<compile_context>
chip_gen: v6e
topology: v6e:2x2x1
jax: 0.10.0
libtpu: 0.0.40
codegen_flags: <defaults>
</compile_context>

<pallas_src>
import jax
import jax.numpy as jnp
from jax.experimental import pallas as pl
from jax.experimental.pallas import tpu as pltpu

# ----------------------------- configuration --------------------------------
NUM_CLASSES = 20
NUM_GROUPS = 8                       # num_of_groups
D_MODEL = 64                         # decoder_embedding (scaled down from 768)
C_IN = 64                            # initial_num_features (scaled down from 2048)
NUM_HEADS = 8                        # PyTorch layer default nhead=8
DIM_FF = 256                         # dim_feedforward (module hardcodes 2048; scaled down)
LN_EPS = 1e-5

EMBED_LEN = NUM_GROUPS if NUM_GROUPS > 0 else 256
EMBED_LEN = min(EMBED_LEN, NUM_CLASSES)                        # 8
DUP_FACTOR = int(NUM_CLASSES / EMBED_LEN + 0.999)              # 3
OUT_PAD = ((max(NUM_CLASSES, EMBED_LEN * DUP_FACTOR) + 127) // 128) * 128   # 128


def _layer_norm(x, g, b):
    mu = jnp.mean(x, axis=-1, keepdims=True)
    var = jnp.mean(jnp.square(x - mu), axis=-1, keepdims=True)
    return (x - mu) * jax.lax.rsqrt(var + LN_EPS) * g + b


# ------------------------------- fused kernel --------------------------------
def fused_mldecoder_kernel(tok_ref, we_ref, be_ref,
                           t1_ref, qk_ref, qbk_ref, wvo_ref, bvo_ref,
                           g2_ref, b2_ref, g3_ref, b3_ref,
                           wf1_ref, bf1_ref, wf2_ref, bf2_ref,
                           wcls_ref, mask_ref, bias_ref,
                           o_ref):
    # One batch element per grid step (batch dim squeezed by the BlockSpec):
    #   tok_ref (S, C) ; we (C, D), be (1, D)
    #   t1  (K, D)   : LN1(2*query)                      (batch-invariant, precomputed)
    #   qk  (H*K, D) : scaled per-head  q_h @ Wk_h^T     (row r = h*K + q)
    #   qbk (H*K, 1) : scaled per-head  q_h . bk_h
    #   wvo (H, D, D): per-head  Wv_h @ Wo_h ; bvo (1, D) = bv @ Wo + bo
    #   wcls (D, 128): GroupFC weights placed at global class columns
    #   mask (K, 128): mask[k, c] = 1 iff class c belongs to group k
    #   bias (1, 128): duplicate_pooling_bias, zero-padded
    K, D = t1_ref.shape
    HK = qk_ref.shape[0]
    NH = HK // K

    # 1) embed_standart Linear + ReLU
    mem = jnp.maximum(
        jnp.dot(tok_ref[...], we_ref[...], preferred_element_type=jnp.float32)
        + be_ref[...], 0.0)                                             # (S, D)

    # 2) cross multi-head attention, "heads as rows" (no head loop, no concat)
    scores = jax.lax.dot_general(qk_ref[...], mem,
                                 (((1,), (1,)), ((), ())),
                                 preferred_element_type=jnp.float32)    # (H*K, S)
    scores = scores + qbk_ref[...]                  # constant-per-row k-bias term
    probs = jax.nn.softmax(scores, axis=-1)         # per-(head, query) softmax
    ctx = jnp.dot(probs, mem, preferred_element_type=jnp.float32)       # (H*K, D)

    # per-head (Wv Wo) projection applied via a single batched dot over heads
    ctx3 = ctx.reshape(NH, K, D)                    # pure leading-dim split
    attn = jax.lax.dot_general(ctx3, wvo_ref[...],
                               (((2,), (1,)), ((0,), (0,))),
                               preferred_element_type=jnp.float32)      # (H, K, D)
    attn = jnp.sum(attn, axis=0) + bvo_ref[...]                         # (K, D)

    t2 = _layer_norm(t1_ref[...] + attn, g2_ref[...], b2_ref[...])      # (K, D)

    # 3) feed-forward + LN3
    ff = jnp.maximum(
        jnp.dot(t2, wf1_ref[...], preferred_element_type=jnp.float32) + bf1_ref[...],
        0.0)
    ff = jnp.dot(ff, wf2_ref[...], preferred_element_type=jnp.float32) + bf2_ref[...]
    h = _layer_norm(t2 + ff, g3_ref[...], b3_ref[...])                  # (K, D)

    # 4) GroupFC + flatten + duplicate_pooling_bias as one lane-dense matmul:
    #    g[k, c] = h[k] . dup_pool[group(c), :, c - group(c)*F]; mask keeps k==group(c).
    g = jnp.dot(h, wcls_ref[...], preferred_element_type=jnp.float32)   # (K, 128)
    o_ref[...] = jnp.sum(g * mask_ref[...], axis=0, keepdims=True) + bias_ref[...]


# --------------------- one-time, batch-invariant folding ---------------------
def prepare_kernel_params(p):
    D, H = D_MODEL, NUM_HEADS
    hd = D // H
    K, F = EMBED_LEN, DUP_FACTOR
    scale = 1.0 / (hd ** 0.5)

    # hoisted query-side work: tgt = tgt + dropout1(tgt) (eval -> 2*tgt), LN1, Wq
    t1 = _layer_norm(p["query"] + p["query"], p["ln1_g"], p["ln1_b"])   # (K, D)
    q = (t1 @ p["wq"] + p["bq"]) * scale                                # (K, D)

    q3 = q.reshape(K, H, hd)
    wk3 = p["wk"].reshape(D, H, hd)
    qk = jnp.einsum("qhd,chd->hqc", q3, wk3).reshape(H * K, D)          # (H*K, D)
    qbk = jnp.einsum("qhd,hd->hq", q3, p["bk"].reshape(H, hd)).reshape(H * K, 1)

    wv3 = p["wv"].reshape(D, H, hd)
    wo3 = p["wo"].reshape(H, hd, D)
    wvo = jnp.einsum("chd,hdf->hcf", wv3, wo3)                          # (H, D, D)
    bvo = p["bv"] @ p["wo"] + p["bo"]                                   # (1, D)

    # GroupFC weights placed at global (flattened) class columns, padded to 128 lanes
    wcls = jnp.zeros((D, OUT_PAD), jnp.float32)
    mask = jnp.zeros((K, OUT_PAD), jnp.float32)
    for k in range(K):
        wcls = wcls.at[:, k * F:(k + 1) * F].set(p["dup_pool"][k])      # (D, F)
        mask = mask.at[k, k * F:(k + 1) * F].set(1.0)
    bias_pad = jnp.zeros((1, OUT_PAD), jnp.float32).at[0, :NUM_CLASSES].set(p["dup_bias"])

    return dict(we=p["embed_w"], be=p["embed_b"],
                t1=t1, qk=qk, qbk=qbk, wvo=wvo, bvo=bvo,
                g2=p["ln2_g"], b2=p["ln2_b"], g3=p["ln3_g"], b3=p["ln3_b"],
                wf1=p["ffn_w1"], bf1=p["ffn_b1"], wf2=p["ffn_w2"], bf2=p["ffn_b2"],
                wcls=wcls, mask=mask, bias=bias_pad)


# ------------------------------ pallas wrapper --------------------------------
@jax.jit
def ml_decoder_forward(x, kp):
    # x: (bs, C, H, W) NCHW, as in PyTorch; flatten(2).transpose(1,2) -> (bs, S, C)
    bs, C, Hh, Ww = x.shape
    S = Hh * Ww
    tokens = jnp.transpose(x.reshape(bs, C, S), (0, 2, 1))              # (bs, S, C)

    params = [kp["we"], kp["be"], kp["t1"], kp["qk"], kp["qbk"], kp["wvo"], kp["bvo"],
              kp["g2"], kp["b2"], kp["g3"], kp["b3"],
              kp["wf1"], kp["bf1"], kp["wf2"], kp["bf2"],
              kp["wcls"], kp["mask"], kp["bias"]]

    in_specs = ([pl.BlockSpec((None, S, C), lambda i: (i, 0, 0))]       # squeezed batch dim
                + [pl.BlockSpec(w.shape, (lambda i, n=w.ndim: (0,) * n)) for w in params])

    out = pl.pallas_call(
        fused_mldecoder_kernel,
        out_shape=jax.ShapeDtypeStruct((bs, 1, OUT_PAD), jnp.float32),  # lane-dense, padded
        grid=(bs,),
        in_specs=in_specs,
        out_specs=pl.BlockSpec((None, 1, OUT_PAD), lambda i: (i, 0, 0)),
        compiler_params=pltpu.CompilerParams(dimension_semantics=("parallel",)),
    )(tokens, *params)

    return out[:, 0, :NUM_CLASSES]                                      # (bs, num_classes)


# ------------------------------ reference (pure JAX) --------------------------
def reference_forward(x, p):
    bs, C, H, W = x.shape
    tokens = jnp.transpose(x.reshape(bs, C, H * W), (0, 2, 1))
    mem = jax.nn.relu(tokens @ p["embed_w"] + p["embed_b"][0])
    K, D = p["query"].shape
    S = mem.shape[1]
    hd = D // NUM_HEADS
    tgt = jnp.broadcast_to(p["query"], (bs, K, D))

    def ln(v, g, b):
        mu = jnp.mean(v, -1, keepdims=True)
        var = jnp.mean(jnp.square(v - mu), -1, keepdims=True)
        return (v - mu) * jax.lax.rsqrt(var + LN_EPS) * g + b

    t = ln(tgt + tgt, p["ln1_g"][0], p["ln1_b"][0])
    q = t @ p["wq"] + p["bq"][0]
    k = mem @ p["wk"] + p["bk"][0]
    v = mem @ p["wv"] + p["bv"][0]
    qh = q.reshape(bs, K, NUM_HEADS, hd).transpose(0, 2, 1, 3)
    kh = k.reshape(bs, S, NUM_HEADS, hd).transpose(0, 2, 1, 3)
    vh = v.reshape(bs, S, NUM_HEADS, hd).transpose(0, 2, 1, 3)
    scores = jnp.einsum("bhqd,bhkd->bhqk", qh, kh) / jnp.sqrt(hd).astype(jnp.float32)
    probs = jax.nn.softmax(scores, -1)
    attn = jnp.einsum("bhqk,bhkd->bhqd", probs, vh).transpose(0, 2, 1, 3).reshape(bs, K, D)
    attn = attn @ p["wo"] + p["bo"][0]
    t = ln(t + attn, p["ln2_g"][0], p["ln2_b"][0])
    ff = jax.nn.relu(t @ p["ffn_w1"] + p["ffn_b1"][0]) @ p["ffn_w2"] + p["ffn_b2"][0]
    h = ln(t + ff, p["ln3_g"][0], p["ln3_b"][0])
    out = jnp.einsum("bkd,kdf->bkf", h, p["dup_pool"])
    return out.reshape(bs, -1)[:, :NUM_CLASSES] + p["dup_bias"]


# ------------------------------ params / main ---------------------------------
def make_params(key):
    ks = jax.random.split(key, 16)
    n = lambda k, shape, s=0.05: (jax.random.normal(k, shape, jnp.float32) * s)
    p = {
        "embed_w": n(ks[0], (C_IN, D_MODEL)),
        "embed_b": n(ks[1], (1, D_MODEL)),
        "query":   n(ks[2], (EMBED_LEN, D_MODEL), 0.5),     # nn.Embedding weight
        "wq": n(ks[3], (D_MODEL, D_MODEL)), "bq": n(ks[4], (1, D_MODEL)),
        "wk": n(ks[5], (D_MODEL, D_MODEL)), "bk": n(ks[6], (1, D_MODEL)),
        "wv": n(ks[7], (D_MODEL, D_MODEL)), "bv": n(ks[8], (1, D_MODEL)),
        "wo": n(ks[9], (D_MODEL, D_MODEL)), "bo": n(ks[10], (1, D_MODEL)),
        "ln1_g": jnp.ones((1, D_MODEL), jnp.float32), "ln1_b": jnp.zeros((1, D_MODEL), jnp.float32),
        "ln2_g": jnp.ones((1, D_MODEL), jnp.float32), "ln2_b": jnp.zeros((1, D_MODEL), jnp.float32),
        "ln3_g": jnp.ones((1, D_MODEL), jnp.float32), "ln3_b": jnp.zeros((1, D_MODEL), jnp.float32),
        "ffn_w1": n(ks[11], (D_MODEL, DIM_FF)), "ffn_b1": n(ks[12], (1, DIM_FF)),
        "ffn_w2": n(ks[13], (DIM_FF, D_MODEL)), "ffn_b2": n(ks[14], (1, D_MODEL)),
        "dup_pool": n(ks[15], (EMBED_LEN, D_MODEL, DUP_FACTOR), 0.1),   # xavier_normal-ish
        "dup_bias": jnp.zeros((NUM_CLASSES,), jnp.float32),             # init constant 0
    }
    return p


if __name__ == "__main__":
    # full-f32 matmuls everywhere so the folded-weight kernel and the plain-JAX
    # reference agree to tight tolerance
    jax.config.update("jax_default_matmul_precision", "highest")

    key = jax.random.PRNGKey(0)
    kx, kparam = jax.random.split(key)
    bs, H, W = 2, 4, 4
    x = jax.random.normal(kx, (bs, C_IN, H, W), jnp.float32)   # NCHW feature map
    params = make_params(kparam)

    kernel_params = prepare_kernel_params(params)              # one-time folding
    logits = ml_decoder_forward(x, kernel_params)
    jax.block_until_ready(logits)

    ref = reference_forward(x, params)
    assert logits.shape == (bs, NUM_CLASSES), logits.shape
    err = float(jnp.max(jnp.abs(logits - ref)))
    assert err < 1e-3, err

    print("KERNEL_OK")
</pallas_src>

<mosaic_0001>
module attributes {stable_mosaic.version = 11 : i64} {
  func.func @fused_mldecoder_kernel(%arg0: i32, %arg1: memref<1x16x64xf32, #tpu.memory_space<vmem>>, %arg2: memref<64x64xf32, #tpu.memory_space<vmem>>, %arg3: memref<1x64xf32, #tpu.memory_space<vmem>>, %arg4: memref<8x64xf32, #tpu.memory_space<vmem>>, %arg5: memref<64x64xf32, #tpu.memory_space<vmem>>, %arg6: memref<64x1xf32, #tpu.memory_space<vmem>>, %arg7: memref<8x64x64xf32, #tpu.memory_space<vmem>>, %arg8: memref<1x64xf32, #tpu.memory_space<vmem>>, %arg9: memref<1x64xf32, #tpu.memory_space<vmem>>, %arg10: memref<1x64xf32, #tpu.memory_space<vmem>>, %arg11: memref<1x64xf32, #tpu.memory_space<vmem>>, %arg12: memref<1x64xf32, #tpu.memory_space<vmem>>, %arg13: memref<64x256xf32, #tpu.memory_space<vmem>>, %arg14: memref<1x256xf32, #tpu.memory_space<vmem>>, %arg15: memref<256x64xf32, #tpu.memory_space<vmem>>, %arg16: memref<1x64xf32, #tpu.memory_space<vmem>>, %arg17: memref<64x128xf32, #tpu.memory_space<vmem>>, %arg18: memref<8x128xf32, #tpu.memory_space<vmem>>, %arg19: memref<1x128xf32, #tpu.memory_space<vmem>>, %arg20: memref<1x1x128xf32, #tpu.memory_space<vmem>>) attributes {dimension_semantics = [#tpu.dimension_semantics<parallel>], iteration_bounds = array<i64: 2>, scalar_prefetch = 0 : i64, scratch_operands = 0 : i64, tpu.core_type = #tpu.core_type<tc>, window_params = [{transform_indices = @transform_0, window_bounds = array<i64: 1, 16, 64>}, {pipeline_mode = #tpu.pipeline_mode<synchronous>, transform_indices = @transform_1, window_bounds = array<i64: 64, 64>}, {pipeline_mode = #tpu.pipeline_mode<synchronous>, transform_indices = @transform_2, window_bounds = array<i64: 1, 64>}, {pipeline_mode = #tpu.pipeline_mode<synchronous>, transform_indices = @transform_3, window_bounds = array<i64: 8, 64>}, {pipeline_mode = #tpu.pipeline_mode<synchronous>, transform_indices = @transform_4, window_bounds = array<i64: 64, 64>}, {pipeline_mode = #tpu.pipeline_mode<synchronous>, transform_indices = @transform_5, window_bounds = array<i64: 64, 1>}, {pipeline_mode = #tpu.pipeline_mode<synchronous>, transform_indices = @transform_6, window_bounds = array<i64: 8, 64, 64>}, {pipeline_mode = #tpu.pipeline_mode<synchronous>, transform_indices = @transform_7, window_bounds = array<i64: 1, 64>}, {pipeline_mode = #tpu.pipeline_mode<synchronous>, transform_indices = @transform_8, window_bounds = array<i64: 1, 64>}, {pipeline_mode = #tpu.pipeline_mode<synchronous>, transform_indices = @transform_9, window_bounds = array<i64: 1, 64>}, {pipeline_mode = #tpu.pipeline_mode<synchronous>, transform_indices = @transform_10, window_bounds = array<i64: 1, 64>}, {pipeline_mode = #tpu.pipeline_mode<synchronous>, transform_indices = @transform_11, window_bounds = array<i64: 1, 64>}, {pipeline_mode = #tpu.pipeline_mode<synchronous>, transform_indices = @transform_12, window_bounds = array<i64: 64, 256>}, {pipeline_mode = #tpu.pipeline_mode<synchronous>, transform_indices = @transform_13, window_bounds = array<i64: 1, 256>}, {pipeline_mode = #tpu.pipeline_mode<synchronous>, transform_indices = @transform_14, window_bounds = array<i64: 256, 64>}, {pipeline_mode = #tpu.pipeline_mode<synchronous>, transform_indices = @transform_15, window_bounds = array<i64: 1, 64>}, {pipeline_mode = #tpu.pipeline_mode<synchronous>, transform_indices = @transform_16, window_bounds = array<i64: 64, 128>}, {pipeline_mode = #tpu.pipeline_mode<synchronous>, transform_indices = @transform_17, window_bounds = array<i64: 8, 128>}, {pipeline_mode = #tpu.pipeline_mode<synchronous>, transform_indices = @transform_18, window_bounds = array<i64: 1, 128>}, {transform_indices = @transform_19, window_bounds = array<i64: 1, 1, 128>}]} {
    %c0 = arith.constant 0 : index
    %c0_0 = arith.constant 0 : index
    %c0_1 = arith.constant 0 : index
    %0 = vector.load %arg1[%c0, %c0_0, %c0_1] : memref<1x16x64xf32, #tpu.memory_space<vmem>>, vector<1x16x64xf32>
    %1 = vector.shape_cast %0 : vector<1x16x64xf32> to vector<16x64xf32>
    %c0_2 = arith.constant 0 : index
    %c0_3 = arith.constant 0 : index
    %2 = vector.load %arg2[%c0_2, %c0_3] : memref<64x64xf32, #tpu.memory_space<vmem>>, vector<64x64xf32>
    %cst = arith.constant dense<0.000000e+00> : vector<16x64xf32>
    %3 = tpu.matmul %1, %2, %cst {dimension_numbers = #tpu.dot_dimension_numbers<[1], [0], [0], [1], [0, 0, 1, 1], [], []>, precision = #tpu.contract_precision<fp32>} : vector<16x64xf32>, vector<64x64xf32>, vector<16x64xf32> -> vector<16x64xf32>
    %c0_4 = arith.constant 0 : index
    %c0_5 = arith.constant 0 : index
    %4 = vector.load %arg3[%c0_4, %c0_5] : memref<1x64xf32, #tpu.memory_space<vmem>>, vector<1x64xf32>
    %5 = vector.broadcast %4 : vector<1x64xf32> to vector<16x64xf32>
    %6 = arith.addf %3, %5 : vector<16x64xf32>
    %cst_6 = arith.constant 0.000000e+00 : f32
    %7 = vector.broadcast %cst_6 : f32 to vector<16x64xf32>
    %8 = arith.maximumf %6, %7 : vector<16x64xf32>
    %c0_7 = arith.constant 0 : index
    %c0_8 = arith.constant 0 : index
    %9 = vector.load %arg5[%c0_7, %c0_8] : memref<64x64xf32, #tpu.memory_space<vmem>>, vector<64x64xf32>
    %cst_9 = arith.constant dense<0.000000e+00> : vector<64x16xf32>
    %10 = tpu.matmul %9, %8, %cst_9 {dimension_numbers = #tpu.dot_dimension_numbers<[1], [1], [0], [0], [0, 0, 1, 0], [], []>, precision = #tpu.contract_precision<fp32>} : vector<64x64xf32>, vector<16x64xf32>, vector<64x16xf32> -> vector<64x16xf32>
    %c0_10 = arith.constant 0 : index
    %c0_11 = arith.constant 0 : index
    %11 = vector.load %arg6[%c0_10, %c0_11] : memref<64x1xf32, #tpu.memory_space<vmem>>, vector<64x1xf32>
    %12 = vector.broadcast %11 : vector<64x1xf32> to vector<64x16xf32>
    %13 = arith.addf %10, %12 : vector<64x16xf32>
    %cst_12 = arith.constant dense<0xFF800000> : vector<64xf32>
    %14 = vector.multi_reduction <maximumf>, %13, %cst_12 [1] : vector<64x16xf32> to vector<64xf32>
    %cst_13 = arith.constant 0xFF800000 : f32
    %15 = vector.broadcast %cst_13 : f32 to vector<64xf32>
    %16 = arith.maximumf %15, %14 : vector<64xf32>
    %17 = vector.shape_cast %16 : vector<64xf32> to vector<64x1xf32>
    %18 = vector.broadcast %17 : vector<64x1xf32> to vector<64x16xf32>
    %19 = arith.subf %13, %18 : vector<64x16xf32>
    %20 = math.exp %19 : vector<64x16xf32>
    %cst_14 = arith.constant dense<0.000000e+00> : vector<64xf32>
    %21 = vector.multi_reduction <add>, %20, %cst_14 [1] : vector<64x16xf32> to vector<64xf32>
    %22 = vector.shape_cast %21 : vector<64xf32> to vector<64x1xf32>
    %23 = vector.broadcast %22 : vector<64x1xf32> to vector<64x16xf32>
    %24 = arith.divf %20, %23 : vector<64x16xf32>
    %cst_15 = arith.constant dense<0.000000e+00> : vector<64x64xf32>
    %25 = tpu.matmul %24, %8, %cst_15 {dimension_numbers = #tpu.dot_dimension_numbers<[1], [0], [0], [1], [0, 0, 1, 1], [], []>, precision = #tpu.contract_precision<fp32>} : vector<64x16xf32>, vector<16x64xf32>, vector<64x64xf32> -> vector<64x64xf32>
    %26 = vector.shape_cast %25 : vector<64x64xf32> to vector<8x8x64xf32>
    %c0_16 = arith.constant 0 : index
    %c0_17 = arith.constant 0 : index
    %c0_18 = arith.constant 0 : index
    %27 = vector.load %arg7[%c0_16, %c0_17, %c0_18] : memref<8x64x64xf32, #tpu.memory_space<vmem>>, vector<8x64x64xf32>
    %cst_19 = arith.constant dense<0.000000e+00> : vector<8x8x64xf32>
    %28 = tpu.matmul %26, %27, %cst_19 {dimension_numbers = #tpu.dot_dimension_numbers<[2], [1], [1], [2], [0, 0, 0, 1, 1, 2], [0], [0]>, precision = #tpu.contract_precision<fp32>} : vector<8x8x64xf32>, vector<8x64x64xf32>, vector<8x8x64xf32> -> vector<8x8x64xf32>
    %cst_20 = arith.constant dense<0.000000e+00> : vector<8x64xf32>
    %29 = vector.multi_reduction <add>, %28, %cst_20 [0] : vector<8x8x64xf32> to vector<8x64xf32>
    %c0_21 = arith.constant 0 : index
    %c0_22 = arith.constant 0 : index
    %30 = vector.load %arg8[%c0_21, %c0_22] : memref<1x64xf32, #tpu.memory_space<vmem>>, vector<1x64xf32>
    %31 = vector.broadcast %30 : vector<1x64xf32> to vector<8x64xf32>
    %32 = arith.addf %29, %31 : vector<8x64xf32>
    %c0_23 = arith.constant 0 : index
    %c0_24 = arith.constant 0 : index
    %33 = vector.load %arg4[%c0_23, %c0_24] : memref<8x64xf32, #tpu.memory_space<vmem>>, vector<8x64xf32>
    %34 = arith.addf %33, %32 : vector<8x64xf32>
    %c0_25 = arith.constant 0 : index
    %c0_26 = arith.constant 0 : index
    %35 = vector.load %arg9[%c0_25, %c0_26] : memref<1x64xf32, #tpu.memory_space<vmem>>, vector<1x64xf32>
    %c0_27 = arith.constant 0 : index
    %c0_28 = arith.constant 0 : index
    %36 = vector.load %arg10[%c0_27, %c0_28] : memref<1x64xf32, #tpu.memory_space<vmem>>, vector<1x64xf32>
    %cst_29 = arith.constant dense<0.000000e+00> : vector<8xf32>
    %37 = vector.multi_reduction <add>, %34, %cst_29 [1] : vector<8x64xf32> to vector<8xf32>
    %38 = vector.shape_cast %37 : vector<8xf32> to vector<8x1xf32>
    %cst_30 = arith.constant 6.400000e+01 : f32
    %39 = vector.broadcast %cst_30 : f32 to vector<8x1xf32>
    %40 = arith.divf %38, %39 : vector<8x1xf32>
    %41 = vector.broadcast %40 : vector<8x1xf32> to vector<8x64xf32>
    %42 = arith.subf %34, %41 : vector<8x64xf32>
    %43 = arith.mulf %42, %42 : vector<8x64xf32>
    %cst_31 = arith.constant dense<0.000000e+00> : vector<8xf32>
    %44 = vector.multi_reduction <add>, %43, %cst_31 [1] : vector<8x64xf32> to vector<8xf32>
    %45 = vector.shape_cast %44 : vector<8xf32> to vector<8x1xf32>
    %cst_32 = arith.constant 6.400000e+01 : f32
    %46 = vector.broadcast %cst_32 : f32 to vector<8x1xf32>
    %47 = arith.divf %45, %46 : vector<8x1xf32>
    %48 = vector.broadcast %40 : vector<8x1xf32> to vector<8x64xf32>
    %49 = arith.subf %34, %48 : vector<8x64xf32>
    %cst_33 = arith.constant 9.99999974E-6 : f32
    %50 = vector.broadcast %cst_33 : f32 to vector<8x1xf32>
    %51 = arith.addf %47, %50 : vector<8x1xf32>
    %52 = math.rsqrt %51 : vector<8x1xf32>
    %53 = vector.broadcast %52 : vector<8x1xf32> to vector<8x64xf32>
    %54 = arith.mulf %49, %53 : vector<8x64xf32>
    %55 = vector.broadcast %35 : vector<1x64xf32> to vector<8x64xf32>
    %56 = arith.mulf %54, %55 : vector<8x64xf32>
    %57 = vector.broadcast %36 : vector<1x64xf32> to vector<8x64xf32>
    %58 = arith.addf %56, %57 : vector<8x64xf32>
    %c0_34 = arith.constant 0 : index
    %c0_35 = arith.constant 0 : index
    %59 = vector.load %arg13[%c0_34, %c0_35] : memref<64x256xf32, #tpu.memory_space<vmem>>, vector<64x256xf32>
    %cst_36 = arith.constant dense<0.000000e+00> : vector<8x256xf32>
    %60 = tpu.matmul %58, %59, %cst_36 {dimension_numbers = #tpu.dot_dimension_numbers<[1], [0], [0], [1], [0, 0, 1, 1], [], []>, precision = #tpu.contract_precision<fp32>} : vector<8x64xf32>, vector<64x256xf32>, vector<8x256xf32> -> vector<8x256xf32>
    %c0_37 = arith.constant 0 : index
    %c0_38 = arith.constant 0 : index
    %61 = vector.load %arg14[%c0_37, %c0_38] : memref<1x256xf32, #tpu.memory_space<vmem>>, vector<1x256xf32>
    %62 = vector.broadcast %61 : vector<1x256xf32> to vector<8x256xf32>
    %63 = arith.addf %60, %62 : vector<8x256xf32>
    %cst_39 = arith.constant 0.000000e+00 : f32
    %64 = vector.broadcast %cst_39 : f32 to vector<8x256xf32>
    %65 = arith.maximumf %63, %64 : vector<8x256xf32>
    %c0_40 = arith.constant 0 : index
    %c0_41 = arith.constant 0 : index
    %66 = vector.load %arg15[%c0_40, %c0_41] : memref<256x64xf32, #tpu.memory_space<vmem>>, vector<256x64xf32>
    %cst_42 = arith.constant dense<0.000000e+00> : vector<8x64xf32>
    %67 = tpu.matmul %65, %66, %cst_42 {dimension_numbers = #tpu.dot_dimension_numbers<[1], [0], [0], [1], [0, 0, 1, 1], [], []>, precision = #tpu.contract_precision<fp32>} : vector<8x256xf32>, vector<256x64xf32>, vector<8x64xf32> -> vector<8x64xf32>
    %c0_43 = arith.constant 0 : index
    %c0_44 = arith.constant 0 : index
    %68 = vector.load %arg16[%c0_43, %c0_44] : memref<1x64xf32, #tpu.memory_space<vmem>>, vector<1x64xf32>
    %69 = vector.broadcast %68 : vector<1x64xf32> to vector<8x64xf32>
    %70 = arith.addf %67, %69 : vector<8x64xf32>
    %71 = arith.addf %58, %70 : vector<8x64xf32>
    %c0_45 = arith.constant 0 : index
    %c0_46 = arith.constant 0 : index
    %72 = vector.load %arg11[%c0_45, %c0_46] : memref<1x64xf32, #tpu.memory_space<vmem>>, vector<1x64xf32>
    %c0_47 = arith.constant 0 : index
    %c0_48 = arith.constant 0 : index
    %73 = vector.load %arg12[%c0_47, %c0_48] : memref<1x64xf32, #tpu.memory_space<vmem>>, vector<1x64xf32>
    %cst_49 = arith.constant dense<0.000000e+00> : vector<8xf32>
    %74 = vector.multi_reduction <add>, %71, %cst_49 [1] : vector<8x64xf32> to vector<8xf32>
    %75 = vector.shape_cast %74 : vector<8xf32> to vector<8x1xf32>
    %cst_50 = arith.constant 6.400000e+01 : f32
    %76 = vector.broadcast %cst_50 : f32 to vector<8x1xf32>
    %77 = arith.divf %75, %76 : vector<8x1xf32>
    %78 = vector.broadcast %77 : vector<8x1xf32> to vector<8x64xf32>
    %79 = arith.subf %71, %78 : vector<8x64xf32>
    %80 = arith.mulf %79, %79 : vector<8x64xf32>
    %cst_51 = arith.constant dense<0.000000e+00> : vector<8xf32>
    %81 = vector.multi_reduction <add>, %80, %cst_51 [1] : vector<8x64xf32> to vector<8xf32>
    %82 = vector.shape_cast %81 : vector<8xf32> to vector<8x1xf32>
    %cst_52 = arith.constant 6.400000e+01 : f32
    %83 = vector.broadcast %cst_52 : f32 to vector<8x1xf32>
    %84 = arith.divf %82, %83 : vector<8x1xf32>
    %85 = vector.broadcast %77 : vector<8x1xf32> to vector<8x64xf32>
    %86 = arith.subf %71, %85 : vector<8x64xf32>
    %cst_53 = arith.constant 9.99999974E-6 : f32
    %87 = vector.broadcast %cst_53 : f32 to vector<8x1xf32>
    %88 = arith.addf %84, %87 : vector<8x1xf32>
    %89 = math.rsqrt %88 : vector<8x1xf32>
    %90 = vector.broadcast %89 : vector<8x1xf32> to vector<8x64xf32>
    %91 = arith.mulf %86, %90 : vector<8x64xf32>
    %92 = vector.broadcast %72 : vector<1x64xf32> to vector<8x64xf32>
    %93 = arith.mulf %91, %92 : vector<8x64xf32>
    %94 = vector.broadcast %73 : vector<1x64xf32> to vector<8x64xf32>
    %95 = arith.addf %93, %94 : vector<8x64xf32>
    %c0_54 = arith.constant 0 : index
    %c0_55 = arith.constant 0 : index
    %96 = vector.load %arg17[%c0_54, %c0_55] : memref<64x128xf32, #tpu.memory_space<vmem>>, vector<64x128xf32>
    %cst_56 = arith.constant dense<0.000000e+00> : vector<8x128xf32>
    %97 = tpu.matmul %95, %96, %cst_56 {dimension_numbers = #tpu.dot_dimension_numbers<[1], [0], [0], [1], [0, 0, 1, 1], [], []>, precision = #tpu.contract_precision<fp32>} : vector<8x64xf32>, vector<64x128xf32>, vector<8x128xf32> -> vector<8x128xf32>
    %c0_57 = arith.constant 0 : index
    %c0_58 = arith.constant 0 : index
    %98 = vector.load %arg18[%c0_57, %c0_58] : memref<8x128xf32, #tpu.memory_space<vmem>>, vector<8x128xf32>
    %99 = arith.mulf %97, %98 : vector<8x128xf32>
    %cst_59 = arith.constant dense<0.000000e+00> : vector<128xf32>
    %100 = vector.multi_reduction <add>, %99, %cst_59 [0] : vector<8x128xf32> to vector<128xf32>
    %101 = vector.shape_cast %100 : vector<128xf32> to vector<1x128xf32>
    %c0_60 = arith.constant 0 : index
    %c0_61 = arith.constant 0 : index
    %102 = vector.load %arg19[%c0_60, %c0_61] : memref<1x128xf32, #tpu.memory_space<vmem>>, vector<1x128xf32>
    %103 = arith.addf %101, %102 : vector<1x128xf32>
    %c0_62 = arith.constant 0 : index
    %c0_63 = arith.constant 0 : index
    %c0_64 = arith.constant 0 : index
    %104 = vector.load %arg20[%c0_62, %c0_63, %c0_64] : memref<1x1x128xf32, #tpu.memory_space<vmem>>, vector<1x1x128xf32>
    %105 = vector.shape_cast %104 : vector<1x1x128xf32> to vector<1x128xf32>
    %106 = vector.shape_cast %103 : vector<1x128xf32> to vector<1x1x128xf32>
    tpu.vector_store %arg20[%c0_62, %c0_63, %c0_64], %106 {strides = array<i32>} : memref<1x1x128xf32, #tpu.memory_space<vmem>>, vector<1x1x128xf32>,
    return
  }
  func.func @transform_0(%arg0: i32) -> (i32, i32, i32) {
    %c0_i32 = arith.constant 0 : i32
    %c0_i32_0 = arith.constant 0 : i32
    %c0_i32_1 = arith.constant 0 : i32
    return %arg0, %c0_i32, %c0_i32_0 : i32, i32, i32
  }
  func.func @transform_1(%arg0: i32) -> (i32, i32) {
    %c0_i32 = arith.constant 0 : i32
    %c0_i32_0 = arith.constant 0 : i32
    %c0_i32_1 = arith.constant 0 : i32
    return %c0_i32, %c0_i32_0 : i32, i32
  }
  func.func @transform_2(%arg0: i32) -> (i32, i32) {
    %c0_i32 = arith.constant 0 : i32
    %c0_i32_0 = arith.constant 0 : i32
    %c0_i32_1 = arith.constant 0 : i32
    return %c0_i32, %c0_i32_0 : i32, i32
  }
  func.func @transform_3(%arg0: i32) -> (i32, i32) {
    %c0_i32 = arith.constant 0 : i32
    %c0_i32_0 = arith.constant 0 : i32
    %c0_i32_1 = arith.constant 0 : i32
    return %c0_i32, %c0_i32_0 : i32, i32
  }
  func.func @transform_4(%arg0: i32) -> (i32, i32) {
    %c0_i32 = arith.constant 0 : i32
    %c0_i32_0 = arith.constant 0 : i32
    %c0_i32_1 = arith.constant 0 : i32
    return %c0_i32, %c0_i32_0 : i32, i32
  }
  func.func @transform_5(%arg0: i32) -> (i32, i32) {
    %c0_i32 = arith.constant 0 : i32
    %c0_i32_0 = arith.constant 0 : i32
    %c0_i32_1 = arith.constant 0 : i32
    return %c0_i32, %c0_i32_0 : i32, i32
  }
  func.func @transform_6(%arg0: i32) -> (i32, i32, i32) {
    %c0_i32 = arith.constant 0 : i32
    %c0_i32_0 = arith.constant 0 : i32
    %c0_i32_1 = arith.constant 0 : i32
    %c0_i32_2 = arith.constant 0 : i32
    return %c0_i32, %c0_i32_0, %c0_i32_1 : i32, i32, i32
  }
  func.func @transform_7(%arg0: i32) -> (i32, i32) {
    %c0_i32 = arith.constant 0 : i32
    %c0_i32_0 = arith.constant 0 : i32
    %c0_i32_1 = arith.constant 0 : i32
    return %c0_i32, %c0_i32_0 : i32, i32
  }
  func.func @transform_8(%arg0: i32) -> (i32, i32) {
    %c0_i32 = arith.constant 0 : i32
    %c0_i32_0 = arith.constant 0 : i32
    %c0_i32_1 = arith.constant 0 : i32
    return %c0_i32, %c0_i32_0 : i32, i32
  }
  func.func @transform_9(%arg0: i32) -> (i32, i32) {
    %c0_i32 = arith.constant 0 : i32
    %c0_i32_0 = arith.constant 0 : i32
    %c0_i32_1 = arith.constant 0 : i32
    return %c0_i32, %c0_i32_0 : i32, i32
  }
  func.func @transform_10(%arg0: i32) -> (i32, i32) {
    %c0_i32 = arith.constant 0 : i32
    %c0_i32_0 = arith.constant 0 : i32
    %c0_i32_1 = arith.constant 0 : i32
    return %c0_i32, %c0_i32_0 : i32, i32
  }
  func.func @transform_11(%arg0: i32) -> (i32, i32) {
    %c0_i32 = arith.constant 0 : i32
    %c0_i32_0 = arith.constant 0 : i32
    %c0_i32_1 = arith.constant 0 : i32
    return %c0_i32, %c0_i32_0 : i32, i32
  }
  func.func @transform_12(%arg0: i32) -> (i32, i32) {
    %c0_i32 = arith.constant 0 : i32
    %c0_i32_0 = arith.constant 0 : i32
    %c0_i32_1 = arith.constant 0 : i32
    return %c0_i32, %c0_i32_0 : i32, i32
  }
  func.func @transform_13(%arg0: i32) -> (i32, i32) {
    %c0_i32 = arith.constant 0 : i32
    %c0_i32_0 = arith.constant 0 : i32
    %c0_i32_1 = arith.constant 0 : i32
    return %c0_i32, %c0_i32_0 : i32, i32
  }
  func.func @transform_14(%arg0: i32) -> (i32, i32) {
    %c0_i32 = arith.constant 0 : i32
    %c0_i32_0 = arith.constant 0 : i32
    %c0_i32_1 = arith.constant 0 : i32
    return %c0_i32, %c0_i32_0 : i32, i32
  }
  func.func @transform_15(%arg0: i32) -> (i32, i32) {
    %c0_i32 = arith.constant 0 : i32
    %c0_i32_0 = arith.constant 0 : i32
    %c0_i32_1 = arith.constant 0 : i32
    return %c0_i32, %c0_i32_0 : i32, i32
  }
  func.func @transform_16(%arg0: i32) -> (i32, i32) {
    %c0_i32 = arith.constant 0 : i32
    %c0_i32_0 = arith.constant 0 : i32
    %c0_i32_1 = arith.constant 0 : i32
    return %c0_i32, %c0_i32_0 : i32, i32
  }
  func.func @transform_17(%arg0: i32) -> (i32, i32) {
    %c0_i32 = arith.constant 0 : i32
    %c0_i32_0 = arith.constant 0 : i32
    %c0_i32_1 = arith.constant 0 : i32
    return %c0_i32, %c0_i32_0 : i32, i32
  }
  func.func @transform_18(%arg0: i32) -> (i32, i32) {
    %c0_i32 = arith.constant 0 : i32
    %c0_i32_0 = arith.constant 0 : i32
    %c0_i32_1 = arith.constant 0 : i32
    return %c0_i32, %c0_i32_0 : i32, i32
  }
  func.func @transform_19(%arg0: i32) -> (i32, i32, i32) {
    %c0_i32 = arith.constant 0 : i32
    %c0_i32_0 = arith.constant 0 : i32
    %c0_i32_1 = arith.constant 0 : i32
    return %arg0, %c0_i32, %c0_i32_0 : i32, i32, i32
  }
}

</mosaic_0001>

<llo_original>
// kernel: ml_decoder_forward.1
$region0: #{ml_decoder_forward.1}
  #allocation0 [shape = 'u32[]', space=smem, size = 0x4, offset = 0x4, fixed_abs, tag = 'smem constant byte address 0x4 - core index']
  #allocation1 [shape = 'u32[144,128]{1,0:T(1,128)}', space=vmem, size = 0x12000, scoped, tag = 'internal scratch']
  %s0 = inlined_call_operand.vmem [shape: f32[2,16,64], index: 0, kind: input, shape index: {}]
  %s1 = inlined_call_operand.vmem [shape: f32[64,64], index: 1, kind: input, shape index: {}]
  %s2 = inlined_call_operand.vmem [shape: f32[1,64], index: 2, kind: input, shape index: {}]
  %s3 = inlined_call_operand.vmem [shape: f32[8,64], index: 3, kind: input, shape index: {}]
  %s4 = inlined_call_operand.vmem [shape: f32[64,64], index: 4, kind: input, shape index: {}]
  %s5 = inlined_call_operand.vmem [shape: f32[64,1], index: 5, kind: input, shape index: {}]
  %s6 = inlined_call_operand.hbm [shape: f32[8,64,64], index: 6, kind: input, shape index: {}]
  %s7 = inlined_call_operand.vmem [shape: f32[1,64], index: 7, kind: input, shape index: {}]
  %s8 = inlined_call_operand.vmem [shape: f32[1,64], index: 8, kind: input, shape index: {}]
  %s9 = inlined_call_operand.vmem [shape: f32[1,64], index: 9, kind: input, shape index: {}]
  %s10 = inlined_call_operand.vmem [shape: f32[1,64], index: 10, kind: input, shape index: {}]
  %s11 = inlined_call_operand.vmem [shape: f32[1,64], index: 11, kind: input, shape index: {}]
  %s12 = inlined_call_operand.vmem [shape: f32[64,256], index: 12, kind: input, shape index: {}]
  %s13 = inlined_call_operand.vmem [shape: f32[1,256], index: 13, kind: input, shape index: {}]
  %s14 = inlined_call_operand.vmem [shape: f32[256,64], index: 14, kind: input, shape index: {}]
  %s15 = inlined_call_operand.vmem [shape: f32[1,64], index: 15, kind: input, shape index: {}]
  %s16 = inlined_call_operand.vmem [shape: f32[64,128], index: 16, kind: input, shape index: {}]
  %s17 = inlined_call_operand.vmem [shape: f32[8,128], index: 17, kind: input, shape index: {}]
  %s18 = inlined_call_operand.vmem [shape: f32[1,128], index: 18, kind: input, shape index: {}]
  %s19 = inlined_call_operand.hbm [shape: f32[2,1,128], index: 19, kind: output, shape index: {}]
  %s20 = sld [smem:[#allocation0]]
  $region113: #{ml_decoder_forward.1} parent=0
    _
  %s22 = ssub.s32 1, %s20
  %s23 = scalar_select 0, %s22, %s20
  $region1: #{ml_decoder_forward.1} parent=0
    #allocation2 [shape = 'u8[262144]{0}', space=vmem, size = 0x40000, scoped, tag = 'input window, operand 6, single buffered']
    #allocation3 [shape = 's32[2]{0}', space=sflag, size = 0x8, scoped, tag = 'scoped memory for ml_decoder_forward.1']
    #allocation4 [shape = 's32[2]{0}', space=sflag, size = 0x8, scoped, tag = 'scoped memory for ml_decoder_forward.1']
    #allocation5 [shape = 'u8[1024]{0}', space=vmem, size = 0x400, scoped, tag = 'output window, operand 0']
    %24 = vsyncpa [#allocation3], 0
    %25 = vsyncpa [#allocation4], 0
    %s26 = scalar_lea.sflag [#allocation4], 1
    %27 = vsyncpa %s26, 0
    loop: start=0, step=1, limit=4
    $region2: #{ml_decoder_forward.1} parent=1 // loop_pre_header
      _
    $region3: #{ml_decoder_forward.1} parent=1 // loop_header
      %s29 = sphi 0, %s33
      %p30 = scmp.ge.s32.totalorder %s29, 4
      %s39 = sphi 0, %s41
      %s42 = sphi 0, %s39
      %s43 = sphi 0, %s42
      %s59 = sphi 0, %s43
      %s63 = sphi 0, %s63
      %s65 = sphi 0, %s63
      %s66 = sphi 0, %s65
      %s80 = sphi 0, %s66
      %s84 = sphi 0, %s84
      %s86 = sphi 0, %s84
      %s87 = sphi 0, %s86
      %s101 = sphi 0, %s87
      %s105 = sphi 0, %s105
      %s107 = sphi 0, %s105
      %s108 = sphi 0, %s107
      %s122 = sphi 0, %s108
      %s126 = sphi 0, %s126
      %s128 = sphi 0, %s126
      %s129 = sphi 0, %s128
      %s143 = sphi 0, %s129
      %s147 = sphi 0, %s147
      %s149 = sphi 0, %s147
      %s150 = sphi 0, %s149
      %s164 = sphi 0, %s150
      %s168 = sphi 0, %s168
      %s170 = sphi 0, %s168
      %s171 = sphi 0, %s170
      %s185 = sphi 0, %s171
      %s189 = sphi 0, %s189
      %s191 = sphi 0, %s189
      %s192 = sphi 0, %s191
      %s206 = sphi 0, %s192
      %s210 = sphi 0, %s210
      %s212 = sphi 0, %s210
      %s213 = sphi 0, %s212
      %s227 = sphi 0, %s213
      %s231 = sphi 0, %s231
      %s233 = sphi 0, %s231
      %s234 = sphi 0, %s233
      %s248 = sphi 0, %s234
      %s252 = sphi 0, %s252
      %s254 = sphi 0, %s252
      %s255 = sphi 0, %s254
      %s269 = sphi 0, %s255
      %s273 = sphi 0, %s273
      %s275 = sphi 0, %s273
      %s276 = sphi 0, %s275
      %s290 = sphi 0, %s276
      %s294 = sphi 0, %s294
      %s296 = sphi 0, %s294
      %s297 = sphi 0, %s296
      %s311 = sphi 0, %s297
      %s315 = sphi 0, %s315
      %s317 = sphi 0, %s315
      %s318 = sphi 0, %s317
      %s332 = sphi 0, %s318
      %s336 = sphi 0, %s336
      %s338 = sphi 0, %s336
      %s339 = sphi 0, %s338
      %s353 = sphi 0, %s339
      %s357 = sphi 0, %s357
      %s359 = sphi 0, %s357
      %s360 = sphi 0, %s359
      %s374 = sphi 0, %s360
      %s378 = sphi 0, %s378
      %s380 = sphi 0, %s378
      %s381 = sphi 0, %s380
      %s395 = sphi 0, %s381
      %s399 = sphi 0, %s399
      %s401 = sphi 0, %s399
      %s402 = sphi 0, %s401
      %s416 = sphi 0, %s402
      %s420 = sphi 0, %s420
      %s422 = sphi 0, %s420
      %s423 = sphi 0, %s422
      %s437 = sphi 0, %s423
      %s443 = sphi 0, %s445
      %s446 = sphi 0, %s443
      %s447 = sphi 0, %s446
      %s463 = sphi 0, %s447
    $region4: #{ml_decoder_forward.1} parent=1 // loop_header_branch
      %32 = sbr.rel (%p30) target = $region8
    $region5: #{ml_decoder_forward.1} parent=1 // loop_body
      %s34 = ssub.s32 %s29, 1
      %s35 = ssub.s32 %s29, 2
      %s36 = sadd.s32 %s29, 1
      %s37 = ssub.s32 %s29, %s36
      %p38 = scmp.eq.s32.totalorder %s37, 0
      %s40 = sadd.s32 %s39, 1
      %s41 = scalar_select %p38, %s39, %s40
      %p44 = pneg %p38
      %p45 = scmp.eq.s32.totalorder %s29, 1
      %p46 = por %p44, %p45
      %p47 = scmp.ne.s32.totalorder %s39, %s42
      %p48 = scmp.eq.s32.totalorder %s29, 0
      %p49 = por %p47, %p48
      %p50 = scmp.ne.s32.totalorder %s39, %s42
      %p51 = scmp.eq.s32.totalorder %s34, 1
      %p52 = por %p50, %p51
      %p53 = scmp.ne.s32.totalorder %s42, %s43
      %p54 = scmp.eq.s32.totalorder %s34, 0
      %p55 = por %p53, %p54
      %p56 = scmp.ne.s32.totalorder %s42, %s43
      %p57 = scmp.eq.s32.totalorder %s35, 1
      %p58 = por %p56, %p57
      %p60 = scmp.ne.s32.totalorder %s43, %s59
      %p61 = scmp.eq.s32.totalorder %s35, 0
      %p62 = por %p60, %p61
      %s64 = sadd.s32 %s63, 1
      %p67 = scmp.eq.s32.totalorder %s29, 1
      %p68 = scmp.ne.s32.totalorder %s63, %s65
      %p69 = scmp.eq.s32.totalorder %s29, 0
      %p70 = por %p68, %p69
      %p71 = scmp.ne.s32.totalorder %s63, %s65
      %p72 = scmp.eq.s32.totalorder %s34, 1
      %p73 = por %p71, %p72
      %p74 = scmp.ne.s32.totalorder %s65, %s66
      %p75 = scmp.eq.s32.totalorder %s34, 0
      %p76 = por %p74, %p75
      %p77 = scmp.ne.s32.totalorder %s65, %s66
      %p78 = scmp.eq.s32.totalorder %s35, 1
      %p79 = por %p77, %p78
      %p81 = scmp.ne.s32.totalorder %s66, %s80
      %p82 = scmp.eq.s32.totalorder %s35, 0
      %p83 = por %p81, %p82
      %s85 = sadd.s32 %s84, 1
      %p88 = scmp.eq.s32.totalorder %s29, 1
      %p89 = scmp.ne.s32.totalorder %s84, %s86
      %p90 = scmp.eq.s32.totalorder %s29, 0
      %p91 = por %p89, %p90
      %p92 = scmp.ne.s32.totalorder %s84, %s86
      %p93 = scmp.eq.s32.totalorder %s34, 1
      %p94 = por %p92, %p93
      %p95 = scmp.ne.s32.totalorder %s86, %s87
      %p96 = scmp.eq.s32.totalorder %s34, 0
      %p97 = por %p95, %p96
      %p98 = scmp.ne.s32.totalorder %s86, %s87
      %p99 = scmp.eq.s32.totalorder %s35, 1
      %p100 = por %p98, %p99
      %p102 = scmp.ne.s32.totalorder %s87, %s101
      %p103 = scmp.eq.s32.totalorder %s35, 0
      %p104 = por %p102, %p103
      %s106 = sadd.s32 %s105, 1
      %p109 = scmp.eq.s32.totalorder %s29, 1
      %p110 = scmp.ne.s32.totalorder %s105, %s107
      %p111 = scmp.eq.s32.totalorder %s29, 0
      %p112 = por %p110, %p111
      %p113 = scmp.ne.s32.totalorder %s105, %s107
      %p114 = scmp.eq.s32.totalorder %s34, 1
      %p115 = por %p113, %p114
      %p116 = scmp.ne.s32.totalorder %s107, %s108
      %p117 = scmp.eq.s32.totalorder %s34, 0
      %p118 = por %p116, %p117
      %p119 = scmp.ne.s32.totalorder %s107, %s108
      %p120 = scmp.eq.s32.totalorder %s35, 1
      %p121 = por %p119, %p120
      %p123 = scmp.ne.s32.totalorder %s108, %s122
      %p124 = scmp.eq.s32.totalorder %s35, 0
      %p125 = por %p123, %p124
      %s127 = sadd.s32 %s126, 1
      %p130 = scmp.eq.s32.totalorder %s29, 1
      %p131 = scmp.ne.s32.totalorder %s126, %s128
      %p132 = scmp.eq.s32.totalorder %s29, 0
      %p133 = por %p131, %p132
      %p134 = scmp.ne.s32.totalorder %s126, %s128
      %p135 = scmp.eq.s32.totalorder %s34, 1
      %p136 = por %p134, %p135
      %p137 = scmp.ne.s32.totalorder %s128, %s129
      %p138 = scmp.eq.s32.totalorder %s34, 0
      %p139 = por %p137, %p138
      %p140 = scmp.ne.s32.totalorder %s128, %s129
      %p141 = scmp.eq.s32.totalorder %s35, 1
      %p142 = por %p140, %p141
      %p144 = scmp.ne.s32.totalorder %s129, %s143
      %p145 = scmp.eq.s32.totalorder %s35, 0
      %p146 = por %p144, %p145
      %s148 = sadd.s32 %s147, 1
      %p151 = scmp.eq.s32.totalorder %s29, 1
      %p152 = scmp.ne.s32.totalorder %s147, %s149
      %p153 = scmp.eq.s32.totalorder %s29, 0
      %p154 = por %p152, %p153
      %p155 = scmp.ne.s32.totalorder %s147, %s149
      %p156 = scmp.eq.s32.totalorder %s34, 1
      %p157 = por %p155, %p156
      %p158 = scmp.ne.s32.totalorder %s149, %s150
      %p159 = scmp.eq.s32.totalorder %s34, 0
      %p160 = por %p158, %p159
      %p161 = scmp.ne.s32.totalorder %s149, %s150
      %p162 = scmp.eq.s32.totalorder %s35, 1
      %p163 = por %p161, %p162
      %p165 = scmp.ne.s32.totalorder %s150, %s164
      %p166 = scmp.eq.s32.totalorder %s35, 0
      %p167 = por %p165, %p166
      %s169 = sadd.s32 %s168, 1
      %p172 = scmp.eq.s32.totalorder %s29, 1
      %p173 = scmp.ne.s32.totalorder %s168, %s170
      %p174 = scmp.eq.s32.totalorder %s29, 0
      %p175 = por %p173, %p174
      %p176 = scmp.ne.s32.totalorder %s168, %s170
      %p177 = scmp.eq.s32.totalorder %s34, 1
      %p178 = por %p176, %p177
      %p179 = scmp.ne.s32.totalorder %s170, %s171
      %p180 = scmp.eq.s32.totalorder %s34, 0
      %p181 = por %p179, %p180
      %p182 = scmp.ne.s32.totalorder %s170, %s171
      %p183 = scmp.eq.s32.totalorder %s35, 1
      %p184 = por %p182, %p183
      %p186 = scmp.ne.s32.totalorder %s171, %s185
      %p187 = scmp.eq.s32.totalorder %s35, 0
      %p188 = por %p186, %p187
      %s190 = sadd.s32 %s189, 1
      %p193 = scmp.eq.s32.totalorder %s29, 1
      %p194 = scmp.ne.s32.totalorder %s189, %s191
      %p195 = scmp.eq.s32.totalorder %s29, 0
      %p196 = por %p194, %p195
      %p197 = scmp.ne.s32.totalorder %s189, %s191
      %p198 = scmp.eq.s32.totalorder %s34, 1
      %p199 = por %p197, %p198
      %p200 = scmp.ne.s32.totalorder %s191, %s192
      %p201 = scmp.eq.s32.totalorder %s34, 0
      %p202 = por %p200, %p201
      %p203 = scmp.ne.s32.totalorder %s191, %s192
      %p204 = scmp.eq.s32.totalorder %s35, 1
      %p205 = por %p203, %p204
      %p207 = scmp.ne.s32.totalorder %s192, %s206
      %p208 = scmp.eq.s32.totalorder %s35, 0
      %p209 = por %p207, %p208
      %s211 = sadd.s32 %s210, 1
      %p214 = scmp.eq.s32.totalorder %s29, 1
      %p215 = scmp.ne.s32.totalorder %s210, %s212
      %p216 = scmp.eq.s32.totalorder %s29, 0
      %p217 = por %p215, %p216
      %p218 = scmp.ne.s32.totalorder %s210, %s212
      %p219 = scmp.eq.s32.totalorder %s34, 1
      %p220 = por %p218, %p219
      %p221 = scmp.ne.s32.totalorder %s212, %s213
      %p222 = scmp.eq.s32.totalorder %s34, 0
      %p223 = por %p221, %p222
      %p224 = scmp.ne.s32.totalorder %s212, %s213
      %p225 = scmp.eq.s32.totalorder %s35, 1
      %p226 = por %p224, %p225
      %p228 = scmp.ne.s32.totalorder %s213, %s227
      %p229 = scmp.eq.s32.totalorder %s35, 0
      %p230 = por %p228, %p229
      %s232 = sadd.s32 %s231, 1
      %p235 = scmp.eq.s32.totalorder %s29, 1
      %p236 = scmp.ne.s32.totalorder %s231, %s233
      %p237 = scmp.eq.s32.totalorder %s29, 0
      %p238 = por %p236, %p237
      %p239 = scmp.ne.s32.totalorder %s231, %s233
      %p240 = scmp.eq.s32.totalorder %s34, 1
      %p241 = por %p239, %p240
      %p242 = scmp.ne.s32.totalorder %s233, %s234
      %p243 = scmp.eq.s32.totalorder %s34, 0
      %p244 = por %p242, %p243
      %p245 = scmp.ne.s32.totalorder %s233, %s234
      %p246 = scmp.eq.s32.totalorder %s35, 1
      %p247 = por %p245, %p246
      %p249 = scmp.ne.s32.totalorder %s234, %s248
      %p250 = scmp.eq.s32.totalorder %s35, 0
      %p251 = por %p249, %p250
      %s253 = sadd.s32 %s252, 1
      %p256 = scmp.eq.s32.totalorder %s29, 1
      %p257 = scmp.ne.s32.totalorder %s252, %s254
      %p258 = scmp.eq.s32.totalorder %s29, 0
      %p259 = por %p257, %p258
      %p260 = scmp.ne.s32.totalorder %s252, %s254
      %p261 = scmp.eq.s32.totalorder %s34, 1
      %p262 = por %p260, %p261
      %p263 = scmp.ne.s32.totalorder %s254, %s255
      %p264 = scmp.eq.s32.totalorder %s34, 0
      %p265 = por %p263, %p264
      %p266 = scmp.ne.s32.totalorder %s254, %s255
      %p267 = scmp.eq.s32.totalorder %s35, 1
      %p268 = por %p266, %p267
      %p270 = scmp.ne.s32.totalorder %s255, %s269
      %p271 = scmp.eq.s32.totalorder %s35, 0
      %p272 = por %p270, %p271
      %s274 = sadd.s32 %s273, 1
      %p277 = scmp.eq.s32.totalorder %s29, 1
      %p278 = scmp.ne.s32.totalorder %s273, %s275
      %p279 = scmp.eq.s32.totalorder %s29, 0
      %p280 = por %p278, %p279
      %p281 = scmp.ne.s32.totalorder %s273, %s275
      %p282 = scmp.eq.s32.totalorder %s34, 1
      %p283 = por %p281, %p282
      %p284 = scmp.ne.s32.totalorder %s275, %s276
      %p285 = scmp.eq.s32.totalorder %s34, 0
      %p286 = por %p284, %p285
      %p287 = scmp.ne.s32.totalorder %s275, %s276
      %p288 = scmp.eq.s32.totalorder %s35, 1
      %p289 = por %p287, %p288
      %p291 = scmp.ne.s32.totalorder %s276, %s290
      %p292 = scmp.eq.s32.totalorder %s35, 0
      %p293 = por %p291, %p292
      %s295 = sadd.s32 %s294, 1
      %p298 = scmp.eq.s32.totalorder %s29, 1
      %p299 = scmp.ne.s32.totalorder %s294, %s296
      %p300 = scmp.eq.s32.totalorder %s29, 0
      %p301 = por %p299, %p300
      %p302 = scmp.ne.s32.totalorder %s294, %s296
      %p303 = scmp.eq.s32.totalorder %s34, 1
      %p304 = por %p302, %p303
      %p305 = scmp.ne.s32.totalorder %s296, %s297
      %p306 = scmp.eq.s32.totalorder %s34, 0
      %p307 = por %p305, %p306
      %p308 = scmp.ne.s32.totalorder %s296, %s297
      %p309 = scmp.eq.s32.totalorder %s35, 1
      %p310 = por %p308, %p309
      %p312 = scmp.ne.s32.totalorder %s297, %s311
      %p313 = scmp.eq.s32.totalorder %s35, 0
      %p314 = por %p312, %p313
      %s316 = sadd.s32 %s315, 1
      %p319 = scmp.eq.s32.totalorder %s29, 1
      %p320 = scmp.ne.s32.totalorder %s315, %s317
      %p321 = scmp.eq.s32.totalorder %s29, 0
      %p322 = por %p320, %p321
      %p323 = scmp.ne.s32.totalorder %s315, %s317
      %p324 = scmp.eq.s32.totalorder %s34, 1
      %p325 = por %p323, %p324
      %p326 = scmp.ne.s32.totalorder %s317, %s318
      %p327 = scmp.eq.s32.totalorder %s34, 0
      %p328 = por %p326, %p327
      %p329 = scmp.ne.s32.totalorder %s317, %s318
      %p330 = scmp.eq.s32.totalorder %s35, 1
      %p331 = por %p329, %p330
      %p333 = scmp.ne.s32.totalorder %s318, %s332
      %p334 = scmp.eq.s32.totalorder %s35, 0
      %p335 = por %p333, %p334
      %s337 = sadd.s32 %s336, 1
      %p340 = scmp.eq.s32.totalorder %s29, 1
      %p341 = scmp.ne.s32.totalorder %s336, %s338
      %p342 = scmp.eq.s32.totalorder %s29, 0
      %p343 = por %p341, %p342
      %p344 = scmp.ne.s32.totalorder %s336, %s338
      %p345 = scmp.eq.s32.totalorder %s34, 1
      %p346 = por %p344, %p345
      %p347 = scmp.ne.s32.totalorder %s338, %s339
      %p348 = scmp.eq.s32.totalorder %s34, 0
      %p349 = por %p347, %p348
      %p350 = scmp.ne.s32.totalorder %s338, %s339
      %p351 = scmp.eq.s32.totalorder %s35, 1
      %p352 = por %p350, %p351
      %p354 = scmp.ne.s32.totalorder %s339, %s353
      %p355 = scmp.eq.s32.totalorder %s35, 0
      %p356 = por %p354, %p355
      %s358 = sadd.s32 %s357, 1
      %p361 = scmp.eq.s32.totalorder %s29, 1
      %p362 = scmp.ne.s32.totalorder %s357, %s359
      %p363 = scmp.eq.s32.totalorder %s29, 0
      %p364 = por %p362, %p363
      %p365 = scmp.ne.s32.totalorder %s357, %s359
      %p366 = scmp.eq.s32.totalorder %s34, 1
      %p367 = por %p365, %p366
      %p368 = scmp.ne.s32.totalorder %s359, %s360
      %p369 = scmp.eq.s32.totalorder %s34, 0
      %p370 = por %p368, %p369
      %p371 = scmp.ne.s32.totalorder %s359, %s360
      %p372 = scmp.eq.s32.totalorder %s35, 1
      %p373 = por %p371, %p372
      %p375 = scmp.ne.s32.totalorder %s360, %s374
      %p376 = scmp.eq.s32.totalorder %s35, 0
      %p377 = por %p375, %p376
      %s379 = sadd.s32 %s378, 1
      %p382 = scmp.eq.s32.totalorder %s29, 1
      %p383 = scmp.ne.s32.totalorder %s378, %s380
      %p384 = scmp.eq.s32.totalorder %s29, 0
      %p385 = por %p383, %p384
      %p386 = scmp.ne.s32.totalorder %s378, %s380
      %p387 = scmp.eq.s32.totalorder %s34, 1
      %p388 = por %p386, %p387
      %p389 = scmp.ne.s32.totalorder %s380, %s381
      %p390 = scmp.eq.s32.totalorder %s34, 0
      %p391 = por %p389, %p390
      %p392 = scmp.ne.s32.totalorder %s380, %s381
      %p393 = scmp.eq.s32.totalorder %s35, 1
      %p394 = por %p392, %p393
      %p396 = scmp.ne.s32.totalorder %s381, %s395
      %p397 = scmp.eq.s32.totalorder %s35, 0
      %p398 = por %p396, %p397
      %s400 = sadd.s32 %s399, 1
      %p403 = scmp.eq.s32.totalorder %s29, 1
      %p404 = scmp.ne.s32.totalorder %s399, %s401
      %p405 = scmp.eq.s32.totalorder %s29, 0
      %p406 = por %p404, %p405
      %p407 = scmp.ne.s32.totalorder %s399, %s401
      %p408 = scmp.eq.s32.totalorder %s34, 1
      %p409 = por %p407, %p408
      %p410 = scmp.ne.s32.totalorder %s401, %s402
      %p411 = scmp.eq.s32.totalorder %s34, 0
      %p412 = por %p410, %p411
      %p413 = scmp.ne.s32.totalorder %s401, %s402
      %p414 = scmp.eq.s32.totalorder %s35, 1
      %p415 = por %p413, %p414
      %p417 = scmp.ne.s32.totalorder %s402, %s416
      %p418 = scmp.eq.s32.totalorder %s35, 0
      %p419 = por %p417, %p418
      %s421 = sadd.s32 %s420, 1
      %p424 = scmp.eq.s32.totalorder %s29, 1
      %p425 = scmp.ne.s32.totalorder %s420, %s422
      %p426 = scmp.eq.s32.totalorder %s29, 0
      %p427 = por %p425, %p426
      %p428 = scmp.ne.s32.totalorder %s420, %s422
      %p429 = scmp.eq.s32.totalorder %s34, 1
      %p430 = por %p428, %p429
      %p431 = scmp.ne.s32.totalorder %s422, %s423
      %p432 = scmp.eq.s32.totalorder %s34, 0
      %p433 = por %p431, %p432
      %p434 = scmp.ne.s32.totalorder %s422, %s423
      %p435 = scmp.eq.s32.totalorder %s35, 1
      %p436 = por %p434, %p435
      %p438 = scmp.ne.s32.totalorder %s423, %s437
      %p439 = scmp.eq.s32.totalorder %s35, 0
      %p440 = por %p438, %p439
      %s441 = ssub.s32 %s29, %s36
      %p442 = scmp.eq.s32.totalorder %s441, 0
      %s444 = sadd.s32 %s443, 1
      %s445 = scalar_select %p442, %s443, %s444
      %p448 = pneg %p442
      %p449 = scmp.eq.s32.totalorder %s29, 1
      %p450 = por %p448, %p449
      %p451 = scmp.ne.s32.totalorder %s443, %s446
      %p452 = scmp.eq.s32.totalorder %s29, 0
      %p453 = por %p451, %p452
      %p454 = scmp.ne.s32.totalorder %s443, %s446
      %p455 = scmp.eq.s32.totalorder %s34, 1
      %p456 = por %p454, %p455
      %p457 = scmp.ne.s32.totalorder %s446, %s447
      %p458 = scmp.eq.s32.totalorder %s34, 0
      %p459 = por %p457, %p458
      %p460 = scmp.ne.s32.totalorder %s446, %s447
      %p461 = scmp.eq.s32.totalorder %s35, 1
      %p462 = por %p460, %p461
      %p464 = scmp.ne.s32.totalorder %s447, %s463
      %p465 = scmp.eq.s32.totalorder %s35, 0
      %p466 = por %p464, %p465
      %p467 = scmp.le.s32.totalorder 1, %s29
      %p468 = scmp.lt.s32.totalorder %s29, 3
      %p469 = pnand %p467, %p468
      %p470 = pneg %p469
      // Predicated region
      $region9: #{ml_decoder_forward.1} parent=5 // pred_check
        _
      $region10: #{ml_decoder_forward.1} parent=5 // pred_check_branch
        %472 = sbr.rel (%p469) target = $region12
      $region11: #{ml_decoder_forward.1} parent=5 // pred_region
        %s473 = ssub.s32 %s29, 1
        // Predicated region
        $region13: #{ml_decoder_forward.1} parent=11 // pred_check
          %p474 = pneg %p76
        $region14: #{ml_decoder_forward.1} parent=11 // pred_check_branch
          %476 = sbr.rel (%p474) target = $region16
        $region15: #{ml_decoder_forward.1} parent=11 // pred_region
          _
        $region16: #{ml_decoder_forward.1} parent=11 // pred_fallthru
          _
        // Predicated region
        $region17: #{ml_decoder_forward.1} parent=11 // pred_check
          %p477 = pneg %p97
        $region18: #{ml_decoder_forward.1} parent=11 // pred_check_branch
          %479 = sbr.rel (%p477) target = $region20
        $region19: #{ml_decoder_forward.1} parent=11 // pred_region
          _
        $region20: #{ml_decoder_forward.1} parent=11 // pred_fallthru
          _
        // Predicated region
        $region21: #{ml_decoder_forward.1} parent=11 // pred_check
          %p480 = pneg %p118
        $region22: #{ml_decoder_forward.1} parent=11 // pred_check_branch
          %482 = sbr.rel (%p480) target = $region24
        $region23: #{ml_decoder_forward.1} parent=11 // pred_region
          _
        $region24: #{ml_decoder_forward.1} parent=11 // pred_fallthru
          _
        // Predicated region
        $region25: #{ml_decoder_forward.1} parent=11 // pred_check
          %p483 = pneg %p139
        $region26: #{ml_decoder_forward.1} parent=11 // pred_check_branch
          %485 = sbr.rel (%p483) target = $region28
        $region27: #{ml_decoder_forward.1} parent=11 // pred_region
          _
        $region28: #{ml_decoder_forward.1} parent=11 // pred_fallthru
          _
        // Predicated region
        $region29: #{ml_decoder_forward.1} parent=11 // pred_check
          %p486 = pneg %p160
        $region30: #{ml_decoder_forward.1} parent=11 // pred_check_branch
          %488 = sbr.rel (%p486) target = $region32
        $region31: #{ml_decoder_forward.1} parent=11 // pred_region
          _
        $region32: #{ml_decoder_forward.1} parent=11 // pred_fallthru
          _
        // Predicated region
        $region33: #{ml_decoder_forward.1} parent=11 // pred_check
          %p489 = pneg %p181
        $region34: #{ml_decoder_forward.1} parent=11 // pred_check_branch
          %491 = sbr.rel (%p489) target = $region36
        $region35: #{ml_decoder_forward.1} parent=11 // pred_region
          %s493 = ssub.s32 8192, 8192
          %494 = vsyncadd [#allocation3], %s493
          %s495 = sshll.u32 [#allocation2], 4
          %s496 = int_to_ptr.vmem [resolvable:$true] %s495
          %501 = dma.hbm_to_vmem [thread:$0]  %s6, 8192, %s496, [#allocation3], 128, 128, 8
        $region36: #{ml_decoder_forward.1} parent=11 // pred_fallthru
          _
        // Predicated region
        $region37: #{ml_decoder_forward.1} parent=11 // pred_check
          %p502 = pneg %p202
        $region38: #{ml_decoder_forward.1} parent=11 // pred_check_branch
          %504 = sbr.rel (%p502) target = $region40
        $region39: #{ml_decoder_forward.1} parent=11 // pred_region
          _
        $region40: #{ml_decoder_forward.1} parent=11 // pred_fallthru
          _
        // Predicated region
        $region41: #{ml_decoder_forward.1} parent=11 // pred_check
          %p505 = pneg %p223
        $region42: #{ml_decoder_forward.1} parent=11 // pred_check_branch
          %507 = sbr.rel (%p505) target = $region44
        $region43: #{ml_decoder_forward.1} parent=11 // pred_region
          _
        $region44: #{ml_decoder_forward.1} parent=11 // pred_fallthru
          _
        // Predicated region
        $region45: #{ml_decoder_forward.1} parent=11 // pred_check
          %p508 = pneg %p244
        $region46: #{ml_decoder_forward.1} parent=11 // pred_check_branch
          %510 = sbr.rel (%p508) target = $region48
        $region47: #{ml_decoder_forward.1} parent=11 // pred_region
          _
        $region48: #{ml_decoder_forward.1} parent=11 // pred_fallthru
          _
        // Predicated region
        $region49: #{ml_decoder_forward.1} parent=11 // pred_check
          %p511 = pneg %p265
        $region50: #{ml_decoder_forward.1} parent=11 // pred_check_branch
          %513 = sbr.rel (%p511) target = $region52
        $region51: #{ml_decoder_forward.1} parent=11 // pred_region
          _
        $region52: #{ml_decoder_forward.1} parent=11 // pred_fallthru
          _
        // Predicated region
        $region53: #{ml_decoder_forward.1} parent=11 // pred_check
          %p514 = pneg %p286
        $region54: #{ml_decoder_forward.1} parent=11 // pred_check_branch
          %516 = sbr.rel (%p514) target = $region56
        $region55: #{ml_decoder_forward.1} parent=11 // pred_region
          _
        $region56: #{ml_decoder_forward.1} parent=11 // pred_fallthru
          _
        // Predicated region
        $region57: #{ml_decoder_forward.1} parent=11 // pred_check
          %p517 = pneg %p307
        $region58: #{ml_decoder_forward.1} parent=11 // pred_check_branch
          %519 = sbr.rel (%p517) target = $region60
        $region59: #{ml_decoder_forward.1} parent=11 // pred_region
          _
        $region60: #{ml_decoder_forward.1} parent=11 // pred_fallthru
          _
        // Predicated region
        $region61: #{ml_decoder_forward.1} parent=11 // pred_check
          %p520 = pneg %p328
        $region62: #{ml_decoder_forward.1} parent=11 // pred_check_branch
          %522 = sbr.rel (%p520) target = $region64
        $region63: #{ml_decoder_forward.1} parent=11 // pred_region
          _
        $region64: #{ml_decoder_forward.1} parent=11 // pred_fallthru
          _
        // Predicated region
        $region65: #{ml_decoder_forward.1} parent=11 // pred_check
          %p523 = pneg %p349
        $region66: #{ml_decoder_forward.1} parent=11 // pred_check_branch
          %525 = sbr.rel (%p523) target = $region68
        $region67: #{ml_decoder_forward.1} parent=11 // pred_region
          _
        $region68: #{ml_decoder_forward.1} parent=11 // pred_fallthru
          _
        // Predicated region
        $region69: #{ml_decoder_forward.1} parent=11 // pred_check
          %p526 = pneg %p370
        $region70: #{ml_decoder_forward.1} parent=11 // pred_check_branch
          %528 = sbr.rel (%p526) target = $region72
        $region71: #{ml_decoder_forward.1} parent=11 // pred_region
          _
        $region72: #{ml_decoder_forward.1} parent=11 // pred_fallthru
          _
        // Predicated region
        $region73: #{ml_decoder_forward.1} parent=11 // pred_check
          %p529 = pneg %p391
        $region74: #{ml_decoder_forward.1} parent=11 // pred_check_branch
          %531 = sbr.rel (%p529) target = $region76
        $region75: #{ml_decoder_forward.1} parent=11 // pred_region
          _
        $region76: #{ml_decoder_forward.1} parent=11 // pred_fallthru
          _
        // Predicated region
        $region77: #{ml_decoder_forward.1} parent=11 // pred_check
          %p532 = pneg %p412
        $region78: #{ml_decoder_forward.1} parent=11 // pred_check_branch
          %534 = sbr.rel (%p532) target = $region80
        $region79: #{ml_decoder_forward.1} parent=11 // pred_region
          _
        $region80: #{ml_decoder_forward.1} parent=11 // pred_fallthru
          _
        // Predicated region
        $region81: #{ml_decoder_forward.1} parent=11 // pred_check
          %p535 = pneg %p433
        $region82: #{ml_decoder_forward.1} parent=11 // pred_check_branch
          %537 = sbr.rel (%p535) target = $region84
        $region83: #{ml_decoder_forward.1} parent=11 // pred_region
          _
        $region84: #{ml_decoder_forward.1} parent=11 // pred_fallthru
          _
      $region12: #{ml_decoder_forward.1} parent=5 // pred_fallthru
        _
      %p538 = scmp.lt.s32.totalorder %s29, 2
      // Predicated region
      $region85: #{ml_decoder_forward.1} parent=5 // pred_check
        %p539 = pneg %p538
      $region86: #{ml_decoder_forward.1} parent=5 // pred_check_branch
        %541 = sbr.rel (%p539) target = $region88
      $region87: #{ml_decoder_forward.1} parent=5 // pred_region
        // Predicated region
        $region89: #{ml_decoder_forward.1} parent=87 // pred_check
          %p542 = pneg %p49
        $region90: #{ml_decoder_forward.1} parent=87 // pred_check_branch
          %544 = sbr.rel (%p542) target = $region92
        $region91: #{ml_decoder_forward.1} parent=87 // pred_region
          %p545 = scmp.lt.s32.totalorder %s29, 1
          %s546 = scalar_select %p545, %s29, 1
          %s547 = smul.addr %s546, 2
          %s548 = smul.addr %s547, 8
          %s549 = scalar_lea.vmem %s0, %s548
        $region92: #{ml_decoder_forward.1} parent=87 // pred_fallthru
          _
      $region88: #{ml_decoder_forward.1} parent=5 // pred_fallthru
        _
      %p550 = scmp.le.s32.totalorder 1, %s29
      %p551 = scmp.lt.s32.totalorder %s29, 3
      %p552 = pnand %p550, %p551
      %p553 = pneg %p552
      // Predicated region
      $region93: #{ml_decoder_forward.1} parent=5 // pred_check
        _
      $region94: #{ml_decoder_forward.1} parent=5 // pred_check_branch
        %555 = sbr.rel (%p552) target = $region96
      $region95: #{ml_decoder_forward.1} parent=5 // pred_region
        %s556 = ssub.s32 %s29, 1
        // Predicated region
        $region97: #{ml_decoder_forward.1} parent=95 // pred_check
          %p557 = pneg %p181
        $region98: #{ml_decoder_forward.1} parent=95 // pred_check_branch
          %559 = sbr.rel (%p557) target = $region100
        $region99: #{ml_decoder_forward.1} parent=95 // pred_region
          %560 = dma.done [#allocation3], 8192
        $region100: #{ml_decoder_forward.1} parent=95 // pred_fallthru
          _
        %p561 = scmp.lt.s32.totalorder %s34, 1
        %s562 = scalar_select %p561, %s34, 1
        %s563 = smul.addr %s562, 2
        %s564 = smul.addr %s563, 8
        %s565 = scalar_lea.vmem %s0, %s564
        %p566 = pneg %p55
        %p567 = pneg %p52
        %p568 = pneg %p76
        %p569 = pneg %p73
        %p570 = pneg %p97
        %p571 = pneg %p94
        %p572 = pneg %p118
        %p573 = pneg %p115
        %p574 = pneg %p139
        %p575 = pneg %p136
        %p576 = pneg %p160
        %p577 = pneg %p157
        %p578 = pneg %p181
        %p579 = pneg %p178
        %p580 = pneg %p202
        %p581 = pneg %p199
        %p582 = pneg %p223
        %p583 = pneg %p220
        %p584 = pneg %p244
        %p585 = pneg %p241
        %p586 = pneg %p265
        %p587 = pneg %p262
        %p588 = pneg %p286
        %p589 = pneg %p283
        %p590 = pneg %p307
        %p591 = pneg %p304
        %p592 = pneg %p328
        %p593 = pneg %p325
        %p594 = pneg %p349
        %p595 = pneg %p346
        %p596 = pneg %p370
        %p597 = pneg %p367
        %p598 = pneg %p391
        %p599 = pneg %p388
        %p600 = pneg %p412
        %p601 = pneg %p409
        %p602 = pneg %p433
        %p603 = pneg %p430
        %p604 = pneg %p459
        %p605 = pneg %p456
        %s606 = sand.u32 %s446, 1
        %s607 = scalar_lea.sflag [#allocation4], %s606
        %s608 = sand.u32 %s446, 1
        %s609 = scalar_lea.vmem [#allocation5], %s608
        %p610 = scmp.lt.s32.totalorder %s34, 1
        %s611 = scalar_select %p610, %s34, 1
        %s612 = smul.addr %s611, 2
        %s613 = smul.addr %s612, 8
        %s614 = scalar_lea.vmem %s0, %s613
        %v615 = vld [vmem:[%s614] sm:$0xff]
        %v616 = vld [vmem:[%s614 + $0x8] sm:$0xff]
        %v617 = vld [vmem:[%s1] sm:$0xff]
        %v618 = vld [vmem:[%s1 + $0x8] sm:$0xff]
        %v619 = vld [vmem:[%s1 + $0x10] sm:$0xff]
        %v620 = vld [vmem:[%s1 + $0x18] sm:$0xff]
        %v621 = vld [vmem:[%s1 + $0x20] sm:$0xff]
        %v622 = vld [vmem:[%s1 + $0x28] sm:$0xff]
        %v623 = vld [vmem:[%s1 + $0x30] sm:$0xff]
        %v624 = vld [vmem:[%s1 + $0x38] sm:$0xff]
        %v625 = vld [vmem:[%s2] sm:$0x1]
        %v627 = vlaneseq
        %v628 = vshrl.u32 %v627, 7
        %v629 = vsub.s32 0, %v628
        %v630 = vrot.slane %v625, %v629
        %vm632 = vcmask 523264
        %v634 = vsel %vm632, %v615, 0
        %v637 = vsel %vm632, %v616, 0
        %639 = vmatprep.subr.mxu0 0.0
        %640 = vmatpush1.msra.mxu0 0.0
        %641 = vmatprep.subr.mxu0 0.0
        %642 = vmatpush1.msra.mxu0 0.0
        %643 = vmatprep.subr.mxu0 0.0
        %644 = vmatpush1.msra.mxu0 0.0
        %645 = vmatprep.subr.mxu0 0.0
        %646 = vmatpush1.msra.mxu0 0.0
        %647 = vmatprep.subr.mxu0 0.0
        %648 = vmatpush1.msra.mxu0 0.0
        %649 = vmatprep.subr.mxu0 0.0
        %650 = vmatpush1.msra.mxu0 0.0
        %651 = vmatprep.subr.mxu0 0.0
        %652 = vmatpush1.msra.mxu0 0.0
        %653 = vmatprep.subr.mxu0 0.0
        %654 = vmatpush1.msra.mxu0 0.0
        %655 = vmatprep.subr.mxu0 0.0
        %v656 = vand.u32 %v624, 4294901760
        %657 = vmatpush1.msra.mxu0 %v656
        %658 = vmatprep.subr.mxu0 0.0
        %v659 = vand.u32 %v623, 4294901760
        %660 = vmatpush1.msra.mxu0 %v659
        %661 = vmatprep.subr.mxu0 0.0
        %v662 = vand.u32 %v622, 4294901760
        %663 = vmatpush1.msra.mxu0 %v662
        %664 = vmatprep.subr.mxu0 0.0
        %v665 = vand.u32 %v621, 4294901760
        %666 = vmatpush1.msra.mxu0 %v665
        %667 = vmatprep.subr.mxu0 0.0
        %v668 = vand.u32 %v620, 4294901760
        %669 = vmatpush1.msra.mxu0 %v668
        %670 = vmatprep.subr.mxu0 0.0
        %v671 = vand.u32 %v619, 4294901760
        %672 = vmatpush1.msra.mxu0 %v671
        %673 = vmatprep.subr.mxu0 0.0
        %v674 = vand.u32 %v618, 4294901760
        %675 = vmatpush1.msra.mxu0 %v674
        %676 = vmatprep.subr.mxu0 0.0
        %v677 = vand.u32 %v617, 4294901760
        %678 = vmatpush1.msra.mxu0 %v677
        %679 = vmatprep.subr.mxu0 0.0
        %680 = vmatpush2.msra.mxu0 0.0
        %681 = vmatprep.subr.mxu0 0.0
        %682 = vmatpush2.msra.mxu0 0.0
        %683 = vmatprep.subr.mxu0 0.0
        %684 = vmatpush2.msra.mxu0 0.0
        %685 = vmatprep.subr.mxu0 0.0
        %686 = vmatpush2.msra.mxu0 0.0
        %687 = vmatprep.subr.mxu0 0.0
        %688 = vmatpush2.msra.mxu0 0.0
        %689 = vmatprep.subr.mxu0 0.0
        %690 = vmatpush2.msra.mxu0 0.0
        %691 = vmatprep.subr.mxu0 0.0
        %692 = vmatpush2.msra.mxu0 0.0
        %693 = vmatprep.subr.mxu0 0.0
        %694 = vmatpush2.msra.mxu0 0.0
        %695 = vmatprep.subr.mxu0 0.0
        %696 = vmatpush2.msra.mxu0 0.0
        %697 = vmatprep.subr.mxu0 0.0
        %698 = vmatpush2.msra.mxu0 0.0
        %699 = vmatprep.subr.mxu0 0.0
        %700 = vmatpush2.msra.mxu0 0.0
        %701 = vmatprep.subr.mxu0 0.0
        %702 = vmatpush2.msra.mxu0 0.0
        %703 = vmatprep.subr.mxu0 0.0
        %704 = vmatpush2.msra.mxu0 0.0
        %705 = vmatprep.subr.mxu0 0.0
        %706 = vmatpush2.msra.mxu0 0.0
        %707 = vmatprep.subr.mxu0 0.0
        %708 = vmatpush2.msra.mxu0 0.0
        %709 = vmatprep.subr.mxu0 0.0
        %710 = vmatpush2.msra.mxu0 0.0
        %711 = vmatprep.mubr.f32.mxu0 0.0
        %v712 = vand.u32 %v634, 4294901760
        %v713 = vsub.f32 %v634, %v712
        %v714 = vand.u32 %v713, 4294901760
        %v715 = vsub.f32 %v713, %v714
        %v716 = vand.u32 %v715, 4294901760
        %717 = vmatmul.mubr.f32.gmra.mxu0 %v716
        %v718 = vpop.f32.mrf.mxu0
        %v719 = vadd.f32 %v630, %v718
        %v720 = vpop.f32.mrf.mxu0
        %721 = vmatprep.mubr.f32.mxu0 0.0
        %v722 = vand.u32 %v637, 4294901760
        %v723 = vsub.f32 %v637, %v722
        %v724 = vand.u32 %v723, 4294901760
        %v725 = vsub.f32 %v723, %v724
        %v726 = vand.u32 %v725, 4294901760
        %727 = vmatmul.mubr.f32.gmra.mxu0 %v726
        %v728 = vpop.f32.mrf.mxu0
        %v729 = vadd.f32 %v630, %v728
        %v730 = vpop.f32.mrf.mxu0
        %731 = vdwg.mxu0
        %732 = vmatprep.subr.mxu0 0.0
        %733 = vmatpush1.msra.mxu0 0.0
        %734 = vmatprep.subr.mxu0 0.0
        %735 = vmatpush1.msra.mxu0 0.0
        %736 = vmatprep.subr.mxu0 0.0
        %737 = vmatpush1.msra.mxu0 0.0
        %738 = vmatprep.subr.mxu0 0.0
        %739 = vmatpush1.msra.mxu0 0.0
        %740 = vmatprep.subr.mxu0 0.0
        %741 = vmatpush1.msra.mxu0 0.0
        %742 = vmatprep.subr.mxu0 0.0
        %743 = vmatpush1.msra.mxu0 0.0
        %744 = vmatprep.subr.mxu0 0.0
        %745 = vmatpush1.msra.mxu0 0.0
        %746 = vmatprep.subr.mxu0 0.0
        %747 = vmatpush1.msra.mxu0 0.0
        %748 = vmatprep.subr.mxu0 0.0
        %v749 = vand.u32 %v624, 4294901760
        %v750 = vsub.f32 %v624, %v749
        %v751 = vand.u32 %v750, 4294901760
        %v752 = vsub.f32 %v750, %v751
        %v753 = vand.u32 %v752, 4294901760
        %754 = vmatpush1.msra.mxu0 %v753
        %755 = vmatprep.subr.mxu0 0.0
        %v756 = vand.u32 %v623, 4294901760
        %v757 = vsub.f32 %v623, %v756
        %v758 = vand.u32 %v757, 4294901760
        %v759 = vsub.f32 %v757, %v758
        %v760 = vand.u32 %v759, 4294901760
        %761 = vmatpush1.msra.mxu0 %v760
        %762 = vmatprep.subr.mxu0 0.0
        %v763 = vand.u32 %v622, 4294901760
        %v764 = vsub.f32 %v622, %v763
        %v765 = vand.u32 %v764, 4294901760
        %v766 = vsub.f32 %v764, %v765
        %v767 = vand.u32 %v766, 4294901760
        %768 = vmatpush1.msra.mxu0 %v767
        %769 = vmatprep.subr.mxu0 0.0
        %v770 = vand.u32 %v621, 4294901760
        %v771 = vsub.f32 %v621, %v770
        %v772 = vand.u32 %v771, 4294901760
        %v773 = vsub.f32 %v771, %v772
        %v774 = vand.u32 %v773, 4294901760
        %775 = vmatpush1.msra.mxu0 %v774
        %776 = vmatprep.subr.mxu0 0.0
        %v777 = vand.u32 %v620, 4294901760
        %v778 = vsub.f32 %v620, %v777
        %v779 = vand.u32 %v778, 4294901760
        %v780 = vsub.f32 %v778, %v779
        %v781 = vand.u32 %v780, 4294901760
        %782 = vmatpush1.msra.mxu0 %v781
        %783 = vmatprep.subr.mxu0 0.0
        %v784 = vand.u32 %v619, 4294901760
        %v785 = vsub.f32 %v619, %v784
        %v786 = vand.u32 %v785, 4294901760
        %v787 = vsub.f32 %v785, %v786
        %v788 = vand.u32 %v787, 4294901760
        %789 = vmatpush1.msra.mxu0 %v788
        %790 = vmatprep.subr.mxu0 0.0
        %v791 = vand.u32 %v618, 4294901760
        %v792 = vsub.f32 %v618, %v791
        %v793 = vand.u32 %v792, 4294901760
        %v794 = vsub.f32 %v792, %v793
        %v795 = vand.u32 %v794, 4294901760
        %796 = vmatpush1.msra.mxu0 %v795
        %797 = vmatprep.subr.mxu0 0.0
        %v798 = vand.u32 %v617, 4294901760
        %v799 = vsub.f32 %v617, %v798
        %v800 = vand.u32 %v799, 4294901760
        %v801 = vsub.f32 %v799, %v800
        %v802 = vand.u32 %v801, 4294901760
        %803 = vmatpush1.msra.mxu0 %v802
        %804 = vmatprep.subr.mxu0 0.0
        %805 = vmatpush2.msra.mxu0 0.0
        %806 = vmatprep.subr.mxu0 0.0
        %807 = vmatpush2.msra.mxu0 0.0
        %808 = vmatprep.subr.mxu0 0.0
        %809 = vmatpush2.msra.mxu0 0.0
        %810 = vmatprep.subr.mxu0 0.0
        %811 = vmatpush2.msra.mxu0 0.0
        %812 = vmatprep.subr.mxu0 0.0
        %813 = vmatpush2.msra.mxu0 0.0
        %814 = vmatprep.subr.mxu0 0.0
        %815 = vmatpush2.msra.mxu0 0.0
        %816 = vmatprep.subr.mxu0 0.0
        %817 = vmatpush2.msra.mxu0 0.0
        %818 = vmatprep.subr.mxu0 0.0
        %819 = vmatpush2.msra.mxu0 0.0
        %820 = vmatprep.subr.mxu0 0.0
        %821 = vmatpush2.msra.mxu0 0.0
        %822 = vmatprep.subr.mxu0 0.0
        %823 = vmatpush2.msra.mxu0 0.0
        %824 = vmatprep.subr.mxu0 0.0
        %825 = vmatpush2.msra.mxu0 0.0
        %826 = vmatprep.subr.mxu0 0.0
        %827 = vmatpush2.msra.mxu0 0.0
        %828 = vmatprep.subr.mxu0 0.0
        %829 = vmatpush2.msra.mxu0 0.0
        %830 = vmatprep.subr.mxu0 0.0
        %831 = vmatpush2.msra.mxu0 0.0
        %832 = vmatprep.subr.mxu0 0.0
        %833 = vmatpush2.msra.mxu0 0.0
        %834 = vmatprep.subr.mxu0 0.0
        %835 = vmatpush2.msra.mxu0 0.0
        %836 = vmatprep.mubr.f32.mxu0 0.0
        %v837 = vand.u32 %v634, 4294901760
        %838 = vmatmul.mubr.f32.gmra.mxu0 %v837
        %v839 = vpop.f32.mrf.mxu0
        %v840 = vadd.f32 %v719, %v839
        %v841 = vpop.f32.mrf.mxu0
        %842 = vmatprep.mubr.f32.mxu0 0.0
        %v843 = vand.u32 %v637, 4294901760
        %844 = vmatmul.mubr.f32.gmra.mxu0 %v843
        %v845 = vpop.f32.mrf.mxu0
        %v846 = vadd.f32 %v729, %v845
        %v847 = vpop.f32.mrf.mxu0
        %848 = vdwg.mxu0
        %849 = vmatprep.subr.mxu0 0.0
        %850 = vmatpush1.msra.mxu0 0.0
        %851 = vmatprep.subr.mxu0 0.0
        %852 = vmatpush1.msra.mxu0 0.0
        %853 = vmatprep.subr.mxu0 0.0
        %854 = vmatpush1.msra.mxu0 0.0
        %855 = vmatprep.subr.mxu0 0.0
        %856 = vmatpush1.msra.mxu0 0.0
        %857 = vmatprep.subr.mxu0 0.0
        %858 = vmatpush1.msra.mxu0 0.0
        %859 = vmatprep.subr.mxu0 0.0
        %860 = vmatpush1.msra.mxu0 0.0
        %861 = vmatprep.subr.mxu0 0.0
        %862 = vmatpush1.msra.mxu0 0.0
        %863 = vmatprep.subr.mxu0 0.0
        %864 = vmatpush1.msra.mxu0 0.0
        %865 = vmatprep.subr.mxu0 0.0
        %v866 = vand.u32 %v624, 4294901760
        %v867 = vsub.f32 %v624, %v866
        %868 = vmatpush1.msra.mxu0 %v867
        %869 = vmatprep.subr.mxu0 0.0
        %v870 = vand.u32 %v623, 4294901760
        %v871 = vsub.f32 %v623, %v870
        %872 = vmatpush1.msra.mxu0 %v871
        %873 = vmatprep.subr.mxu0 0.0
        %v874 = vand.u32 %v622, 4294901760
        %v875 = vsub.f32 %v622, %v874
        %876 = vmatpush1.msra.mxu0 %v875
        %877 = vmatprep.subr.mxu0 0.0
        %v878 = vand.u32 %v621, 4294901760
        %v879 = vsub.f32 %v621, %v878
        %880 = vmatpush1.msra.mxu0 %v879
        %881 = vmatprep.subr.mxu0 0.0
        %v882 = vand.u32 %v620, 4294901760
        %v883 = vsub.f32 %v620, %v882
        %884 = vmatpush1.msra.mxu0 %v883
        %885 = vmatprep.subr.mxu0 0.0
        %v886 = vand.u32 %v619, 4294901760
        %v887 = vsub.f32 %v619, %v886
        %888 = vmatpush1.msra.mxu0 %v887
        %889 = vmatprep.subr.mxu0 0.0
        %v890 = vand.u32 %v618, 4294901760
        %v891 = vsub.f32 %v618, %v890
        %892 = vmatpush1.msra.mxu0 %v891
        %893 = vmatprep.subr.mxu0 0.0
        %v894 = vand.u32 %v617, 4294901760
        %v895 = vsub.f32 %v617, %v894
        %896 = vmatpush1.msra.mxu0 %v895
        %897 = vmatprep.subr.mxu0 0.0
        %898 = vmatpush2.msra.mxu0 0.0
        %899 = vmatprep.subr.mxu0 0.0
        %900 = vmatpush2.msra.mxu0 0.0
        %901 = vmatprep.subr.mxu0 0.0
        %902 = vmatpush2.msra.mxu0 0.0
        %903 = vmatprep.subr.mxu0 0.0
        %904 = vmatpush2.msra.mxu0 0.0
        %905 = vmatprep.subr.mxu0 0.0
        %906 = vmatpush2.msra.mxu0 0.0
        %907 = vmatprep.subr.mxu0 0.0
        %908 = vmatpush2.msra.mxu0 0.0
        %909 = vmatprep.subr.mxu0 0.0
        %910 = vmatpush2.msra.mxu0 0.0
        %911 = vmatprep.subr.mxu0 0.0
        %912 = vmatpush2.msra.mxu0 0.0
        %913 = vmatprep.subr.mxu0 0.0
        %914 = vmatpush2.msra.mxu0 0.0
        %915 = vmatprep.subr.mxu0 0.0
        %916 = vmatpush2.msra.mxu0 0.0
        %917 = vmatprep.subr.mxu0 0.0
        %918 = vmatpush2.msra.mxu0 0.0
        %919 = vmatprep.subr.mxu0 0.0
        %920 = vmatpush2.msra.mxu0 0.0
        %921 = vmatprep.subr.mxu0 0.0
        %922 = vmatpush2.msra.mxu0 0.0
        %923 = vmatprep.subr.mxu0 0.0
        %924 = vmatpush2.msra.mxu0 0.0
        %925 = vmatprep.subr.mxu0 0.0
        %926 = vmatpush2.msra.mxu0 0.0
        %927 = vmatprep.subr.mxu0 0.0
        %928 = vmatpush2.msra.mxu0 0.0
        %929 = vmatprep.mubr.f32.mxu0 0.0
        %v930 = vand.u32 %v634, 4294901760
        %v931 = vsub.f32 %v634, %v930
        %932 = vmatmul.mubr.f32.gmra.mxu0 %v931
        %v933 = vpop.f32.mrf.mxu0
        %v934 = vadd.f32 %v840, %v933
        %v935 = vpop.f32.mrf.mxu0
        %936 = vmatprep.mubr.f32.mxu0 0.0
        %v937 = vand.u32 %v637, 4294901760
        %v938 = vsub.f32 %v637, %v937
        %939 = vmatmul.mubr.f32.gmra.mxu0 %v938
        %v940 = vpop.f32.mrf.mxu0
        %v941 = vadd.f32 %v846, %v940
        %v942 = vpop.f32.mrf.mxu0
        %943 = vdwg.mxu0
        %944 = vmatprep.subr.mxu0 0.0
        %945 = vmatpush1.msra.mxu0 0.0
        %946 = vmatprep.subr.mxu0 0.0
        %947 = vmatpush1.msra.mxu0 0.0
        %948 = vmatprep.subr.mxu0 0.0
        %949 = vmatpush1.msra.mxu0 0.0
        %950 = vmatprep.subr.mxu0 0.0
        %951 = vmatpush1.msra.mxu0 0.0
        %952 = vmatprep.subr.mxu0 0.0
        %953 = vmatpush1.msra.mxu0 0.0
        %954 = vmatprep.subr.mxu0 0.0
        %955 = vmatpush1.msra.mxu0 0.0
        %956 = vmatprep.subr.mxu0 0.0
        %957 = vmatpush1.msra.mxu0 0.0
        %958 = vmatprep.subr.mxu0 0.0
        %959 = vmatpush1.msra.mxu0 0.0
        %960 = vmatprep.subr.mxu0 0.0
        %v961 = vand.u32 %v624, 4294901760
        %962 = vmatpush1.msra.mxu0 %v961
        %963 = vmatprep.subr.mxu0 0.0
        %v964 = vand.u32 %v623, 4294901760
        %965 = vmatpush1.msra.mxu0 %v964
        %966 = vmatprep.subr.mxu0 0.0
        %v967 = vand.u32 %v622, 4294901760
        %968 = vmatpush1.msra.mxu0 %v967
        %969 = vmatprep.subr.mxu0 0.0
        %v970 = vand.u32 %v621, 4294901760
        %971 = vmatpush1.msra.mxu0 %v970
        %972 = vmatprep.subr.mxu0 0.0
        %v973 = vand.u32 %v620, 4294901760
        %974 = vmatpush1.msra.mxu0 %v973
        %975 = vmatprep.subr.mxu0 0.0
        %v976 = vand.u32 %v619, 4294901760
        %977 = vmatpush1.msra.mxu0 %v976
        %978 = vmatprep.subr.mxu0 0.0
        %v979 = vand.u32 %v618, 4294901760
        %980 = vmatpush1.msra.mxu0 %v979
        %981 = vmatprep.subr.mxu0 0.0
        %v982 = vand.u32 %v617, 4294901760
        %983 = vmatpush1.msra.mxu0 %v982
        %984 = vmatprep.subr.mxu0 0.0
        %985 = vmatpush2.msra.mxu0 0.0
        %986 = vmatprep.subr.mxu0 0.0
        %987 = vmatpush2.msra.mxu0 0.0
        %988 = vmatprep.subr.mxu0 0.0
        %989 = vmatpush2.msra.mxu0 0.0
        %990 = vmatprep.subr.mxu0 0.0
        %991 = vmatpush2.msra.mxu0 0.0
        %992 = vmatprep.subr.mxu0 0.0
        %993 = vmatpush2.msra.mxu0 0.0
        %994 = vmatprep.subr.mxu0 0.0
        %995 = vmatpush2.msra.mxu0 0.0
        %996 = vmatprep.subr.mxu0 0.0
        %997 = vmatpush2.msra.mxu0 0.0
        %998 = vmatprep.subr.mxu0 0.0
        %999 = vmatpush2.msra.mxu0 0.0
        %1000 = vmatprep.subr.mxu0 0.0
        %1001 = vmatpush2.msra.mxu0 0.0
        %1002 = vmatprep.subr.mxu0 0.0
        %1003 = vmatpush2.msra.mxu0 0.0
        %1004 = vmatprep.subr.mxu0 0.0
        %1005 = vmatpush2.msra.mxu0 0.0
        %1006 = vmatprep.subr.mxu0 0.0
        %1007 = vmatpush2.msra.mxu0 0.0
        %1008 = vmatprep.subr.mxu0 0.0
        %1009 = vmatpush2.msra.mxu0 0.0
        %1010 = vmatprep.subr.mxu0 0.0
        %1011 = vmatpush2.msra.mxu0 0.0
        %1012 = vmatprep.subr.mxu0 0.0
        %1013 = vmatpush2.msra.mxu0 0.0
        %1014 = vmatprep.subr.mxu0 0.0
        %1015 = vmatpush2.msra.mxu0 0.0
        %1016 = vmatprep.mubr.f32.mxu0 0.0
        %v1017 = vand.u32 %v634, 4294901760
        %v1018 = vsub.f32 %v634, %v1017
        %v1019 = vand.u32 %v1018, 4294901760
        %1020 = vmatmul.mubr.f32.gmra.mxu0 %v1019
        %v1021 = vpop.f32.mrf.mxu0
        %v1022 = vadd.f32 %v934, %v1021
        %v1023 = vpop.f32.mrf.mxu0
        %1024 = vmatprep.mubr.f32.mxu0 0.0
        %v1025 = vand.u32 %v637, 4294901760
        %v1026 = vsub.f32 %v637, %v1025
        %v1027 = vand.u32 %v1026, 4294901760
        %1028 = vmatmul.mubr.f32.gmra.mxu0 %v1027
        %v1029 = vpop.f32.mrf.mxu0
        %v1030 = vadd.f32 %v941, %v1029
        %v1031 = vpop.f32.mrf.mxu0
        %1032 = vdwg.mxu0
        %1033 = vmatprep.subr.mxu0 0.0
        %1034 = vmatpush1.msra.mxu0 0.0
        %1035 = vmatprep.subr.mxu0 0.0
        %1036 = vmatpush1.msra.mxu0 0.0
        %1037 = vmatprep.subr.mxu0 0.0
        %1038 = vmatpush1.msra.mxu0 0.0
        %1039 = vmatprep.subr.mxu0 0.0
        %1040 = vmatpush1.msra.mxu0 0.0
        %1041 = vmatprep.subr.mxu0 0.0
        %1042 = vmatpush1.msra.mxu0 0.0
        %1043 = vmatprep.subr.mxu0 0.0
        %1044 = vmatpush1.msra.mxu0 0.0
        %1045 = vmatprep.subr.mxu0 0.0
        %1046 = vmatpush1.msra.mxu0 0.0
        %1047 = vmatprep.subr.mxu0 0.0
        %1048 = vmatpush1.msra.mxu0 0.0
        %1049 = vmatprep.subr.mxu0 0.0
        %v1050 = vand.u32 %v624, 4294901760
        %v1051 = vsub.f32 %v624, %v1050
        %v1052 = vand.u32 %v1051, 4294901760
        %1053 = vmatpush1.msra.mxu0 %v1052
        %1054 = vmatprep.subr.mxu0 0.0
        %v1055 = vand.u32 %v623, 4294901760
        %v1056 = vsub.f32 %v623, %v1055
        %v1057 = vand.u32 %v1056, 4294901760
        %1058 = vmatpush1.msra.mxu0 %v1057
        %1059 = vmatprep.subr.mxu0 0.0
        %v1060 = vand.u32 %v622, 4294901760
        %v1061 = vsub.f32 %v622, %v1060
        %v1062 = vand.u32 %v1061, 4294901760
        %1063 = vmatpush1.msra.mxu0 %v1062
        %1064 = vmatprep.subr.mxu0 0.0
        %v1065 = vand.u32 %v621, 4294901760
        %v1066 = vsub.f32 %v621, %v1065
        %v1067 = vand.u32 %v1066, 4294901760
        %1068 = vmatpush1.msra.mxu0 %v1067
        %1069 = vmatprep.subr.mxu0 0.0
        %v1070 = vand.u32 %v620, 4294901760
        %v1071 = vsub.f32 %v620, %v1070
        %v1072 = vand.u32 %v1071, 4294901760
        %1073 = vmatpush1.msra.mxu0 %v1072
        %1074 = vmatprep.subr.mxu0 0.0
        %v1075 = vand.u32 %v619, 4294901760
        %v1076 = vsub.f32 %v619, %v1075
        %v1077 = vand.u32 %v1076, 4294901760
        %1078 = vmatpush1.msra.mxu0 %v1077
        %1079 = vmatprep.subr.mxu0 0.0
        %v1080 = vand.u32 %v618, 4294901760
        %v1081 = vsub.f32 %v618, %v1080
        %v1082 = vand.u32 %v1081, 4294901760
        %1083 = vmatpush1.msra.mxu0 %v1082
        %1084 = vmatprep.subr.mxu0 0.0
        %v1085 = vand.u32 %v617, 4294901760
        %v1086 = vsub.f32 %v617, %v1085
        %v1087 = vand.u32 %v1086, 4294901760
        %1088 = vmatpush1.msra.mxu0 %v1087
        %1089 = vmatprep.subr.mxu0 0.0
        %1090 = vmatpush2.msra.mxu0 0.0
        %1091 = vmatprep.subr.mxu0 0.0
        %1092 = vmatpush2.msra.mxu0 0.0
        %1093 = vmatprep.subr.mxu0 0.0
        %1094 = vmatpush2.msra.mxu0 0.0
        %1095 = vmatprep.subr.mxu0 0.0
        %1096 = vmatpush2.msra.mxu0 0.0
        %1097 = vmatprep.subr.mxu0 0.0
        %1098 = vmatpush2.msra.mxu0 0.0
        %1099 = vmatprep.subr.mxu0 0.0
        %1100 = vmatpush2.msra.mxu0 0.0
        %1101 = vmatprep.subr.mxu0 0.0
        %1102 = vmatpush2.msra.mxu0 0.0
        %1103 = vmatprep.subr.mxu0 0.0
        %1104 = vmatpush2.msra.mxu0 0.0
        %1105 = vmatprep.subr.mxu0 0.0
        %1106 = vmatpush2.msra.mxu0 0.0
        %1107 = vmatprep.subr.mxu0 0.0
        %1108 = vmatpush2.msra.mxu0 0.0
        %1109 = vmatprep.subr.mxu0 0.0
        %1110 = vmatpush2.msra.mxu0 0.0
        %1111 = vmatprep.subr.mxu0 0.0
        %1112 = vmatpush2.msra.mxu0 0.0
        %1113 = vmatprep.subr.mxu0 0.0
        %1114 = vmatpush2.msra.mxu0 0.0
        %1115 = vmatprep.subr.mxu0 0.0
        %1116 = vmatpush2.msra.mxu0 0.0
        %1117 = vmatprep.subr.mxu0 0.0
        %1118 = vmatpush2.msra.mxu0 0.0
        %1119 = vmatprep.subr.mxu0 0.0
        %1120 = vmatpush2.msra.mxu0 0.0
        %1121 = vmatprep.mubr.f32.mxu0 0.0
        %v1122 = vand.u32 %v634, 4294901760
        %1123 = vmatmul.mubr.f32.gmra.mxu0 %v1122
        %v1124 = vpop.f32.mrf.mxu0
        %v1125 = vadd.f32 %v1022, %v1124
        %v1126 = vpop.f32.mrf.mxu0
        %1127 = vmatprep.mubr.f32.mxu0 0.0
        %v1128 = vand.u32 %v637, 4294901760
        %1129 = vmatmul.mubr.f32.gmra.mxu0 %v1128
        %v1130 = vpop.f32.mrf.mxu0
        %v1131 = vadd.f32 %v1030, %v1130
        %v1132 = vpop.f32.mrf.mxu0
        %1133 = vdwg.mxu0
        %1134 = vmatprep.subr.mxu0 0.0
        %1135 = vmatpush1.msra.mxu0 0.0
        %1136 = vmatprep.subr.mxu0 0.0
        %1137 = vmatpush1.msra.mxu0 0.0
        %1138 = vmatprep.subr.mxu0 0.0
        %1139 = vmatpush1.msra.mxu0 0.0
        %1140 = vmatprep.subr.mxu0 0.0
        %1141 = vmatpush1.msra.mxu0 0.0
        %1142 = vmatprep.subr.mxu0 0.0
        %1143 = vmatpush1.msra.mxu0 0.0
        %1144 = vmatprep.subr.mxu0 0.0
        %1145 = vmatpush1.msra.mxu0 0.0
        %1146 = vmatprep.subr.mxu0 0.0
        %1147 = vmatpush1.msra.mxu0 0.0
        %1148 = vmatprep.subr.mxu0 0.0
        %1149 = vmatpush1.msra.mxu0 0.0
        %1150 = vmatprep.subr.mxu0 0.0
        %v1151 = vand.u32 %v624, 4294901760
        %1152 = vmatpush1.msra.mxu0 %v1151
        %1153 = vmatprep.subr.mxu0 0.0
        %v1154 = vand.u32 %v623, 4294901760
        %1155 = vmatpush1.msra.mxu0 %v1154
        %1156 = vmatprep.subr.mxu0 0.0
        %v1157 = vand.u32 %v622, 4294901760
        %1158 = vmatpush1.msra.mxu0 %v1157
        %1159 = vmatprep.subr.mxu0 0.0
        %v1160 = vand.u32 %v621, 4294901760
        %1161 = vmatpush1.msra.mxu0 %v1160
        %1162 = vmatprep.subr.mxu0 0.0
        %v1163 = vand.u32 %v620, 4294901760
        %1164 = vmatpush1.msra.mxu0 %v1163
        %1165 = vmatprep.subr.mxu0 0.0
        %v1166 = vand.u32 %v619, 4294901760
        %1167 = vmatpush1.msra.mxu0 %v1166
        %1168 = vmatprep.subr.mxu0 0.0
        %v1169 = vand.u32 %v618, 4294901760
        %1170 = vmatpush1.msra.mxu0 %v1169
        %1171 = vmatprep.subr.mxu0 0.0
        %v1172 = vand.u32 %v617, 4294901760
        %1173 = vmatpush1.msra.mxu0 %v1172
        %1174 = vmatprep.subr.mxu0 0.0
        %1175 = vmatpush2.msra.mxu0 0.0
        %1176 = vmatprep.subr.mxu0 0.0
        %1177 = vmatpush2.msra.mxu0 0.0
        %1178 = vmatprep.subr.mxu0 0.0
        %1179 = vmatpush2.msra.mxu0 0.0
        %1180 = vmatprep.subr.mxu0 0.0
        %1181 = vmatpush2.msra.mxu0 0.0
        %1182 = vmatprep.subr.mxu0 0.0
        %1183 = vmatpush2.msra.mxu0 0.0
        %1184 = vmatprep.subr.mxu0 0.0
        %1185 = vmatpush2.msra.mxu0 0.0
        %1186 = vmatprep.subr.mxu0 0.0
        %1187 = vmatpush2.msra.mxu0 0.0
        %1188 = vmatprep.subr.mxu0 0.0
        %1189 = vmatpush2.msra.mxu0 0.0
        %1190 = vmatprep.subr.mxu0 0.0
        %1191 = vmatpush2.msra.mxu0 0.0
        %1192 = vmatprep.subr.mxu0 0.0
        %1193 = vmatpush2.msra.mxu0 0.0
        %1194 = vmatprep.subr.mxu0 0.0
        %1195 = vmatpush2.msra.mxu0 0.0
        %1196 = vmatprep.subr.mxu0 0.0
        %1197 = vmatpush2.msra.mxu0 0.0
        %1198 = vmatprep.subr.mxu0 0.0
        %1199 = vmatpush2.msra.mxu0 0.0
        %1200 = vmatprep.subr.mxu0 0.0
        %1201 = vmatpush2.msra.mxu0 0.0
        %1202 = vmatprep.subr.mxu0 0.0
        %1203 = vmatpush2.msra.mxu0 0.0
        %1204 = vmatprep.subr.mxu0 0.0
        %1205 = vmatpush2.msra.mxu0 0.0
        %1206 = vmatprep.mubr.f32.mxu0 0.0
        %v1207 = vand.u32 %v634, 4294901760
        %1208 = vmatmul.mubr.f32.gmra.mxu0 %v1207
        %v1209 = vpop.f32.mrf.mxu0
        %v1210 = vadd.f32 %v1125, %v1209
        %v1211 = vpop.f32.mrf.mxu0
        %1212 = vmatprep.mubr.f32.mxu0 0.0
        %v1213 = vand.u32 %v637, 4294901760
        %1214 = vmatmul.mubr.f32.gmra.mxu0 %v1213
        %v1215 = vpop.f32.mrf.mxu0
        %v1216 = vadd.f32 %v1131, %v1215
        %v1217 = vpop.f32.mrf.mxu0
        %1218 = vdwg.mxu0
        %v1219 = vmax.f32 %v1210, 0.0
        %v1220 = vmax.f32 %v1216, 0.0
        %v1221 = vld [vmem:[%s4] sm:$0xff]
        %v1222 = vld [vmem:[%s4 + $0x8] sm:$0xff]
        %v1223 = vld [vmem:[%s4 + $0x10] sm:$0xff]
        %v1224 = vld [vmem:[%s4 + $0x18] sm:$0xff]
        %v1225 = vld [vmem:[%s4 + $0x20] sm:$0xff]
        %v1226 = vld [vmem:[%s4 + $0x28] sm:$0xff]
        %v1227 = vld [vmem:[%s4 + $0x30] sm:$0xff]
        %v1228 = vld [vmem:[%s4 + $0x38] sm:$0xff]
        %v1229 = vld [vmem:[%s5] sm:$0xff]
        %v1230 = vld [vmem:[%s5 + $0x8] sm:$0xff]
        %v1231 = vld [vmem:[%s5 + $0x10] sm:$0xff]
        %v1232 = vld [vmem:[%s5 + $0x18] sm:$0xff]
        %v1233 = vld [vmem:[%s5 + $0x20] sm:$0xff]
        %v1234 = vld [vmem:[%s5 + $0x28] sm:$0xff]
        %v1235 = vld [vmem:[%s5 + $0x30] sm:$0xff]
        %v1236 = vld [vmem:[%s5 + $0x38] sm:$0xff]
        %1238 = vset.pattern.permute.xlu0 0
        %1239 = vperm.xlu0 %1238, %v1229
        %v1240 = vpop.permute.xlu0 %1239
        %1243 = vset.pattern.permute.xlu0 0
        %1244 = vperm.xlu0 %1243, %v1230
        %v1245 = vpop.permute.xlu0 %1244
        %1248 = vset.pattern.permute.xlu0 0
        %1249 = vperm.xlu0 %1248, %v1231
        %v1250 = vpop.permute.xlu0 %1249
        %1253 = vset.pattern.permute.xlu0 0
        %1254 = vperm.xlu0 %1253, %v1232
        %v1255 = vpop.permute.xlu0 %1254
        %1258 = vset.pattern.permute.xlu0 0
        %1259 = vperm.xlu0 %1258, %v1233
        %v1260 = vpop.permute.xlu0 %1259
        %1263 = vset.pattern.permute.xlu0 0
        %1264 = vperm.xlu0 %1263, %v1234
        %v1265 = vpop.permute.xlu0 %1264
        %1268 = vset.pattern.permute.xlu0 0
        %1269 = vperm.xlu0 %1268, %v1235
        %v1270 = vpop.permute.xlu0 %1269
        %1273 = vset.pattern.permute.xlu0 0
        %1274 = vperm.xlu0 %1273, %v1236
        %v1275 = vpop.permute.xlu0 %1274
        %v1278 = vsel %vm632, %v1221, 0
        %v1281 = vsel %vm632, %v1222, 0
        %v1284 = vsel %vm632, %v1223, 0
        %v1287 = vsel %vm632, %v1224, 0
        %v1290 = vsel %vm632, %v1225, 0
        %v1293 = vsel %vm632, %v1226, 0
        %v1296 = vsel %vm632, %v1227, 0
        %v1299 = vsel %vm632, %v1228, 0
        %v1302 = vsel %vm632, %v1219, 0
        %v1305 = vsel %vm632, %v1220, 0
        %1307 = vmatprep.subr.mxu0 0.0
        %1308 = vmatpush1.xpose.msra.mxu0 0.0
        %1309 = vmatprep.subr.mxu0 0.0
        %1310 = vmatpush1.xpose.msra.mxu0 0.0
        %1311 = vmatprep.subr.mxu0 0.0
        %1312 = vmatpush1.xpose.msra.mxu0 0.0
        %1313 = vmatprep.subr.mxu0 0.0
        %1314 = vmatpush1.xpose.msra.mxu0 0.0
        %1315 = vmatprep.subr.mxu0 0.0
        %1316 = vmatpush1.xpose.msra.mxu0 0.0
        %1317 = vmatprep.subr.mxu0 0.0
        %1318 = vmatpush1.xpose.msra.mxu0 0.0
        %1319 = vmatprep.subr.mxu0 0.0
        %1320 = vmatpush1.xpose.msra.mxu0 0.0
        %1321 = vmatprep.subr.mxu0 0.0
        %1322 = vmatpush1.xpose.msra.mxu0 0.0
        %1323 = vmatprep.subr.mxu0 0.0
        %1324 = vmatpush1.xpose.msra.mxu0 0.0
        %1325 = vmatprep.subr.mxu0 0.0
        %1326 = vmatpush1.xpose.msra.mxu0 0.0
        %1327 = vmatprep.subr.mxu0 0.0
        %1328 = vmatpush1.xpose.msra.mxu0 0.0
        %1329 = vmatprep.subr.mxu0 0.0
        %1330 = vmatpush1.xpose.msra.mxu0 0.0
        %1331 = vmatprep.subr.mxu0 0.0
        %1332 = vmatpush1.xpose.msra.mxu0 0.0
        %1333 = vmatprep.subr.mxu0 0.0
        %1334 = vmatpush1.xpose.msra.mxu0 0.0
        %1335 = vmatprep.subr.mxu0 0.0
        %v1336 = vand.u32 %v1305, 4294901760
        %1337 = vmatpush1.xpose.msra.mxu0 %v1336
        %1338 = vmatprep.subr.mxu0 0.0
        %v1339 = vand.u32 %v1302, 4294901760
        %1340 = vmatpush1.xpose.msra.mxu0 %v1339
        %1341 = vmatprep.subr.mxu0 0.0
        %1342 = vmatpush2.xpose.msra.mxu0 0.0
        %1343 = vmatprep.subr.mxu0 0.0
        %1344 = vmatpush2.xpose.msra.mxu0 0.0
        %1345 = vmatprep.subr.mxu0 0.0
        %1346 = vmatpush2.xpose.msra.mxu0 0.0
        %1347 = vmatprep.subr.mxu0 0.0
        %1348 = vmatpush2.xpose.msra.mxu0 0.0
        %1349 = vmatprep.subr.mxu0 0.0
        %1350 = vmatpush2.xpose.msra.mxu0 0.0
        %1351 = vmatprep.subr.mxu0 0.0
        %1352 = vmatpush2.xpose.msra.mxu0 0.0
        %1353 = vmatprep.subr.mxu0 0.0
        %1354 = vmatpush2.xpose.msra.mxu0 0.0
        %1355 = vmatprep.subr.mxu0 0.0
        %1356 = vmatpush2.xpose.msra.mxu0 0.0
        %1357 = vmatprep.subr.mxu0 0.0
        %1358 = vmatpush2.xpose.msra.mxu0 0.0
        %1359 = vmatprep.subr.mxu0 0.0
        %1360 = vmatpush2.xpose.msra.mxu0 0.0
        %1361 = vmatprep.subr.mxu0 0.0
        %1362 = vmatpush2.xpose.msra.mxu0 0.0
        %1363 = vmatprep.subr.mxu0 0.0
        %1364 = vmatpush2.xpose.msra.mxu0 0.0
        %1365 = vmatprep.subr.mxu0 0.0
        %1366 = vmatpush2.xpose.msra.mxu0 0.0
        %1367 = vmatprep.subr.mxu0 0.0
        %1368 = vmatpush2.xpose.msra.mxu0 0.0
        %1369 = vmatprep.subr.mxu0 0.0
        %1370 = vmatpush2.xpose.msra.mxu0 0.0
        %1371 = vmatprep.subr.mxu0 0.0
        %1372 = vmatpush2.xpose.msra.mxu0 0.0
        %1373 = vmatprep.mubr.f32.mxu0 0.0
        %v1374 = vand.u32 %v1278, 4294901760
        %v1375 = vsub.f32 %v1278, %v1374
        %v1376 = vand.u32 %v1375, 4294901760
        %v1377 = vsub.f32 %v1375, %v1376
        %v1378 = vand.u32 %v1377, 4294901760
        %1379 = vmatmul.mubr.f32.gmra.mxu0 %v1378
        %v1380 = vpop.f32.mrf.mxu0
        %v1381 = vadd.f32 %v1240, %v1380
        %v1382 = vpop.f32.mrf.mxu0
        %1383 = vmatprep.mubr.f32.mxu0 0.0
        %v1384 = vand.u32 %v1281, 4294901760
        %v1385 = vsub.f32 %v1281, %v1384
        %v1386 = vand.u32 %v1385, 4294901760
        %v1387 = vsub.f32 %v1385, %v1386
        %v1388 = vand.u32 %v1387, 4294901760
        %1389 = vmatmul.mubr.f32.gmra.mxu0 %v1388
        %v1390 = vpop.f32.mrf.mxu0
        %v1391 = vadd.f32 %v1245, %v1390
        %v1392 = vpop.f32.mrf.mxu0
        %1393 = vmatprep.mubr.f32.mxu0 0.0
        %v1394 = vand.u32 %v1284, 4294901760
        %v1395 = vsub.f32 %v1284, %v1394
        %v1396 = vand.u32 %v1395, 4294901760
        %v1397 = vsub.f32 %v1395, %v1396
        %v1398 = vand.u32 %v1397, 4294901760
        %1399 = vmatmul.mubr.f32.gmra.mxu0 %v1398
        %v1400 = vpop.f32.mrf.mxu0
        %v1401 = vadd.f32 %v1250, %v1400
        %v1402 = vpop.f32.mrf.mxu0
        %1403 = vmatprep.mubr.f32.mxu0 0.0
        %v1404 = vand.u32 %v1287, 4294901760
        %v1405 = vsub.f32 %v1287, %v1404
        %v1406 = vand.u32 %v1405, 4294901760
        %v1407 = vsub.f32 %v1405, %v1406
        %v1408 = vand.u32 %v1407, 4294901760
        %1409 = vmatmul.mubr.f32.gmra.mxu0 %v1408
        %v1410 = vpop.f32.mrf.mxu0
        %v1411 = vadd.f32 %v1255, %v1410
        %v1412 = vpop.f32.mrf.mxu0
        %1413 = vmatprep.mubr.f32.mxu0 0.0
        %v1414 = vand.u32 %v1290, 4294901760
        %v1415 = vsub.f32 %v1290, %v1414
        %v1416 = vand.u32 %v1415, 4294901760
        %v1417 = vsub.f32 %v1415, %v1416
        %v1418 = vand.u32 %v1417, 4294901760
        %1419 = vmatmul.mubr.f32.gmra.mxu0 %v1418
        %v1420 = vpop.f32.mrf.mxu0
        %v1421 = vadd.f32 %v1260, %v1420
        %v1422 = vpop.f32.mrf.mxu0
        %1423 = vmatprep.mubr.f32.mxu0 0.0
        %v1424 = vand.u32 %v1293, 4294901760
        %v1425 = vsub.f32 %v1293, %v1424
        %v1426 = vand.u32 %v1425, 4294901760
        %v1427 = vsub.f32 %v1425, %v1426
        %v1428 = vand.u32 %v1427, 4294901760
        %1429 = vmatmul.mubr.f32.gmra.mxu0 %v1428
        %v1430 = vpop.f32.mrf.mxu0
        %v1431 = vadd.f32 %v1265, %v1430
        %v1432 = vpop.f32.mrf.mxu0
        %1433 = vmatprep.mubr.f32.mxu0 0.0
        %v1434 = vand.u32 %v1296, 4294901760
        %v1435 = vsub.f32 %v1296, %v1434
        %v1436 = vand.u32 %v1435, 4294901760
        %v1437 = vsub.f32 %v1435, %v1436
        %v1438 = vand.u32 %v1437, 4294901760
        %1439 = vmatmul.mubr.f32.gmra.mxu0 %v1438
        %v1440 = vpop.f32.mrf.mxu0
        %v1441 = vadd.f32 %v1270, %v1440
        %v1442 = vpop.f32.mrf.mxu0
        %1443 = vmatprep.mubr.f32.mxu0 0.0
        %v1444 = vand.u32 %v1299, 4294901760
        %v1445 = vsub.f32 %v1299, %v1444
        %v1446 = vand.u32 %v1445, 4294901760
        %v1447 = vsub.f32 %v1445, %v1446
        %v1448 = vand.u32 %v1447, 4294901760
        %1449 = vmatmul.mubr.f32.gmra.mxu0 %v1448
        %v1450 = vpop.f32.mrf.mxu0
        %v1451 = vadd.f32 %v1275, %v1450
        %v1452 = vpop.f32.mrf.mxu0
        %1453 = vdwg.mxu0
        %1454 = vmatprep.subr.mxu0 0.0
        %1455 = vmatpush1.xpose.msra.mxu0 0.0
        %1456 = vmatprep.subr.mxu0 0.0
        %1457 = vmatpush1.xpose.msra.mxu0 0.0
        %1458 = vmatprep.subr.mxu0 0.0
        %1459 = vmatpush1.xpose.msra.mxu0 0.0
        %1460 = vmatprep.subr.mxu0 0.0
        %1461 = vmatpush1.xpose.msra.mxu0 0.0
        %1462 = vmatprep.subr.mxu0 0.0
        %1463 = vmatpush1.xpose.msra.mxu0 0.0
        %1464 = vmatprep.subr.mxu0 0.0
        %1465 = vmatpush1.xpose.msra.mxu0 0.0
        %1466 = vmatprep.subr.mxu0 0.0
        %1467 = vmatpush1.xpose.msra.mxu0 0.0
        %1468 = vmatprep.subr.mxu0 0.0
        %1469 = vmatpush1.xpose.msra.mxu0 0.0
        %1470 = vmatprep.subr.mxu0 0.0
        %1471 = vmatpush1.xpose.msra.mxu0 0.0
        %1472 = vmatprep.subr.mxu0 0.0
        %1473 = vmatpush1.xpose.msra.mxu0 0.0
        %1474 = vmatprep.subr.mxu0 0.0
        %1475 = vmatpush1.xpose.msra.mxu0 0.0
        %1476 = vmatprep.subr.mxu0 0.0
        %1477 = vmatpush1.xpose.msra.mxu0 0.0
        %1478 = vmatprep.subr.mxu0 0.0
        %1479 = vmatpush1.xpose.msra.mxu0 0.0
        %1480 = vmatprep.subr.mxu0 0.0
        %1481 = vmatpush1.xpose.msra.mxu0 0.0
        %1482 = vmatprep.subr.mxu0 0.0
        %v1483 = vand.u32 %v1305, 4294901760
        %v1484 = vsub.f32 %v1305, %v1483
        %v1485 = vand.u32 %v1484, 4294901760
        %v1486 = vsub.f32 %v1484, %v1485
        %v1487 = vand.u32 %v1486, 4294901760
        %1488 = vmatpush1.xpose.msra.mxu0 %v1487
        %1489 = vmatprep.subr.mxu0 0.0
        %v1490 = vand.u32 %v1302, 4294901760
        %v1491 = vsub.f32 %v1302, %v1490
        %v1492 = vand.u32 %v1491, 4294901760
        %v1493 = vsub.f32 %v1491, %v1492
        %v1494 = vand.u32 %v1493, 4294901760
        %1495 = vmatpush1.xpose.msra.mxu0 %v1494
        %1496 = vmatprep.subr.mxu0 0.0
        %1497 = vmatpush2.xpose.msra.mxu0 0.0
        %1498 = vmatprep.subr.mxu0 0.0
        %1499 = vmatpush2.xpose.msra.mxu0 0.0
        %1500 = vmatprep.subr.mxu0 0.0
        %1501 = vmatpush2.xpose.msra.mxu0 0.0
        %1502 = vmatprep.subr.mxu0 0.0
        %1503 = vmatpush2.xpose.msra.mxu0 0.0
        %1504 = vmatprep.subr.mxu0 0.0
        %1505 = vmatpush2.xpose.msra.mxu0 0.0
        %1506 = vmatprep.subr.mxu0 0.0
        %1507 = vmatpush2.xpose.msra.mxu0 0.0
        %1508 = vmatprep.subr.mxu0 0.0
        %1509 = vmatpush2.xpose.msra.mxu0 0.0
        %1510 = vmatprep.subr.mxu0 0.0
        %1511 = vmatpush2.xpose.msra.mxu0 0.0
        %1512 = vmatprep.subr.mxu0 0.0
        %1513 = vmatpush2.xpose.msra.mxu0 0.0
        %1514 = vmatprep.subr.mxu0 0.0
        %1515 = vmatpush2.xpose.msra.mxu0 0.0
        %1516 = vmatprep.subr.mxu0 0.0
        %1517 = vmatpush2.xpose.msra.mxu0 0.0
        %1518 = vmatprep.subr.mxu0 0.0
        %1519 = vmatpush2.xpose.msra.mxu0 0.0
        %1520 = vmatprep.subr.mxu0 0.0
        %1521 = vmatpush2.xpose.msra.mxu0 0.0
        %1522 = vmatprep.subr.mxu0 0.0
        %1523 = vmatpush2.xpose.msra.mxu0 0.0
        %1524 = vmatprep.subr.mxu0 0.0
        %1525 = vmatpush2.xpose.msra.mxu0 0.0
        %1526 = vmatprep.subr.mxu0 0.0
        %1527 = vmatpush2.xpose.msra.mxu0 0.0
        %1528 = vmatprep.mubr.f32.mxu0 0.0
        %v1529 = vand.u32 %v1278, 4294901760
        %1530 = vmatmul.mubr.f32.gmra.mxu0 %v1529
        %v1531 = vpop.f32.mrf.mxu0
        %v1532 = vadd.f32 %v1381, %v1531
        %v1533 = vpop.f32.mrf.mxu0
        %1534 = vmatprep.mubr.f32.mxu0 0.0
        %v1535 = vand.u32 %v1281, 4294901760
        %1536 = vmatmul.mubr.f32.gmra.mxu0 %v1535
        %v1537 = vpop.f32.mrf.mxu0
        %v1538 = vadd.f32 %v1391, %v1537
        %v1539 = vpop.f32.mrf.mxu0
        %1540 = vmatprep.mubr.f32.mxu0 0.0
        %v1541 = vand.u32 %v1284, 4294901760
        %1542 = vmatmul.mubr.f32.gmra.mxu0 %v1541
        %v1543 = vpop.f32.mrf.mxu0
        %v1544 = vadd.f32 %v1401, %v1543
        %v1545 = vpop.f32.mrf.mxu0
        %1546 = vmatprep.mubr.f32.mxu0 0.0
        %v1547 = vand.u32 %v1287, 4294901760
        %1548 = vmatmul.mubr.f32.gmra.mxu0 %v1547
        %v1549 = vpop.f32.mrf.mxu0
        %v1550 = vadd.f32 %v1411, %v1549
        %v1551 = vpop.f32.mrf.mxu0
        %1552 = vmatprep.mubr.f32.mxu0 0.0
        %v1553 = vand.u32 %v1290, 4294901760
        %1554 = vmatmul.mubr.f32.gmra.mxu0 %v1553
        %v1555 = vpop.f32.mrf.mxu0
        %v1556 = vadd.f32 %v1421, %v1555
        %v1557 = vpop.f32.mrf.mxu0
        %1558 = vmatprep.mubr.f32.mxu0 0.0
        %v1559 = vand.u32 %v1293, 4294901760
        %1560 = vmatmul.mubr.f32.gmra.mxu0 %v1559
        %v1561 = vpop.f32.mrf.mxu0
        %v1562 = vadd.f32 %v1431, %v1561
        %v1563 = vpop.f32.mrf.mxu0
        %1564 = vmatprep.mubr.f32.mxu0 0.0
        %v1565 = vand.u32 %v1296, 4294901760
        %1566 = vmatmul.mubr.f32.gmra.mxu0 %v1565
        %v1567 = vpop.f32.mrf.mxu0
        %v1568 = vadd.f32 %v1441, %v1567
        %v1569 = vpop.f32.mrf.mxu0
        %1570 = vmatprep.mubr.f32.mxu0 0.0
        %v1571 = vand.u32 %v1299, 4294901760
        %1572 = vmatmul.mubr.f32.gmra.mxu0 %v1571
        %v1573 = vpop.f32.mrf.mxu0
        %v1574 = vadd.f32 %v1451, %v1573
        %v1575 = vpop.f32.mrf.mxu0
        %1576 = vdwg.mxu0
        %1577 = vmatprep.subr.mxu0 0.0
        %1578 = vmatpush1.xpose.msra.mxu0 0.0
        %1579 = vmatprep.subr.mxu0 0.0
        %1580 = vmatpush1.xpose.msra.mxu0 0.0
        %1581 = vmatprep.subr.mxu0 0.0
        %1582 = vmatpush1.xpose.msra.mxu0 0.0
        %1583 = vmatprep.subr.mxu0 0.0
        %1584 = vmatpush1.xpose.msra.mxu0 0.0
        %1585 = vmatprep.subr.mxu0 0.0
        %1586 = vmatpush1.xpose.msra.mxu0 0.0
        %1587 = vmatprep.subr.mxu0 0.0
        %1588 = vmatpush1.xpose.msra.mxu0 0.0
        %1589 = vmatprep.subr.mxu0 0.0
        %1590 = vmatpush1.xpose.msra.mxu0 0.0
        %1591 = vmatprep.subr.mxu0 0.0
        %1592 = vmatpush1.xpose.msra.mxu0 0.0
        %1593 = vmatprep.subr.mxu0 0.0
        %1594 = vmatpush1.xpose.msra.mxu0 0.0
        %1595 = vmatprep.subr.mxu0 0.0
        %1596 = vmatpush1.xpose.msra.mxu0 0.0
        %1597 = vmatprep.subr.mxu0 0.0
        %1598 = vmatpush1.xpose.msra.mxu0 0.0
        %1599 = vmatprep.subr.mxu0 0.0
        %1600 = vmatpush1.xpose.msra.mxu0 0.0
        %1601 = vmatprep.subr.mxu0 0.0
        %1602 = vmatpush1.xpose.msra.mxu0 0.0
        %1603 = vmatprep.subr.mxu0 0.0
        %1604 = vmatpush1.xpose.msra.mxu0 0.0
        %1605 = vmatprep.subr.mxu0 0.0
        %v1606 = vand.u32 %v1305, 4294901760
        %v1607 = vsub.f32 %v1305, %v1606
        %1608 = vmatpush1.xpose.msra.mxu0 %v1607
        %1609 = vmatprep.subr.mxu0 0.0
        %v1610 = vand.u32 %v1302, 4294901760
        %v1611 = vsub.f32 %v1302, %v1610
        %1612 = vmatpush1.xpose.msra.mxu0 %v1611
        %1613 = vmatprep.subr.mxu0 0.0
        %1614 = vmatpush2.xpose.msra.mxu0 0.0
        %1615 = vmatprep.subr.mxu0 0.0
        %1616 = vmatpush2.xpose.msra.mxu0 0.0
        %1617 = vmatprep.subr.mxu0 0.0
        %1618 = vmatpush2.xpose.msra.mxu0 0.0
        %1619 = vmatprep.subr.mxu0 0.0
        %1620 = vmatpush2.xpose.msra.mxu0 0.0
        %1621 = vmatprep.subr.mxu0 0.0
        %1622 = vmatpush2.xpose.msra.mxu0 0.0
        %1623 = vmatprep.subr.mxu0 0.0
        %1624 = vmatpush2.xpose.msra.mxu0 0.0
        %1625 = vmatprep.subr.mxu0 0.0
        %1626 = vmatpush2.xpose.msra.mxu0 0.0
        %1627 = vmatprep.subr.mxu0 0.0
        %1628 = vmatpush2.xpose.msra.mxu0 0.0
        %1629 = vmatprep.subr.mxu0 0.0
        %1630 = vmatpush2.xpose.msra.mxu0 0.0
        %1631 = vmatprep.subr.mxu0 0.0
        %1632 = vmatpush2.xpose.msra.mxu0 0.0
        %1633 = vmatprep.subr.mxu0 0.0
        %1634 = vmatpush2.xpose.msra.mxu0 0.0
        %1635 = vmatprep.subr.mxu0 0.0
        %1636 = vmatpush2.xpose.msra.mxu0 0.0
        %1637 = vmatprep.subr.mxu0 0.0
        %1638 = vmatpush2.xpose.msra.mxu0 0.0
        %1639 = vmatprep.subr.mxu0 0.0
        %1640 = vmatpush2.xpose.msra.mxu0 0.0
        %1641 = vmatprep.subr.mxu0 0.0
        %1642 = vmatpush2.xpose.msra.mxu0 0.0
        %1643 = vmatprep.subr.mxu0 0.0
        %1644 = vmatpush2.xpose.msra.mxu0 0.0
        %1645 = vmatprep.mubr.f32.mxu0 0.0
        %v1646 = vand.u32 %v1278, 4294901760
        %v1647 = vsub.f32 %v1278, %v1646
        %1648 = vmatmul.mubr.f32.gmra.mxu0 %v1647
        %v1649 = vpop.f32.mrf.mxu0
        %v1650 = vadd.f32 %v1532, %v1649
        %v1651 = vpop.f32.mrf.mxu0
        %1652 = vmatprep.mubr.f32.mxu0 0.0
        %v1653 = vand.u32 %v1281, 4294901760
        %v1654 = vsub.f32 %v1281, %v1653
        %1655 = vmatmul.mubr.f32.gmra.mxu0 %v1654
        %v1656 = vpop.f32.mrf.mxu0
        %v1657 = vadd.f32 %v1538, %v1656
        %v1658 = vpop.f32.mrf.mxu0
        %1659 = vmatprep.mubr.f32.mxu0 0.0
        %v1660 = vand.u32 %v1284, 4294901760
        %v1661 = vsub.f32 %v1284, %v1660
        %1662 = vmatmul.mubr.f32.gmra.mxu0 %v1661
        %v1663 = vpop.f32.mrf.mxu0
        %v1664 = vadd.f32 %v1544, %v1663
        %v1665 = vpop.f32.mrf.mxu0
        %1666 = vmatprep.mubr.f32.mxu0 0.0
        %v1667 = vand.u32 %v1287, 4294901760
        %v1668 = vsub.f32 %v1287, %v1667
        %1669 = vmatmul.mubr.f32.gmra.mxu0 %v1668
        %v1670 = vpop.f32.mrf.mxu0
        %v1671 = vadd.f32 %v1550, %v1670
        %v1672 = vpop.f32.mrf.mxu0
        %1673 = vmatprep.mubr.f32.mxu0 0.0
        %v1674 = vand.u32 %v1290, 4294901760
        %v1675 = vsub.f32 %v1290, %v1674
        %1676 = vmatmul.mubr.f32.gmra.mxu0 %v1675
        %v1677 = vpop.f32.mrf.mxu0
        %v1678 = vadd.f32 %v1556, %v1677
        %v1679 = vpop.f32.mrf.mxu0
        %1680 = vmatprep.mubr.f32.mxu0 0.0
        %v1681 = vand.u32 %v1293, 4294901760
        %v1682 = vsub.f32 %v1293, %v1681
        %1683 = vmatmul.mubr.f32.gmra.mxu0 %v1682
        %v1684 = vpop.f32.mrf.mxu0
        %v1685 = vadd.f32 %v1562, %v1684
        %v1686 = vpop.f32.mrf.mxu0
        %1687 = vmatprep.mubr.f32.mxu0 0.0
        %v1688 = vand.u32 %v1296, 4294901760
        %v1689 = vsub.f32 %v1296, %v1688
        %1690 = vmatmul.mubr.f32.gmra.mxu0 %v1689
        %v1691 = vpop.f32.mrf.mxu0
        %v1692 = vadd.f32 %v1568, %v1691
        %v1693 = vpop.f32.mrf.mxu0
        %1694 = vmatprep.mubr.f32.mxu0 0.0
        %v1695 = vand.u32 %v1299, 4294901760
        %v1696 = vsub.f32 %v1299, %v1695
        %1697 = vmatmul.mubr.f32.gmra.mxu0 %v1696
        %v1698 = vpop.f32.mrf.mxu0
        %v1699 = vadd.f32 %v1574, %v1698
        %v1700 = vpop.f32.mrf.mxu0
        %1701 = vdwg.mxu0
        %1702 = vmatprep.subr.mxu0 0.0
        %1703 = vmatpush1.xpose.msra.mxu0 0.0
        %1704 = vmatprep.subr.mxu0 0.0
        %1705 = vmatpush1.xpose.msra.mxu0 0.0
        %1706 = vmatprep.subr.mxu0 0.0
        %1707 = vmatpush1.xpose.msra.mxu0 0.0
        %1708 = vmatprep.subr.mxu0 0.0
        %1709 = vmatpush1.xpose.msra.mxu0 0.0
        %1710 = vmatprep.subr.mxu0 0.0
        %1711 = vmatpush1.xpose.msra.mxu0 0.0
        %1712 = vmatprep.subr.mxu0 0.0
        %1713 = vmatpush1.xpose.msra.mxu0 0.0
        %1714 = vmatprep.subr.mxu0 0.0
        %1715 = vmatpush1.xpose.msra.mxu0 0.0
        %1716 = vmatprep.subr.mxu0 0.0
        %1717 = vmatpush1.xpose.msra.mxu0 0.0
        %1718 = vmatprep.subr.mxu0 0.0
        %1719 = vmatpush1.xpose.msra.mxu0 0.0
        %1720 = vmatprep.subr.mxu0 0.0
        %1721 = vmatpush1.xpose.msra.mxu0 0.0
        %1722 = vmatprep.subr.mxu0 0.0
        %1723 = vmatpush1.xpose.msra.mxu0 0.0
        %1724 = vmatprep.subr.mxu0 0.0
        %1725 = vmatpush1.xpose.msra.mxu0 0.0
        %1726 = vmatprep.subr.mxu0 0.0
        %1727 = vmatpush1.xpose.msra.mxu0 0.0
        %1728 = vmatprep.subr.mxu0 0.0
        %1729 = vmatpush1.xpose.msra.mxu0 0.0
        %1730 = vmatprep.subr.mxu0 0.0
        %v1731 = vand.u32 %v1305, 4294901760
        %1732 = vmatpush1.xpose.msra.mxu0 %v1731
        %1733 = vmatprep.subr.mxu0 0.0
        %v1734 = vand.u32 %v1302, 4294901760
        %1735 = vmatpush1.xpose.msra.mxu0 %v1734
        %1736 = vmatprep.subr.mxu0 0.0
        %1737 = vmatpush2.xpose.msra.mxu0 0.0
        %1738 = vmatprep.subr.mxu0 0.0
        %1739 = vmatpush2.xpose.msra.mxu0 0.0
        %1740 = vmatprep.subr.mxu0 0.0
        %1741 = vmatpush2.xpose.msra.mxu0 0.0
        %1742 = vmatprep.subr.mxu0 0.0
        %1743 = vmatpush2.xpose.msra.mxu0 0.0
        %1744 = vmatprep.subr.mxu0 0.0
        %1745 = vmatpush2.xpose.msra.mxu0 0.0
        %1746 = vmatprep.subr.mxu0 0.0
        %1747 = vmatpush2.xpose.msra.mxu0 0.0
        %1748 = vmatprep.subr.mxu0 0.0
        %1749 = vmatpush2.xpose.msra.mxu0 0.0
        %1750 = vmatprep.subr.mxu0 0.0
        %1751 = vmatpush2.xpose.msra.mxu0 0.0
        %1752 = vmatprep.subr.mxu0 0.0
        %1753 = vmatpush2.xpose.msra.mxu0 0.0
        %1754 = vmatprep.subr.mxu0 0.0
        %1755 = vmatpush2.xpose.msra.mxu0 0.0
        %1756 = vmatprep.subr.mxu0 0.0
        %1757 = vmatpush2.xpose.msra.mxu0 0.0
        %1758 = vmatprep.subr.mxu0 0.0
        %1759 = vmatpush2.xpose.msra.mxu0 0.0
        %1760 = vmatprep.subr.mxu0 0.0
        %1761 = vmatpush2.xpose.msra.mxu0 0.0
        %1762 = vmatprep.subr.mxu0 0.0
        %1763 = vmatpush2.xpose.msra.mxu0 0.0
        %1764 = vmatprep.subr.mxu0 0.0
        %1765 = vmatpush2.xpose.msra.mxu0 0.0
        %1766 = vmatprep.subr.mxu0 0.0
        %1767 = vmatpush2.xpose.msra.mxu0 0.0
        %1768 = vmatprep.mubr.f32.mxu0 0.0
        %v1769 = vand.u32 %v1278, 4294901760
        %v1770 = vsub.f32 %v1278, %v1769
        %v1771 = vand.u32 %v1770, 4294901760
        %1772 = vmatmul.mubr.f32.gmra.mxu0 %v1771
        %v1773 = vpop.f32.mrf.mxu0
        %v1774 = vadd.f32 %v1650, %v1773
        %v1775 = vpop.f32.mrf.mxu0
        %1776 = vmatprep.mubr.f32.mxu0 0.0
        %v1777 = vand.u32 %v1281, 4294901760
        %v1778 = vsub.f32 %v1281, %v1777
        %v1779 = vand.u32 %v1778, 4294901760
        %1780 = vmatmul.mubr.f32.gmra.mxu0 %v1779
        %v1781 = vpop.f32.mrf.mxu0
        %v1782 = vadd.f32 %v1657, %v1781
        %v1783 = vpop.f32.mrf.mxu0
        %1784 = vmatprep.mubr.f32.mxu0 0.0
        %v1785 = vand.u32 %v1284, 4294901760
        %v1786 = vsub.f32 %v1284, %v1785
        %v1787 = vand.u32 %v1786, 4294901760
        %1788 = vmatmul.mubr.f32.gmra.mxu0 %v1787
        %v1789 = vpop.f32.mrf.mxu0
        %v1790 = vadd.f32 %v1664, %v1789
        %v1791 = vpop.f32.mrf.mxu0
        %1792 = vmatprep.mubr.f32.mxu0 0.0
        %v1793 = vand.u32 %v1287, 4294901760
        %v1794 = vsub.f32 %v1287, %v1793
        %v1795 = vand.u32 %v1794, 4294901760
        %1796 = vmatmul.mubr.f32.gmra.mxu0 %v1795
        %v1797 = vpop.f32.mrf.mxu0
        %v1798 = vadd.f32 %v1671, %v1797
        %v1799 = vpop.f32.mrf.mxu0
        %1800 = vmatprep.mubr.f32.mxu0 0.0
        %v1801 = vand.u32 %v1290, 4294901760
        %v1802 = vsub.f32 %v1290, %v1801
        %v1803 = vand.u32 %v1802, 4294901760
        %1804 = vmatmul.mubr.f32.gmra.mxu0 %v1803
        %v1805 = vpop.f32.mrf.mxu0
        %v1806 = vadd.f32 %v1678, %v1805
        %v1807 = vpop.f32.mrf.mxu0
        %1808 = vmatprep.mubr.f32.mxu0 0.0
        %v1809 = vand.u32 %v1293, 4294901760
        %v1810 = vsub.f32 %v1293, %v1809
        %v1811 = vand.u32 %v1810, 4294901760
        %1812 = vmatmul.mubr.f32.gmra.mxu0 %v1811
        %v1813 = vpop.f32.mrf.mxu0
        %v1814 = vadd.f32 %v1685, %v1813
        %v1815 = vpop.f32.mrf.mxu0
        %1816 = vmatprep.mubr.f32.mxu0 0.0
        %v1817 = vand.u32 %v1296, 4294901760
        %v1818 = vsub.f32 %v1296, %v1817
        %v1819 = vand.u32 %v1818, 4294901760
        %1820 = vmatmul.mubr.f32.gmra.mxu0 %v1819
        %v1821 = vpop.f32.mrf.mxu0
        %v1822 = vadd.f32 %v1692, %v1821
        %v1823 = vpop.f32.mrf.mxu0
        %1824 = vmatprep.mubr.f32.mxu0 0.0
        %v1825 = vand.u32 %v1299, 4294901760
        %v1826 = vsub.f32 %v1299, %v1825
        %v1827 = vand.u32 %v1826, 4294901760
        %1828 = vmatmul.mubr.f32.gmra.mxu0 %v1827
        %v1829 = vpop.f32.mrf.mxu0
        %v1830 = vadd.f32 %v1699, %v1829
        %v1831 = vpop.f32.mrf.mxu0
        %1832 = vdwg.mxu0
        %1833 = vmatprep.subr.mxu0 0.0
        %1834 = vmatpush1.xpose.msra.mxu0 0.0
        %1835 = vmatprep.subr.mxu0 0.0
        %1836 = vmatpush1.xpose.msra.mxu0 0.0
        %1837 = vmatprep.subr.mxu0 0.0
        %1838 = vmatpush1.xpose.msra.mxu0 0.0
        %1839 = vmatprep.subr.mxu0 0.0
        %1840 = vmatpush1.xpose.msra.mxu0 0.0
        %1841 = vmatprep.subr.mxu0 0.0
        %1842 = vmatpush1.xpose.msra.mxu0 0.0
        %1843 = vmatprep.subr.mxu0 0.0
        %1844 = vmatpush1.xpose.msra.mxu0 0.0
        %1845 = vmatprep.subr.mxu0 0.0
        %1846 = vmatpush1.xpose.msra.mxu0 0.0
        %1847 = vmatprep.subr.mxu0 0.0
        %1848 = vmatpush1.xpose.msra.mxu0 0.0
        %1849 = vmatprep.subr.mxu0 0.0
        %1850 = vmatpush1.xpose.msra.mxu0 0.0
        %1851 = vmatprep.subr.mxu0 0.0
        %1852 = vmatpush1.xpose.msra.mxu0 0.0
        %1853 = vmatprep.subr.mxu0 0.0
        %1854 = vmatpush1.xpose.msra.mxu0 0.0
        %1855 = vmatprep.subr.mxu0 0.0
        %1856 = vmatpush1.xpose.msra.mxu0 0.0
        %1857 = vmatprep.subr.mxu0 0.0
        %1858 = vmatpush1.xpose.msra.mxu0 0.0
        %1859 = vmatprep.subr.mxu0 0.0
        %1860 = vmatpush1.xpose.msra.mxu0 0.0
        %1861 = vmatprep.subr.mxu0 0.0
        %v1862 = vand.u32 %v1305, 4294901760
        %v1863 = vsub.f32 %v1305, %v1862
        %v1864 = vand.u32 %v1863, 4294901760
        %1865 = vmatpush1.xpose.msra.mxu0 %v1864
        %1866 = vmatprep.subr.mxu0 0.0
        %v1867 = vand.u32 %v1302, 4294901760
        %v1868 = vsub.f32 %v1302, %v1867
        %v1869 = vand.u32 %v1868, 4294901760
        %1870 = vmatpush1.xpose.msra.mxu0 %v1869
        %1871 = vmatprep.subr.mxu0 0.0
        %1872 = vmatpush2.xpose.msra.mxu0 0.0
        %1873 = vmatprep.subr.mxu0 0.0
        %1874 = vmatpush2.xpose.msra.mxu0 0.0
        %1875 = vmatprep.subr.mxu0 0.0
        %1876 = vmatpush2.xpose.msra.mxu0 0.0
        %1877 = vmatprep.subr.mxu0 0.0
        %1878 = vmatpush2.xpose.msra.mxu0 0.0
        %1879 = vmatprep.subr.mxu0 0.0
        %1880 = vmatpush2.xpose.msra.mxu0 0.0
        %1881 = vmatprep.subr.mxu0 0.0
        %1882 = vmatpush2.xpose.msra.mxu0 0.0
        %1883 = vmatprep.subr.mxu0 0.0
        %1884 = vmatpush2.xpose.msra.mxu0 0.0
        %1885 = vmatprep.subr.mxu0 0.0
        %1886 = vmatpush2.xpose.msra.mxu0 0.0
        %1887 = vmatprep.subr.mxu0 0.0
        %1888 = vmatpush2.xpose.msra.mxu0 0.0
        %1889 = vmatprep.subr.mxu0 0.0
        %1890 = vmatpush2.xpose.msra.mxu0 0.0
        %1891 = vmatprep.subr.mxu0 0.0
        %1892 = vmatpush2.xpose.msra.mxu0 0.0
        %1893 = vmatprep.subr.mxu0 0.0
        %1894 = vmatpush2.xpose.msra.mxu0 0.0
        %1895 = vmatprep.subr.mxu0 0.0
        %1896 = vmatpush2.xpose.msra.mxu0 0.0
        %1897 = vmatprep.subr.mxu0 0.0
        %1898 = vmatpush2.xpose.msra.mxu0 0.0
        %1899 = vmatprep.subr.mxu0 0.0
        %1900 = vmatpush2.xpose.msra.mxu0 0.0
        %1901 = vmatprep.subr.mxu0 0.0
        %1902 = vmatpush2.xpose.msra.mxu0 0.0
        %1903 = vmatprep.mubr.f32.mxu0 0.0
        %v1904 = vand.u32 %v1278, 4294901760
        %1905 = vmatmul.mubr.f32.gmra.mxu0 %v1904
        %v1906 = vpop.f32.mrf.mxu0
        %v1907 = vadd.f32 %v1774, %v1906
        %v1908 = vpop.f32.mrf.mxu0
        %1909 = vmatprep.mubr.f32.mxu0 0.0
        %v1910 = vand.u32 %v1281, 4294901760
        %1911 = vmatmul.mubr.f32.gmra.mxu0 %v1910
        %v1912 = vpop.f32.mrf.mxu0
        %v1913 = vadd.f32 %v1782, %v1912
        %v1914 = vpop.f32.mrf.mxu0
        %1915 = vmatprep.mubr.f32.mxu0 0.0
        %v1916 = vand.u32 %v1284, 4294901760
        %1917 = vmatmul.mubr.f32.gmra.mxu0 %v1916
        %v1918 = vpop.f32.mrf.mxu0
        %v1919 = vadd.f32 %v1790, %v1918
        %v1920 = vpop.f32.mrf.mxu0
        %1921 = vmatprep.mubr.f32.mxu0 0.0
        %v1922 = vand.u32 %v1287, 4294901760
        %1923 = vmatmul.mubr.f32.gmra.mxu0 %v1922
        %v1924 = vpop.f32.mrf.mxu0
        %v1925 = vadd.f32 %v1798, %v1924
        %v1926 = vpop.f32.mrf.mxu0
        %1927 = vmatprep.mubr.f32.mxu0 0.0
        %v1928 = vand.u32 %v1290, 4294901760
        %1929 = vmatmul.mubr.f32.gmra.mxu0 %v1928
        %v1930 = vpop.f32.mrf.mxu0
        %v1931 = vadd.f32 %v1806, %v1930
        %v1932 = vpop.f32.mrf.mxu0
        %1933 = vmatprep.mubr.f32.mxu0 0.0
        %v1934 = vand.u32 %v1293, 4294901760
        %1935 = vmatmul.mubr.f32.gmra.mxu0 %v1934
        %v1936 = vpop.f32.mrf.mxu0
        %v1937 = vadd.f32 %v1814, %v1936
        %v1938 = vpop.f32.mrf.mxu0
        %1939 = vmatprep.mubr.f32.mxu0 0.0
        %v1940 = vand.u32 %v1296, 4294901760
        %1941 = vmatmul.mubr.f32.gmra.mxu0 %v1940
        %v1942 = vpop.f32.mrf.mxu0
        %v1943 = vadd.f32 %v1822, %v1942
        %v1944 = vpop.f32.mrf.mxu0
        %1945 = vmatprep.mubr.f32.mxu0 0.0
        %v1946 = vand.u32 %v1299, 4294901760
        %1947 = vmatmul.mubr.f32.gmra.mxu0 %v1946
        %v1948 = vpop.f32.mrf.mxu0
        %v1949 = vadd.f32 %v1830, %v1948
        %v1950 = vpop.f32.mrf.mxu0
        %1951 = vdwg.mxu0
        %1952 = vmatprep.subr.mxu0 0.0
        %1953 = vmatpush1.xpose.msra.mxu0 0.0
        %1954 = vmatprep.subr.mxu0 0.0
        %1955 = vmatpush1.xpose.msra.mxu0 0.0
        %1956 = vmatprep.subr.mxu0 0.0
        %1957 = vmatpush1.xpose.msra.mxu0 0.0
        %1958 = vmatprep.subr.mxu0 0.0
        %1959 = vmatpush1.xpose.msra.mxu0 0.0
        %1960 = vmatprep.subr.mxu0 0.0
        %1961 = vmatpush1.xpose.msra.mxu0 0.0
        %1962 = vmatprep.subr.mxu0 0.0
        %1963 = vmatpush1.xpose.msra.mxu0 0.0
        %1964 = vmatprep.subr.mxu0 0.0
        %1965 = vmatpush1.xpose.msra.mxu0 0.0
        %1966 = vmatprep.subr.mxu0 0.0
        %1967 = vmatpush1.xpose.msra.mxu0 0.0
        %1968 = vmatprep.subr.mxu0 0.0
        %1969 = vmatpush1.xpose.msra.mxu0 0.0
        %1970 = vmatprep.subr.mxu0 0.0
        %1971 = vmatpush1.xpose.msra.mxu0 0.0
        %1972 = vmatprep.subr.mxu0 0.0
        %1973 = vmatpush1.xpose.msra.mxu0 0.0
        %1974 = vmatprep.subr.mxu0 0.0
        %1975 = vmatpush1.xpose.msra.mxu0 0.0
        %1976 = vmatprep.subr.mxu0 0.0
        %1977 = vmatpush1.xpose.msra.mxu0 0.0
        %1978 = vmatprep.subr.mxu0 0.0
        %1979 = vmatpush1.xpose.msra.mxu0 0.0
        %1980 = vmatprep.subr.mxu0 0.0
        %v1981 = vand.u32 %v1305, 4294901760
        %1982 = vmatpush1.xpose.msra.mxu0 %v1981
        %1983 = vmatprep.subr.mxu0 0.0
        %v1984 = vand.u32 %v1302, 4294901760
        %1985 = vmatpush1.xpose.msra.mxu0 %v1984
        %1986 = vmatprep.subr.mxu0 0.0
        %1987 = vmatpush2.xpose.msra.mxu0 0.0
        %1988 = vmatprep.subr.mxu0 0.0
        %1989 = vmatpush2.xpose.msra.mxu0 0.0
        %1990 = vmatprep.subr.mxu0 0.0
        %1991 = vmatpush2.xpose.msra.mxu0 0.0
        %1992 = vmatprep.subr.mxu0 0.0
        %1993 = vmatpush2.xpose.msra.mxu0 0.0
        %1994 = vmatprep.subr.mxu0 0.0
        %1995 = vmatpush2.xpose.msra.mxu0 0.0
        %1996 = vmatprep.subr.mxu0 0.0
        %1997 = vmatpush2.xpose.msra.mxu0 0.0
        %1998 = vmatprep.subr.mxu0 0.0
        %1999 = vmatpush2.xpose.msra.mxu0 0.0
        %2000 = vmatprep.subr.mxu0 0.0
        %2001 = vmatpush2.xpose.msra.mxu0 0.0
        %2002 = vmatprep.subr.mxu0 0.0
        %2003 = vmatpush2.xpose.msra.mxu0 0.0
        %2004 = vmatprep.subr.mxu0 0.0
        %2005 = vmatpush2.xpose.msra.mxu0 0.0
        %2006 = vmatprep.subr.mxu0 0.0
        %2007 = vmatpush2.xpose.msra.mxu0 0.0
        %2008 = vmatprep.subr.mxu0 0.0
        %2009 = vmatpush2.xpose.msra.mxu0 0.0
        %2010 = vmatprep.subr.mxu0 0.0
        %2011 = vmatpush2.xpose.msra.mxu0 0.0
        %2012 = vmatprep.subr.mxu0 0.0
        %2013 = vmatpush2.xpose.msra.mxu0 0.0
        %2014 = vmatprep.subr.mxu0 0.0
        %2015 = vmatpush2.xpose.msra.mxu0 0.0
        %2016 = vmatprep.subr.mxu0 0.0
        %2017 = vmatpush2.xpose.msra.mxu0 0.0
        %2018 = vmatprep.mubr.f32.mxu0 0.0
        %v2019 = vand.u32 %v1278, 4294901760
        %2020 = vmatmul.mubr.f32.gmra.mxu0 %v2019
        %v2021 = vpop.f32.mrf.mxu0
        %v2022 = vadd.f32 %v1907, %v2021
        %v2023 = vpop.f32.mrf.mxu0
        %2024 = vmatprep.mubr.f32.mxu0 0.0
        %v2025 = vand.u32 %v1281, 4294901760
        %2026 = vmatmul.mubr.f32.gmra.mxu0 %v2025
        %v2027 = vpop.f32.mrf.mxu0
        %v2028 = vadd.f32 %v1913, %v2027
        %v2029 = vpop.f32.mrf.mxu0
        %2030 = vmatprep.mubr.f32.mxu0 0.0
        %v2031 = vand.u32 %v1284, 4294901760
        %2032 = vmatmul.mubr.f32.gmra.mxu0 %v2031
        %v2033 = vpop.f32.mrf.mxu0
        %v2034 = vadd.f32 %v1919, %v2033
        %v2035 = vpop.f32.mrf.mxu0
        %2036 = vmatprep.mubr.f32.mxu0 0.0
        %v2037 = vand.u32 %v1287, 4294901760
        %2038 = vmatmul.mubr.f32.gmra.mxu0 %v2037
        %v2039 = vpop.f32.mrf.mxu0
        %v2040 = vadd.f32 %v1925, %v2039
        %v2041 = vpop.f32.mrf.mxu0
        %2042 = vmatprep.mubr.f32.mxu0 0.0
        %v2043 = vand.u32 %v1290, 4294901760
        %2044 = vmatmul.mubr.f32.gmra.mxu0 %v2043
        %v2045 = vpop.f32.mrf.mxu0
        %v2046 = vadd.f32 %v1931, %v2045
        %v2047 = vpop.f32.mrf.mxu0
        %2048 = vmatprep.mubr.f32.mxu0 0.0
        %v2049 = vand.u32 %v1293, 4294901760
        %2050 = vmatmul.mubr.f32.gmra.mxu0 %v2049
        %v2051 = vpop.f32.mrf.mxu0
        %v2052 = vadd.f32 %v1937, %v2051
        %v2053 = vpop.f32.mrf.mxu0
        %2054 = vmatprep.mubr.f32.mxu0 0.0
        %v2055 = vand.u32 %v1296, 4294901760
        %2056 = vmatmul.mubr.f32.gmra.mxu0 %v2055
        %v2057 = vpop.f32.mrf.mxu0
        %v2058 = vadd.f32 %v1943, %v2057
        %v2059 = vpop.f32.mrf.mxu0
        %2060 = vmatprep.mubr.f32.mxu0 0.0
        %v2061 = vand.u32 %v1299, 4294901760
        %2062 = vmatmul.mubr.f32.gmra.mxu0 %v2061
        %v2063 = vpop.f32.mrf.mxu0
        %v2064 = vadd.f32 %v1949, %v2063
        %v2065 = vpop.f32.mrf.mxu0
        %2066 = vdwg.mxu0
        %vm2067 = vcmask 130048
        %v2068 = vsel %vm2067, %v2022, -inf
        %2069 = vmax.xlane.f32.xlu0 %v2068
        %v2070 = vpop.xlane.xlu0 %2069
        %v2071 = vsel %vm2067, %v2028, -inf
        %2072 = vmax.xlane.f32.xlu0 %v2071
        %v2073 = vpop.xlane.xlu0 %2072
        %v2074 = vsel %vm2067, %v2034, -inf
        %2075 = vmax.xlane.f32.xlu0 %v2074
        %v2076 = vpop.xlane.xlu0 %2075
        %v2077 = vsel %vm2067, %v2040, -inf
        %2078 = vmax.xlane.f32.xlu0 %v2077
        %v2079 = vpop.xlane.xlu0 %2078
        %v2080 = vsel %vm2067, %v2046, -inf
        %2081 = vmax.xlane.f32.xlu0 %v2080
        %v2082 = vpop.xlane.xlu0 %2081
        %v2083 = vsel %vm2067, %v2052, -inf
        %2084 = vmax.xlane.f32.xlu0 %v2083
        %v2085 = vpop.xlane.xlu0 %2084
        %v2086 = vsel %vm2067, %v2058, -inf
        %2087 = vmax.xlane.f32.xlu0 %v2086
        %v2088 = vpop.xlane.xlu0 %2087
        %v2089 = vsel %vm2067, %v2064, -inf
        %2090 = vmax.xlane.f32.xlu0 %v2089
        %v2091 = vpop.xlane.xlu0 %2090
        %v2092 = vsub.f32 %v2022, %v2070
        %v2093 = vsub.f32 %v2028, %v2073
        %v2094 = vsub.f32 %v2034, %v2076
        %v2095 = vsub.f32 %v2040, %v2079
        %v2096 = vsub.f32 %v2046, %v2082
        %v2097 = vsub.f32 %v2052, %v2085
        %v2098 = vsub.f32 %v2058, %v2088
        %v2099 = vsub.f32 %v2064, %v2091
        %v2100 = vmul.f32 %v2092, 1.442695
        %v2101 = vpow.pop %v2100
        %v2102 = vmul.f32 %v2093, 1.442695
        %v2103 = vpow.pop %v2102
        %v2104 = vmul.f32 %v2094, 1.442695
        %v2105 = vpow.pop %v2104
        %v2106 = vmul.f32 %v2095, 1.442695
        %v2107 = vpow.pop %v2106
        %v2108 = vmul.f32 %v2096, 1.442695
        %v2109 = vpow.pop %v2108
        %v2110 = vmul.f32 %v2097, 1.442695
        %v2111 = vpow.pop %v2110
        %v2112 = vmul.f32 %v2098, 1.442695
        %v2113 = vpow.pop %v2112
        %v2114 = vmul.f32 %v2099, 1.442695
        %v2115 = vpow.pop %v2114
        %v2116 = vsel %vm2067, %v2101, 0.0
        %2117 = vadd.xlane.f32.xlu0 %v2116
        %v2118 = vpop.xlane.xlu0 %2117
        %v2119 = vsel %vm2067, %v2103, 0.0
        %2120 = vadd.xlane.f32.xlu0 %v2119
        %v2121 = vpop.xlane.xlu0 %2120
        %v2122 = vsel %vm2067, %v2105, 0.0
        %2123 = vadd.xlane.f32.xlu0 %v2122
        %v2124 = vpop.xlane.xlu0 %2123
        %v2125 = vsel %vm2067, %v2107, 0.0
        %2126 = vadd.xlane.f32.xlu0 %v2125
        %v2127 = vpop.xlane.xlu0 %2126
        %v2128 = vsel %vm2067, %v2109, 0.0
        %2129 = vadd.xlane.f32.xlu0 %v2128
        %v2130 = vpop.xlane.xlu0 %2129
        %v2131 = vsel %vm2067, %v2111, 0.0
        %2132 = vadd.xlane.f32.xlu0 %v2131
        %v2133 = vpop.xlane.xlu0 %2132
        %v2134 = vsel %vm2067, %v2113, 0.0
        %2135 = vadd.xlane.f32.xlu0 %v2134
        %v2136 = vpop.xlane.xlu0 %2135
        %v2137 = vsel %vm2067, %v2115, 0.0
        %2138 = vadd.xlane.f32.xlu0 %v2137
        %v2139 = vpop.xlane.xlu0 %2138
        %v2140 = vrcp.pop %v2118
        %v2141 = vmul.f32 %v2101, %v2140
        %v2142 = vrcp.pop %v2121
        %v2143 = vmul.f32 %v2103, %v2142
        %v2144 = vrcp.pop %v2124
        %v2145 = vmul.f32 %v2105, %v2144
        %v2146 = vrcp.pop %v2127
        %v2147 = vmul.f32 %v2107, %v2146
        %v2148 = vrcp.pop %v2130
        %v2149 = vmul.f32 %v2109, %v2148
        %v2150 = vrcp.pop %v2133
        %v2151 = vmul.f32 %v2111, %v2150
        %v2152 = vrcp.pop %v2136
        %v2153 = vmul.f32 %v2113, %v2152
        %v2154 = vrcp.pop %v2139
        %v2155 = vmul.f32 %v2115, %v2154
        %v2157 = vsel %vm2067, %v2141, 0
        %v2160 = vsel %vm2067, %v2143, 0
        %v2163 = vsel %vm2067, %v2145, 0
        %v2166 = vsel %vm2067, %v2147, 0
        %v2169 = vsel %vm2067, %v2149, 0
        %v2172 = vsel %vm2067, %v2151, 0
        %v2175 = vsel %vm2067, %v2153, 0
        %v2178 = vsel %vm2067, %v2155, 0
        %2180 = vmatprep.subr.mxu0 0.0
        %2181 = vmatpush1.msra.mxu0 0.0
        %2182 = vmatprep.subr.mxu0 0.0
        %2183 = vmatpush1.msra.mxu0 0.0
        %2184 = vmatprep.subr.mxu0 0.0
        %2185 = vmatpush1.msra.mxu0 0.0
        %2186 = vmatprep.subr.mxu0 0.0
        %2187 = vmatpush1.msra.mxu0 0.0
        %2188 = vmatprep.subr.mxu0 0.0
        %2189 = vmatpush1.msra.mxu0 0.0
        %2190 = vmatprep.subr.mxu0 0.0
        %2191 = vmatpush1.msra.mxu0 0.0
        %2192 = vmatprep.subr.mxu0 0.0
        %2193 = vmatpush1.msra.mxu0 0.0
        %2194 = vmatprep.subr.mxu0 0.0
        %2195 = vmatpush1.msra.mxu0 0.0
        %2196 = vmatprep.subr.mxu0 0.0
        %2197 = vmatpush1.msra.mxu0 0.0
        %2198 = vmatprep.subr.mxu0 0.0
        %2199 = vmatpush1.msra.mxu0 0.0
        %2200 = vmatprep.subr.mxu0 0.0
        %2201 = vmatpush1.msra.mxu0 0.0
        %2202 = vmatprep.subr.mxu0 0.0
        %2203 = vmatpush1.msra.mxu0 0.0
        %2204 = vmatprep.subr.mxu0 0.0
        %2205 = vmatpush1.msra.mxu0 0.0
        %2206 = vmatprep.subr.mxu0 0.0
        %2207 = vmatpush1.msra.mxu0 0.0
        %2208 = vmatprep.subr.mxu0 0.0
        %v2209 = vand.u32 %v1220, 4294901760
        %2210 = vmatpush1.msra.mxu0 %v2209
        %2211 = vmatprep.subr.mxu0 0.0
        %v2212 = vand.u32 %v1219, 4294901760
        %2213 = vmatpush1.msra.mxu0 %v2212
        %2214 = vmatprep.subr.mxu0 0.0
        %2215 = vmatpush2.msra.mxu0 0.0
        %2216 = vmatprep.subr.mxu0 0.0
        %2217 = vmatpush2.msra.mxu0 0.0
        %2218 = vmatprep.subr.mxu0 0.0
        %2219 = vmatpush2.msra.mxu0 0.0
        %2220 = vmatprep.subr.mxu0 0.0
        %2221 = vmatpush2.msra.mxu0 0.0
        %2222 = vmatprep.subr.mxu0 0.0
        %2223 = vmatpush2.msra.mxu0 0.0
        %2224 = vmatprep.subr.mxu0 0.0
        %2225 = vmatpush2.msra.mxu0 0.0
        %2226 = vmatprep.subr.mxu0 0.0
        %2227 = vmatpush2.msra.mxu0 0.0
        %2228 = vmatprep.subr.mxu0 0.0
        %2229 = vmatpush2.msra.mxu0 0.0
        %2230 = vmatprep.subr.mxu0 0.0
        %2231 = vmatpush2.msra.mxu0 0.0
        %2232 = vmatprep.subr.mxu0 0.0
        %2233 = vmatpush2.msra.mxu0 0.0
        %2234 = vmatprep.subr.mxu0 0.0
        %2235 = vmatpush2.msra.mxu0 0.0
        %2236 = vmatprep.subr.mxu0 0.0
        %2237 = vmatpush2.msra.mxu0 0.0
        %2238 = vmatprep.subr.mxu0 0.0
        %2239 = vmatpush2.msra.mxu0 0.0
        %2240 = vmatprep.subr.mxu0 0.0
        %2241 = vmatpush2.msra.mxu0 0.0
        %2242 = vmatprep.subr.mxu0 0.0
        %2243 = vmatpush2.msra.mxu0 0.0
        %2244 = vmatprep.subr.mxu0 0.0
        %2245 = vmatpush2.msra.mxu0 0.0
        %2246 = vmatprep.mubr.f32.mxu0 0.0
        %v2247 = vand.u32 %v2157, 4294901760
        %v2248 = vsub.f32 %v2157, %v2247
        %v2249 = vand.u32 %v2248, 4294901760
        %v2250 = vsub.f32 %v2248, %v2249
        %v2251 = vand.u32 %v2250, 4294901760
        %2252 = vmatmul.mubr.f32.gmra.mxu0 %v2251
        %v2253 = vpop.f32.mrf.mxu0
        %v2254 = vadd.f32 0.0, %v2253
        %v2255 = vpop.f32.mrf.mxu0
        %2256 = vmatprep.mubr.f32.mxu0 0.0
        %v2257 = vand.u32 %v2160, 4294901760
        %v2258 = vsub.f32 %v2160, %v2257
        %v2259 = vand.u32 %v2258, 4294901760
        %v2260 = vsub.f32 %v2258, %v2259
        %v2261 = vand.u32 %v2260, 4294901760
        %2262 = vmatmul.mubr.f32.gmra.mxu0 %v2261
        %v2263 = vpop.f32.mrf.mxu0
        %v2264 = vadd.f32 0.0, %v2263
        %v2265 = vpop.f32.mrf.mxu0
        %2266 = vmatprep.mubr.f32.mxu0 0.0
        %v2267 = vand.u32 %v2163, 4294901760
        %v2268 = vsub.f32 %v2163, %v2267
        %v2269 = vand.u32 %v2268, 4294901760
        %v2270 = vsub.f32 %v2268, %v2269
        %v2271 = vand.u32 %v2270, 4294901760
        %2272 = vmatmul.mubr.f32.gmra.mxu0 %v2271
        %v2273 = vpop.f32.mrf.mxu0
        %v2274 = vadd.f32 0.0, %v2273
        %v2275 = vpop.f32.mrf.mxu0
        %2276 = vmatprep.mubr.f32.mxu0 0.0
        %v2277 = vand.u32 %v2166, 4294901760
        %v2278 = vsub.f32 %v2166, %v2277
        %v2279 = vand.u32 %v2278, 4294901760
        %v2280 = vsub.f32 %v2278, %v2279
        %v2281 = vand.u32 %v2280, 4294901760
        %2282 = vmatmul.mubr.f32.gmra.mxu0 %v2281
        %v2283 = vpop.f32.mrf.mxu0
        %v2284 = vadd.f32 0.0, %v2283
        %v2285 = vpop.f32.mrf.mxu0
        %2286 = vmatprep.mubr.f32.mxu0 0.0
        %v2287 = vand.u32 %v2169, 4294901760
        %v2288 = vsub.f32 %v2169, %v2287
        %v2289 = vand.u32 %v2288, 4294901760
        %v2290 = vsub.f32 %v2288, %v2289
        %v2291 = vand.u32 %v2290, 4294901760
        %2292 = vmatmul.mubr.f32.gmra.mxu0 %v2291
        %v2293 = vpop.f32.mrf.mxu0
        %v2294 = vadd.f32 0.0, %v2293
        %v2295 = vpop.f32.mrf.mxu0
        %2296 = vmatprep.mubr.f32.mxu0 0.0
        %v2297 = vand.u32 %v2172, 4294901760
        %v2298 = vsub.f32 %v2172, %v2297
        %v2299 = vand.u32 %v2298, 4294901760
        %v2300 = vsub.f32 %v2298, %v2299
        %v2301 = vand.u32 %v2300, 4294901760
        %2302 = vmatmul.mubr.f32.gmra.mxu0 %v2301
        %v2303 = vpop.f32.mrf.mxu0
        %v2304 = vadd.f32 0.0, %v2303
        %v2305 = vpop.f32.mrf.mxu0
        %2306 = vmatprep.mubr.f32.mxu0 0.0
        %v2307 = vand.u32 %v2175, 4294901760
        %v2308 = vsub.f32 %v2175, %v2307
        %v2309 = vand.u32 %v2308, 4294901760
        %v2310 = vsub.f32 %v2308, %v2309
        %v2311 = vand.u32 %v2310, 4294901760
        %2312 = vmatmul.mubr.f32.gmra.mxu0 %v2311
        %v2313 = vpop.f32.mrf.mxu0
        %v2314 = vadd.f32 0.0, %v2313
        %v2315 = vpop.f32.mrf.mxu0
        %2316 = vmatprep.mubr.f32.mxu0 0.0
        %v2317 = vand.u32 %v2178, 4294901760
        %v2318 = vsub.f32 %v2178, %v2317
        %v2319 = vand.u32 %v2318, 4294901760
        %v2320 = vsub.f32 %v2318, %v2319
        %v2321 = vand.u32 %v2320, 4294901760
        %2322 = vmatmul.mubr.f32.gmra.mxu0 %v2321
        %v2323 = vpop.f32.mrf.mxu0
        %v2324 = vadd.f32 0.0, %v2323
        %v2325 = vpop.f32.mrf.mxu0
        %2326 = vdwg.mxu0
        %2327 = vmatprep.subr.mxu0 0.0
        %2328 = vmatpush1.msra.mxu0 0.0
        %2329 = vmatprep.subr.mxu0 0.0
        %2330 = vmatpush1.msra.mxu0 0.0
        %2331 = vmatprep.subr.mxu0 0.0
        %2332 = vmatpush1.msra.mxu0 0.0
        %2333 = vmatprep.subr.mxu0 0.0
        %2334 = vmatpush1.msra.mxu0 0.0
        %2335 = vmatprep.subr.mxu0 0.0
        %2336 = vmatpush1.msra.mxu0 0.0
        %2337 = vmatprep.subr.mxu0 0.0
        %2338 = vmatpush1.msra.mxu0 0.0
        %2339 = vmatprep.subr.mxu0 0.0
        %2340 = vmatpush1.msra.mxu0 0.0
        %2341 = vmatprep.subr.mxu0 0.0
        %2342 = vmatpush1.msra.mxu0 0.0
        %2343 = vmatprep.subr.mxu0 0.0
        %2344 = vmatpush1.msra.mxu0 0.0
        %2345 = vmatprep.subr.mxu0 0.0
        %2346 = vmatpush1.msra.mxu0 0.0
        %2347 = vmatprep.subr.mxu0 0.0
        %2348 = vmatpush1.msra.mxu0 0.0
        %2349 = vmatprep.subr.mxu0 0.0
        %2350 = vmatpush1.msra.mxu0 0.0
        %2351 = vmatprep.subr.mxu0 0.0
        %2352 = vmatpush1.msra.mxu0 0.0
        %2353 = vmatprep.subr.mxu0 0.0
        %2354 = vmatpush1.msra.mxu0 0.0
        %2355 = vmatprep.subr.mxu0 0.0
        %v2356 = vand.u32 %v1220, 4294901760
        %v2357 = vsub.f32 %v1220, %v2356
        %v2358 = vand.u32 %v2357, 4294901760
        %v2359 = vsub.f32 %v2357, %v2358
        %v2360 = vand.u32 %v2359, 4294901760
        %2361 = vmatpush1.msra.mxu0 %v2360
        %2362 = vmatprep.subr.mxu0 0.0
        %v2363 = vand.u32 %v1219, 4294901760
        %v2364 = vsub.f32 %v1219, %v2363
        %v2365 = vand.u32 %v2364, 4294901760
        %v2366 = vsub.f32 %v2364, %v2365
        %v2367 = vand.u32 %v2366, 4294901760
        %2368 = vmatpush1.msra.mxu0 %v2367
        %2369 = vmatprep.subr.mxu0 0.0
        %2370 = vmatpush2.msra.mxu0 0.0
        %2371 = vmatprep.subr.mxu0 0.0
        %2372 = vmatpush2.msra.mxu0 0.0
        %2373 = vmatprep.subr.mxu0 0.0
        %2374 = vmatpush2.msra.mxu0 0.0
        %2375 = vmatprep.subr.mxu0 0.0
        %2376 = vmatpush2.msra.mxu0 0.0
        %2377 = vmatprep.subr.mxu0 0.0
        %2378 = vmatpush2.msra.mxu0 0.0
        %2379 = vmatprep.subr.mxu0 0.0
        %2380 = vmatpush2.msra.mxu0 0.0
        %2381 = vmatprep.subr.mxu0 0.0
        %2382 = vmatpush2.msra.mxu0 0.0
        %2383 = vmatprep.subr.mxu0 0.0
        %2384 = vmatpush2.msra.mxu0 0.0
        %2385 = vmatprep.subr.mxu0 0.0
        %2386 = vmatpush2.msra.mxu0 0.0
        %2387 = vmatprep.subr.mxu0 0.0
        %2388 = vmatpush2.msra.mxu0 0.0
        %2389 = vmatprep.subr.mxu0 0.0
        %2390 = vmatpush2.msra.mxu0 0.0
        %2391 = vmatprep.subr.mxu0 0.0
        %2392 = vmatpush2.msra.mxu0 0.0
        %2393 = vmatprep.subr.mxu0 0.0
        %2394 = vmatpush2.msra.mxu0 0.0
        %2395 = vmatprep.subr.mxu0 0.0
        %2396 = vmatpush2.msra.mxu0 0.0
        %2397 = vmatprep.subr.mxu0 0.0
        %2398 = vmatpush2.msra.mxu0 0.0
        %2399 = vmatprep.subr.mxu0 0.0
        %2400 = vmatpush2.msra.mxu0 0.0
        %2401 = vmatprep.mubr.f32.mxu0 0.0
        %v2402 = vand.u32 %v2157, 4294901760
        %2403 = vmatmul.mubr.f32.gmra.mxu0 %v2402
        %v2404 = vpop.f32.mrf.mxu0
        %v2405 = vadd.f32 %v2254, %v2404
        %v2406 = vpop.f32.mrf.mxu0
        %2407 = vmatprep.mubr.f32.mxu0 0.0
        %v2408 = vand.u32 %v2160, 4294901760
        %2409 = vmatmul.mubr.f32.gmra.mxu0 %v2408
        %v2410 = vpop.f32.mrf.mxu0
        %v2411 = vadd.f32 %v2264, %v2410
        %v2412 = vpop.f32.mrf.mxu0
        %2413 = vmatprep.mubr.f32.mxu0 0.0
        %v2414 = vand.u32 %v2163, 4294901760
        %2415 = vmatmul.mubr.f32.gmra.mxu0 %v2414
        %v2416 = vpop.f32.mrf.mxu0
        %v2417 = vadd.f32 %v2274, %v2416
        %v2418 = vpop.f32.mrf.mxu0
        %2419 = vmatprep.mubr.f32.mxu0 0.0
        %v2420 = vand.u32 %v2166, 4294901760
        %2421 = vmatmul.mubr.f32.gmra.mxu0 %v2420
        %v2422 = vpop.f32.mrf.mxu0
        %v2423 = vadd.f32 %v2284, %v2422
        %v2424 = vpop.f32.mrf.mxu0
        %2425 = vmatprep.mubr.f32.mxu0 0.0
        %v2426 = vand.u32 %v2169, 4294901760
        %2427 = vmatmul.mubr.f32.gmra.mxu0 %v2426
        %v2428 = vpop.f32.mrf.mxu0
        %v2429 = vadd.f32 %v2294, %v2428
        %v2430 = vpop.f32.mrf.mxu0
        %2431 = vmatprep.mubr.f32.mxu0 0.0
        %v2432 = vand.u32 %v2172, 4294901760
        %2433 = vmatmul.mubr.f32.gmra.mxu0 %v2432
        %v2434 = vpop.f32.mrf.mxu0
        %v2435 = vadd.f32 %v2304, %v2434
        %v2436 = vpop.f32.mrf.mxu0
        %2437 = vmatprep.mubr.f32.mxu0 0.0
        %v2438 = vand.u32 %v2175, 4294901760
        %2439 = vmatmul.mubr.f32.gmra.mxu0 %v2438
        %v2440 = vpop.f32.mrf.mxu0
        %v2441 = vadd.f32 %v2314, %v2440
        %v2442 = vpop.f32.mrf.mxu0
        %2443 = vmatprep.mubr.f32.mxu0 0.0
        %v2444 = vand.u32 %v2178, 4294901760
        %2445 = vmatmul.mubr.f32.gmra.mxu0 %v2444
        %v2446 = vpop.f32.mrf.mxu0
        %v2447 = vadd.f32 %v2324, %v2446
        %v2448 = vpop.f32.mrf.mxu0
        %2449 = vdwg.mxu0
        %2450 = vmatprep.subr.mxu0 0.0
        %2451 = vmatpush1.msra.mxu0 0.0
        %2452 = vmatprep.subr.mxu0 0.0
        %2453 = vmatpush1.msra.mxu0 0.0
        %2454 = vmatprep.subr.mxu0 0.0
        %2455 = vmatpush1.msra.mxu0 0.0
        %2456 = vmatprep.subr.mxu0 0.0
        %2457 = vmatpush1.msra.mxu0 0.0
        %2458 = vmatprep.subr.mxu0 0.0
        %2459 = vmatpush1.msra.mxu0 0.0
        %2460 = vmatprep.subr.mxu0 0.0
        %2461 = vmatpush1.msra.mxu0 0.0
        %2462 = vmatprep.subr.mxu0 0.0
        %2463 = vmatpush1.msra.mxu0 0.0
        %2464 = vmatprep.subr.mxu0 0.0
        %2465 = vmatpush1.msra.mxu0 0.0
        %2466 = vmatprep.subr.mxu0 0.0
        %2467 = vmatpush1.msra.mxu0 0.0
        %2468 = vmatprep.subr.mxu0 0.0
        %2469 = vmatpush1.msra.mxu0 0.0
        %2470 = vmatprep.subr.mxu0 0.0
        %2471 = vmatpush1.msra.mxu0 0.0
        %2472 = vmatprep.subr.mxu0 0.0
        %2473 = vmatpush1.msra.mxu0 0.0
        %2474 = vmatprep.subr.mxu0 0.0
        %2475 = vmatpush1.msra.mxu0 0.0
        %2476 = vmatprep.subr.mxu0 0.0
        %2477 = vmatpush1.msra.mxu0 0.0
        %2478 = vmatprep.subr.mxu0 0.0
        %v2479 = vand.u32 %v1220, 4294901760
        %v2480 = vsub.f32 %v1220, %v2479
        %2481 = vmatpush1.msra.mxu0 %v2480
        %2482 = vmatprep.subr.mxu0 0.0
        %v2483 = vand.u32 %v1219, 4294901760
        %v2484 = vsub.f32 %v1219, %v2483
        %2485 = vmatpush1.msra.mxu0 %v2484
        %2486 = vmatprep.subr.mxu0 0.0
        %2487 = vmatpush2.msra.mxu0 0.0
        %2488 = vmatprep.subr.mxu0 0.0
        %2489 = vmatpush2.msra.mxu0 0.0
        %2490 = vmatprep.subr.mxu0 0.0
        %2491 = vmatpush2.msra.mxu0 0.0
        %2492 = vmatprep.subr.mxu0 0.0
        %2493 = vmatpush2.msra.mxu0 0.0
        %2494 = vmatprep.subr.mxu0 0.0
        %2495 = vmatpush2.msra.mxu0 0.0
        %2496 = vmatprep.subr.mxu0 0.0
        %2497 = vmatpush2.msra.mxu0 0.0
        %2498 = vmatprep.subr.mxu0 0.0
        %2499 = vmatpush2.msra.mxu0 0.0
        %2500 = vmatprep.subr.mxu0 0.0
        %2501 = vmatpush2.msra.mxu0 0.0
        %2502 = vmatprep.subr.mxu0 0.0
        %2503 = vmatpush2.msra.mxu0 0.0
        %2504 = vmatprep.subr.mxu0 0.0
        %2505 = vmatpush2.msra.mxu0 0.0
        %2506 = vmatprep.subr.mxu0 0.0
        %2507 = vmatpush2.msra.mxu0 0.0
        %2508 = vmatprep.subr.mxu0 0.0
        %2509 = vmatpush2.msra.mxu0 0.0
        %2510 = vmatprep.subr.mxu0 0.0
        %2511 = vmatpush2.msra.mxu0 0.0
        %2512 = vmatprep.subr.mxu0 0.0
        %2513 = vmatpush2.msra.mxu0 0.0
        %2514 = vmatprep.subr.mxu0 0.0
        %2515 = vmatpush2.msra.mxu0 0.0
        %2516 = vmatprep.subr.mxu0 0.0
        %2517 = vmatpush2.msra.mxu0 0.0
        %2518 = vmatprep.mubr.f32.mxu0 0.0
        %v2519 = vand.u32 %v2157, 4294901760
        %v2520 = vsub.f32 %v2157, %v2519
        %2521 = vmatmul.mubr.f32.gmra.mxu0 %v2520
        %v2522 = vpop.f32.mrf.mxu0
        %v2523 = vadd.f32 %v2405, %v2522
        %v2524 = vpop.f32.mrf.mxu0
        %2525 = vmatprep.mubr.f32.mxu0 0.0
        %v2526 = vand.u32 %v2160, 4294901760
        %v2527 = vsub.f32 %v2160, %v2526
        %2528 = vmatmul.mubr.f32.gmra.mxu0 %v2527
        %v2529 = vpop.f32.mrf.mxu0
        %v2530 = vadd.f32 %v2411, %v2529
        %v2531 = vpop.f32.mrf.mxu0
        %2532 = vmatprep.mubr.f32.mxu0 0.0
        %v2533 = vand.u32 %v2163, 4294901760
        %v2534 = vsub.f32 %v2163, %v2533
        %2535 = vmatmul.mubr.f32.gmra.mxu0 %v2534
        %v2536 = vpop.f32.mrf.mxu0
        %v2537 = vadd.f32 %v2417, %v2536
        %v2538 = vpop.f32.mrf.mxu0
        %2539 = vmatprep.mubr.f32.mxu0 0.0
        %v2540 = vand.u32 %v2166, 4294901760
        %v2541 = vsub.f32 %v2166, %v2540
        %2542 = vmatmul.mubr.f32.gmra.mxu0 %v2541
        %v2543 = vpop.f32.mrf.mxu0
        %v2544 = vadd.f32 %v2423, %v2543
        %v2545 = vpop.f32.mrf.mxu0
        %2546 = vmatprep.mubr.f32.mxu0 0.0
        %v2547 = vand.u32 %v2169, 4294901760
        %v2548 = vsub.f32 %v2169, %v2547
        %2549 = vmatmul.mubr.f32.gmra.mxu0 %v2548
        %v2550 = vpop.f32.mrf.mxu0
        %v2551 = vadd.f32 %v2429, %v2550
        %v2552 = vpop.f32.mrf.mxu0
        %2553 = vmatprep.mubr.f32.mxu0 0.0
        %v2554 = vand.u32 %v2172, 4294901760
        %v2555 = vsub.f32 %v2172, %v2554
        %2556 = vmatmul.mubr.f32.gmra.mxu0 %v2555
        %v2557 = vpop.f32.mrf.mxu0
        %v2558 = vadd.f32 %v2435, %v2557
        %v2559 = vpop.f32.mrf.mxu0
        %2560 = vmatprep.mubr.f32.mxu0 0.0
        %v2561 = vand.u32 %v2175, 4294901760
        %v2562 = vsub.f32 %v2175, %v2561
        %2563 = vmatmul.mubr.f32.gmra.mxu0 %v2562
        %v2564 = vpop.f32.mrf.mxu0
        %v2565 = vadd.f32 %v2441, %v2564
        %v2566 = vpop.f32.mrf.mxu0
        %2567 = vmatprep.mubr.f32.mxu0 0.0
        %v2568 = vand.u32 %v2178, 4294901760
        %v2569 = vsub.f32 %v2178, %v2568
        %2570 = vmatmul.mubr.f32.gmra.mxu0 %v2569
        %v2571 = vpop.f32.mrf.mxu0
        %v2572 = vadd.f32 %v2447, %v2571
        %v2573 = vpop.f32.mrf.mxu0
        %2574 = vdwg.mxu0
        %2575 = vmatprep.subr.mxu0 0.0
        %2576 = vmatpush1.msra.mxu0 0.0
        %2577 = vmatprep.subr.mxu0 0.0
        %2578 = vmatpush1.msra.mxu0 0.0
        %2579 = vmatprep.subr.mxu0 0.0
        %2580 = vmatpush1.msra.mxu0 0.0
        %2581 = vmatprep.subr.mxu0 0.0
        %2582 = vmatpush1.msra.mxu0 0.0
        %2583 = vmatprep.subr.mxu0 0.0
        %2584 = vmatpush1.msra.mxu0 0.0
        %2585 = vmatprep.subr.mxu0 0.0
        %2586 = vmatpush1.msra.mxu0 0.0
        %2587 = vmatprep.subr.mxu0 0.0
        %2588 = vmatpush1.msra.mxu0 0.0
        %2589 = vmatprep.subr.mxu0 0.0
        %2590 = vmatpush1.msra.mxu0 0.0
        %2591 = vmatprep.subr.mxu0 0.0
        %2592 = vmatpush1.msra.mxu0 0.0
        %2593 = vmatprep.subr.mxu0 0.0
        %2594 = vmatpush1.msra.mxu0 0.0
        %2595 = vmatprep.subr.mxu0 0.0
        %2596 = vmatpush1.msra.mxu0 0.0
        %2597 = vmatprep.subr.mxu0 0.0
        %2598 = vmatpush1.msra.mxu0 0.0
        %2599 = vmatprep.subr.mxu0 0.0
        %2600 = vmatpush1.msra.mxu0 0.0
        %2601 = vmatprep.subr.mxu0 0.0
        %2602 = vmatpush1.msra.mxu0 0.0
        %2603 = vmatprep.subr.mxu0 0.0
        %v2604 = vand.u32 %v1220, 4294901760
        %2605 = vmatpush1.msra.mxu0 %v2604
        %2606 = vmatprep.subr.mxu0 0.0
        %v2607 = vand.u32 %v1219, 4294901760
        %2608 = vmatpush1.msra.mxu0 %v2607
        %2609 = vmatprep.subr.mxu0 0.0
        %2610 = vmatpush2.msra.mxu0 0.0
        %2611 = vmatprep.subr.mxu0 0.0
        %2612 = vmatpush2.msra.mxu0 0.0
        %2613 = vmatprep.subr.mxu0 0.0
        %2614 = vmatpush2.msra.mxu0 0.0
        %2615 = vmatprep.subr.mxu0 0.0
        %2616 = vmatpush2.msra.mxu0 0.0
        %2617 = vmatprep.subr.mxu0 0.0
        %2618 = vmatpush2.msra.mxu0 0.0
        %2619 = vmatprep.subr.mxu0 0.0
        %2620 = vmatpush2.msra.mxu0 0.0
        %2621 = vmatprep.subr.mxu0 0.0
        %2622 = vmatpush2.msra.mxu0 0.0
        %2623 = vmatprep.subr.mxu0 0.0
        %2624 = vmatpush2.msra.mxu0 0.0
        %2625 = vmatprep.subr.mxu0 0.0
        %2626 = vmatpush2.msra.mxu0 0.0
        %2627 = vmatprep.subr.mxu0 0.0
        %2628 = vmatpush2.msra.mxu0 0.0
        %2629 = vmatprep.subr.mxu0 0.0
        %2630 = vmatpush2.msra.mxu0 0.0
        %2631 = vmatprep.subr.mxu0 0.0
        %2632 = vmatpush2.msra.mxu0 0.0
        %2633 = vmatprep.subr.mxu0 0.0
        %2634 = vmatpush2.msra.mxu0 0.0
        %2635 = vmatprep.subr.mxu0 0.0
        %2636 = vmatpush2.msra.mxu0 0.0
        %2637 = vmatprep.subr.mxu0 0.0
        %2638 = vmatpush2.msra.mxu0 0.0
        %2639 = vmatprep.subr.mxu0 0.0
        %2640 = vmatpush2.msra.mxu0 0.0
        %2641 = vmatprep.mubr.f32.mxu0 0.0
        %v2642 = vand.u32 %v2157, 4294901760
        %v2643 = vsub.f32 %v2157, %v2642
        %v2644 = vand.u32 %v2643, 4294901760
        %2645 = vmatmul.mubr.f32.gmra.mxu0 %v2644
        %v2646 = vpop.f32.mrf.mxu0
        %v2647 = vadd.f32 %v2523, %v2646
        %v2648 = vpop.f32.mrf.mxu0
        %2649 = vmatprep.mubr.f32.mxu0 0.0
        %v2650 = vand.u32 %v2160, 4294901760
        %v2651 = vsub.f32 %v2160, %v2650
        %v2652 = vand.u32 %v2651, 4294901760
        %2653 = vmatmul.mubr.f32.gmra.mxu0 %v2652
        %v2654 = vpop.f32.mrf.mxu0
        %v2655 = vadd.f32 %v2530, %v2654
        %v2656 = vpop.f32.mrf.mxu0
        %2657 = vmatprep.mubr.f32.mxu0 0.0
        %v2658 = vand.u32 %v2163, 4294901760
        %v2659 = vsub.f32 %v2163, %v2658
        %v2660 = vand.u32 %v2659, 4294901760
        %2661 = vmatmul.mubr.f32.gmra.mxu0 %v2660
        %v2662 = vpop.f32.mrf.mxu0
        %v2663 = vadd.f32 %v2537, %v2662
        %v2664 = vpop.f32.mrf.mxu0
        %2665 = vmatprep.mubr.f32.mxu0 0.0
        %v2666 = vand.u32 %v2166, 4294901760
        %v2667 = vsub.f32 %v2166, %v2666
        %v2668 = vand.u32 %v2667, 4294901760
        %2669 = vmatmul.mubr.f32.gmra.mxu0 %v2668
        %v2670 = vpop.f32.mrf.mxu0
        %v2671 = vadd.f32 %v2544, %v2670
        %v2672 = vpop.f32.mrf.mxu0
        %2673 = vmatprep.mubr.f32.mxu0 0.0
        %v2674 = vand.u32 %v2169, 4294901760
        %v2675 = vsub.f32 %v2169, %v2674
        %v2676 = vand.u32 %v2675, 4294901760
        %2677 = vmatmul.mubr.f32.gmra.mxu0 %v2676
        %v2678 = vpop.f32.mrf.mxu0
        %v2679 = vadd.f32 %v2551, %v2678
        %v2680 = vpop.f32.mrf.mxu0
        %2681 = vmatprep.mubr.f32.mxu0 0.0
        %v2682 = vand.u32 %v2172, 4294901760
        %v2683 = vsub.f32 %v2172, %v2682
        %v2684 = vand.u32 %v2683, 4294901760
        %2685 = vmatmul.mubr.f32.gmra.mxu0 %v2684
        %v2686 = vpop.f32.mrf.mxu0
        %v2687 = vadd.f32 %v2558, %v2686
        %v2688 = vpop.f32.mrf.mxu0
        %2689 = vmatprep.mubr.f32.mxu0 0.0
        %v2690 = vand.u32 %v2175, 4294901760
        %v2691 = vsub.f32 %v2175, %v2690
        %v2692 = vand.u32 %v2691, 4294901760
        %2693 = vmatmul.mubr.f32.gmra.mxu0 %v2692
        %v2694 = vpop.f32.mrf.mxu0
        %v2695 = vadd.f32 %v2565, %v2694
        %v2696 = vpop.f32.mrf.mxu0
        %2697 = vmatprep.mubr.f32.mxu0 0.0
        %v2698 = vand.u32 %v2178, 4294901760
        %v2699 = vsub.f32 %v2178, %v2698
        %v2700 = vand.u32 %v2699, 4294901760
        %2701 = vmatmul.mubr.f32.gmra.mxu0 %v2700
        %v2702 = vpop.f32.mrf.mxu0
        %v2703 = vadd.f32 %v2572, %v2702
        %v2704 = vpop.f32.mrf.mxu0
        %2705 = vdwg.mxu0
        %2706 = vmatprep.subr.mxu0 0.0
        %2707 = vmatpush1.msra.mxu0 0.0
        %2708 = vmatprep.subr.mxu0 0.0
        %2709 = vmatpush1.msra.mxu0 0.0
        %2710 = vmatprep.subr.mxu0 0.0
        %2711 = vmatpush1.msra.mxu0 0.0
        %2712 = vmatprep.subr.mxu0 0.0
        %2713 = vmatpush1.msra.mxu0 0.0
        %2714 = vmatprep.subr.mxu0 0.0
        %2715 = vmatpush1.msra.mxu0 0.0
        %2716 = vmatprep.subr.mxu0 0.0
        %2717 = vmatpush1.msra.mxu0 0.0
        %2718 = vmatprep.subr.mxu0 0.0
        %2719 = vmatpush1.msra.mxu0 0.0
        %2720 = vmatprep.subr.mxu0 0.0
        %2721 = vmatpush1.msra.mxu0 0.0
        %2722 = vmatprep.subr.mxu0 0.0
        %2723 = vmatpush1.msra.mxu0 0.0
        %2724 = vmatprep.subr.mxu0 0.0
        %2725 = vmatpush1.msra.mxu0 0.0
        %2726 = vmatprep.subr.mxu0 0.0
        %2727 = vmatpush1.msra.mxu0 0.0
        %2728 = vmatprep.subr.mxu0 0.0
        %2729 = vmatpush1.msra.mxu0 0.0
        %2730 = vmatprep.subr.mxu0 0.0
        %2731 = vmatpush1.msra.mxu0 0.0
        %2732 = vmatprep.subr.mxu0 0.0
        %2733 = vmatpush1.msra.mxu0 0.0
        %2734 = vmatprep.subr.mxu0 0.0
        %v2735 = vand.u32 %v1220, 4294901760
        %v2736 = vsub.f32 %v1220, %v2735
        %v2737 = vand.u32 %v2736, 4294901760
        %2738 = vmatpush1.msra.mxu0 %v2737
        %2739 = vmatprep.subr.mxu0 0.0
        %v2740 = vand.u32 %v1219, 4294901760
        %v2741 = vsub.f32 %v1219, %v2740
        %v2742 = vand.u32 %v2741, 4294901760
        %2743 = vmatpush1.msra.mxu0 %v2742
        %2744 = vmatprep.subr.mxu0 0.0
        %2745 = vmatpush2.msra.mxu0 0.0
        %2746 = vmatprep.subr.mxu0 0.0
        %2747 = vmatpush2.msra.mxu0 0.0
        %2748 = vmatprep.subr.mxu0 0.0
        %2749 = vmatpush2.msra.mxu0 0.0
        %2750 = vmatprep.subr.mxu0 0.0
        %2751 = vmatpush2.msra.mxu0 0.0
        %2752 = vmatprep.subr.mxu0 0.0
        %2753 = vmatpush2.msra.mxu0 0.0
        %2754 = vmatprep.subr.mxu0 0.0
        %2755 = vmatpush2.msra.mxu0 0.0
        %2756 = vmatprep.subr.mxu0 0.0
        %2757 = vmatpush2.msra.mxu0 0.0
        %2758 = vmatprep.subr.mxu0 0.0
        %2759 = vmatpush2.msra.mxu0 0.0
        %2760 = vmatprep.subr.mxu0 0.0
        %2761 = vmatpush2.msra.mxu0 0.0
        %2762 = vmatprep.subr.mxu0 0.0
        %2763 = vmatpush2.msra.mxu0 0.0
        %2764 = vmatprep.subr.mxu0 0.0
        %2765 = vmatpush2.msra.mxu0 0.0
        %2766 = vmatprep.subr.mxu0 0.0
        %2767 = vmatpush2.msra.mxu0 0.0
        %2768 = vmatprep.subr.mxu0 0.0
        %2769 = vmatpush2.msra.mxu0 0.0
        %2770 = vmatprep.subr.mxu0 0.0
        %2771 = vmatpush2.msra.mxu0 0.0
        %2772 = vmatprep.subr.mxu0 0.0
        %2773 = vmatpush2.msra.mxu0 0.0
        %2774 = vmatprep.subr.mxu0 0.0
        %2775 = vmatpush2.msra.mxu0 0.0
        %2776 = vmatprep.mubr.f32.mxu0 0.0
        %v2777 = vand.u32 %v2157, 4294901760
        %2778 = vmatmul.mubr.f32.gmra.mxu0 %v2777
        %v2779 = vpop.f32.mrf.mxu0
        %v2780 = vadd.f32 %v2647, %v2779
        %v2781 = vpop.f32.mrf.mxu0
        %2782 = vmatprep.mubr.f32.mxu0 0.0
        %v2783 = vand.u32 %v2160, 4294901760
        %2784 = vmatmul.mubr.f32.gmra.mxu0 %v2783
        %v2785 = vpop.f32.mrf.mxu0
        %v2786 = vadd.f32 %v2655, %v2785
        %v2787 = vpop.f32.mrf.mxu0
        %2788 = vmatprep.mubr.f32.mxu0 0.0
        %v2789 = vand.u32 %v2163, 4294901760
        %2790 = vmatmul.mubr.f32.gmra.mxu0 %v2789
        %v2791 = vpop.f32.mrf.mxu0
        %v2792 = vadd.f32 %v2663, %v2791
        %v2793 = vpop.f32.mrf.mxu0
        %2794 = vmatprep.mubr.f32.mxu0 0.0
        %v2795 = vand.u32 %v2166, 4294901760
        %2796 = vmatmul.mubr.f32.gmra.mxu0 %v2795
        %v2797 = vpop.f32.mrf.mxu0
        %v2798 = vadd.f32 %v2671, %v2797
        %v2799 = vpop.f32.mrf.mxu0
        %2800 = vmatprep.mubr.f32.mxu0 0.0
        %v2801 = vand.u32 %v2169, 4294901760
        %2802 = vmatmul.mubr.f32.gmra.mxu0 %v2801
        %v2803 = vpop.f32.mrf.mxu0
        %v2804 = vadd.f32 %v2679, %v2803
        %v2805 = vpop.f32.mrf.mxu0
        %2806 = vmatprep.mubr.f32.mxu0 0.0
        %v2807 = vand.u32 %v2172, 4294901760
        %2808 = vmatmul.mubr.f32.gmra.mxu0 %v2807
        %v2809 = vpop.f32.mrf.mxu0
        %v2810 = vadd.f32 %v2687, %v2809
        %v2811 = vpop.f32.mrf.mxu0
        %2812 = vmatprep.mubr.f32.mxu0 0.0
        %v2813 = vand.u32 %v2175, 4294901760
        %2814 = vmatmul.mubr.f32.gmra.mxu0 %v2813
        %v2815 = vpop.f32.mrf.mxu0
        %v2816 = vadd.f32 %v2695, %v2815
        %v2817 = vpop.f32.mrf.mxu0
        %2818 = vmatprep.mubr.f32.mxu0 0.0
        %v2819 = vand.u32 %v2178, 4294901760
        %2820 = vmatmul.mubr.f32.gmra.mxu0 %v2819
        %v2821 = vpop.f32.mrf.mxu0
        %v2822 = vadd.f32 %v2703, %v2821
        %v2823 = vpop.f32.mrf.mxu0
        %2824 = vdwg.mxu0
        %2825 = vmatprep.subr.mxu0 0.0
        %2826 = vmatpush1.msra.mxu0 0.0
        %2827 = vmatprep.subr.mxu0 0.0
        %2828 = vmatpush1.msra.mxu0 0.0
        %2829 = vmatprep.subr.mxu0 0.0
        %2830 = vmatpush1.msra.mxu0 0.0
        %2831 = vmatprep.subr.mxu0 0.0
        %2832 = vmatpush1.msra.mxu0 0.0
        %2833 = vmatprep.subr.mxu0 0.0
        %2834 = vmatpush1.msra.mxu0 0.0
        %2835 = vmatprep.subr.mxu0 0.0
        %2836 = vmatpush1.msra.mxu0 0.0
        %2837 = vmatprep.subr.mxu0 0.0
        %2838 = vmatpush1.msra.mxu0 0.0
        %2839 = vmatprep.subr.mxu0 0.0
        %2840 = vmatpush1.msra.mxu0 0.0
        %2841 = vmatprep.subr.mxu0 0.0
        %2842 = vmatpush1.msra.mxu0 0.0
        %2843 = vmatprep.subr.mxu0 0.0
        %2844 = vmatpush1.msra.mxu0 0.0
        %2845 = vmatprep.subr.mxu0 0.0
        %2846 = vmatpush1.msra.mxu0 0.0
        %2847 = vmatprep.subr.mxu0 0.0
        %2848 = vmatpush1.msra.mxu0 0.0
        %2849 = vmatprep.subr.mxu0 0.0
        %2850 = vmatpush1.msra.mxu0 0.0
        %2851 = vmatprep.subr.mxu0 0.0
        %2852 = vmatpush1.msra.mxu0 0.0
        %2853 = vmatprep.subr.mxu0 0.0
        %v2854 = vand.u32 %v1220, 4294901760
        %2855 = vmatpush1.msra.mxu0 %v2854
        %2856 = vmatprep.subr.mxu0 0.0
        %v2857 = vand.u32 %v1219, 4294901760
        %2858 = vmatpush1.msra.mxu0 %v2857
        %2859 = vmatprep.subr.mxu0 0.0
        %2860 = vmatpush2.msra.mxu0 0.0
        %2861 = vmatprep.subr.mxu0 0.0
        %2862 = vmatpush2.msra.mxu0 0.0
        %2863 = vmatprep.subr.mxu0 0.0
        %2864 = vmatpush2.msra.mxu0 0.0
        %2865 = vmatprep.subr.mxu0 0.0
        %2866 = vmatpush2.msra.mxu0 0.0
        %2867 = vmatprep.subr.mxu0 0.0
        %2868 = vmatpush2.msra.mxu0 0.0
        %2869 = vmatprep.subr.mxu0 0.0
        %2870 = vmatpush2.msra.mxu0 0.0
        %2871 = vmatprep.subr.mxu0 0.0
        %2872 = vmatpush2.msra.mxu0 0.0
        %2873 = vmatprep.subr.mxu0 0.0
        %2874 = vmatpush2.msra.mxu0 0.0
        %2875 = vmatprep.subr.mxu0 0.0
        %2876 = vmatpush2.msra.mxu0 0.0
        %2877 = vmatprep.subr.mxu0 0.0
        %2878 = vmatpush2.msra.mxu0 0.0
        %2879 = vmatprep.subr.mxu0 0.0
        %2880 = vmatpush2.msra.mxu0 0.0
        %2881 = vmatprep.subr.mxu0 0.0
        %2882 = vmatpush2.msra.mxu0 0.0
        %2883 = vmatprep.subr.mxu0 0.0
        %2884 = vmatpush2.msra.mxu0 0.0
        %2885 = vmatprep.subr.mxu0 0.0
        %2886 = vmatpush2.msra.mxu0 0.0
        %2887 = vmatprep.subr.mxu0 0.0
        %2888 = vmatpush2.msra.mxu0 0.0
        %2889 = vmatprep.subr.mxu0 0.0
        %2890 = vmatpush2.msra.mxu0 0.0
        %2891 = vmatprep.mubr.f32.mxu0 0.0
        %v2892 = vand.u32 %v2157, 4294901760
        %2893 = vmatmul.mubr.f32.gmra.mxu0 %v2892
        %v2894 = vpop.f32.mrf.mxu0
        %v2895 = vadd.f32 %v2780, %v2894
        %v2896 = vpop.f32.mrf.mxu0
        %2897 = vmatprep.mubr.f32.mxu0 0.0
        %v2898 = vand.u32 %v2160, 4294901760
        %2899 = vmatmul.mubr.f32.gmra.mxu0 %v2898
        %v2900 = vpop.f32.mrf.mxu0
        %v2901 = vadd.f32 %v2786, %v2900
        %v2902 = vpop.f32.mrf.mxu0
        %2903 = vmatprep.mubr.f32.mxu0 0.0
        %v2904 = vand.u32 %v2163, 4294901760
        %2905 = vmatmul.mubr.f32.gmra.mxu0 %v2904
        %v2906 = vpop.f32.mrf.mxu0
        %v2907 = vadd.f32 %v2792, %v2906
        %v2908 = vpop.f32.mrf.mxu0
        %2909 = vmatprep.mubr.f32.mxu0 0.0
        %v2910 = vand.u32 %v2166, 4294901760
        %2911 = vmatmul.mubr.f32.gmra.mxu0 %v2910
        %v2912 = vpop.f32.mrf.mxu0
        %v2913 = vadd.f32 %v2798, %v2912
        %v2914 = vpop.f32.mrf.mxu0
        %2915 = vmatprep.mubr.f32.mxu0 0.0
        %v2916 = vand.u32 %v2169, 4294901760
        %2917 = vmatmul.mubr.f32.gmra.mxu0 %v2916
        %v2918 = vpop.f32.mrf.mxu0
        %v2919 = vadd.f32 %v2804, %v2918
        %v2920 = vpop.f32.mrf.mxu0
        %2921 = vmatprep.mubr.f32.mxu0 0.0
        %v2922 = vand.u32 %v2172, 4294901760
        %2923 = vmatmul.mubr.f32.gmra.mxu0 %v2922
        %v2924 = vpop.f32.mrf.mxu0
        %v2925 = vadd.f32 %v2810, %v2924
        %v2926 = vpop.f32.mrf.mxu0
        %2927 = vmatprep.mubr.f32.mxu0 0.0
        %v2928 = vand.u32 %v2175, 4294901760
        %2929 = vmatmul.mubr.f32.gmra.mxu0 %v2928
        %v2930 = vpop.f32.mrf.mxu0
        %v2931 = vadd.f32 %v2816, %v2930
        %v2932 = vpop.f32.mrf.mxu0
        %2933 = vmatprep.mubr.f32.mxu0 0.0
        %v2934 = vand.u32 %v2178, 4294901760
        %2935 = vmatmul.mubr.f32.gmra.mxu0 %v2934
        %v2936 = vpop.f32.mrf.mxu0
        %v2937 = vadd.f32 %v2822, %v2936
        %v2938 = vpop.f32.mrf.mxu0
        %2939 = vdwg.mxu0
        %v2940 = vld [vmem:[#allocation2] sm:$0xff]
        %v2941 = vld [vmem:[#allocation2 + $0x8] sm:$0xff]
        %v2942 = vld [vmem:[#allocation2 + $0x10] sm:$0xff]
        %v2943 = vld [vmem:[#allocation2 + $0x18] sm:$0xff]
        %v2944 = vld [vmem:[#allocation2 + $0x20] sm:$0xff]
        %v2945 = vld [vmem:[#allocation2 + $0x28] sm:$0xff]
        %v2946 = vld [vmem:[#allocation2 + $0x30] sm:$0xff]
        %v2947 = vld [vmem:[#allocation2 + $0x38] sm:$0xff]
        %v2948 = vld [vmem:[#allocation2 + $0x40] sm:$0xff]
        %v2949 = vld [vmem:[#allocation2 + $0x48] sm:$0xff]
        %v2950 = vld [vmem:[#allocation2 + $0x50] sm:$0xff]
        %v2951 = vld [vmem:[#allocation2 + $0x58] sm:$0xff]
        %v2952 = vld [vmem:[#allocation2 + $0x60] sm:$0xff]
        %v2953 = vld [vmem:[#allocation2 + $0x68] sm:$0xff]
        %v2954 = vld [vmem:[#allocation2 + $0x70] sm:$0xff]
        %v2955 = vld [vmem:[#allocation2 + $0x78] sm:$0xff]
        %v2956 = vld [vmem:[#allocation2 + $0x80] sm:$0xff]
        %v2957 = vld [vmem:[#allocation2 + $0x88] sm:$0xff]
        %v2958 = vld [vmem:[#allocation2 + $0x90] sm:$0xff]
        %v2959 = vld [vmem:[#allocation2 + $0x98] sm:$0xff]
        %v2960 = vld [vmem:[#allocation2 + $0xa0] sm:$0xff]
        %v2961 = vld [vmem:[#allocation2 + $0xa8] sm:$0xff]
        %v2962 = vld [vmem:[#allocation2 + $0xb0] sm:$0xff]
        %v2963 = vld [vmem:[#allocation2 + $0xb8] sm:$0xff]
        %v2964 = vld [vmem:[#allocation2 + $0xc0] sm:$0xff]
        %v2965 = vld [vmem:[#allocation2 + $0xc8] sm:$0xff]
        %v2966 = vld [vmem:[#allocation2 + $0xd0] sm:$0xff]
        %v2967 = vld [vmem:[#allocation2 + $0xd8] sm:$0xff]
        %v2968 = vld [vmem:[#allocation2 + $0xe0] sm:$0xff]
        %v2969 = vld [vmem:[#allocation2 + $0xe8] sm:$0xff]
        %v2970 = vld [vmem:[#allocation2 + $0xf0] sm:$0xff]
        %v2971 = vld [vmem:[#allocation2 + $0xf8] sm:$0xff]
        %v2972 = vld [vmem:[#allocation2 + $0x100] sm:$0xff]
        %v2973 = vld [vmem:[#allocation2 + $0x108] sm:$0xff]
        %v2974 = vld [vmem:[#allocation2 + $0x110] sm:$0xff]
        %v2975 = vld [vmem:[#allocation2 + $0x118] sm:$0xff]
        %v2976 = vld [vmem:[#allocation2 + $0x120] sm:$0xff]
        %v2977 = vld [vmem:[#allocation2 + $0x128] sm:$0xff]
        %v2978 = vld [vmem:[#allocation2 + $0x130] sm:$0xff]
        %v2979 = vld [vmem:[#allocation2 + $0x138] sm:$0xff]
        %v2980 = vld [vmem:[#allocation2 + $0x140] sm:$0xff]
        %v2981 = vld [vmem:[#allocation2 + $0x148] sm:$0xff]
        %v2982 = vld [vmem:[#allocation2 + $0x150] sm:$0xff]
        %v2983 = vld [vmem:[#allocation2 + $0x158] sm:$0xff]
        %v2984 = vld [vmem:[#allocation2 + $0x160] sm:$0xff]
        %v2985 = vld [vmem:[#allocation2 + $0x168] sm:$0xff]
        %v2986 = vld [vmem:[#allocation2 + $0x170] sm:$0xff]
        %v2987 = vld [vmem:[#allocation2 + $0x178] sm:$0xff]
        %v2988 = vld [vmem:[#allocation2 + $0x180] sm:$0xff]
        %v2989 = vld [vmem:[#allocation2 + $0x188] sm:$0xff]
        %v2990 = vld [vmem:[#allocation2 + $0x190] sm:$0xff]
        %v2991 = vld [vmem:[#allocation2 + $0x198] sm:$0xff]
        %v2992 = vld [vmem:[#allocation2 + $0x1a0] sm:$0xff]
        %v2993 = vld [vmem:[#allocation2 + $0x1a8] sm:$0xff]
        %v2994 = vld [vmem:[#allocation2 + $0x1b0] sm:$0xff]
        %v2995 = vld [vmem:[#allocation2 + $0x1b8] sm:$0xff]
        %v2996 = vld [vmem:[#allocation2 + $0x1c0] sm:$0xff]
        %v2997 = vld [vmem:[#allocation2 + $0x1c8] sm:$0xff]
        %v2998 = vld [vmem:[#allocation2 + $0x1d0] sm:$0xff]
        %v2999 = vld [vmem:[#allocation2 + $0x1d8] sm:$0xff]
        %v3000 = vld [vmem:[#allocation2 + $0x1e0] sm:$0xff]
        %v3001 = vld [vmem:[#allocation2 + $0x1e8] sm:$0xff]
        %v3002 = vld [vmem:[#allocation2 + $0x1f0] sm:$0xff]
        %v3003 = vld [vmem:[#allocation2 + $0x1f8] sm:$0xff]
        %v3005 = vsel %vm632, %v2895, 0
        %3007 = vmatprep.subr.mxu0 0.0
        %3008 = vmatpush1.msra.mxu0 0.0
        %3009 = vmatprep.subr.mxu0 0.0
        %3010 = vmatpush1.msra.mxu0 0.0
        %3011 = vmatprep.subr.mxu0 0.0
        %3012 = vmatpush1.msra.mxu0 0.0
        %3013 = vmatprep.subr.mxu0 0.0
        %3014 = vmatpush1.msra.mxu0 0.0
        %3015 = vmatprep.subr.mxu0 0.0
        %3016 = vmatpush1.msra.mxu0 0.0
        %3017 = vmatprep.subr.mxu0 0.0
        %3018 = vmatpush1.msra.mxu0 0.0
        %3019 = vmatprep.subr.mxu0 0.0
        %3020 = vmatpush1.msra.mxu0 0.0
        %3021 = vmatprep.subr.mxu0 0.0
        %3022 = vmatpush1.msra.mxu0 0.0
        %3023 = vmatprep.subr.mxu0 0.0
        %v3024 = vand.u32 %v2947, 4294901760
        %3025 = vmatpush1.msra.mxu0 %v3024
        %3026 = vmatprep.subr.mxu0 0.0
        %v3027 = vand.u32 %v2946, 4294901760
        %3028 = vmatpush1.msra.mxu0 %v3027
        %3029 = vmatprep.subr.mxu0 0.0
        %v3030 = vand.u32 %v2945, 4294901760
        %3031 = vmatpush1.msra.mxu0 %v3030
        %3032 = vmatprep.subr.mxu0 0.0
        %v3033 = vand.u32 %v2944, 4294901760
        %3034 = vmatpush1.msra.mxu0 %v3033
        %3035 = vmatprep.subr.mxu0 0.0
        %v3036 = vand.u32 %v2943, 4294901760
        %3037 = vmatpush1.msra.mxu0 %v3036
        %3038 = vmatprep.subr.mxu0 0.0
        %v3039 = vand.u32 %v2942, 4294901760
        %3040 = vmatpush1.msra.mxu0 %v3039
        %3041 = vmatprep.subr.mxu0 0.0
        %v3042 = vand.u32 %v2941, 4294901760
        %3043 = vmatpush1.msra.mxu0 %v3042
        %3044 = vmatprep.subr.mxu0 0.0
        %v3045 = vand.u32 %v2940, 4294901760
        %3046 = vmatpush1.msra.mxu0 %v3045
        %3047 = vmatprep.subr.mxu0 0.0
        %3048 = vmatpush2.msra.mxu0 0.0
        %3049 = vmatprep.subr.mxu0 0.0
        %3050 = vmatpush2.msra.mxu0 0.0
        %3051 = vmatprep.subr.mxu0 0.0
        %3052 = vmatpush2.msra.mxu0 0.0
        %3053 = vmatprep.subr.mxu0 0.0
        %3054 = vmatpush2.msra.mxu0 0.0
        %3055 = vmatprep.subr.mxu0 0.0
        %3056 = vmatpush2.msra.mxu0 0.0
        %3057 = vmatprep.subr.mxu0 0.0
        %3058 = vmatpush2.msra.mxu0 0.0
        %3059 = vmatprep.subr.mxu0 0.0
        %3060 = vmatpush2.msra.mxu0 0.0
        %3061 = vmatprep.subr.mxu0 0.0
        %3062 = vmatpush2.msra.mxu0 0.0
        %3063 = vmatprep.subr.mxu0 0.0
        %3064 = vmatpush2.msra.mxu0 0.0
        %3065 = vmatprep.subr.mxu0 0.0
        %3066 = vmatpush2.msra.mxu0 0.0
        %3067 = vmatprep.subr.mxu0 0.0
        %3068 = vmatpush2.msra.mxu0 0.0
        %3069 = vmatprep.subr.mxu0 0.0
        %3070 = vmatpush2.msra.mxu0 0.0
        %3071 = vmatprep.subr.mxu0 0.0
        %3072 = vmatpush2.msra.mxu0 0.0
        %3073 = vmatprep.subr.mxu0 0.0
        %3074 = vmatpush2.msra.mxu0 0.0
        %3075 = vmatprep.subr.mxu0 0.0
        %3076 = vmatpush2.msra.mxu0 0.0
        %3077 = vmatprep.subr.mxu0 0.0
        %3078 = vmatpush2.msra.mxu0 0.0
        %3079 = vmatprep.mubr.f32.mxu0 0.0
        %v3080 = vand.u32 %v3005, 4294901760
        %v3081 = vsub.f32 %v3005, %v3080
        %v3082 = vand.u32 %v3081, 4294901760
        %v3083 = vsub.f32 %v3081, %v3082
        %v3084 = vand.u32 %v3083, 4294901760
        %3085 = vmatmul.mubr.f32.gmra.mxu0 %v3084
        %v3086 = vpop.f32.mrf.mxu0
        %v3087 = vadd.f32 0.0, %v3086
        %v3088 = vpop.f32.mrf.mxu0
        %3089 = vdwg.mxu0
        %3090 = vmatprep.subr.mxu0 0.0
        %3091 = vmatpush1.msra.mxu0 0.0
        %3092 = vmatprep.subr.mxu0 0.0
        %3093 = vmatpush1.msra.mxu0 0.0
        %3094 = vmatprep.subr.mxu0 0.0
        %3095 = vmatpush1.msra.mxu0 0.0
        %3096 = vmatprep.subr.mxu0 0.0
        %3097 = vmatpush1.msra.mxu0 0.0
        %3098 = vmatprep.subr.mxu0 0.0
        %3099 = vmatpush1.msra.mxu0 0.0
        %3100 = vmatprep.subr.mxu0 0.0
        %3101 = vmatpush1.msra.mxu0 0.0
        %3102 = vmatprep.subr.mxu0 0.0
        %3103 = vmatpush1.msra.mxu0 0.0
        %3104 = vmatprep.subr.mxu0 0.0
        %3105 = vmatpush1.msra.mxu0 0.0
        %3106 = vmatprep.subr.mxu0 0.0
        %v3107 = vand.u32 %v2947, 4294901760
        %v3108 = vsub.f32 %v2947, %v3107
        %v3109 = vand.u32 %v3108, 4294901760
        %v3110 = vsub.f32 %v3108, %v3109
        %v3111 = vand.u32 %v3110, 4294901760
        %3112 = vmatpush1.msra.mxu0 %v3111
        %3113 = vmatprep.subr.mxu0 0.0
        %v3114 = vand.u32 %v2946, 4294901760
        %v3115 = vsub.f32 %v2946, %v3114
        %v3116 = vand.u32 %v3115, 4294901760
        %v3117 = vsub.f32 %v3115, %v3116
        %v3118 = vand.u32 %v3117, 4294901760
        %3119 = vmatpush1.msra.mxu0 %v3118
        %3120 = vmatprep.subr.mxu0 0.0
        %v3121 = vand.u32 %v2945, 4294901760
        %v3122 = vsub.f32 %v2945, %v3121
        %v3123 = vand.u32 %v3122, 4294901760
        %v3124 = vsub.f32 %v3122, %v3123
        %v3125 = vand.u32 %v3124, 4294901760
        %3126 = vmatpush1.msra.mxu0 %v3125
        %3127 = vmatprep.subr.mxu0 0.0
        %v3128 = vand.u32 %v2944, 4294901760
        %v3129 = vsub.f32 %v2944, %v3128
        %v3130 = vand.u32 %v3129, 4294901760
        %v3131 = vsub.f32 %v3129, %v3130
        %v3132 = vand.u32 %v3131, 4294901760
        %3133 = vmatpush1.msra.mxu0 %v3132
        %3134 = vmatprep.subr.mxu0 0.0
        %v3135 = vand.u32 %v2943, 4294901760
        %v3136 = vsub.f32 %v2943, %v3135
        %v3137 = vand.u32 %v3136, 4294901760
        %v3138 = vsub.f32 %v3136, %v3137
        %v3139 = vand.u32 %v3138, 4294901760
        %3140 = vmatpush1.msra.mxu0 %v3139
        %3141 = vmatprep.subr.mxu0 0.0
        %v3142 = vand.u32 %v2942, 4294901760
        %v3143 = vsub.f32 %v2942, %v3142
        %v3144 = vand.u32 %v3143, 4294901760
        %v3145 = vsub.f32 %v3143, %v3144
        %v3146 = vand.u32 %v3145, 4294901760
        %3147 = vmatpush1.msra.mxu0 %v3146
        %3148 = vmatprep.subr.mxu0 0.0
        %v3149 = vand.u32 %v2941, 4294901760
        %v3150 = vsub.f32 %v2941, %v3149
        %v3151 = vand.u32 %v3150, 4294901760
        %v3152 = vsub.f32 %v3150, %v3151
        %v3153 = vand.u32 %v3152, 4294901760
        %3154 = vmatpush1.msra.mxu0 %v3153
        %3155 = vmatprep.subr.mxu0 0.0
        %v3156 = vand.u32 %v2940, 4294901760
        %v3157 = vsub.f32 %v2940, %v3156
        %v3158 = vand.u32 %v3157, 4294901760
        %v3159 = vsub.f32 %v3157, %v3158
        %v3160 = vand.u32 %v3159, 4294901760
        %3161 = vmatpush1.msra.mxu0 %v3160
        %3162 = vmatprep.subr.mxu0 0.0
        %3163 = vmatpush2.msra.mxu0 0.0
        %3164 = vmatprep.subr.mxu0 0.0
        %3165 = vmatpush2.msra.mxu0 0.0
        %3166 = vmatprep.subr.mxu0 0.0
        %3167 = vmatpush2.msra.mxu0 0.0
        %3168 = vmatprep.subr.mxu0 0.0
        %3169 = vmatpush2.msra.mxu0 0.0
        %3170 = vmatprep.subr.mxu0 0.0
        %3171 = vmatpush2.msra.mxu0 0.0
        %3172 = vmatprep.subr.mxu0 0.0
        %3173 = vmatpush2.msra.mxu0 0.0
        %3174 = vmatprep.subr.mxu0 0.0
        %3175 = vmatpush2.msra.mxu0 0.0
        %3176 = vmatprep.subr.mxu0 0.0
        %3177 = vmatpush2.msra.mxu0 0.0
        %3178 = vmatprep.subr.mxu0 0.0
        %3179 = vmatpush2.msra.mxu0 0.0
        %3180 = vmatprep.subr.mxu0 0.0
        %3181 = vmatpush2.msra.mxu0 0.0
        %3182 = vmatprep.subr.mxu0 0.0
        %3183 = vmatpush2.msra.mxu0 0.0
        %3184 = vmatprep.subr.mxu0 0.0
        %3185 = vmatpush2.msra.mxu0 0.0
        %3186 = vmatprep.subr.mxu0 0.0
        %3187 = vmatpush2.msra.mxu0 0.0
        %3188 = vmatprep.subr.mxu0 0.0
        %3189 = vmatpush2.msra.mxu0 0.0
        %3190 = vmatprep.subr.mxu0 0.0
        %3191 = vmatpush2.msra.mxu0 0.0
        %3192 = vmatprep.subr.mxu0 0.0
        %3193 = vmatpush2.msra.mxu0 0.0
        %3194 = vmatprep.mubr.f32.mxu0 0.0
        %v3195 = vand.u32 %v3005, 4294901760
        %3196 = vmatmul.mubr.f32.gmra.mxu0 %v3195
        %v3197 = vpop.f32.mrf.mxu0
        %v3198 = vadd.f32 %v3087, %v3197
        %v3199 = vpop.f32.mrf.mxu0
        %3200 = vdwg.mxu0
        %3201 = vmatprep.subr.mxu0 0.0
        %3202 = vmatpush1.msra.mxu0 0.0
        %3203 = vmatprep.subr.mxu0 0.0
        %3204 = vmatpush1.msra.mxu0 0.0
        %3205 = vmatprep.subr.mxu0 0.0
        %3206 = vmatpush1.msra.mxu0 0.0
        %3207 = vmatprep.subr.mxu0 0.0
        %3208 = vmatpush1.msra.mxu0 0.0
        %3209 = vmatprep.subr.mxu0 0.0
        %3210 = vmatpush1.msra.mxu0 0.0
        %3211 = vmatprep.subr.mxu0 0.0
        %3212 = vmatpush1.msra.mxu0 0.0
        %3213 = vmatprep.subr.mxu0 0.0
        %3214 = vmatpush1.msra.mxu0 0.0
        %3215 = vmatprep.subr.mxu0 0.0
        %3216 = vmatpush1.msra.mxu0 0.0
        %3217 = vmatprep.subr.mxu0 0.0
        %v3218 = vand.u32 %v2947, 4294901760
        %v3219 = vsub.f32 %v2947, %v3218
        %3220 = vmatpush1.msra.mxu0 %v3219
        %3221 = vmatprep.subr.mxu0 0.0
        %v3222 = vand.u32 %v2946, 4294901760
        %v3223 = vsub.f32 %v2946, %v3222
        %3224 = vmatpush1.msra.mxu0 %v3223
        %3225 = vmatprep.subr.mxu0 0.0
        %v3226 = vand.u32 %v2945, 4294901760
        %v3227 = vsub.f32 %v2945, %v3226
        %3228 = vmatpush1.msra.mxu0 %v3227
        %3229 = vmatprep.subr.mxu0 0.0
        %v3230 = vand.u32 %v2944, 4294901760
        %v3231 = vsub.f32 %v2944, %v3230
        %3232 = vmatpush1.msra.mxu0 %v3231
        %3233 = vmatprep.subr.mxu0 0.0
        %v3234 = vand.u32 %v2943, 4294901760
        %v3235 = vsub.f32 %v2943, %v3234
        %3236 = vmatpush1.msra.mxu0 %v3235
        %3237 = vmatprep.subr.mxu0 0.0
        %v3238 = vand.u32 %v2942, 4294901760
        %v3239 = vsub.f32 %v2942, %v3238
        %3240 = vmatpush1.msra.mxu0 %v3239
        %3241 = vmatprep.subr.mxu0 0.0
        %v3242 = vand.u32 %v2941, 4294901760
        %v3243 = vsub.f32 %v2941, %v3242
        %3244 = vmatpush1.msra.mxu0 %v3243
        %3245 = vmatprep.subr.mxu0 0.0
        %v3246 = vand.u32 %v2940, 4294901760
        %v3247 = vsub.f32 %v2940, %v3246
        %3248 = vmatpush1.msra.mxu0 %v3247
        %3249 = vmatprep.subr.mxu0 0.0
        %3250 = vmatpush2.msra.mxu0 0.0
        %3251 = vmatprep.subr.mxu0 0.0
        %3252 = vmatpush2.msra.mxu0 0.0
        %3253 = vmatprep.subr.mxu0 0.0
        %3254 = vmatpush2.msra.mxu0 0.0
        %3255 = vmatprep.subr.mxu0 0.0
        %3256 = vmatpush2.msra.mxu0 0.0
        %3257 = vmatprep.subr.mxu0 0.0
        %3258 = vmatpush2.msra.mxu0 0.0
        %3259 = vmatprep.subr.mxu0 0.0
        %3260 = vmatpush2.msra.mxu0 0.0
        %3261 = vmatprep.subr.mxu0 0.0
        %3262 = vmatpush2.msra.mxu0 0.0
        %3263 = vmatprep.subr.mxu0 0.0
        %3264 = vmatpush2.msra.mxu0 0.0
        %3265 = vmatprep.subr.mxu0 0.0
        %3266 = vmatpush2.msra.mxu0 0.0
        %3267 = vmatprep.subr.mxu0 0.0
        %3268 = vmatpush2.msra.mxu0 0.0
        %3269 = vmatprep.subr.mxu0 0.0
        %3270 = vmatpush2.msra.mxu0 0.0
        %3271 = vmatprep.subr.mxu0 0.0
        %3272 = vmatpush2.msra.mxu0 0.0
        %3273 = vmatprep.subr.mxu0 0.0
        %3274 = vmatpush2.msra.mxu0 0.0
        %3275 = vmatprep.subr.mxu0 0.0
        %3276 = vmatpush2.msra.mxu0 0.0
        %3277 = vmatprep.subr.mxu0 0.0
        %3278 = vmatpush2.msra.mxu0 0.0
        %3279 = vmatprep.subr.mxu0 0.0
        %3280 = vmatpush2.msra.mxu0 0.0
        %3281 = vmatprep.mubr.f32.mxu0 0.0
        %v3282 = vand.u32 %v3005, 4294901760
        %v3283 = vsub.f32 %v3005, %v3282
        %3284 = vmatmul.mubr.f32.gmra.mxu0 %v3283
        %v3285 = vpop.f32.mrf.mxu0
        %v3286 = vadd.f32 %v3198, %v3285
        %v3287 = vpop.f32.mrf.mxu0
        %3288 = vdwg.mxu0
        %3289 = vmatprep.subr.mxu0 0.0
        %3290 = vmatpush1.msra.mxu0 0.0
        %3291 = vmatprep.subr.mxu0 0.0
        %3292 = vmatpush1.msra.mxu0 0.0
        %3293 = vmatprep.subr.mxu0 0.0
        %3294 = vmatpush1.msra.mxu0 0.0
        %3295 = vmatprep.subr.mxu0 0.0
        %3296 = vmatpush1.msra.mxu0 0.0
        %3297 = vmatprep.subr.mxu0 0.0
        %3298 = vmatpush1.msra.mxu0 0.0
        %3299 = vmatprep.subr.mxu0 0.0
        %3300 = vmatpush1.msra.mxu0 0.0
        %3301 = vmatprep.subr.mxu0 0.0
        %3302 = vmatpush1.msra.mxu0 0.0
        %3303 = vmatprep.subr.mxu0 0.0
        %3304 = vmatpush1.msra.mxu0 0.0
        %3305 = vmatprep.subr.mxu0 0.0
        %v3306 = vand.u32 %v2947, 4294901760
        %3307 = vmatpush1.msra.mxu0 %v3306
        %3308 = vmatprep.subr.mxu0 0.0
        %v3309 = vand.u32 %v2946, 4294901760
        %3310 = vmatpush1.msra.mxu0 %v3309
        %3311 = vmatprep.subr.mxu0 0.0
        %v3312 = vand.u32 %v2945, 4294901760
        %3313 = vmatpush1.msra.mxu0 %v3312
        %3314 = vmatprep.subr.mxu0 0.0
        %v3315 = vand.u32 %v2944, 4294901760
        %3316 = vmatpush1.msra.mxu0 %v3315
        %3317 = vmatprep.subr.mxu0 0.0
        %v3318 = vand.u32 %v2943, 4294901760
        %3319 = vmatpush1.msra.mxu0 %v3318
        %3320 = vmatprep.subr.mxu0 0.0
        %v3321 = vand.u32 %v2942, 4294901760
        %3322 = vmatpush1.msra.mxu0 %v3321
        %3323 = vmatprep.subr.mxu0 0.0
        %v3324 = vand.u32 %v2941, 4294901760
        %3325 = vmatpush1.msra.mxu0 %v3324
        %3326 = vmatprep.subr.mxu0 0.0
        %v3327 = vand.u32 %v2940, 4294901760
        %3328 = vmatpush1.msra.mxu0 %v3327
        %3329 = vmatprep.subr.mxu0 0.0
        %3330 = vmatpush2.msra.mxu0 0.0
        %3331 = vmatprep.subr.mxu0 0.0
        %3332 = vmatpush2.msra.mxu0 0.0
        %3333 = vmatprep.subr.mxu0 0.0
        %3334 = vmatpush2.msra.mxu0 0.0
        %3335 = vmatprep.subr.mxu0 0.0
        %3336 = vmatpush2.msra.mxu0 0.0
        %3337 = vmatprep.subr.mxu0 0.0
        %3338 = vmatpush2.msra.mxu0 0.0
        %3339 = vmatprep.subr.mxu0 0.0
        %3340 = vmatpush2.msra.mxu0 0.0
        %3341 = vmatprep.subr.mxu0 0.0
        %3342 = vmatpush2.msra.mxu0 0.0
        %3343 = vmatprep.subr.mxu0 0.0
        %3344 = vmatpush2.msra.mxu0 0.0
        %3345 = vmatprep.subr.mxu0 0.0
        %3346 = vmatpush2.msra.mxu0 0.0
        %3347 = vmatprep.subr.mxu0 0.0
        %3348 = vmatpush2.msra.mxu0 0.0
        %3349 = vmatprep.subr.mxu0 0.0
        %3350 = vmatpush2.msra.mxu0 0.0
        %3351 = vmatprep.subr.mxu0 0.0
        %3352 = vmatpush2.msra.mxu0 0.0
        %3353 = vmatprep.subr.mxu0 0.0
        %3354 = vmatpush2.msra.mxu0 0.0
        %3355 = vmatprep.subr.mxu0 0.0
        %3356 = vmatpush2.msra.mxu0 0.0
        %3357 = vmatprep.subr.mxu0 0.0
        %3358 = vmatpush2.msra.mxu0 0.0
        %3359 = vmatprep.subr.mxu0 0.0
        %3360 = vmatpush2.msra.mxu0 0.0
        %3361 = vmatprep.mubr.f32.mxu0 0.0
        %v3362 = vand.u32 %v3005, 4294901760
        %v3363 = vsub.f32 %v3005, %v3362
        %v3364 = vand.u32 %v3363, 4294901760
        %3365 = vmatmul.mubr.f32.gmra.mxu0 %v3364
        %v3366 = vpop.f32.mrf.mxu0
        %v3367 = vadd.f32 %v3286, %v3366
        %v3368 = vpop.f32.mrf.mxu0
        %3369 = vdwg.mxu0
        %3370 = vmatprep.subr.mxu0 0.0
        %3371 = vmatpush1.msra.mxu0 0.0
        %3372 = vmatprep.subr.mxu0 0.0
        %3373 = vmatpush1.msra.mxu0 0.0
        %3374 = vmatprep.subr.mxu0 0.0
        %3375 = vmatpush1.msra.mxu0 0.0
        %3376 = vmatprep.subr.mxu0 0.0
        %3377 = vmatpush1.msra.mxu0 0.0
        %3378 = vmatprep.subr.mxu0 0.0
        %3379 = vmatpush1.msra.mxu0 0.0
        %3380 = vmatprep.subr.mxu0 0.0
        %3381 = vmatpush1.msra.mxu0 0.0
        %3382 = vmatprep.subr.mxu0 0.0
        %3383 = vmatpush1.msra.mxu0 0.0
        %3384 = vmatprep.subr.mxu0 0.0
        %3385 = vmatpush1.msra.mxu0 0.0
        %3386 = vmatprep.subr.mxu0 0.0
        %v3387 = vand.u32 %v2947, 4294901760
        %v3388 = vsub.f32 %v2947, %v3387
        %v3389 = vand.u32 %v3388, 4294901760
        %3390 = vmatpush1.msra.mxu0 %v3389
        %3391 = vmatprep.subr.mxu0 0.0
        %v3392 = vand.u32 %v2946, 4294901760
        %v3393 = vsub.f32 %v2946, %v3392
        %v3394 = vand.u32 %v3393, 4294901760
        %3395 = vmatpush1.msra.mxu0 %v3394
        %3396 = vmatprep.subr.mxu0 0.0
        %v3397 = vand.u32 %v2945, 4294901760
        %v3398 = vsub.f32 %v2945, %v3397
        %v3399 = vand.u32 %v3398, 4294901760
        %3400 = vmatpush1.msra.mxu0 %v3399
        %3401 = vmatprep.subr.mxu0 0.0
        %v3402 = vand.u32 %v2944, 4294901760
        %v3403 = vsub.f32 %v2944, %v3402
        %v3404 = vand.u32 %v3403, 4294901760
        %3405 = vmatpush1.msra.mxu0 %v3404
        %3406 = vmatprep.subr.mxu0 0.0
        %v3407 = vand.u32 %v2943, 4294901760
        %v3408 = vsub.f32 %v2943, %v3407
        %v3409 = vand.u32 %v3408, 4294901760
        %3410 = vmatpush1.msra.mxu0 %v3409
        %3411 = vmatprep.subr.mxu0 0.0
        %v3412 = vand.u32 %v2942, 4294901760
        %v3413 = vsub.f32 %v2942, %v3412
        %v3414 = vand.u32 %v3413, 4294901760
        %3415 = vmatpush1.msra.mxu0 %v3414
        %3416 = vmatprep.subr.mxu0 0.0
        %v3417 = vand.u32 %v2941, 4294901760
        %v3418 = vsub.f32 %v2941, %v3417
        %v3419 = vand.u32 %v3418, 4294901760
        %3420 = vmatpush1.msra.mxu0 %v3419
        %3421 = vmatprep.subr.mxu0 0.0
        %v3422 = vand.u32 %v2940, 4294901760
        %v3423 = vsub.f32 %v2940, %v3422
        %v3424 = vand.u32 %v3423, 4294901760
        %3425 = vmatpush1.msra.mxu0 %v3424
        %3426 = vmatprep.subr.mxu0 0.0
        %3427 = vmatpush2.msra.mxu0 0.0
        %3428 = vmatprep.subr.mxu0 0.0
        %3429 = vmatpush2.msra.mxu0 0.0
        %3430 = vmatprep.subr.mxu0 0.0
        %3431 = vmatpush2.msra.mxu0 0.0
        %3432 = vmatprep.subr.mxu0 0.0
        %3433 = vmatpush2.msra.mxu0 0.0
        %3434 = vmatprep.subr.mxu0 0.0
        %3435 = vmatpush2.msra.mxu0 0.0
        %3436 = vmatprep.subr.mxu0 0.0
        %3437 = vmatpush2.msra.mxu0 0.0
        %3438 = vmatprep.subr.mxu0 0.0
        %3439 = vmatpush2.msra.mxu0 0.0
        %3440 = vmatprep.subr.mxu0 0.0
        %3441 = vmatpush2.msra.mxu0 0.0
        %3442 = vmatprep.subr.mxu0 0.0
        %3443 = vmatpush2.msra.mxu0 0.0
        %3444 = vmatprep.subr.mxu0 0.0
        %3445 = vmatpush2.msra.mxu0 0.0
        %3446 = vmatprep.subr.mxu0 0.0
        %3447 = vmatpush2.msra.mxu0 0.0
        %3448 = vmatprep.subr.mxu0 0.0
        %3449 = vmatpush2.msra.mxu0 0.0
        %3450 = vmatprep.subr.mxu0 0.0
        %3451 = vmatpush2.msra.mxu0 0.0
        %3452 = vmatprep.subr.mxu0 0.0
        %3453 = vmatpush2.msra.mxu0 0.0
        %3454 = vmatprep.subr.mxu0 0.0
        %3455 = vmatpush2.msra.mxu0 0.0
        %3456 = vmatprep.subr.mxu0 0.0
        %3457 = vmatpush2.msra.mxu0 0.0
        %3458 = vmatprep.mubr.f32.mxu0 0.0
        %v3459 = vand.u32 %v3005, 4294901760
        %3460 = vmatmul.mubr.f32.gmra.mxu0 %v3459
        %v3461 = vpop.f32.mrf.mxu0
        %v3462 = vadd.f32 %v3367, %v3461
        %v3463 = vpop.f32.mrf.mxu0
        %3464 = vdwg.mxu0
        %3465 = vmatprep.subr.mxu0 0.0
        %3466 = vmatpush1.msra.mxu0 0.0
        %3467 = vmatprep.subr.mxu0 0.0
        %3468 = vmatpush1.msra.mxu0 0.0
        %3469 = vmatprep.subr.mxu0 0.0
        %3470 = vmatpush1.msra.mxu0 0.0
        %3471 = vmatprep.subr.mxu0 0.0
        %3472 = vmatpush1.msra.mxu0 0.0
        %3473 = vmatprep.subr.mxu0 0.0
        %3474 = vmatpush1.msra.mxu0 0.0
        %3475 = vmatprep.subr.mxu0 0.0
        %3476 = vmatpush1.msra.mxu0 0.0
        %3477 = vmatprep.subr.mxu0 0.0
        %3478 = vmatpush1.msra.mxu0 0.0
        %3479 = vmatprep.subr.mxu0 0.0
        %3480 = vmatpush1.msra.mxu0 0.0
        %3481 = vmatprep.subr.mxu0 0.0
        %v3482 = vand.u32 %v2947, 4294901760
        %3483 = vmatpush1.msra.mxu0 %v3482
        %3484 = vmatprep.subr.mxu0 0.0
        %v3485 = vand.u32 %v2946, 4294901760
        %3486 = vmatpush1.msra.mxu0 %v3485
        %3487 = vmatprep.subr.mxu0 0.0
        %v3488 = vand.u32 %v2945, 4294901760
        %3489 = vmatpush1.msra.mxu0 %v3488
        %3490 = vmatprep.subr.mxu0 0.0
        %v3491 = vand.u32 %v2944, 4294901760
        %3492 = vmatpush1.msra.mxu0 %v3491
        %3493 = vmatprep.subr.mxu0 0.0
        %v3494 = vand.u32 %v2943, 4294901760
        %3495 = vmatpush1.msra.mxu0 %v3494
        %3496 = vmatprep.subr.mxu0 0.0
        %v3497 = vand.u32 %v2942, 4294901760
        %3498 = vmatpush1.msra.mxu0 %v3497
        %3499 = vmatprep.subr.mxu0 0.0
        %v3500 = vand.u32 %v2941, 4294901760
        %3501 = vmatpush1.msra.mxu0 %v3500
        %3502 = vmatprep.subr.mxu0 0.0
        %v3503 = vand.u32 %v2940, 4294901760
        %3504 = vmatpush1.msra.mxu0 %v3503
        %3505 = vmatprep.subr.mxu0 0.0
        %3506 = vmatpush2.msra.mxu0 0.0
        %3507 = vmatprep.subr.mxu0 0.0
        %3508 = vmatpush2.msra.mxu0 0.0
        %3509 = vmatprep.subr.mxu0 0.0
        %3510 = vmatpush2.msra.mxu0 0.0
        %3511 = vmatprep.subr.mxu0 0.0
        %3512 = vmatpush2.msra.mxu0 0.0
        %3513 = vmatprep.subr.mxu0 0.0
        %3514 = vmatpush2.msra.mxu0 0.0
        %3515 = vmatprep.subr.mxu0 0.0
        %3516 = vmatpush2.msra.mxu0 0.0
        %3517 = vmatprep.subr.mxu0 0.0
        %3518 = vmatpush2.msra.mxu0 0.0
        %3519 = vmatprep.subr.mxu0 0.0
        %3520 = vmatpush2.msra.mxu0 0.0
        %3521 = vmatprep.subr.mxu0 0.0
        %3522 = vmatpush2.msra.mxu0 0.0
        %3523 = vmatprep.subr.mxu0 0.0
        %3524 = vmatpush2.msra.mxu0 0.0
        %3525 = vmatprep.subr.mxu0 0.0
        %3526 = vmatpush2.msra.mxu0 0.0
        %3527 = vmatprep.subr.mxu0 0.0
        %3528 = vmatpush2.msra.mxu0 0.0
        %3529 = vmatprep.subr.mxu0 0.0
        %3530 = vmatpush2.msra.mxu0 0.0
        %3531 = vmatprep.subr.mxu0 0.0
        %3532 = vmatpush2.msra.mxu0 0.0
        %3533 = vmatprep.subr.mxu0 0.0
        %3534 = vmatpush2.msra.mxu0 0.0
        %3535 = vmatprep.subr.mxu0 0.0
        %3536 = vmatpush2.msra.mxu0 0.0
        %3537 = vmatprep.mubr.f32.mxu0 0.0
        %v3538 = vand.u32 %v3005, 4294901760
        %3539 = vmatmul.mubr.f32.gmra.mxu0 %v3538
        %v3540 = vpop.f32.mrf.mxu0
        %v3541 = vadd.f32 %v3462, %v3540
        %v3542 = vpop.f32.mrf.mxu0
        %3543 = vdwg.mxu0
        %v3545 = vsel %vm632, %v2901, 0
        %3547 = vmatprep.subr.mxu0 0.0
        %3548 = vmatpush1.msra.mxu0 0.0
        %3549 = vmatprep.subr.mxu0 0.0
        %3550 = vmatpush1.msra.mxu0 0.0
        %3551 = vmatprep.subr.mxu0 0.0
        %3552 = vmatpush1.msra.mxu0 0.0
        %3553 = vmatprep.subr.mxu0 0.0
        %3554 = vmatpush1.msra.mxu0 0.0
        %3555 = vmatprep.subr.mxu0 0.0
        %3556 = vmatpush1.msra.mxu0 0.0
        %3557 = vmatprep.subr.mxu0 0.0
        %3558 = vmatpush1.msra.mxu0 0.0
        %3559 = vmatprep.subr.mxu0 0.0
        %3560 = vmatpush1.msra.mxu0 0.0
        %3561 = vmatprep.subr.mxu0 0.0
        %3562 = vmatpush1.msra.mxu0 0.0
        %3563 = vmatprep.subr.mxu0 0.0
        %v3564 = vand.u32 %v2955, 4294901760
        %3565 = vmatpush1.msra.mxu0 %v3564
        %3566 = vmatprep.subr.mxu0 0.0
        %v3567 = vand.u32 %v2954, 4294901760
        %3568 = vmatpush1.msra.mxu0 %v3567
        %3569 = vmatprep.subr.mxu0 0.0
        %v3570 = vand.u32 %v2953, 4294901760
        %3571 = vmatpush1.msra.mxu0 %v3570
        %3572 = vmatprep.subr.mxu0 0.0
        %v3573 = vand.u32 %v2952, 4294901760
        %3574 = vmatpush1.msra.mxu0 %v3573
        %3575 = vmatprep.subr.mxu0 0.0
        %v3576 = vand.u32 %v2951, 4294901760
        %3577 = vmatpush1.msra.mxu0 %v3576
        %3578 = vmatprep.subr.mxu0 0.0
        %v3579 = vand.u32 %v2950, 4294901760
        %3580 = vmatpush1.msra.mxu0 %v3579
        %3581 = vmatprep.subr.mxu0 0.0
        %v3582 = vand.u32 %v2949, 4294901760
        %3583 = vmatpush1.msra.mxu0 %v3582
        %3584 = vmatprep.subr.mxu0 0.0
        %v3585 = vand.u32 %v2948, 4294901760
        %3586 = vmatpush1.msra.mxu0 %v3585
        %3587 = vmatprep.subr.mxu0 0.0
        %3588 = vmatpush2.msra.mxu0 0.0
        %3589 = vmatprep.subr.mxu0 0.0
        %3590 = vmatpush2.msra.mxu0 0.0
        %3591 = vmatprep.subr.mxu0 0.0
        %3592 = vmatpush2.msra.mxu0 0.0
        %3593 = vmatprep.subr.mxu0 0.0
        %3594 = vmatpush2.msra.mxu0 0.0
        %3595 = vmatprep.subr.mxu0 0.0
        %3596 = vmatpush2.msra.mxu0 0.0
        %3597 = vmatprep.subr.mxu0 0.0
        %3598 = vmatpush2.msra.mxu0 0.0
        %3599 = vmatprep.subr.mxu0 0.0
        %3600 = vmatpush2.msra.mxu0 0.0
        %3601 = vmatprep.subr.mxu0 0.0
        %3602 = vmatpush2.msra.mxu0 0.0
        %3603 = vmatprep.subr.mxu0 0.0
        %3604 = vmatpush2.msra.mxu0 0.0
        %3605 = vmatprep.subr.mxu0 0.0
        %3606 = vmatpush2.msra.mxu0 0.0
        %3607 = vmatprep.subr.mxu0 0.0
        %3608 = vmatpush2.msra.mxu0 0.0
        %3609 = vmatprep.subr.mxu0 0.0
        %3610 = vmatpush2.msra.mxu0 0.0
        %3611 = vmatprep.subr.mxu0 0.0
        %3612 = vmatpush2.msra.mxu0 0.0
        %3613 = vmatprep.subr.mxu0 0.0
        %3614 = vmatpush2.msra.mxu0 0.0
        %3615 = vmatprep.subr.mxu0 0.0
        %3616 = vmatpush2.msra.mxu0 0.0
        %3617 = vmatprep.subr.mxu0 0.0
        %3618 = vmatpush2.msra.mxu0 0.0
        %3619 = vmatprep.mubr.f32.mxu0 0.0
        %v3620 = vand.u32 %v3545, 4294901760
        %v3621 = vsub.f32 %v3545, %v3620
        %v3622 = vand.u32 %v3621, 4294901760
        %v3623 = vsub.f32 %v3621, %v3622
        %v3624 = vand.u32 %v3623, 4294901760
        %3625 = vmatmul.mubr.f32.gmra.mxu0 %v3624
        %v3626 = vpop.f32.mrf.mxu0
        %v3627 = vadd.f32 0.0, %v3626
        %v3628 = vpop.f32.mrf.mxu0
        %3629 = vdwg.mxu0
        %3630 = vmatprep.subr.mxu0 0.0
        %3631 = vmatpush1.msra.mxu0 0.0
        %3632 = vmatprep.subr.mxu0 0.0
        %3633 = vmatpush1.msra.mxu0 0.0
        %3634 = vmatprep.subr.mxu0 0.0
        %3635 = vmatpush1.msra.mxu0 0.0
        %3636 = vmatprep.subr.mxu0 0.0
        %3637 = vmatpush1.msra.mxu0 0.0
        %3638 = vmatprep.subr.mxu0 0.0
        %3639 = vmatpush1.msra.mxu0 0.0
        %3640 = vmatprep.subr.mxu0 0.0
        %3641 = vmatpush1.msra.mxu0 0.0
        %3642 = vmatprep.subr.mxu0 0.0
        %3643 = vmatpush1.msra.mxu0 0.0
        %3644 = vmatprep.subr.mxu0 0.0
        %3645 = vmatpush1.msra.mxu0 0.0
        %3646 = vmatprep.subr.mxu0 0.0
        %v3647 = vand.u32 %v2955, 4294901760
        %v3648 = vsub.f32 %v2955, %v3647
        %v3649 = vand.u32 %v3648, 4294901760
        %v3650 = vsub.f32 %v3648, %v3649
        %v3651 = vand.u32 %v3650, 4294901760
        %3652 = vmatpush1.msra.mxu0 %v3651
        %3653 = vmatprep.subr.mxu0 0.0
        %v3654 = vand.u32 %v2954, 4294901760
        %v3655 = vsub.f32 %v2954, %v3654
        %v3656 = vand.u32 %v3655, 4294901760
        %v3657 = vsub.f32 %v3655, %v3656
        %v3658 = vand.u32 %v3657, 4294901760
        %3659 = vmatpush1.msra.mxu0 %v3658
        %3660 = vmatprep.subr.mxu0 0.0
        %v3661 = vand.u32 %v2953, 4294901760
        %v3662 = vsub.f32 %v2953, %v3661
        %v3663 = vand.u32 %v3662, 4294901760
        %v3664 = vsub.f32 %v3662, %v3663
        %v3665 = vand.u32 %v3664, 4294901760
        %3666 = vmatpush1.msra.mxu0 %v3665
        %3667 = vmatprep.subr.mxu0 0.0
        %v3668 = vand.u32 %v2952, 4294901760
        %v3669 = vsub.f32 %v2952, %v3668
        %v3670 = vand.u32 %v3669, 4294901760
        %v3671 = vsub.f32 %v3669, %v3670
        %v3672 = vand.u32 %v3671, 4294901760
        %3673 = vmatpush1.msra.mxu0 %v3672
        %3674 = vmatprep.subr.mxu0 0.0
        %v3675 = vand.u32 %v2951, 4294901760
        %v3676 = vsub.f32 %v2951, %v3675
        %v3677 = vand.u32 %v3676, 4294901760
        %v3678 = vsub.f32 %v3676, %v3677
        %v3679 = vand.u32 %v3678, 4294901760
        %3680 = vmatpush1.msra.mxu0 %v3679
        %3681 = vmatprep.subr.mxu0 0.0
        %v3682 = vand.u32 %v2950, 4294901760
        %v3683 = vsub.f32 %v2950, %v3682
        %v3684 = vand.u32 %v3683, 4294901760
        %v3685 = vsub.f32 %v3683, %v3684
        %v3686 = vand.u32 %v3685, 4294901760
        %3687 = vmatpush1.msra.mxu0 %v3686
        %3688 = vmatprep.subr.mxu0 0.0
        %v3689 = vand.u32 %v2949, 4294901760
        %v3690 = vsub.f32 %v2949, %v3689
        %v3691 = vand.u32 %v3690, 4294901760
        %v3692 = vsub.f32 %v3690, %v3691
        %v3693 = vand.u32 %v3692, 4294901760
        %3694 = vmatpush1.msra.mxu0 %v3693
        %3695 = vmatprep.subr.mxu0 0.0
        %v3696 = vand.u32 %v2948, 4294901760
        %v3697 = vsub.f32 %v2948, %v3696
        %v3698 = vand.u32 %v3697, 4294901760
        %v3699 = vsub.f32 %v3697, %v3698
        %v3700 = vand.u32 %v3699, 4294901760
        %3701 = vmatpush1.msra.mxu0 %v3700
        %3702 = vmatprep.subr.mxu0 0.0
        %3703 = vmatpush2.msra.mxu0 0.0
        %3704 = vmatprep.subr.mxu0 0.0
        %3705 = vmatpush2.msra.mxu0 0.0
        %3706 = vmatprep.subr.mxu0 0.0
        %3707 = vmatpush2.msra.mxu0 0.0
        %3708 = vmatprep.subr.mxu0 0.0
        %3709 = vmatpush2.msra.mxu0 0.0
        %3710 = vmatprep.subr.mxu0 0.0
        %3711 = vmatpush2.msra.mxu0 0.0
        %3712 = vmatprep.subr.mxu0 0.0
        %3713 = vmatpush2.msra.mxu0 0.0
        %3714 = vmatprep.subr.mxu0 0.0
        %3715 = vmatpush2.msra.mxu0 0.0
        %3716 = vmatprep.subr.mxu0 0.0
        %3717 = vmatpush2.msra.mxu0 0.0
        %3718 = vmatprep.subr.mxu0 0.0
        %3719 = vmatpush2.msra.mxu0 0.0
        %3720 = vmatprep.subr.mxu0 0.0
        %3721 = vmatpush2.msra.mxu0 0.0
        %3722 = vmatprep.subr.mxu0 0.0
        %3723 = vmatpush2.msra.mxu0 0.0
        %3724 = vmatprep.subr.mxu0 0.0
        %3725 = vmatpush2.msra.mxu0 0.0
        %3726 = vmatprep.subr.mxu0 0.0
        %3727 = vmatpush2.msra.mxu0 0.0
        %3728 = vmatprep.subr.mxu0 0.0
        %3729 = vmatpush2.msra.mxu0 0.0
        %3730 = vmatprep.subr.mxu0 0.0
        %3731 = vmatpush2.msra.mxu0 0.0
        %3732 = vmatprep.subr.mxu0 0.0
        %3733 = vmatpush2.msra.mxu0 0.0
        %3734 = vmatprep.mubr.f32.mxu0 0.0
        %v3735 = vand.u32 %v3545, 4294901760
        %3736 = vmatmul.mubr.f32.gmra.mxu0 %v3735
        %v3737 = vpop.f32.mrf.mxu0
        %v3738 = vadd.f32 %v3627, %v3737
        %v3739 = vpop.f32.mrf.mxu0
        %3740 = vdwg.mxu0
        %3741 = vmatprep.subr.mxu0 0.0
        %3742 = vmatpush1.msra.mxu0 0.0
        %3743 = vmatprep.subr.mxu0 0.0
        %3744 = vmatpush1.msra.mxu0 0.0
        %3745 = vmatprep.subr.mxu0 0.0
        %3746 = vmatpush1.msra.mxu0 0.0
        %3747 = vmatprep.subr.mxu0 0.0
        %3748 = vmatpush1.msra.mxu0 0.0
        %3749 = vmatprep.subr.mxu0 0.0
        %3750 = vmatpush1.msra.mxu0 0.0
        %3751 = vmatprep.subr.mxu0 0.0
        %3752 = vmatpush1.msra.mxu0 0.0
        %3753 = vmatprep.subr.mxu0 0.0
        %3754 = vmatpush1.msra.mxu0 0.0
        %3755 = vmatprep.subr.mxu0 0.0
        %3756 = vmatpush1.msra.mxu0 0.0
        %3757 = vmatprep.subr.mxu0 0.0
        %v3758 = vand.u32 %v2955, 4294901760
        %v3759 = vsub.f32 %v2955, %v3758
        %3760 = vmatpush1.msra.mxu0 %v3759
        %3761 = vmatprep.subr.mxu0 0.0
        %v3762 = vand.u32 %v2954, 4294901760
        %v3763 = vsub.f32 %v2954, %v3762
        %3764 = vmatpush1.msra.mxu0 %v3763
        %3765 = vmatprep.subr.mxu0 0.0
        %v3766 = vand.u32 %v2953, 4294901760
        %v3767 = vsub.f32 %v2953, %v3766
        %3768 = vmatpush1.msra.mxu0 %v3767
        %3769 = vmatprep.subr.mxu0 0.0
        %v3770 = vand.u32 %v2952, 4294901760
        %v3771 = vsub.f32 %v2952, %v3770
        %3772 = vmatpush1.msra.mxu0 %v3771
        %3773 = vmatprep.subr.mxu0 0.0
        %v3774 = vand.u32 %v2951, 4294901760
        %v3775 = vsub.f32 %v2951, %v3774
        %3776 = vmatpush1.msra.mxu0 %v3775
        %3777 = vmatprep.subr.mxu0 0.0
        %v3778 = vand.u32 %v2950, 4294901760
        %v3779 = vsub.f32 %v2950, %v3778
        %3780 = vmatpush1.msra.mxu0 %v3779
        %3781 = vmatprep.subr.mxu0 0.0
        %v3782 = vand.u32 %v2949, 4294901760
        %v3783 = vsub.f32 %v2949, %v3782
        %3784 = vmatpush1.msra.mxu0 %v3783
        %3785 = vmatprep.subr.mxu0 0.0
        %v3786 = vand.u32 %v2948, 4294901760
        %v3787 = vsub.f32 %v2948, %v3786
        %3788 = vmatpush1.msra.mxu0 %v3787
        %3789 = vmatprep.subr.mxu0 0.0
        %3790 = vmatpush2.msra.mxu0 0.0
        %3791 = vmatprep.subr.mxu0 0.0
        %3792 = vmatpush2.msra.mxu0 0.0
        %3793 = vmatprep.subr.mxu0 0.0
        %3794 = vmatpush2.msra.mxu0 0.0
        %3795 = vmatprep.subr.mxu0 0.0
        %3796 = vmatpush2.msra.mxu0 0.0
        %3797 = vmatprep.subr.mxu0 0.0
        %3798 = vmatpush2.msra.mxu0 0.0
        %3799 = vmatprep.subr.mxu0 0.0
        %3800 = vmatpush2.msra.mxu0 0.0
        %3801 = vmatprep.subr.mxu0 0.0
        %3802 = vmatpush2.msra.mxu0 0.0
        %3803 = vmatprep.subr.mxu0 0.0
        %3804 = vmatpush2.msra.mxu0 0.0
        %3805 = vmatprep.subr.mxu0 0.0
        %3806 = vmatpush2.msra.mxu0 0.0
        %3807 = vmatprep.subr.mxu0 0.0
        %3808 = vmatpush2.msra.mxu0 0.0
        %3809 = vmatprep.subr.mxu0 0.0
        %3810 = vmatpush2.msra.mxu0 0.0
        %3811 = vmatprep.subr.mxu0 0.0
        %3812 = vmatpush2.msra.mxu0 0.0
        %3813 = vmatprep.subr.mxu0 0.0
        %3814 = vmatpush2.msra.mxu0 0.0
        %3815 = vmatprep.subr.mxu0 0.0
        %3816 = vmatpush2.msra.mxu0 0.0
        %3817 = vmatprep.subr.mxu0 0.0
        %3818 = vmatpush2.msra.mxu0 0.0
        %3819 = vmatprep.subr.mxu0 0.0
        %3820 = vmatpush2.msra.mxu0 0.0
        %3821 = vmatprep.mubr.f32.mxu0 0.0
        %v3822 = vand.u32 %v3545, 4294901760
        %v3823 = vsub.f32 %v3545, %v3822
        %3824 = vmatmul.mubr.f32.gmra.mxu0 %v3823
        %v3825 = vpop.f32.mrf.mxu0
        %v3826 = vadd.f32 %v3738, %v3825
        %v3827 = vpop.f32.mrf.mxu0
        %3828 = vdwg.mxu0
        %3829 = vmatprep.subr.mxu0 0.0
        %3830 = vmatpush1.msra.mxu0 0.0
        %3831 = vmatprep.subr.mxu0 0.0
        %3832 = vmatpush1.msra.mxu0 0.0
        %3833 = vmatprep.subr.mxu0 0.0
        %3834 = vmatpush1.msra.mxu0 0.0
        %3835 = vmatprep.subr.mxu0 0.0
        %3836 = vmatpush1.msra.mxu0 0.0
        %3837 = vmatprep.subr.mxu0 0.0
        %3838 = vmatpush1.msra.mxu0 0.0
        %3839 = vmatprep.subr.mxu0 0.0
        %3840 = vmatpush1.msra.mxu0 0.0
        %3841 = vmatprep.subr.mxu0 0.0
        %3842 = vmatpush1.msra.mxu0 0.0
        %3843 = vmatprep.subr.mxu0 0.0
        %3844 = vmatpush1.msra.mxu0 0.0
        %3845 = vmatprep.subr.mxu0 0.0
        %v3846 = vand.u32 %v2955, 4294901760
        %3847 = vmatpush1.msra.mxu0 %v3846
        %3848 = vmatprep.subr.mxu0 0.0
        %v3849 = vand.u32 %v2954, 4294901760
        %3850 = vmatpush1.msra.mxu0 %v3849
        %3851 = vmatprep.subr.mxu0 0.0
        %v3852 = vand.u32 %v2953, 4294901760
        %3853 = vmatpush1.msra.mxu0 %v3852
        %3854 = vmatprep.subr.mxu0 0.0
        %v3855 = vand.u32 %v2952, 4294901760
        %3856 = vmatpush1.msra.mxu0 %v3855
        %3857 = vmatprep.subr.mxu0 0.0
        %v3858 = vand.u32 %v2951, 4294901760
        %3859 = vmatpush1.msra.mxu0 %v3858
        %3860 = vmatprep.subr.mxu0 0.0
        %v3861 = vand.u32 %v2950, 4294901760
        %3862 = vmatpush1.msra.mxu0 %v3861
        %3863 = vmatprep.subr.mxu0 0.0
        %v3864 = vand.u32 %v2949, 4294901760
        %3865 = vmatpush1.msra.mxu0 %v3864
        %3866 = vmatprep.subr.mxu0 0.0
        %v3867 = vand.u32 %v2948, 4294901760
        %3868 = vmatpush1.msra.mxu0 %v3867
        %3869 = vmatprep.subr.mxu0 0.0
        %3870 = vmatpush2.msra.mxu0 0.0
        %3871 = vmatprep.subr.mxu0 0.0
        %3872 = vmatpush2.msra.mxu0 0.0
        %3873 = vmatprep.subr.mxu0 0.0
        %3874 = vmatpush2.msra.mxu0 0.0
        %3875 = vmatprep.subr.mxu0 0.0
        %3876 = vmatpush2.msra.mxu0 0.0
        %3877 = vmatprep.subr.mxu0 0.0
        %3878 = vmatpush2.msra.mxu0 0.0
        %3879 = vmatprep.subr.mxu0 0.0
        %3880 = vmatpush2.msra.mxu0 0.0
        %3881 = vmatprep.subr.mxu0 0.0
        %3882 = vmatpush2.msra.mxu0 0.0
        %3883 = vmatprep.subr.mxu0 0.0
        %3884 = vmatpush2.msra.mxu0 0.0
        %3885 = vmatprep.subr.mxu0 0.0
        %3886 = vmatpush2.msra.mxu0 0.0
        %3887 = vmatprep.subr.mxu0 0.0
        %3888 = vmatpush2.msra.mxu0 0.0
        %3889 = vmatprep.subr.mxu0 0.0
        %3890 = vmatpush2.msra.mxu0 0.0
        %3891 = vmatprep.subr.mxu0 0.0
        %3892 = vmatpush2.msra.mxu0 0.0
        %3893 = vmatprep.subr.mxu0 0.0
        %3894 = vmatpush2.msra.mxu0 0.0
        %3895 = vmatprep.subr.mxu0 0.0
        %3896 = vmatpush2.msra.mxu0 0.0
        %3897 = vmatprep.subr.mxu0 0.0
        %3898 = vmatpush2.msra.mxu0 0.0
        %3899 = vmatprep.subr.mxu0 0.0
        %3900 = vmatpush2.msra.mxu0 0.0
        %3901 = vmatprep.mubr.f32.mxu0 0.0
        %v3902 = vand.u32 %v3545, 4294901760
        %v3903 = vsub.f32 %v3545, %v3902
        %v3904 = vand.u32 %v3903, 4294901760
        %3905 = vmatmul.mubr.f32.gmra.mxu0 %v3904
        %v3906 = vpop.f32.mrf.mxu0
        %v3907 = vadd.f32 %v3826, %v3906
        %v3908 = vpop.f32.mrf.mxu0
        %3909 = vdwg.mxu0
        %3910 = vmatprep.subr.mxu0 0.0
        %3911 = vmatpush1.msra.mxu0 0.0
        %3912 = vmatprep.subr.mxu0 0.0
        %3913 = vmatpush1.msra.mxu0 0.0
        %3914 = vmatprep.subr.mxu0 0.0
        %3915 = vmatpush1.msra.mxu0 0.0
        %3916 = vmatprep.subr.mxu0 0.0
        %3917 = vmatpush1.msra.mxu0 0.0
        %3918 = vmatprep.subr.mxu0 0.0
        %3919 = vmatpush1.msra.mxu0 0.0
        %3920 = vmatprep.subr.mxu0 0.0
        %3921 = vmatpush1.msra.mxu0 0.0
        %3922 = vmatprep.subr.mxu0 0.0
        %3923 = vmatpush1.msra.mxu0 0.0
        %3924 = vmatprep.subr.mxu0 0.0
        %3925 = vmatpush1.msra.mxu0 0.0
        %3926 = vmatprep.subr.mxu0 0.0
        %v3927 = vand.u32 %v2955, 4294901760
        %v3928 = vsub.f32 %v2955, %v3927
        %v3929 = vand.u32 %v3928, 4294901760
        %3930 = vmatpush1.msra.mxu0 %v3929
        %3931 = vmatprep.subr.mxu0 0.0
        %v3932 = vand.u32 %v2954, 4294901760
        %v3933 = vsub.f32 %v2954, %v3932
        %v3934 = vand.u32 %v3933, 4294901760
        %3935 = vmatpush1.msra.mxu0 %v3934
        %3936 = vmatprep.subr.mxu0 0.0
        %v3937 = vand.u32 %v2953, 4294901760
        %v3938 = vsub.f32 %v2953, %v3937
        %v3939 = vand.u32 %v3938, 4294901760
        %3940 = vmatpush1.msra.mxu0 %v3939
        %3941 = vmatprep.subr.mxu0 0.0
        %v3942 = vand.u32 %v2952, 4294901760
        %v3943 = vsub.f32 %v2952, %v3942
        %v3944 = vand.u32 %v3943, 4294901760
        %3945 = vmatpush1.msra.mxu0 %v3944
        %3946 = vmatprep.subr.mxu0 0.0
        %v3947 = vand.u32 %v2951, 4294901760
        %v3948 = vsub.f32 %v2951, %v3947
        %v3949 = vand.u32 %v3948, 4294901760
        %3950 = vmatpush1.msra.mxu0 %v3949
        %3951 = vmatprep.subr.mxu0 0.0
        %v3952 = vand.u32 %v2950, 4294901760
        %v3953 = vsub.f32 %v2950, %v3952
        %v3954 = vand.u32 %v3953, 4294901760
        %3955 = vmatpush1.msra.mxu0 %v3954
        %3956 = vmatprep.subr.mxu0 0.0
        %v3957 = vand.u32 %v2949, 4294901760
        %v3958 = vsub.f32 %v2949, %v3957
        %v3959 = vand.u32 %v3958, 4294901760
        %3960 = vmatpush1.msra.mxu0 %v3959
        %3961 = vmatprep.subr.mxu0 0.0
        %v3962 = vand.u32 %v2948, 4294901760
        %v3963 = vsub.f32 %v2948, %v3962
        %v3964 = vand.u32 %v3963, 4294901760
        %3965 = vmatpush1.msra.mxu0 %v3964
        %3966 = vmatprep.subr.mxu0 0.0
        %3967 = vmatpush2.msra.mxu0 0.0
        %3968 = vmatprep.subr.mxu0 0.0
        %3969 = vmatpush2.msra.mxu0 0.0
        %3970 = vmatprep.subr.mxu0 0.0
        %3971 = vmatpush2.msra.mxu0 0.0
        %3972 = vmatprep.subr.mxu0 0.0
        %3973 = vmatpush2.msra.mxu0 0.0
        %3974 = vmatprep.subr.mxu0 0.0
        %3975 = vmatpush2.msra.mxu0 0.0
        %3976 = vmatprep.subr.mxu0 0.0
        %3977 = vmatpush2.msra.mxu0 0.0
        %3978 = vmatprep.subr.mxu0 0.0
        %3979 = vmatpush2.msra.mxu0 0.0
        %3980 = vmatprep.subr.mxu0 0.0
        %3981 = vmatpush2.msra.mxu0 0.0
        %3982 = vmatprep.subr.mxu0 0.0
        %3983 = vmatpush2.msra.mxu0 0.0
        %3984 = vmatprep.subr.mxu0 0.0
        %3985 = vmatpush2.msra.mxu0 0.0
        %3986 = vmatprep.subr.mxu0 0.0
        %3987 = vmatpush2.msra.mxu0 0.0
        %3988 = vmatprep.subr.mxu0 0.0
        %3989 = vmatpush2.msra.mxu0 0.0
        %3990 = vmatprep.subr.mxu0 0.0
        %3991 = vmatpush2.msra.mxu0 0.0
        %3992 = vmatprep.subr.mxu0 0.0
        %3993 = vmatpush2.msra.mxu0 0.0
        %3994 = vmatprep.subr.mxu0 0.0
        %3995 = vmatpush2.msra.mxu0 0.0
        %3996 = vmatprep.subr.mxu0 0.0
        %3997 = vmatpush2.msra.mxu0 0.0
        %3998 = vmatprep.mubr.f32.mxu0 0.0
        %v3999 = vand.u32 %v3545, 4294901760
        %4000 = vmatmul.mubr.f32.gmra.mxu0 %v3999
        %v4001 = vpop.f32.mrf.mxu0
        %v4002 = vadd.f32 %v3907, %v4001
        %v4003 = vpop.f32.mrf.mxu0
        %4004 = vdwg.mxu0
        %4005 = vmatprep.subr.mxu0 0.0
        %4006 = vmatpush1.msra.mxu0 0.0
        %4007 = vmatprep.subr.mxu0 0.0
        %4008 = vmatpush1.msra.mxu0 0.0
        %4009 = vmatprep.subr.mxu0 0.0
        %4010 = vmatpush1.msra.mxu0 0.0
        %4011 = vmatprep.subr.mxu0 0.0
        %4012 = vmatpush1.msra.mxu0 0.0
        %4013 = vmatprep.subr.mxu0 0.0
        %4014 = vmatpush1.msra.mxu0 0.0
        %4015 = vmatprep.subr.mxu0 0.0
        %4016 = vmatpush1.msra.mxu0 0.0
        %4017 = vmatprep.subr.mxu0 0.0
        %4018 = vmatpush1.msra.mxu0 0.0
        %4019 = vmatprep.subr.mxu0 0.0
        %4020 = vmatpush1.msra.mxu0 0.0
        %4021 = vmatprep.subr.mxu0 0.0
        %v4022 = vand.u32 %v2955, 4294901760
        %4023 = vmatpush1.msra.mxu0 %v4022
        %4024 = vmatprep.subr.mxu0 0.0
        %v4025 = vand.u32 %v2954, 4294901760
        %4026 = vmatpush1.msra.mxu0 %v4025
        %4027 = vmatprep.subr.mxu0 0.0
        %v4028 = vand.u32 %v2953, 4294901760
        %4029 = vmatpush1.msra.mxu0 %v4028
        %4030 = vmatprep.subr.mxu0 0.0
        %v4031 = vand.u32 %v2952, 4294901760
        %4032 = vmatpush1.msra.mxu0 %v4031
        %4033 = vmatprep.subr.mxu0 0.0
        %v4034 = vand.u32 %v2951, 4294901760
        %4035 = vmatpush1.msra.mxu0 %v4034
        %4036 = vmatprep.subr.mxu0 0.0
        %v4037 = vand.u32 %v2950, 4294901760
        %4038 = vmatpush1.msra.mxu0 %v4037
        %4039 = vmatprep.subr.mxu0 0.0
        %v4040 = vand.u32 %v2949, 4294901760
        %4041 = vmatpush1.msra.mxu0 %v4040
        %4042 = vmatprep.subr.mxu0 0.0
        %v4043 = vand.u32 %v2948, 4294901760
        %4044 = vmatpush1.msra.mxu0 %v4043
        %4045 = vmatprep.subr.mxu0 0.0
        %4046 = vmatpush2.msra.mxu0 0.0
        %4047 = vmatprep.subr.mxu0 0.0
        %4048 = vmatpush2.msra.mxu0 0.0
        %4049 = vmatprep.subr.mxu0 0.0
        %4050 = vmatpush2.msra.mxu0 0.0
        %4051 = vmatprep.subr.mxu0 0.0
        %4052 = vmatpush2.msra.mxu0 0.0
        %4053 = vmatprep.subr.mxu0 0.0
        %4054 = vmatpush2.msra.mxu0 0.0
        %4055 = vmatprep.subr.mxu0 0.0
        %4056 = vmatpush2.msra.mxu0 0.0
        %4057 = vmatprep.subr.mxu0 0.0
        %4058 = vmatpush2.msra.mxu0 0.0
        %4059 = vmatprep.subr.mxu0 0.0
        %4060 = vmatpush2.msra.mxu0 0.0
        %4061 = vmatprep.subr.mxu0 0.0
        %4062 = vmatpush2.msra.mxu0 0.0
        %4063 = vmatprep.subr.mxu0 0.0
        %4064 = vmatpush2.msra.mxu0 0.0
        %4065 = vmatprep.subr.mxu0 0.0
        %4066 = vmatpush2.msra.mxu0 0.0
        %4067 = vmatprep.subr.mxu0 0.0
        %4068 = vmatpush2.msra.mxu0 0.0
        %4069 = vmatprep.subr.mxu0 0.0
        %4070 = vmatpush2.msra.mxu0 0.0
        %4071 = vmatprep.subr.mxu0 0.0
        %4072 = vmatpush2.msra.mxu0 0.0
        %4073 = vmatprep.subr.mxu0 0.0
        %4074 = vmatpush2.msra.mxu0 0.0
        %4075 = vmatprep.subr.mxu0 0.0
        %4076 = vmatpush2.msra.mxu0 0.0
        %4077 = vmatprep.mubr.f32.mxu0 0.0
        %v4078 = vand.u32 %v3545, 4294901760
        %4079 = vmatmul.mubr.f32.gmra.mxu0 %v4078
        %v4080 = vpop.f32.mrf.mxu0
        %v4081 = vadd.f32 %v4002, %v4080
        %v4082 = vpop.f32.mrf.mxu0
        %4083 = vdwg.mxu0
        %v4085 = vsel %vm632, %v2907, 0
        %4087 = vmatprep.subr.mxu0 0.0
        %4088 = vmatpush1.msra.mxu0 0.0
        %4089 = vmatprep.subr.mxu0 0.0
        %4090 = vmatpush1.msra.mxu0 0.0
        %4091 = vmatprep.subr.mxu0 0.0
        %4092 = vmatpush1.msra.mxu0 0.0
        %4093 = vmatprep.subr.mxu0 0.0
        %4094 = vmatpush1.msra.mxu0 0.0
        %4095 = vmatprep.subr.mxu0 0.0
        %4096 = vmatpush1.msra.mxu0 0.0
        %4097 = vmatprep.subr.mxu0 0.0
        %4098 = vmatpush1.msra.mxu0 0.0
        %4099 = vmatprep.subr.mxu0 0.0
        %4100 = vmatpush1.msra.mxu0 0.0
        %4101 = vmatprep.subr.mxu0 0.0
        %4102 = vmatpush1.msra.mxu0 0.0
        %4103 = vmatprep.subr.mxu0 0.0
        %v4104 = vand.u32 %v2963, 4294901760
        %4105 = vmatpush1.msra.mxu0 %v4104
        %4106 = vmatprep.subr.mxu0 0.0
        %v4107 = vand.u32 %v2962, 4294901760
        %4108 = vmatpush1.msra.mxu0 %v4107
        %4109 = vmatprep.subr.mxu0 0.0
        %v4110 = vand.u32 %v2961, 4294901760
        %4111 = vmatpush1.msra.mxu0 %v4110
        %4112 = vmatprep.subr.mxu0 0.0
        %v4113 = vand.u32 %v2960, 4294901760
        %4114 = vmatpush1.msra.mxu0 %v4113
        %4115 = vmatprep.subr.mxu0 0.0
        %v4116 = vand.u32 %v2959, 4294901760
        %4117 = vmatpush1.msra.mxu0 %v4116
        %4118 = vmatprep.subr.mxu0 0.0
        %v4119 = vand.u32 %v2958, 4294901760
        %4120 = vmatpush1.msra.mxu0 %v4119
        %4121 = vmatprep.subr.mxu0 0.0
        %v4122 = vand.u32 %v2957, 4294901760
        %4123 = vmatpush1.msra.mxu0 %v4122
        %4124 = vmatprep.subr.mxu0 0.0
        %v4125 = vand.u32 %v2956, 4294901760
        %4126 = vmatpush1.msra.mxu0 %v4125
        %4127 = vmatprep.subr.mxu0 0.0
        %4128 = vmatpush2.msra.mxu0 0.0
        %4129 = vmatprep.subr.mxu0 0.0
        %4130 = vmatpush2.msra.mxu0 0.0
        %4131 = vmatprep.subr.mxu0 0.0
        %4132 = vmatpush2.msra.mxu0 0.0
        %4133 = vmatprep.subr.mxu0 0.0
        %4134 = vmatpush2.msra.mxu0 0.0
        %4135 = vmatprep.subr.mxu0 0.0
        %4136 = vmatpush2.msra.mxu0 0.0
        %4137 = vmatprep.subr.mxu0 0.0
        %4138 = vmatpush2.msra.mxu0 0.0
        %4139 = vmatprep.subr.mxu0 0.0
        %4140 = vmatpush2.msra.mxu0 0.0
        %4141 = vmatprep.subr.mxu0 0.0
        %4142 = vmatpush2.msra.mxu0 0.0
        %4143 = vmatprep.subr.mxu0 0.0
        %4144 = vmatpush2.msra.mxu0 0.0
        %4145 = vmatprep.subr.mxu0 0.0
        %4146 = vmatpush2.msra.mxu0 0.0
        %4147 = vmatprep.subr.mxu0 0.0
        %4148 = vmatpush2.msra.mxu0 0.0
        %4149 = vmatprep.subr.mxu0 0.0
        %4150 = vmatpush2.msra.mxu0 0.0
        %4151 = vmatprep.subr.mxu0 0.0
        %4152 = vmatpush2.msra.mxu0 0.0
        %4153 = vmatprep.subr.mxu0 0.0
        %4154 = vmatpush2.msra.mxu0 0.0
        %4155 = vmatprep.subr.mxu0 0.0
        %4156 = vmatpush2.msra.mxu0 0.0
        %4157 = vmatprep.subr.mxu0 0.0
        %4158 = vmatpush2.msra.mxu0 0.0
        %4159 = vmatprep.mubr.f32.mxu0 0.0
        %v4160 = vand.u32 %v4085, 4294901760
        %v4161 = vsub.f32 %v4085, %v4160
        %v4162 = vand.u32 %v4161, 4294901760
        %v4163 = vsub.f32 %v4161, %v4162
        %v4164 = vand.u32 %v4163, 4294901760
        %4165 = vmatmul.mubr.f32.gmra.mxu0 %v4164
        %v4166 = vpop.f32.mrf.mxu0
        %v4167 = vadd.f32 0.0, %v4166
        %v4168 = vpop.f32.mrf.mxu0
        %4169 = vdwg.mxu0
        %4170 = vmatprep.subr.mxu0 0.0
        %4171 = vmatpush1.msra.mxu0 0.0
        %4172 = vmatprep.subr.mxu0 0.0
        %4173 = vmatpush1.msra.mxu0 0.0
        %4174 = vmatprep.subr.mxu0 0.0
        %4175 = vmatpush1.msra.mxu0 0.0
        %4176 = vmatprep.subr.mxu0 0.0
        %4177 = vmatpush1.msra.mxu0 0.0
        %4178 = vmatprep.subr.mxu0 0.0
        %4179 = vmatpush1.msra.mxu0 0.0
        %4180 = vmatprep.subr.mxu0 0.0
        %4181 = vmatpush1.msra.mxu0 0.0
        %4182 = vmatprep.subr.mxu0 0.0
        %4183 = vmatpush1.msra.mxu0 0.0
        %4184 = vmatprep.subr.mxu0 0.0
        %4185 = vmatpush1.msra.mxu0 0.0
        %4186 = vmatprep.subr.mxu0 0.0
        %v4187 = vand.u32 %v2963, 4294901760
        %v4188 = vsub.f32 %v2963, %v4187
        %v4189 = vand.u32 %v4188, 4294901760
        %v4190 = vsub.f32 %v4188, %v4189
        %v4191 = vand.u32 %v4190, 4294901760
        %4192 = vmatpush1.msra.mxu0 %v4191
        %4193 = vmatprep.subr.mxu0 0.0
        %v4194 = vand.u32 %v2962, 4294901760
        %v4195 = vsub.f32 %v2962, %v4194
        %v4196 = vand.u32 %v4195, 4294901760
        %v4197 = vsub.f32 %v4195, %v4196
        %v4198 = vand.u32 %v4197, 4294901760
        %4199 = vmatpush1.msra.mxu0 %v4198
        %4200 = vmatprep.subr.mxu0 0.0
        %v4201 = vand.u32 %v2961, 4294901760
        %v4202 = vsub.f32 %v2961, %v4201
        %v4203 = vand.u32 %v4202, 4294901760
        %v4204 = vsub.f32 %v4202, %v4203
        %v4205 = vand.u32 %v4204, 4294901760
        %4206 = vmatpush1.msra.mxu0 %v4205
        %4207 = vmatprep.subr.mxu0 0.0
        %v4208 = vand.u32 %v2960, 4294901760
        %v4209 = vsub.f32 %v2960, %v4208
        %v4210 = vand.u32 %v4209, 4294901760
        %v4211 = vsub.f32 %v4209, %v4210
        %v4212 = vand.u32 %v4211, 4294901760
        %4213 = vmatpush1.msra.mxu0 %v4212
        %4214 = vmatprep.subr.mxu0 0.0
        %v4215 = vand.u32 %v2959, 4294901760
        %v4216 = vsub.f32 %v2959, %v4215
        %v4217 = vand.u32 %v4216, 4294901760
        %v4218 = vsub.f32 %v4216, %v4217
        %v4219 = vand.u32 %v4218, 4294901760
        %4220 = vmatpush1.msra.mxu0 %v4219
        %4221 = vmatprep.subr.mxu0 0.0
        %v4222 = vand.u32 %v2958, 4294901760
        %v4223 = vsub.f32 %v2958, %v4222
        %v4224 = vand.u32 %v4223, 4294901760
        %v4225 = vsub.f32 %v4223, %v4224
        %v4226 = vand.u32 %v4225, 4294901760
        %4227 = vmatpush1.msra.mxu0 %v4226
        %4228 = vmatprep.subr.mxu0 0.0
        %v4229 = vand.u32 %v2957, 4294901760
        %v4230 = vsub.f32 %v2957, %v4229
        %v4231 = vand.u32 %v4230, 4294901760
        %v4232 = vsub.f32 %v4230, %v4231
        %v4233 = vand.u32 %v4232, 4294901760
        %4234 = vmatpush1.msra.mxu0 %v4233
        %4235 = vmatprep.subr.mxu0 0.0
        %v4236 = vand.u32 %v2956, 4294901760
        %v4237 = vsub.f32 %v2956, %v4236
        %v4238 = vand.u32 %v4237, 4294901760
        %v4239 = vsub.f32 %v4237, %v4238
        %v4240 = vand.u32 %v4239, 4294901760
        %4241 = vmatpush1.msra.mxu0 %v4240
        %4242 = vmatprep.subr.mxu0 0.0
        %4243 = vmatpush2.msra.mxu0 0.0
        %4244 = vmatprep.subr.mxu0 0.0
        %4245 = vmatpush2.msra.mxu0 0.0
        %4246 = vmatprep.subr.mxu0 0.0
        %4247 = vmatpush2.msra.mxu0 0.0
        %4248 = vmatprep.subr.mxu0 0.0
        %4249 = vmatpush2.msra.mxu0 0.0
        %4250 = vmatprep.subr.mxu0 0.0
        %4251 = vmatpush2.msra.mxu0 0.0
        %4252 = vmatprep.subr.mxu0 0.0
        %4253 = vmatpush2.msra.mxu0 0.0
        %4254 = vmatprep.subr.mxu0 0.0
        %4255 = vmatpush2.msra.mxu0 0.0
        %4256 = vmatprep.subr.mxu0 0.0
        %4257 = vmatpush2.msra.mxu0 0.0
        %4258 = vmatprep.subr.mxu0 0.0
        %4259 = vmatpush2.msra.mxu0 0.0
        %4260 = vmatprep.subr.mxu0 0.0
        %4261 = vmatpush2.msra.mxu0 0.0
        %4262 = vmatprep.subr.mxu0 0.0
        %4263 = vmatpush2.msra.mxu0 0.0
        %4264 = vmatprep.subr.mxu0 0.0
        %4265 = vmatpush2.msra.mxu0 0.0
        %4266 = vmatprep.subr.mxu0 0.0
        %4267 = vmatpush2.msra.mxu0 0.0
        %4268 = vmatprep.subr.mxu0 0.0
        %4269 = vmatpush2.msra.mxu0 0.0
        %4270 = vmatprep.subr.mxu0 0.0
        %4271 = vmatpush2.msra.mxu0 0.0
        %4272 = vmatprep.subr.mxu0 0.0
        %4273 = vmatpush2.msra.mxu0 0.0
        %4274 = vmatprep.mubr.f32.mxu0 0.0
        %v4275 = vand.u32 %v4085, 4294901760
        %4276 = vmatmul.mubr.f32.gmra.mxu0 %v4275
        %v4277 = vpop.f32.mrf.mxu0
        %v4278 = vadd.f32 %v4167, %v4277
        %v4279 = vpop.f32.mrf.mxu0
        %4280 = vdwg.mxu0
        %4281 = vmatprep.subr.mxu0 0.0
        %4282 = vmatpush1.msra.mxu0 0.0
        %4283 = vmatprep.subr.mxu0 0.0
        %4284 = vmatpush1.msra.mxu0 0.0
        %4285 = vmatprep.subr.mxu0 0.0
        %4286 = vmatpush1.msra.mxu0 0.0
        %4287 = vmatprep.subr.mxu0 0.0
        %4288 = vmatpush1.msra.mxu0 0.0
        %4289 = vmatprep.subr.mxu0 0.0
        %4290 = vmatpush1.msra.mxu0 0.0
        %4291 = vmatprep.subr.mxu0 0.0
        %4292 = vmatpush1.msra.mxu0 0.0
        %4293 = vmatprep.subr.mxu0 0.0
        %4294 = vmatpush1.msra.mxu0 0.0
        %4295 = vmatprep.subr.mxu0 0.0
        %4296 = vmatpush1.msra.mxu0 0.0
        %4297 = vmatprep.subr.mxu0 0.0
        %v4298 = vand.u32 %v2963, 4294901760
        %v4299 = vsub.f32 %v2963, %v4298
        %4300 = vmatpush1.msra.mxu0 %v4299
        %4301 = vmatprep.subr.mxu0 0.0
        %v4302 = vand.u32 %v2962, 4294901760
        %v4303 = vsub.f32 %v2962, %v4302
        %4304 = vmatpush1.msra.mxu0 %v4303
        %4305 = vmatprep.subr.mxu0 0.0
        %v4306 = vand.u32 %v2961, 4294901760
        %v4307 = vsub.f32 %v2961, %v4306
        %4308 = vmatpush1.msra.mxu0 %v4307
        %4309 = vmatprep.subr.mxu0 0.0
        %v4310 = vand.u32 %v2960, 4294901760
        %v4311 = vsub.f32 %v2960, %v4310
        %4312 = vmatpush1.msra.mxu0 %v4311
        %4313 = vmatprep.subr.mxu0 0.0
        %v4314 = vand.u32 %v2959, 4294901760
        %v4315 = vsub.f32 %v2959, %v4314
        %4316 = vmatpush1.msra.mxu0 %v4315
        %4317 = vmatprep.subr.mxu0 0.0
        %v4318 = vand.u32 %v2958, 4294901760
        %v4319 = vsub.f32 %v2958, %v4318
        %4320 = vmatpush1.msra.mxu0 %v4319
        %4321 = vmatprep.subr.mxu0 0.0
        %v4322 = vand.u32 %v2957, 4294901760
        %v4323 = vsub.f32 %v2957, %v4322
        %4324 = vmatpush1.msra.mxu0 %v4323
        %4325 = vmatprep.subr.mxu0 0.0
        %v4326 = vand.u32 %v2956, 4294901760
        %v4327 = vsub.f32 %v2956, %v4326
        %4328 = vmatpush1.msra.mxu0 %v4327
        %4329 = vmatprep.subr.mxu0 0.0
        %4330 = vmatpush2.msra.mxu0 0.0
        %4331 = vmatprep.subr.mxu0 0.0
        %4332 = vmatpush2.msra.mxu0 0.0
        %4333 = vmatprep.subr.mxu0 0.0
        %4334 = vmatpush2.msra.mxu0 0.0
        %4335 = vmatprep.subr.mxu0 0.0
        %4336 = vmatpush2.msra.mxu0 0.0
        %4337 = vmatprep.subr.mxu0 0.0
        %4338 = vmatpush2.msra.mxu0 0.0
        %4339 = vmatprep.subr.mxu0 0.0
        %4340 = vmatpush2.msra.mxu0 0.0
        %4341 = vmatprep.subr.mxu0 0.0
        %4342 = vmatpush2.msra.mxu0 0.0
        %4343 = vmatprep.subr.mxu0 0.0
        %4344 = vmatpush2.msra.mxu0 0.0
        %4345 = vmatprep.subr.mxu0 0.0
        %4346 = vmatpush2.msra.mxu0 0.0
        %4347 = vmatprep.subr.mxu0 0.0
        %4348 = vmatpush2.msra.mxu0 0.0
        %4349 = vmatprep.subr.mxu0 0.0
        %4350 = vmatpush2.msra.mxu0 0.0
        %4351 = vmatprep.subr.mxu0 0.0
        %4352 = vmatpush2.msra.mxu0 0.0
        %4353 = vmatprep.subr.mxu0 0.0
        %4354 = vmatpush2.msra.mxu0 0.0
        %4355 = vmatprep.subr.mxu0 0.0
        %4356 = vmatpush2.msra.mxu0 0.0
        %4357 = vmatprep.subr.mxu0 0.0
        %4358 = vmatpush2.msra.mxu0 0.0
        %4359 = vmatprep.subr.mxu0 0.0
        %4360 = vmatpush2.msra.mxu0 0.0
        %4361 = vmatprep.mubr.f32.mxu0 0.0
        %v4362 = vand.u32 %v4085, 4294901760
        %v4363 = vsub.f32 %v4085, %v4362
        %4364 = vmatmul.mubr.f32.gmra.mxu0 %v4363
        %v4365 = vpop.f32.mrf.mxu0
        %v4366 = vadd.f32 %v4278, %v4365
        %v4367 = vpop.f32.mrf.mxu0
        %4368 = vdwg.mxu0
        %4369 = vmatprep.subr.mxu0 0.0
        %4370 = vmatpush1.msra.mxu0 0.0
        %4371 = vmatprep.subr.mxu0 0.0
        %4372 = vmatpush1.msra.mxu0 0.0
        %4373 = vmatprep.subr.mxu0 0.0
        %4374 = vmatpush1.msra.mxu0 0.0
        %4375 = vmatprep.subr.mxu0 0.0
        %4376 = vmatpush1.msra.mxu0 0.0
        %4377 = vmatprep.subr.mxu0 0.0
        %4378 = vmatpush1.msra.mxu0 0.0
        %4379 = vmatprep.subr.mxu0 0.0
        %4380 = vmatpush1.msra.mxu0 0.0
        %4381 = vmatprep.subr.mxu0 0.0
        %4382 = vmatpush1.msra.mxu0 0.0
        %4383 = vmatprep.subr.mxu0 0.0
        %4384 = vmatpush1.msra.mxu0 0.0
        %4385 = vmatprep.subr.mxu0 0.0
        %v4386 = vand.u32 %v2963, 4294901760
        %4387 = vmatpush1.msra.mxu0 %v4386
        %4388 = vmatprep.subr.mxu0 0.0
        %v4389 = vand.u32 %v2962, 4294901760
        %4390 = vmatpush1.msra.mxu0 %v4389
        %4391 = vmatprep.subr.mxu0 0.0
        %v4392 = vand.u32 %v2961, 4294901760
        %4393 = vmatpush1.msra.mxu0 %v4392
        %4394 = vmatprep.subr.mxu0 0.0
        %v4395 = vand.u32 %v2960, 4294901760
        %4396 = vmatpush1.msra.mxu0 %v4395
        %4397 = vmatprep.subr.mxu0 0.0
        %v4398 = vand.u32 %v2959, 4294901760
        %4399 = vmatpush1.msra.mxu0 %v4398
        %4400 = vmatprep.subr.mxu0 0.0
        %v4401 = vand.u32 %v2958, 4294901760
        %4402 = vmatpush1.msra.mxu0 %v4401
        %4403 = vmatprep.subr.mxu0 0.0
        %v4404 = vand.u32 %v2957, 4294901760
        %4405 = vmatpush1.msra.mxu0 %v4404
        %4406 = vmatprep.subr.mxu0 0.0
        %v4407 = vand.u32 %v2956, 4294901760
        %4408 = vmatpush1.msra.mxu0 %v4407
        %4409 = vmatprep.subr.mxu0 0.0
        %4410 = vmatpush2.msra.mxu0 0.0
        %4411 = vmatprep.subr.mxu0 0.0
        %4412 = vmatpush2.msra.mxu0 0.0
        %4413 = vmatprep.subr.mxu0 0.0
        %4414 = vmatpush2.msra.mxu0 0.0
        %4415 = vmatprep.subr.mxu0 0.0
        %4416 = vmatpush2.msra.mxu0 0.0
        %4417 = vmatprep.subr.mxu0 0.0
        %4418 = vmatpush2.msra.mxu0 0.0
        %4419 = vmatprep.subr.mxu0 0.0
        %4420 = vmatpush2.msra.mxu0 0.0
        %4421 = vmatprep.subr.mxu0 0.0
        %4422 = vmatpush2.msra.mxu0 0.0
        %4423 = vmatprep.subr.mxu0 0.0
        %4424 = vmatpush2.msra.mxu0 0.0
        %4425 = vmatprep.subr.mxu0 0.0
        %4426 = vmatpush2.msra.mxu0 0.0
        %4427 = vmatprep.subr.mxu0 0.0
        %4428 = vmatpush2.msra.mxu0 0.0
        %4429 = vmatprep.subr.mxu0 0.0
        %4430 = vmatpush2.msra.mxu0 0.0
        %4431 = vmatprep.subr.mxu0 0.0
        %4432 = vmatpush2.msra.mxu0 0.0
        %4433 = vmatprep.subr.mxu0 0.0
        %4434 = vmatpush2.msra.mxu0 0.0
        %4435 = vmatprep.subr.mxu0 0.0
        %4436 = vmatpush2.msra.mxu0 0.0
        %4437 = vmatprep.subr.mxu0 0.0
        %4438 = vmatpush2.msra.mxu0 0.0
        %4439 = vmatprep.subr.mxu0 0.0
        %4440 = vmatpush2.msra.mxu0 0.0
        %4441 = vmatprep.mubr.f32.mxu0 0.0
        %v4442 = vand.u32 %v4085, 4294901760
        %v4443 = vsub.f32 %v4085, %v4442
        %v4444 = vand.u32 %v4443, 4294901760
        %4445 = vmatmul.mubr.f32.gmra.mxu0 %v4444
        %v4446 = vpop.f32.mrf.mxu0
        %v4447 = vadd.f32 %v4366, %v4446
        %v4448 = vpop.f32.mrf.mxu0
        %4449 = vdwg.mxu0
        %4450 = vmatprep.subr.mxu0 0.0
        %4451 = vmatpush1.msra.mxu0 0.0
        %4452 = vmatprep.subr.mxu0 0.0
        %4453 = vmatpush1.msra.mxu0 0.0
        %4454 = vmatprep.subr.mxu0 0.0
        %4455 = vmatpush1.msra.mxu0 0.0
        %4456 = vmatprep.subr.mxu0 0.0
        %4457 = vmatpush1.msra.mxu0 0.0
        %4458 = vmatprep.subr.mxu0 0.0
        %4459 = vmatpush1.msra.mxu0 0.0
        %4460 = vmatprep.subr.mxu0 0.0
        %4461 = vmatpush1.msra.mxu0 0.0
        %4462 = vmatprep.subr.mxu0 0.0
        %4463 = vmatpush1.msra.mxu0 0.0
        %4464 = vmatprep.subr.mxu0 0.0
        %4465 = vmatpush1.msra.mxu0 0.0
        %4466 = vmatprep.subr.mxu0 0.0
        %v4467 = vand.u32 %v2963, 4294901760
        %v4468 = vsub.f32 %v2963, %v4467
        %v4469 = vand.u32 %v4468, 4294901760
        %4470 = vmatpush1.msra.mxu0 %v4469
        %4471 = vmatprep.subr.mxu0 0.0
        %v4472 = vand.u32 %v2962, 4294901760
        %v4473 = vsub.f32 %v2962, %v4472
        %v4474 = vand.u32 %v4473, 4294901760
        %4475 = vmatpush1.msra.mxu0 %v4474
        %4476 = vmatprep.subr.mxu0 0.0
        %v4477 = vand.u32 %v2961, 4294901760
        %v4478 = vsub.f32 %v2961, %v4477
        %v4479 = vand.u32 %v4478, 4294901760
        %4480 = vmatpush1.msra.mxu0 %v4479
        %4481 = vmatprep.subr.mxu0 0.0
        %v4482 = vand.u32 %v2960, 4294901760
        %v4483 = vsub.f32 %v2960, %v4482
        %v4484 = vand.u32 %v4483, 4294901760
        %4485 = vmatpush1.msra.mxu0 %v4484
        %4486 = vmatprep.subr.mxu0 0.0
        %v4487 = vand.u32 %v2959, 4294901760
        %v4488 = vsub.f32 %v2959, %v4487
        %v4489 = vand.u32 %v4488, 4294901760
        %4490 = vmatpush1.msra.mxu0 %v4489
        %4491 = vmatprep.subr.mxu0 0.0
        %v4492 = vand.u32 %v2958, 4294901760
        %v4493 = vsub.f32 %v2958, %v4492
        %v4494 = vand.u32 %v4493, 4294901760
        %4495 = vmatpush1.msra.mxu0 %v4494
        %4496 = vmatprep.subr.mxu0 0.0
        %v4497 = vand.u32 %v2957, 4294901760
        %v4498 = vsub.f32 %v2957, %v4497
        %v4499 = vand.u32 %v4498, 4294901760
        %4500 = vmatpush1.msra.mxu0 %v4499
        %4501 = vmatprep.subr.mxu0 0.0
        %v4502 = vand.u32 %v2956, 4294901760
        %v4503 = vsub.f32 %v2956, %v4502
        %v4504 = vand.u32 %v4503, 4294901760
        %4505 = vmatpush1.msra.mxu0 %v4504
        %4506 = vmatprep.subr.mxu0 0.0
        %4507 = vmatpush2.msra.mxu0 0.0
        %4508 = vmatprep.subr.mxu0 0.0
        %4509 = vmatpush2.msra.mxu0 0.0
        %4510 = vmatprep.subr.mxu0 0.0
        %4511 = vmatpush2.msra.mxu0 0.0
        %4512 = vmatprep.subr.mxu0 0.0
        %4513 = vmatpush2.msra.mxu0 0.0
        %4514 = vmatprep.subr.mxu0 0.0
        %4515 = vmatpush2.msra.mxu0 0.0
        %4516 = vmatprep.subr.mxu0 0.0
        %4517 = vmatpush2.msra.mxu0 0.0
        %4518 = vmatprep.subr.mxu0 0.0
        %4519 = vmatpush2.msra.mxu0 0.0
        %4520 = vmatprep.subr.mxu0 0.0
        %4521 = vmatpush2.msra.mxu0 0.0
        %4522 = vmatprep.subr.mxu0 0.0
        %4523 = vmatpush2.msra.mxu0 0.0
        %4524 = vmatprep.subr.mxu0 0.0
        %4525 = vmatpush2.msra.mxu0 0.0
        %4526 = vmatprep.subr.mxu0 0.0
        %4527 = vmatpush2.msra.mxu0 0.0
        %4528 = vmatprep.subr.mxu0 0.0
        %4529 = vmatpush2.msra.mxu0 0.0
        %4530 = vmatprep.subr.mxu0 0.0
        %4531 = vmatpush2.msra.mxu0 0.0
        %4532 = vmatprep.subr.mxu0 0.0
        %4533 = vmatpush2.msra.mxu0 0.0
        %4534 = vmatprep.subr.mxu0 0.0
        %4535 = vmatpush2.msra.mxu0 0.0
        %4536 = vmatprep.subr.mxu0 0.0
        %4537 = vmatpush2.msra.mxu0 0.0
        %4538 = vmatprep.mubr.f32.mxu0 0.0
        %v4539 = vand.u32 %v4085, 4294901760
        %4540 = vmatmul.mubr.f32.gmra.mxu0 %v4539
        %v4541 = vpop.f32.mrf.mxu0
        %v4542 = vadd.f32 %v4447, %v4541
        %v4543 = vpop.f32.mrf.mxu0
        %4544 = vdwg.mxu0
        %4545 = vmatprep.subr.mxu0 0.0
        %4546 = vmatpush1.msra.mxu0 0.0
        %4547 = vmatprep.subr.mxu0 0.0
        %4548 = vmatpush1.msra.mxu0 0.0
        %4549 = vmatprep.subr.mxu0 0.0
        %4550 = vmatpush1.msra.mxu0 0.0
        %4551 = vmatprep.subr.mxu0 0.0
        %4552 = vmatpush1.msra.mxu0 0.0
        %4553 = vmatprep.subr.mxu0 0.0
        %4554 = vmatpush1.msra.mxu0 0.0
        %4555 = vmatprep.subr.mxu0 0.0
        %4556 = vmatpush1.msra.mxu0 0.0
        %4557 = vmatprep.subr.mxu0 0.0
        %4558 = vmatpush1.msra.mxu0 0.0
        %4559 = vmatprep.subr.mxu0 0.0
        %4560 = vmatpush1.msra.mxu0 0.0
        %4561 = vmatprep.subr.mxu0 0.0
        %v4562 = vand.u32 %v2963, 4294901760
        %4563 = vmatpush1.msra.mxu0 %v4562
        %4564 = vmatprep.subr.mxu0 0.0
        %v4565 = vand.u32 %v2962, 4294901760
        %4566 = vmatpush1.msra.mxu0 %v4565
        %4567 = vmatprep.subr.mxu0 0.0
        %v4568 = vand.u32 %v2961, 4294901760
        %4569 = vmatpush1.msra.mxu0 %v4568
        %4570 = vmatprep.subr.mxu0 0.0
        %v4571 = vand.u32 %v2960, 4294901760
        %4572 = vmatpush1.msra.mxu0 %v4571
        %4573 = vmatprep.subr.mxu0 0.0
        %v4574 = vand.u32 %v2959, 4294901760
        %4575 = vmatpush1.msra.mxu0 %v4574
        %4576 = vmatprep.subr.mxu0 0.0
        %v4577 = vand.u32 %v2958, 4294901760
        %4578 = vmatpush1.msra.mxu0 %v4577
        %4579 = vmatprep.subr.mxu0 0.0
        %v4580 = vand.u32 %v2957, 4294901760
        %4581 = vmatpush1.msra.mxu0 %v4580
        %4582 = vmatprep.subr.mxu0 0.0
        %v4583 = vand.u32 %v2956, 4294901760
        %4584 = vmatpush1.msra.mxu0 %v4583
        %4585 = vmatprep.subr.mxu0 0.0
        %4586 = vmatpush2.msra.mxu0 0.0
        %4587 = vmatprep.subr.mxu0 0.0
        %4588 = vmatpush2.msra.mxu0 0.0
        %4589 = vmatprep.subr.mxu0 0.0
        %4590 = vmatpush2.msra.mxu0 0.0
        %4591 = vmatprep.subr.mxu0 0.0
        %4592 = vmatpush2.msra.mxu0 0.0
        %4593 = vmatprep.subr.mxu0 0.0
        %4594 = vmatpush2.msra.mxu0 0.0
        %4595 = vmatprep.subr.mxu0 0.0
        %4596 = vmatpush2.msra.mxu0 0.0
        %4597 = vmatprep.subr.mxu0 0.0
        %4598 = vmatpush2.msra.mxu0 0.0
        %4599 = vmatprep.subr.mxu0 0.0
        %4600 = vmatpush2.msra.mxu0 0.0
        %4601 = vmatprep.subr.mxu0 0.0
        %4602 = vmatpush2.msra.mxu0 0.0
        %4603 = vmatprep.subr.mxu0 0.0
        %4604 = vmatpush2.msra.mxu0 0.0
        %4605 = vmatprep.subr.mxu0 0.0
        %4606 = vmatpush2.msra.mxu0 0.0
        %4607 = vmatprep.subr.mxu0 0.0
        %4608 = vmatpush2.msra.mxu0 0.0
        %4609 = vmatprep.subr.mxu0 0.0
        %4610 = vmatpush2.msra.mxu0 0.0
        %4611 = vmatprep.subr.mxu0 0.0
        %4612 = vmatpush2.msra.mxu0 0.0
        %4613 = vmatprep.subr.mxu0 0.0
        %4614 = vmatpush2.msra.mxu0 0.0
        %4615 = vmatprep.subr.mxu0 0.0
        %4616 = vmatpush2.msra.mxu0 0.0
        %4617 = vmatprep.mubr.f32.mxu0 0.0
        %v4618 = vand.u32 %v4085, 4294901760
        %4619 = vmatmul.mubr.f32.gmra.mxu0 %v4618
        %v4620 = vpop.f32.mrf.mxu0
        %v4621 = vadd.f32 %v4542, %v4620
        %v4622 = vpop.f32.mrf.mxu0
        %4623 = vdwg.mxu0
        %v4625 = vsel %vm632, %v2913, 0
        %4627 = vmatprep.subr.mxu0 0.0
        %4628 = vmatpush1.msra.mxu0 0.0
        %4629 = vmatprep.subr.mxu0 0.0
        %4630 = vmatpush1.msra.mxu0 0.0
        %4631 = vmatprep.subr.mxu0 0.0
        %4632 = vmatpush1.msra.mxu0 0.0
        %4633 = vmatprep.subr.mxu0 0.0
        %4634 = vmatpush1.msra.mxu0 0.0
        %4635 = vmatprep.subr.mxu0 0.0
        %4636 = vmatpush1.msra.mxu0 0.0
        %4637 = vmatprep.subr.mxu0 0.0
        %4638 = vmatpush1.msra.mxu0 0.0
        %4639 = vmatprep.subr.mxu0 0.0
        %4640 = vmatpush1.msra.mxu0 0.0
        %4641 = vmatprep.subr.mxu0 0.0
        %4642 = vmatpush1.msra.mxu0 0.0
        %4643 = vmatprep.subr.mxu0 0.0
        %v4644 = vand.u32 %v2971, 4294901760
        %4645 = vmatpush1.msra.mxu0 %v4644
        %4646 = vmatprep.subr.mxu0 0.0
        %v4647 = vand.u32 %v2970, 4294901760
        %4648 = vmatpush1.msra.mxu0 %v4647
        %4649 = vmatprep.subr.mxu0 0.0
        %v4650 = vand.u32 %v2969, 4294901760
        %4651 = vmatpush1.msra.mxu0 %v4650
        %4652 = vmatprep.subr.mxu0 0.0
        %v4653 = vand.u32 %v2968, 4294901760
        %4654 = vmatpush1.msra.mxu0 %v4653
        %4655 = vmatprep.subr.mxu0 0.0
        %v4656 = vand.u32 %v2967, 4294901760
        %4657 = vmatpush1.msra.mxu0 %v4656
        %4658 = vmatprep.subr.mxu0 0.0
        %v4659 = vand.u32 %v2966, 4294901760
        %4660 = vmatpush1.msra.mxu0 %v4659
        %4661 = vmatprep.subr.mxu0 0.0
        %v4662 = vand.u32 %v2965, 4294901760
        %4663 = vmatpush1.msra.mxu0 %v4662
        %4664 = vmatprep.subr.mxu0 0.0
        %v4665 = vand.u32 %v2964, 4294901760
        %4666 = vmatpush1.msra.mxu0 %v4665
        %4667 = vmatprep.subr.mxu0 0.0
        %4668 = vmatpush2.msra.mxu0 0.0
        %4669 = vmatprep.subr.mxu0 0.0
        %4670 = vmatpush2.msra.mxu0 0.0
        %4671 = vmatprep.subr.mxu0 0.0
        %4672 = vmatpush2.msra.mxu0 0.0
        %4673 = vmatprep.subr.mxu0 0.0
        %4674 = vmatpush2.msra.mxu0 0.0
        %4675 = vmatprep.subr.mxu0 0.0
        %4676 = vmatpush2.msra.mxu0 0.0
        %4677 = vmatprep.subr.mxu0 0.0
        %4678 = vmatpush2.msra.mxu0 0.0
        %4679 = vmatprep.subr.mxu0 0.0
        %4680 = vmatpush2.msra.mxu0 0.0
        %4681 = vmatprep.subr.mxu0 0.0
        %4682 = vmatpush2.msra.mxu0 0.0
        %4683 = vmatprep.subr.mxu0 0.0
        %4684 = vmatpush2.msra.mxu0 0.0
        %4685 = vmatprep.subr.mxu0 0.0
        %4686 = vmatpush2.msra.mxu0 0.0
        %4687 = vmatprep.subr.mxu0 0.0
        %4688 = vmatpush2.msra.mxu0 0.0
        %4689 = vmatprep.subr.mxu0 0.0
        %4690 = vmatpush2.msra.mxu0 0.0
        %4691 = vmatprep.subr.mxu0 0.0
        %4692 = vmatpush2.msra.mxu0 0.0
        %4693 = vmatprep.subr.mxu0 0.0
        %4694 = vmatpush2.msra.mxu0 0.0
        %4695 = vmatprep.subr.mxu0 0.0
        %4696 = vmatpush2.msra.mxu0 0.0
        %4697 = vmatprep.subr.mxu0 0.0
        %4698 = vmatpush2.msra.mxu0 0.0
        %4699 = vmatprep.mubr.f32.mxu0 0.0
        %v4700 = vand.u32 %v4625, 4294901760
        %v4701 = vsub.f32 %v4625, %v4700
        %v4702 = vand.u32 %v4701, 4294901760
        %v4703 = vsub.f32 %v4701, %v4702
        %v4704 = vand.u32 %v4703, 4294901760
        %4705 = vmatmul.mubr.f32.gmra.mxu0 %v4704
        %v4706 = vpop.f32.mrf.mxu0
        %v4707 = vadd.f32 0.0, %v4706
        %v4708 = vpop.f32.mrf.mxu0
        %4709 = vdwg.mxu0
        %4710 = vmatprep.subr.mxu0 0.0
        %4711 = vmatpush1.msra.mxu0 0.0
        %4712 = vmatprep.subr.mxu0 0.0
        %4713 = vmatpush1.msra.mxu0 0.0
        %4714 = vmatprep.subr.mxu0 0.0
        %4715 = vmatpush1.msra.mxu0 0.0
        %4716 = vmatprep.subr.mxu0 0.0
        %4717 = vmatpush1.msra.mxu0 0.0
        %4718 = vmatprep.subr.mxu0 0.0
        %4719 = vmatpush1.msra.mxu0 0.0
        %4720 = vmatprep.subr.mxu0 0.0
        %4721 = vmatpush1.msra.mxu0 0.0
        %4722 = vmatprep.subr.mxu0 0.0
        %4723 = vmatpush1.msra.mxu0 0.0
        %4724 = vmatprep.subr.mxu0 0.0
        %4725 = vmatpush1.msra.mxu0 0.0
        %4726 = vmatprep.subr.mxu0 0.0
        %v4727 = vand.u32 %v2971, 4294901760
        %v4728 = vsub.f32 %v2971, %v4727
        %v4729 = vand.u32 %v4728, 4294901760
        %v4730 = vsub.f32 %v4728, %v4729
        %v4731 = vand.u32 %v4730, 4294901760
        %4732 = vmatpush1.msra.mxu0 %v4731
        %4733 = vmatprep.subr.mxu0 0.0
        %v4734 = vand.u32 %v2970, 4294901760
        %v4735 = vsub.f32 %v2970, %v4734
        %v4736 = vand.u32 %v4735, 4294901760
        %v4737 = vsub.f32 %v4735, %v4736
        %v4738 = vand.u32 %v4737, 4294901760
        %4739 = vmatpush1.msra.mxu0 %v4738
        %4740 = vmatprep.subr.mxu0 0.0
        %v4741 = vand.u32 %v2969, 4294901760
        %v4742 = vsub.f32 %v2969, %v4741
        %v4743 = vand.u32 %v4742, 4294901760
        %v4744 = vsub.f32 %v4742, %v4743
        %v4745 = vand.u32 %v4744, 4294901760
        %4746 = vmatpush1.msra.mxu0 %v4745
        %4747 = vmatprep.subr.mxu0 0.0
        %v4748 = vand.u32 %v2968, 4294901760
        %v4749 = vsub.f32 %v2968, %v4748
        %v4750 = vand.u32 %v4749, 4294901760
        %v4751 = vsub.f32 %v4749, %v4750
        %v4752 = vand.u32 %v4751, 4294901760
        %4753 = vmatpush1.msra.mxu0 %v4752
        %4754 = vmatprep.subr.mxu0 0.0
        %v4755 = vand.u32 %v2967, 4294901760
        %v4756 = vsub.f32 %v2967, %v4755
        %v4757 = vand.u32 %v4756, 4294901760
        %v4758 = vsub.f32 %v4756, %v4757
        %v4759 = vand.u32 %v4758, 4294901760
        %4760 = vmatpush1.msra.mxu0 %v4759
        %4761 = vmatprep.subr.mxu0 0.0
        %v4762 = vand.u32 %v2966, 4294901760
        %v4763 = vsub.f32 %v2966, %v4762
        %v4764 = vand.u32 %v4763, 4294901760
        %v4765 = vsub.f32 %v4763, %v4764
        %v4766 = vand.u32 %v4765, 4294901760
        %4767 = vmatpush1.msra.mxu0 %v4766
        %4768 = vmatprep.subr.mxu0 0.0
        %v4769 = vand.u32 %v2965, 4294901760
        %v4770 = vsub.f32 %v2965, %v4769
        %v4771 = vand.u32 %v4770, 4294901760
        %v4772 = vsub.f32 %v4770, %v4771
        %v4773 = vand.u32 %v4772, 4294901760
        %4774 = vmatpush1.msra.mxu0 %v4773
        %4775 = vmatprep.subr.mxu0 0.0
        %v4776 = vand.u32 %v2964, 4294901760
        %v4777 = vsub.f32 %v2964, %v4776
        %v4778 = vand.u32 %v4777, 4294901760
        %v4779 = vsub.f32 %v4777, %v4778
        %v4780 = vand.u32 %v4779, 4294901760
        %4781 = vmatpush1.msra.mxu0 %v4780
        %4782 = vmatprep.subr.mxu0 0.0
        %4783 = vmatpush2.msra.mxu0 0.0
        %4784 = vmatprep.subr.mxu0 0.0
        %4785 = vmatpush2.msra.mxu0 0.0
        %4786 = vmatprep.subr.mxu0 0.0
        %4787 = vmatpush2.msra.mxu0 0.0
        %4788 = vmatprep.subr.mxu0 0.0
        %4789 = vmatpush2.msra.mxu0 0.0
        %4790 = vmatprep.subr.mxu0 0.0
        %4791 = vmatpush2.msra.mxu0 0.0
        %4792 = vmatprep.subr.mxu0 0.0
        %4793 = vmatpush2.msra.mxu0 0.0
        %4794 = vmatprep.subr.mxu0 0.0
        %4795 = vmatpush2.msra.mxu0 0.0
        %4796 = vmatprep.subr.mxu0 0.0
        %4797 = vmatpush2.msra.mxu0 0.0
        %4798 = vmatprep.subr.mxu0 0.0
        %4799 = vmatpush2.msra.mxu0 0.0
        %4800 = vmatprep.subr.mxu0 0.0
        %4801 = vmatpush2.msra.mxu0 0.0
        %4802 = vmatprep.subr.mxu0 0.0
        %4803 = vmatpush2.msra.mxu0 0.0
        %4804 = vmatprep.subr.mxu0 0.0
        %4805 = vmatpush2.msra.mxu0 0.0
        %4806 = vmatprep.subr.mxu0 0.0
        %4807 = vmatpush2.msra.mxu0 0.0
        %4808 = vmatprep.subr.mxu0 0.0
        %4809 = vmatpush2.msra.mxu0 0.0
        %4810 = vmatprep.subr.mxu0 0.0
        %4811 = vmatpush2.msra.mxu0 0.0
        %4812 = vmatprep.subr.mxu0 0.0
        %4813 = vmatpush2.msra.mxu0 0.0
        %4814 = vmatprep.mubr.f32.mxu0 0.0
        %v4815 = vand.u32 %v4625, 4294901760
        %4816 = vmatmul.mubr.f32.gmra.mxu0 %v4815
        %v4817 = vpop.f32.mrf.mxu0
        %v4818 = vadd.f32 %v4707, %v4817
        %v4819 = vpop.f32.mrf.mxu0
        %4820 = vdwg.mxu0
        %4821 = vmatprep.subr.mxu0 0.0
        %4822 = vmatpush1.msra.mxu0 0.0
        %4823 = vmatprep.subr.mxu0 0.0
        %4824 = vmatpush1.msra.mxu0 0.0
        %4825 = vmatprep.subr.mxu0 0.0
        %4826 = vmatpush1.msra.mxu0 0.0
        %4827 = vmatprep.subr.mxu0 0.0
        %4828 = vmatpush1.msra.mxu0 0.0
        %4829 = vmatprep.subr.mxu0 0.0
        %4830 = vmatpush1.msra.mxu0 0.0
        %4831 = vmatprep.subr.mxu0 0.0
        %4832 = vmatpush1.msra.mxu0 0.0
        %4833 = vmatprep.subr.mxu0 0.0
        %4834 = vmatpush1.msra.mxu0 0.0
        %4835 = vmatprep.subr.mxu0 0.0
        %4836 = vmatpush1.msra.mxu0 0.0
        %4837 = vmatprep.subr.mxu0 0.0
        %v4838 = vand.u32 %v2971, 4294901760
        %v4839 = vsub.f32 %v2971, %v4838
        %4840 = vmatpush1.msra.mxu0 %v4839
        %4841 = vmatprep.subr.mxu0 0.0
        %v4842 = vand.u32 %v2970, 4294901760
        %v4843 = vsub.f32 %v2970, %v4842
        %4844 = vmatpush1.msra.mxu0 %v4843
        %4845 = vmatprep.subr.mxu0 0.0
        %v4846 = vand.u32 %v2969, 4294901760
        %v4847 = vsub.f32 %v2969, %v4846
        %4848 = vmatpush1.msra.mxu0 %v4847
        %4849 = vmatprep.subr.mxu0 0.0
        %v4850 = vand.u32 %v2968, 4294901760
        %v4851 = vsub.f32 %v2968, %v4850
        %4852 = vmatpush1.msra.mxu0 %v4851
        %4853 = vmatprep.subr.mxu0 0.0
        %v4854 = vand.u32 %v2967, 4294901760
        %v4855 = vsub.f32 %v2967, %v4854
        %4856 = vmatpush1.msra.mxu0 %v4855
        %4857 = vmatprep.subr.mxu0 0.0
        %v4858 = vand.u32 %v2966, 4294901760
        %v4859 = vsub.f32 %v2966, %v4858
        %4860 = vmatpush1.msra.mxu0 %v4859
        %4861 = vmatprep.subr.mxu0 0.0
        %v4862 = vand.u32 %v2965, 4294901760
        %v4863 = vsub.f32 %v2965, %v4862
        %4864 = vmatpush1.msra.mxu0 %v4863
        %4865 = vmatprep.subr.mxu0 0.0
        %v4866 = vand.u32 %v2964, 4294901760
        %v4867 = vsub.f32 %v2964, %v4866
        %4868 = vmatpush1.msra.mxu0 %v4867
        %4869 = vmatprep.subr.mxu0 0.0
        %4870 = vmatpush2.msra.mxu0 0.0
        %4871 = vmatprep.subr.mxu0 0.0
        %4872 = vmatpush2.msra.mxu0 0.0
        %4873 = vmatprep.subr.mxu0 0.0
        %4874 = vmatpush2.msra.mxu0 0.0
        %4875 = vmatprep.subr.mxu0 0.0
        %4876 = vmatpush2.msra.mxu0 0.0
        %4877 = vmatprep.subr.mxu0 0.0
        %4878 = vmatpush2.msra.mxu0 0.0
        %4879 = vmatprep.subr.mxu0 0.0
        %4880 = vmatpush2.msra.mxu0 0.0
        %4881 = vmatprep.subr.mxu0 0.0
        %4882 = vmatpush2.msra.mxu0 0.0
        %4883 = vmatprep.subr.mxu0 0.0
        %4884 = vmatpush2.msra.mxu0 0.0
        %4885 = vmatprep.subr.mxu0 0.0
        %4886 = vmatpush2.msra.mxu0 0.0
        %4887 = vmatprep.subr.mxu0 0.0
        %4888 = vmatpush2.msra.mxu0 0.0
        %4889 = vmatprep.subr.mxu0 0.0
        %4890 = vmatpush2.msra.mxu0 0.0
        %4891 = vmatprep.subr.mxu0 0.0
        %4892 = vmatpush2.msra.mxu0 0.0
        %4893 = vmatprep.subr.mxu0 0.0
        %4894 = vmatpush2.msra.mxu0 0.0
        %4895 = vmatprep.subr.mxu0 0.0
        %4896 = vmatpush2.msra.mxu0 0.0
        %4897 = vmatprep.subr.mxu0 0.0
        %4898 = vmatpush2.msra.mxu0 0.0
        %4899 = vmatprep.subr.mxu0 0.0
        %4900 = vmatpush2.msra.mxu0 0.0
        %4901 = vmatprep.mubr.f32.mxu0 0.0
        %v4902 = vand.u32 %v4625, 4294901760
        %v4903 = vsub.f32 %v4625, %v4902
        %4904 = vmatmul.mubr.f32.gmra.mxu0 %v4903
        %v4905 = vpop.f32.mrf.mxu0
        %v4906 = vadd.f32 %v4818, %v4905
        %v4907 = vpop.f32.mrf.mxu0
        %4908 = vdwg.mxu0
        %4909 = vmatprep.subr.mxu0 0.0
        %4910 = vmatpush1.msra.mxu0 0.0
        %4911 = vmatprep.subr.mxu0 0.0
        %4912 = vmatpush1.msra.mxu0 0.0
        %4913 = vmatprep.subr.mxu0 0.0
        %4914 = vmatpush1.msra.mxu0 0.0
        %4915 = vmatprep.subr.mxu0 0.0
        %4916 = vmatpush1.msra.mxu0 0.0
        %4917 = vmatprep.subr.mxu0 0.0
        %4918 = vmatpush1.msra.mxu0 0.0
        %4919 = vmatprep.subr.mxu0 0.0
        %4920 = vmatpush1.msra.mxu0 0.0
        %4921 = vmatprep.subr.mxu0 0.0
        %4922 = vmatpush1.msra.mxu0 0.0
        %4923 = vmatprep.subr.mxu0 0.0
        %4924 = vmatpush1.msra.mxu0 0.0
        %4925 = vmatprep.subr.mxu0 0.0
        %v4926 = vand.u32 %v2971, 4294901760
        %4927 = vmatpush1.msra.mxu0 %v4926
        %4928 = vmatprep.subr.mxu0 0.0
        %v4929 = vand.u32 %v2970, 4294901760
        %4930 = vmatpush1.msra.mxu0 %v4929
        %4931 = vmatprep.subr.mxu0 0.0
        %v4932 = vand.u32 %v2969, 4294901760
        %4933 = vmatpush1.msra.mxu0 %v4932
        %4934 = vmatprep.subr.mxu0 0.0
        %v4935 = vand.u32 %v2968, 4294901760
        %4936 = vmatpush1.msra.mxu0 %v4935
        %4937 = vmatprep.subr.mxu0 0.0
        %v4938 = vand.u32 %v2967, 4294901760
        %4939 = vmatpush1.msra.mxu0 %v4938
        %4940 = vmatprep.subr.mxu0 0.0
        %v4941 = vand.u32 %v2966, 4294901760
        %4942 = vmatpush1.msra.mxu0 %v4941
        %4943 = vmatprep.subr.mxu0 0.0
        %v4944 = vand.u32 %v2965, 4294901760
        %4945 = vmatpush1.msra.mxu0 %v4944
        %4946 = vmatprep.subr.mxu0 0.0
        %v4947 = vand.u32 %v2964, 4294901760
        %4948 = vmatpush1.msra.mxu0 %v4947
        %4949 = vmatprep.subr.mxu0 0.0
        %4950 = vmatpush2.msra.mxu0 0.0
        %4951 = vmatprep.subr.mxu0 0.0
        %4952 = vmatpush2.msra.mxu0 0.0
        %4953 = vmatprep.subr.mxu0 0.0
        %4954 = vmatpush2.msra.mxu0 0.0
        %4955 = vmatprep.subr.mxu0 0.0
        %4956 = vmatpush2.msra.mxu0 0.0
        %4957 = vmatprep.subr.mxu0 0.0
        %4958 = vmatpush2.msra.mxu0 0.0
        %4959 = vmatprep.subr.mxu0 0.0
        %4960 = vmatpush2.msra.mxu0 0.0
        %4961 = vmatprep.subr.mxu0 0.0
        %4962 = vmatpush2.msra.mxu0 0.0
        %4963 = vmatprep.subr.mxu0 0.0
        %4964 = vmatpush2.msra.mxu0 0.0
        %4965 = vmatprep.subr.mxu0 0.0
        %4966 = vmatpush2.msra.mxu0 0.0
        %4967 = vmatprep.subr.mxu0 0.0
        %4968 = vmatpush2.msra.mxu0 0.0
        %4969 = vmatprep.subr.mxu0 0.0
        %4970 = vmatpush2.msra.mxu0 0.0
        %4971 = vmatprep.subr.mxu0 0.0
        %4972 = vmatpush2.msra.mxu0 0.0
        %4973 = vmatprep.subr.mxu0 0.0
        %4974 = vmatpush2.msra.mxu0 0.0
        %4975 = vmatprep.subr.mxu0 0.0
        %4976 = vmatpush2.msra.mxu0 0.0
        %4977 = vmatprep.subr.mxu0 0.0
        %4978 = vmatpush2.msra.mxu0 0.0
        %4979 = vmatprep.subr.mxu0 0.0
        %4980 = vmatpush2.msra.mxu0 0.0
        %4981 = vmatprep.mubr.f32.mxu0 0.0
        %v4982 = vand.u32 %v4625, 4294901760
        %v4983 = vsub.f32 %v4625, %v4982
        %v4984 = vand.u32 %v4983, 4294901760
        %4985 = vmatmul.mubr.f32.gmra.mxu0 %v4984
        %v4986 = vpop.f32.mrf.mxu0
        %v4987 = vadd.f32 %v4906, %v4986
        %v4988 = vpop.f32.mrf.mxu0
        %4989 = vdwg.mxu0
        %4990 = vmatprep.subr.mxu0 0.0
        %4991 = vmatpush1.msra.mxu0 0.0
        %4992 = vmatprep.subr.mxu0 0.0
        %4993 = vmatpush1.msra.mxu0 0.0
        %4994 = vmatprep.subr.mxu0 0.0
        %4995 = vmatpush1.msra.mxu0 0.0
        %4996 = vmatprep.subr.mxu0 0.0
        %4997 = vmatpush1.msra.mxu0 0.0
        %4998 = vmatprep.subr.mxu0 0.0
        %4999 = vmatpush1.msra.mxu0 0.0
        %5000 = vmatprep.subr.mxu0 0.0
        %5001 = vmatpush1.msra.mxu0 0.0
        %5002 = vmatprep.subr.mxu0 0.0
        %5003 = vmatpush1.msra.mxu0 0.0
        %5004 = vmatprep.subr.mxu0 0.0
        %5005 = vmatpush1.msra.mxu0 0.0
        %5006 = vmatprep.subr.mxu0 0.0
        %v5007 = vand.u32 %v2971, 4294901760
        %v5008 = vsub.f32 %v2971, %v5007
        %v5009 = vand.u32 %v5008, 4294901760
        %5010 = vmatpush1.msra.mxu0 %v5009
        %5011 = vmatprep.subr.mxu0 0.0
        %v5012 = vand.u32 %v2970, 4294901760
        %v5013 = vsub.f32 %v2970, %v5012
        %v5014 = vand.u32 %v5013, 4294901760
        %5015 = vmatpush1.msra.mxu0 %v5014
        %5016 = vmatprep.subr.mxu0 0.0
        %v5017 = vand.u32 %v2969, 4294901760
        %v5018 = vsub.f32 %v2969, %v5017
        %v5019 = vand.u32 %v5018, 4294901760
        %5020 = vmatpush1.msra.mxu0 %v5019
        %5021 = vmatprep.subr.mxu0 0.0
        %v5022 = vand.u32 %v2968, 4294901760
        %v5023 = vsub.f32 %v2968, %v5022
        %v5024 = vand.u32 %v5023, 4294901760
        %5025 = vmatpush1.msra.mxu0 %v5024
        %5026 = vmatprep.subr.mxu0 0.0
        %v5027 = vand.u32 %v2967, 4294901760
        %v5028 = vsub.f32 %v2967, %v5027
        %v5029 = vand.u32 %v5028, 4294901760
        %5030 = vmatpush1.msra.mxu0 %v5029
        %5031 = vmatprep.subr.mxu0 0.0
        %v5032 = vand.u32 %v2966, 4294901760
        %v5033 = vsub.f32 %v2966, %v5032
        %v5034 = vand.u32 %v5033, 4294901760
        %5035 = vmatpush1.msra.mxu0 %v5034
        %5036 = vmatprep.subr.mxu0 0.0
        %v5037 = vand.u32 %v2965, 4294901760
        %v5038 = vsub.f32 %v2965, %v5037
        %v5039 = vand.u32 %v5038, 4294901760
        %5040 = vmatpush1.msra.mxu0 %v5039
        %5041 = vmatprep.subr.mxu0 0.0
        %v5042 = vand.u32 %v2964, 4294901760
        %v5043 = vsub.f32 %v2964, %v5042
        %v5044 = vand.u32 %v5043, 4294901760
        %5045 = vmatpush1.msra.mxu0 %v5044
        %5046 = vmatprep.subr.mxu0 0.0
        %5047 = vmatpush2.msra.mxu0 0.0
        %5048 = vmatprep.subr.mxu0 0.0
        %5049 = vmatpush2.msra.mxu0 0.0
        %5050 = vmatprep.subr.mxu0 0.0
        %5051 = vmatpush2.msra.mxu0 0.0
        %5052 = vmatprep.subr.mxu0 0.0
        %5053 = vmatpush2.msra.mxu0 0.0
        %5054 = vmatprep.subr.mxu0 0.0
        %5055 = vmatpush2.msra.mxu0 0.0
        %5056 = vmatprep.subr.mxu0 0.0
        %5057 = vmatpush2.msra.mxu0 0.0
        %5058 = vmatprep.subr.mxu0 0.0
        %5059 = vmatpush2.msra.mxu0 0.0
        %5060 = vmatprep.subr.mxu0 0.0
        %5061 = vmatpush2.msra.mxu0 0.0
        %5062 = vmatprep.subr.mxu0 0.0
        %5063 = vmatpush2.msra.mxu0 0.0
        %5064 = vmatprep.subr.mxu0 0.0
        %5065 = vmatpush2.msra.mxu0 0.0
        %5066 = vmatprep.subr.mxu0 0.0
        %5067 = vmatpush2.msra.mxu0 0.0
        %5068 = vmatprep.subr.mxu0 0.0
        %5069 = vmatpush2.msra.mxu0 0.0
        %5070 = vmatprep.subr.mxu0 0.0
        %5071 = vmatpush2.msra.mxu0 0.0
        %5072 = vmatprep.subr.mxu0 0.0
        %5073 = vmatpush2.msra.mxu0 0.0
        %5074 = vmatprep.subr.mxu0 0.0
        %5075 = vmatpush2.msra.mxu0 0.0
        %5076 = vmatprep.subr.mxu0 0.0
        %5077 = vmatpush2.msra.mxu0 0.0
        %5078 = vmatprep.mubr.f32.mxu0 0.0
        %v5079 = vand.u32 %v4625, 4294901760
        %5080 = vmatmul.mubr.f32.gmra.mxu0 %v5079
        %v5081 = vpop.f32.mrf.mxu0
        %v5082 = vadd.f32 %v4987, %v5081
        %v5083 = vpop.f32.mrf.mxu0
        %5084 = vdwg.mxu0
        %5085 = vmatprep.subr.mxu0 0.0
        %5086 = vmatpush1.msra.mxu0 0.0
        %5087 = vmatprep.subr.mxu0 0.0
        %5088 = vmatpush1.msra.mxu0 0.0
        %5089 = vmatprep.subr.mxu0 0.0
        %5090 = vmatpush1.msra.mxu0 0.0
        %5091 = vmatprep.subr.mxu0 0.0
        %5092 = vmatpush1.msra.mxu0 0.0
        %5093 = vmatprep.subr.mxu0 0.0
        %5094 = vmatpush1.msra.mxu0 0.0
        %5095 = vmatprep.subr.mxu0 0.0
        %5096 = vmatpush1.msra.mxu0 0.0
        %5097 = vmatprep.subr.mxu0 0.0
        %5098 = vmatpush1.msra.mxu0 0.0
        %5099 = vmatprep.subr.mxu0 0.0
        %5100 = vmatpush1.msra.mxu0 0.0
        %5101 = vmatprep.subr.mxu0 0.0
        %v5102 = vand.u32 %v2971, 4294901760
        %5103 = vmatpush1.msra.mxu0 %v5102
        %5104 = vmatprep.subr.mxu0 0.0
        %v5105 = vand.u32 %v2970, 4294901760
        %5106 = vmatpush1.msra.mxu0 %v5105
        %5107 = vmatprep.subr.mxu0 0.0
        %v5108 = vand.u32 %v2969, 4294901760
        %5109 = vmatpush1.msra.mxu0 %v5108
        %5110 = vmatprep.subr.mxu0 0.0
        %v5111 = vand.u32 %v2968, 4294901760
        %5112 = vmatpush1.msra.mxu0 %v5111
        %5113 = vmatprep.subr.mxu0 0.0
        %v5114 = vand.u32 %v2967, 4294901760
        %5115 = vmatpush1.msra.mxu0 %v5114
        %5116 = vmatprep.subr.mxu0 0.0
        %v5117 = vand.u32 %v2966, 4294901760
        %5118 = vmatpush1.msra.mxu0 %v5117
        %5119 = vmatprep.subr.mxu0 0.0
        %v5120 = vand.u32 %v2965, 4294901760
        %5121 = vmatpush1.msra.mxu0 %v5120
        %5122 = vmatprep.subr.mxu0 0.0
        %v5123 = vand.u32 %v2964, 4294901760
        %5124 = vmatpush1.msra.mxu0 %v5123
        %5125 = vmatprep.subr.mxu0 0.0
        %5126 = vmatpush2.msra.mxu0 0.0
        %5127 = vmatprep.subr.mxu0 0.0
        %5128 = vmatpush2.msra.mxu0 0.0
        %5129 = vmatprep.subr.mxu0 0.0
        %5130 = vmatpush2.msra.mxu0 0.0
        %5131 = vmatprep.subr.mxu0 0.0
        %5132 = vmatpush2.msra.mxu0 0.0
        %5133 = vmatprep.subr.mxu0 0.0
        %5134 = vmatpush2.msra.mxu0 0.0
        %5135 = vmatprep.subr.mxu0 0.0
        %5136 = vmatpush2.msra.mxu0 0.0
        %5137 = vmatprep.subr.mxu0 0.0
        %5138 = vmatpush2.msra.mxu0 0.0
        %5139 = vmatprep.subr.mxu0 0.0
        %5140 = vmatpush2.msra.mxu0 0.0
        %5141 = vmatprep.subr.mxu0 0.0
        %5142 = vmatpush2.msra.mxu0 0.0
        %5143 = vmatprep.subr.mxu0 0.0
        %5144 = vmatpush2.msra.mxu0 0.0
        %5145 = vmatprep.subr.mxu0 0.0
        %5146 = vmatpush2.msra.mxu0 0.0
        %5147 = vmatprep.subr.mxu0 0.0
        %5148 = vmatpush2.msra.mxu0 0.0
        %5149 = vmatprep.subr.mxu0 0.0
        %5150 = vmatpush2.msra.mxu0 0.0
        %5151 = vmatprep.subr.mxu0 0.0
        %5152 = vmatpush2.msra.mxu0 0.0
        %5153 = vmatprep.subr.mxu0 0.0
        %5154 = vmatpush2.msra.mxu0 0.0
        %5155 = vmatprep.subr.mxu0 0.0
        %5156 = vmatpush2.msra.mxu0 0.0
        %5157 = vmatprep.mubr.f32.mxu0 0.0
        %v5158 = vand.u32 %v4625, 4294901760
        %5159 = vmatmul.mubr.f32.gmra.mxu0 %v5158
        %v5160 = vpop.f32.mrf.mxu0
        %v5161 = vadd.f32 %v5082, %v5160
        %v5162 = vpop.f32.mrf.mxu0
        %5163 = vdwg.mxu0
        %v5165 = vsel %vm632, %v2919, 0
        %5167 = vmatprep.subr.mxu0 0.0
        %5168 = vmatpush1.msra.mxu0 0.0
        %5169 = vmatprep.subr.mxu0 0.0
        %5170 = vmatpush1.msra.mxu0 0.0
        %5171 = vmatprep.subr.mxu0 0.0
        %5172 = vmatpush1.msra.mxu0 0.0
        %5173 = vmatprep.subr.mxu0 0.0
        %5174 = vmatpush1.msra.mxu0 0.0
        %5175 = vmatprep.subr.mxu0 0.0
        %5176 = vmatpush1.msra.mxu0 0.0
        %5177 = vmatprep.subr.mxu0 0.0
        %5178 = vmatpush1.msra.mxu0 0.0
        %5179 = vmatprep.subr.mxu0 0.0
        %5180 = vmatpush1.msra.mxu0 0.0
        %5181 = vmatprep.subr.mxu0 0.0
        %5182 = vmatpush1.msra.mxu0 0.0
        %5183 = vmatprep.subr.mxu0 0.0
        %v5184 = vand.u32 %v2979, 4294901760
        %5185 = vmatpush1.msra.mxu0 %v5184
        %5186 = vmatprep.subr.mxu0 0.0
        %v5187 = vand.u32 %v2978, 4294901760
        %5188 = vmatpush1.msra.mxu0 %v5187
        %5189 = vmatprep.subr.mxu0 0.0
        %v5190 = vand.u32 %v2977, 4294901760
        %5191 = vmatpush1.msra.mxu0 %v5190
        %5192 = vmatprep.subr.mxu0 0.0
        %v5193 = vand.u32 %v2976, 4294901760
        %5194 = vmatpush1.msra.mxu0 %v5193
        %5195 = vmatprep.subr.mxu0 0.0
        %v5196 = vand.u32 %v2975, 4294901760
        %5197 = vmatpush1.msra.mxu0 %v5196
        %5198 = vmatprep.subr.mxu0 0.0
        %v5199 = vand.u32 %v2974, 4294901760
        %5200 = vmatpush1.msra.mxu0 %v5199
        %5201 = vmatprep.subr.mxu0 0.0
        %v5202 = vand.u32 %v2973, 4294901760
        %5203 = vmatpush1.msra.mxu0 %v5202
        %5204 = vmatprep.subr.mxu0 0.0
        %v5205 = vand.u32 %v2972, 4294901760
        %5206 = vmatpush1.msra.mxu0 %v5205
        %5207 = vmatprep.subr.mxu0 0.0
        %5208 = vmatpush2.msra.mxu0 0.0
        %5209 = vmatprep.subr.mxu0 0.0
        %5210 = vmatpush2.msra.mxu0 0.0
        %5211 = vmatprep.subr.mxu0 0.0
        %5212 = vmatpush2.msra.mxu0 0.0
        %5213 = vmatprep.subr.mxu0 0.0
        %5214 = vmatpush2.msra.mxu0 0.0
        %5215 = vmatprep.subr.mxu0 0.0
        %5216 = vmatpush2.msra.mxu0 0.0
        %5217 = vmatprep.subr.mxu0 0.0
        %5218 = vmatpush2.msra.mxu0 0.0
        %5219 = vmatprep.subr.mxu0 0.0
        %5220 = vmatpush2.msra.mxu0 0.0
        %5221 = vmatprep.subr.mxu0 0.0
        %5222 = vmatpush2.msra.mxu0 0.0
        %5223 = vmatprep.subr.mxu0 0.0
        %5224 = vmatpush2.msra.mxu0 0.0
        %5225 = vmatprep.subr.mxu0 0.0
        %5226 = vmatpush2.msra.mxu0 0.0
        %5227 = vmatprep.subr.mxu0 0.0
        %5228 = vmatpush2.msra.mxu0 0.0
        %5229 = vmatprep.subr.mxu0 0.0
        %5230 = vmatpush2.msra.mxu0 0.0
        %5231 = vmatprep.subr.mxu0 0.0
        %5232 = vmatpush2.msra.mxu0 0.0
        %5233 = vmatprep.subr.mxu0 0.0
        %5234 = vmatpush2.msra.mxu0 0.0
        %5235 = vmatprep.subr.mxu0 0.0
        %5236 = vmatpush2.msra.mxu0 0.0
        %5237 = vmatprep.subr.mxu0 0.0
        %5238 = vmatpush2.msra.mxu0 0.0
        %5239 = vmatprep.mubr.f32.mxu0 0.0
        %v5240 = vand.u32 %v5165, 4294901760
        %v5241 = vsub.f32 %v5165, %v5240
        %v5242 = vand.u32 %v5241, 4294901760
        %v5243 = vsub.f32 %v5241, %v5242
        %v5244 = vand.u32 %v5243, 4294901760
        %5245 = vmatmul.mubr.f32.gmra.mxu0 %v5244
        %v5246 = vpop.f32.mrf.mxu0
        %v5247 = vadd.f32 0.0, %v5246
        %v5248 = vpop.f32.mrf.mxu0
        %5249 = vdwg.mxu0
        %5250 = vmatprep.subr.mxu0 0.0
        %5251 = vmatpush1.msra.mxu0 0.0
        %5252 = vmatprep.subr.mxu0 0.0
        %5253 = vmatpush1.msra.mxu0 0.0
        %5254 = vmatprep.subr.mxu0 0.0
        %5255 = vmatpush1.msra.mxu0 0.0
        %5256 = vmatprep.subr.mxu0 0.0
        %5257 = vmatpush1.msra.mxu0 0.0
        %5258 = vmatprep.subr.mxu0 0.0
        %5259 = vmatpush1.msra.mxu0 0.0
        %5260 = vmatprep.subr.mxu0 0.0
        %5261 = vmatpush1.msra.mxu0 0.0
        %5262 = vmatprep.subr.mxu0 0.0
        %5263 = vmatpush1.msra.mxu0 0.0
        %5264 = vmatprep.subr.mxu0 0.0
        %5265 = vmatpush1.msra.mxu0 0.0
        %5266 = vmatprep.subr.mxu0 0.0
        %v5267 = vand.u32 %v2979, 4294901760
        %v5268 = vsub.f32 %v2979, %v5267
        %v5269 = vand.u32 %v5268, 4294901760
        %v5270 = vsub.f32 %v5268, %v5269
        %v5271 = vand.u32 %v5270, 4294901760
        %5272 = vmatpush1.msra.mxu0 %v5271
        %5273 = vmatprep.subr.mxu0 0.0
        %v5274 = vand.u32 %v2978, 4294901760
        %v5275 = vsub.f32 %v2978, %v5274
        %v5276 = vand.u32 %v5275, 4294901760
        %v5277 = vsub.f32 %v5275, %v5276
        %v5278 = vand.u32 %v5277, 4294901760
        %5279 = vmatpush1.msra.mxu0 %v5278
        %5280 = vmatprep.subr.mxu0 0.0
        %v5281 = vand.u32 %v2977, 4294901760
        %v5282 = vsub.f32 %v2977, %v5281
        %v5283 = vand.u32 %v5282, 4294901760
        %v5284 = vsub.f32 %v5282, %v5283
        %v5285 = vand.u32 %v5284, 4294901760
        %5286 = vmatpush1.msra.mxu0 %v5285
        %5287 = vmatprep.subr.mxu0 0.0
        %v5288 = vand.u32 %v2976, 4294901760
        %v5289 = vsub.f32 %v2976, %v5288
        %v5290 = vand.u32 %v5289, 4294901760
        %v5291 = vsub.f32 %v5289, %v5290
        %v5292 = vand.u32 %v5291, 4294901760
        %5293 = vmatpush1.msra.mxu0 %v5292
        %5294 = vmatprep.subr.mxu0 0.0
        %v5295 = vand.u32 %v2975, 4294901760
        %v5296 = vsub.f32 %v2975, %v5295
        %v5297 = vand.u32 %v5296, 4294901760
        %v5298 = vsub.f32 %v5296, %v5297
        %v5299 = vand.u32 %v5298, 4294901760
        %5300 = vmatpush1.msra.mxu0 %v5299
        %5301 = vmatprep.subr.mxu0 0.0
        %v5302 = vand.u32 %v2974, 4294901760
        %v5303 = vsub.f32 %v2974, %v5302
        %v5304 = vand.u32 %v5303, 4294901760
        %v5305 = vsub.f32 %v5303, %v5304
        %v5306 = vand.u32 %v5305, 4294901760
        %5307 = vmatpush1.msra.mxu0 %v5306
        %5308 = vmatprep.subr.mxu0 0.0
        %v5309 = vand.u32 %v2973, 4294901760
        %v5310 = vsub.f32 %v2973, %v5309
        %v5311 = vand.u32 %v5310, 4294901760
        %v5312 = vsub.f32 %v5310, %v5311
        %v5313 = vand.u32 %v5312, 4294901760
        %5314 = vmatpush1.msra.mxu0 %v5313
        %5315 = vmatprep.subr.mxu0 0.0
        %v5316 = vand.u32 %v2972, 4294901760
        %v5317 = vsub.f32 %v2972, %v5316
        %v5318 = vand.u32 %v5317, 4294901760
        %v5319 = vsub.f32 %v5317, %v5318
        %v5320 = vand.u32 %v5319, 4294901760
        %5321 = vmatpush1.msra.mxu0 %v5320
        %5322 = vmatprep.subr.mxu0 0.0
        %5323 = vmatpush2.msra.mxu0 0.0
        %5324 = vmatprep.subr.mxu0 0.0
        %5325 = vmatpush2.msra.mxu0 0.0
        %5326 = vmatprep.subr.mxu0 0.0
        %5327 = vmatpush2.msra.mxu0 0.0
        %5328 = vmatprep.subr.mxu0 0.0
        %5329 = vmatpush2.msra.mxu0 0.0
        %5330 = vmatprep.subr.mxu0 0.0
        %5331 = vmatpush2.msra.mxu0 0.0
        %5332 = vmatprep.subr.mxu0 0.0
        %5333 = vmatpush2.msra.mxu0 0.0
        %5334 = vmatprep.subr.mxu0 0.0
        %5335 = vmatpush2.msra.mxu0 0.0
        %5336 = vmatprep.subr.mxu0 0.0
        %5337 = vmatpush2.msra.mxu0 0.0
        %5338 = vmatprep.subr.mxu0 0.0
        %5339 = vmatpush2.msra.mxu0 0.0
        %5340 = vmatprep.subr.mxu0 0.0
        %5341 = vmatpush2.msra.mxu0 0.0
        %5342 = vmatprep.subr.mxu0 0.0
        %5343 = vmatpush2.msra.mxu0 0.0
        %5344 = vmatprep.subr.mxu0 0.0
        %5345 = vmatpush2.msra.mxu0 0.0
        %5346 = vmatprep.subr.mxu0 0.0
        %5347 = vmatpush2.msra.mxu0 0.0
        %5348 = vmatprep.subr.mxu0 0.0
        %5349 = vmatpush2.msra.mxu0 0.0
        %5350 = vmatprep.subr.mxu0 0.0
        %5351 = vmatpush2.msra.mxu0 0.0
        %5352 = vmatprep.subr.mxu0 0.0
        %5353 = vmatpush2.msra.mxu0 0.0
        %5354 = vmatprep.mubr.f32.mxu0 0.0
        %v5355 = vand.u32 %v5165, 4294901760
        %5356 = vmatmul.mubr.f32.gmra.mxu0 %v5355
        %v5357 = vpop.f32.mrf.mxu0
        %v5358 = vadd.f32 %v5247, %v5357
        %v5359 = vpop.f32.mrf.mxu0
        %5360 = vdwg.mxu0
        %5361 = vmatprep.subr.mxu0 0.0
        %5362 = vmatpush1.msra.mxu0 0.0
        %5363 = vmatprep.subr.mxu0 0.0
        %5364 = vmatpush1.msra.mxu0 0.0
        %5365 = vmatprep.subr.mxu0 0.0
        %5366 = vmatpush1.msra.mxu0 0.0
        %5367 = vmatprep.subr.mxu0 0.0
        %5368 = vmatpush1.msra.mxu0 0.0
        %5369 = vmatprep.subr.mxu0 0.0
        %5370 = vmatpush1.msra.mxu0 0.0
        %5371 = vmatprep.subr.mxu0 0.0
        %5372 = vmatpush1.msra.mxu0 0.0
        %5373 = vmatprep.subr.mxu0 0.0
        %5374 = vmatpush1.msra.mxu0 0.0
        %5375 = vmatprep.subr.mxu0 0.0
        %5376 = vmatpush1.msra.mxu0 0.0
        %5377 = vmatprep.subr.mxu0 0.0
        %v5378 = vand.u32 %v2979, 4294901760
        %v5379 = vsub.f32 %v2979, %v5378
        %5380 = vmatpush1.msra.mxu0 %v5379
        %5381 = vmatprep.subr.mxu0 0.0
        %v5382 = vand.u32 %v2978, 4294901760
        %v5383 = vsub.f32 %v2978, %v5382
        %5384 = vmatpush1.msra.mxu0 %v5383
        %5385 = vmatprep.subr.mxu0 0.0
        %v5386 = vand.u32 %v2977, 4294901760
        %v5387 = vsub.f32 %v2977, %v5386
        %5388 = vmatpush1.msra.mxu0 %v5387
        %5389 = vmatprep.subr.mxu0 0.0
        %v5390 = vand.u32 %v2976, 4294901760
        %v5391 = vsub.f32 %v2976, %v5390
        %5392 = vmatpush1.msra.mxu0 %v5391
        %5393 = vmatprep.subr.mxu0 0.0
        %v5394 = vand.u32 %v2975, 4294901760
        %v5395 = vsub.f32 %v2975, %v5394
        %5396 = vmatpush1.msra.mxu0 %v5395
        %5397 = vmatprep.subr.mxu0 0.0
        %v5398 = vand.u32 %v2974, 4294901760
        %v5399 = vsub.f32 %v2974, %v5398
        %5400 = vmatpush1.msra.mxu0 %v5399
        %5401 = vmatprep.subr.mxu0 0.0
        %v5402 = vand.u32 %v2973, 4294901760
        %v5403 = vsub.f32 %v2973, %v5402
        %5404 = vmatpush1.msra.mxu0 %v5403
        %5405 = vmatprep.subr.mxu0 0.0
        %v5406 = vand.u32 %v2972, 4294901760
        %v5407 = vsub.f32 %v2972, %v5406
        %5408 = vmatpush1.msra.mxu0 %v5407
        %5409 = vmatprep.subr.mxu0 0.0
        %5410 = vmatpush2.msra.mxu0 0.0
        %5411 = vmatprep.subr.mxu0 0.0
        %5412 = vmatpush2.msra.mxu0 0.0
        %5413 = vmatprep.subr.mxu0 0.0
        %5414 = vmatpush2.msra.mxu0 0.0
        %5415 = vmatprep.subr.mxu0 0.0
        %5416 = vmatpush2.msra.mxu0 0.0
        %5417 = vmatprep.subr.mxu0 0.0
        %5418 = vmatpush2.msra.mxu0 0.0
        %5419 = vmatprep.subr.mxu0 0.0
        %5420 = vmatpush2.msra.mxu0 0.0
        %5421 = vmatprep.subr.mxu0 0.0
        %5422 = vmatpush2.msra.mxu0 0.0
        %5423 = vmatprep.subr.mxu0 0.0
        %5424 = vmatpush2.msra.mxu0 0.0
        %5425 = vmatprep.subr.mxu0 0.0
        %5426 = vmatpush2.msra.mxu0 0.0
        %5427 = vmatprep.subr.mxu0 0.0
        %5428 = vmatpush2.msra.mxu0 0.0
        %5429 = vmatprep.subr.mxu0 0.0
        %5430 = vmatpush2.msra.mxu0 0.0
        %5431 = vmatprep.subr.mxu0 0.0
        %5432 = vmatpush2.msra.mxu0 0.0
        %5433 = vmatprep.subr.mxu0 0.0
        %5434 = vmatpush2.msra.mxu0 0.0
        %5435 = vmatprep.subr.mxu0 0.0
        %5436 = vmatpush2.msra.mxu0 0.0
        %5437 = vmatprep.subr.mxu0 0.0
        %5438 = vmatpush2.msra.mxu0 0.0
        %5439 = vmatprep.subr.mxu0 0.0
        %5440 = vmatpush2.msra.mxu0 0.0
        %5441 = vmatprep.mubr.f32.mxu0 0.0
        %v5442 = vand.u32 %v5165, 4294901760
        %v5443 = vsub.f32 %v5165, %v5442
        %5444 = vmatmul.mubr.f32.gmra.mxu0 %v5443
        %v5445 = vpop.f32.mrf.mxu0
        %v5446 = vadd.f32 %v5358, %v5445
        %v5447 = vpop.f32.mrf.mxu0
        %5448 = vdwg.mxu0
        %5449 = vmatprep.subr.mxu0 0.0
        %5450 = vmatpush1.msra.mxu0 0.0
        %5451 = vmatprep.subr.mxu0 0.0
        %5452 = vmatpush1.msra.mxu0 0.0
        %5453 = vmatprep.subr.mxu0 0.0
        %5454 = vmatpush1.msra.mxu0 0.0
        %5455 = vmatprep.subr.mxu0 0.0
        %5456 = vmatpush1.msra.mxu0 0.0
        %5457 = vmatprep.subr.mxu0 0.0
        %5458 = vmatpush1.msra.mxu0 0.0
        %5459 = vmatprep.subr.mxu0 0.0
        %5460 = vmatpush1.msra.mxu0 0.0
        %5461 = vmatprep.subr.mxu0 0.0
        %5462 = vmatpush1.msra.mxu0 0.0
        %5463 = vmatprep.subr.mxu0 0.0
        %5464 = vmatpush1.msra.mxu0 0.0
        %5465 = vmatprep.subr.mxu0 0.0
        %v5466 = vand.u32 %v2979, 4294901760
        %5467 = vmatpush1.msra.mxu0 %v5466
        %5468 = vmatprep.subr.mxu0 0.0
        %v5469 = vand.u32 %v2978, 4294901760
        %5470 = vmatpush1.msra.mxu0 %v5469
        %5471 = vmatprep.subr.mxu0 0.0
        %v5472 = vand.u32 %v2977, 4294901760
        %5473 = vmatpush1.msra.mxu0 %v5472
        %5474 = vmatprep.subr.mxu0 0.0
        %v5475 = vand.u32 %v2976, 4294901760
        %5476 = vmatpush1.msra.mxu0 %v5475
        %5477 = vmatprep.subr.mxu0 0.0
        %v5478 = vand.u32 %v2975, 4294901760
        %5479 = vmatpush1.msra.mxu0 %v5478
        %5480 = vmatprep.subr.mxu0 0.0
        %v5481 = vand.u32 %v2974, 4294901760
        %5482 = vmatpush1.msra.mxu0 %v5481
        %5483 = vmatprep.subr.mxu0 0.0
        %v5484 = vand.u32 %v2973, 4294901760
        %5485 = vmatpush1.msra.mxu0 %v5484
        %5486 = vmatprep.subr.mxu0 0.0
        %v5487 = vand.u32 %v2972, 4294901760
        %5488 = vmatpush1.msra.mxu0 %v5487
        %5489 = vmatprep.subr.mxu0 0.0
        %5490 = vmatpush2.msra.mxu0 0.0
        %5491 = vmatprep.subr.mxu0 0.0
        %5492 = vmatpush2.msra.mxu0 0.0
        %5493 = vmatprep.subr.mxu0 0.0
        %5494 = vmatpush2.msra.mxu0 0.0
        %5495 = vmatprep.subr.mxu0 0.0
        %5496 = vmatpush2.msra.mxu0 0.0
        %5497 = vmatprep.subr.mxu0 0.0
        %5498 = vmatpush2.msra.mxu0 0.0
        %5499 = vmatprep.subr.mxu0 0.0
        %5500 = vmatpush2.msra.mxu0 0.0
        %5501 = vmatprep.subr.mxu0 0.0
        %5502 = vmatpush2.msra.mxu0 0.0
        %5503 = vmatprep.subr.mxu0 0.0
        %5504 = vmatpush2.msra.mxu0 0.0
        %5505 = vmatprep.subr.mxu0 0.0
        %5506 = vmatpush2.msra.mxu0 0.0
        %5507 = vmatprep.subr.mxu0 0.0
        %5508 = vmatpush2.msra.mxu0 0.0
        %5509 = vmatprep.subr.mxu0 0.0
        %5510 = vmatpush2.msra.mxu0 0.0
        %5511 = vmatprep.subr.mxu0 0.0
        %5512 = vmatpush2.msra.mxu0 0.0
        %5513 = vmatprep.subr.mxu0 0.0
        %5514 = vmatpush2.msra.mxu0 0.0
        %5515 = vmatprep.subr.mxu0 0.0
        %5516 = vmatpush2.msra.mxu0 0.0
        %5517 = vmatprep.subr.mxu0 0.0
        %5518 = vmatpush2.msra.mxu0 0.0
        %5519 = vmatprep.subr.mxu0 0.0
        %5520 = vmatpush2.msra.mxu0 0.0
        %5521 = vmatprep.mubr.f32.mxu0 0.0
        %v5522 = vand.u32 %v5165, 4294901760
        %v5523 = vsub.f32 %v5165, %v5522
        %v5524 = vand.u32 %v5523, 4294901760
        %5525 = vmatmul.mubr.f32.gmra.mxu0 %v5524
        %v5526 = vpop.f32.mrf.mxu0
        %v5527 = vadd.f32 %v5446, %v5526
        %v5528 = vpop.f32.mrf.mxu0
        %5529 = vdwg.mxu0
        %5530 = vmatprep.subr.mxu0 0.0
        %5531 = vmatpush1.msra.mxu0 0.0
        %5532 = vmatprep.subr.mxu0 0.0
        %5533 = vmatpush1.msra.mxu0 0.0
        %5534 = vmatprep.subr.mxu0 0.0
        %5535 = vmatpush1.msra.mxu0 0.0
        %5536 = vmatprep.subr.mxu0 0.0
        %5537 = vmatpush1.msra.mxu0 0.0
        %5538 = vmatprep.subr.mxu0 0.0
        %5539 = vmatpush1.msra.mxu0 0.0
        %5540 = vmatprep.subr.mxu0 0.0
        %5541 = vmatpush1.msra.mxu0 0.0
        %5542 = vmatprep.subr.mxu0 0.0
        %5543 = vmatpush1.msra.mxu0 0.0
        %5544 = vmatprep.subr.mxu0 0.0
        %5545 = vmatpush1.msra.mxu0 0.0
        %5546 = vmatprep.subr.mxu0 0.0
        %v5547 = vand.u32 %v2979, 4294901760
        %v5548 = vsub.f32 %v2979, %v5547
        %v5549 = vand.u32 %v5548, 4294901760
        %5550 = vmatpush1.msra.mxu0 %v5549
        %5551 = vmatprep.subr.mxu0 0.0
        %v5552 = vand.u32 %v2978, 4294901760
        %v5553 = vsub.f32 %v2978, %v5552
        %v5554 = vand.u32 %v5553, 4294901760
        %5555 = vmatpush1.msra.mxu0 %v5554
        %5556 = vmatprep.subr.mxu0 0.0
        %v5557 = vand.u32 %v2977, 4294901760
        %v5558 = vsub.f32 %v2977, %v5557
        %v5559 = vand.u32 %v5558, 4294901760
        %5560 = vmatpush1.msra.mxu0 %v5559
        %5561 = vmatprep.subr.mxu0 0.0
        %v5562 = vand.u32 %v2976, 4294901760
        %v5563 = vsub.f32 %v2976, %v5562
        %v5564 = vand.u32 %v5563, 4294901760
        %5565 = vmatpush1.msra.mxu0 %v5564
        %5566 = vmatprep.subr.mxu0 0.0
        %v5567 = vand.u32 %v2975, 4294901760
        %v5568 = vsub.f32 %v2975, %v5567
        %v5569 = vand.u32 %v5568, 4294901760
        %5570 = vmatpush1.msra.mxu0 %v5569
        %5571 = vmatprep.subr.mxu0 0.0
        %v5572 = vand.u32 %v2974, 4294901760
        %v5573 = vsub.f32 %v2974, %v5572
        %v5574 = vand.u32 %v5573, 4294901760
        %5575 = vmatpush1.msra.mxu0 %v5574
        %5576 = vmatprep.subr.mxu0 0.0
        %v5577 = vand.u32 %v2973, 4294901760
        %v5578 = vsub.f32 %v2973, %v5577
        %v5579 = vand.u32 %v5578, 4294901760
        %5580 = vmatpush1.msra.mxu0 %v5579
        %5581 = vmatprep.subr.mxu0 0.0
        %v5582 = vand.u32 %v2972, 4294901760
        %v5583 = vsub.f32 %v2972, %v5582
        %v5584 = vand.u32 %v5583, 4294901760
        %5585 = vmatpush1.msra.mxu0 %v5584
        %5586 = vmatprep.subr.mxu0 0.0
        %5587 = vmatpush2.msra.mxu0 0.0
        %5588 = vmatprep.subr.mxu0 0.0
        %5589 = vmatpush2.msra.mxu0 0.0
        %5590 = vmatprep.subr.mxu0 0.0
        %5591 = vmatpush2.msra.mxu0 0.0
        %5592 = vmatprep.subr.mxu0 0.0
        %5593 = vmatpush2.msra.mxu0 0.0
        %5594 = vmatprep.subr.mxu0 0.0
        %5595 = vmatpush2.msra.mxu0 0.0
        %5596 = vmatprep.subr.mxu0 0.0
        %5597 = vmatpush2.msra.mxu0 0.0
        %5598 = vmatprep.subr.mxu0 0.0
        %5599 = vmatpush2.msra.mxu0 0.0
        %5600 = vmatprep.subr.mxu0 0.0
        %5601 = vmatpush2.msra.mxu0 0.0
        %5602 = vmatprep.subr.mxu0 0.0
        %5603 = vmatpush2.msra.mxu0 0.0
        %5604 = vmatprep.subr.mxu0 0.0
        %5605 = vmatpush2.msra.mxu0 0.0
        %5606 = vmatprep.subr.mxu0 0.0
        %5607 = vmatpush2.msra.mxu0 0.0
        %5608 = vmatprep.subr.mxu0 0.0
        %5609 = vmatpush2.msra.mxu0 0.0
        %5610 = vmatprep.subr.mxu0 0.0
        %5611 = vmatpush2.msra.mxu0 0.0
        %5612 = vmatprep.subr.mxu0 0.0
        %5613 = vmatpush2.msra.mxu0 0.0
        %5614 = vmatprep.subr.mxu0 0.0
        %5615 = vmatpush2.msra.mxu0 0.0
        %5616 = vmatprep.subr.mxu0 0.0
        %5617 = vmatpush2.msra.mxu0 0.0
        %5618 = vmatprep.mubr.f32.mxu0 0.0
        %v5619 = vand.u32 %v5165, 4294901760
        %5620 = vmatmul.mubr.f32.gmra.mxu0 %v5619
        %v5621 = vpop.f32.mrf.mxu0
        %v5622 = vadd.f32 %v5527, %v5621
        %v5623 = vpop.f32.mrf.mxu0
        %5624 = vdwg.mxu0
        %5625 = vmatprep.subr.mxu0 0.0
        %5626 = vmatpush1.msra.mxu0 0.0
        %5627 = vmatprep.subr.mxu0 0.0
        %5628 = vmatpush1.msra.mxu0 0.0
        %5629 = vmatprep.subr.mxu0 0.0
        %5630 = vmatpush1.msra.mxu0 0.0
        %5631 = vmatprep.subr.mxu0 0.0
        %5632 = vmatpush1.msra.mxu0 0.0
        %5633 = vmatprep.subr.mxu0 0.0
        %5634 = vmatpush1.msra.mxu0 0.0
        %5635 = vmatprep.subr.mxu0 0.0
        %5636 = vmatpush1.msra.mxu0 0.0
        %5637 = vmatprep.subr.mxu0 0.0
        %5638 = vmatpush1.msra.mxu0 0.0
        %5639 = vmatprep.subr.mxu0 0.0
        %5640 = vmatpush1.msra.mxu0 0.0
        %5641 = vmatprep.subr.mxu0 0.0
        %v5642 = vand.u32 %v2979, 4294901760
        %5643 = vmatpush1.msra.mxu0 %v5642
        %5644 = vmatprep.subr.mxu0 0.0
        %v5645 = vand.u32 %v2978, 4294901760
        %5646 = vmatpush1.msra.mxu0 %v5645
        %5647 = vmatprep.subr.mxu0 0.0
        %v5648 = vand.u32 %v2977, 4294901760
        %5649 = vmatpush1.msra.mxu0 %v5648
        %5650 = vmatprep.subr.mxu0 0.0
        %v5651 = vand.u32 %v2976, 4294901760
        %5652 = vmatpush1.msra.mxu0 %v5651
        %5653 = vmatprep.subr.mxu0 0.0
        %v5654 = vand.u32 %v2975, 4294901760
        %5655 = vmatpush1.msra.mxu0 %v5654
        %5656 = vmatprep.subr.mxu0 0.0
        %v5657 = vand.u32 %v2974, 4294901760
        %5658 = vmatpush1.msra.mxu0 %v5657
        %5659 = vmatprep.subr.mxu0 0.0
        %v5660 = vand.u32 %v2973, 4294901760
        %5661 = vmatpush1.msra.mxu0 %v5660
        %5662 = vmatprep.subr.mxu0 0.0
        %v5663 = vand.u32 %v2972, 4294901760
        %5664 = vmatpush1.msra.mxu0 %v5663
        %5665 = vmatprep.subr.mxu0 0.0
        %5666 = vmatpush2.msra.mxu0 0.0
        %5667 = vmatprep.subr.mxu0 0.0
        %5668 = vmatpush2.msra.mxu0 0.0
        %5669 = vmatprep.subr.mxu0 0.0
        %5670 = vmatpush2.msra.mxu0 0.0
        %5671 = vmatprep.subr.mxu0 0.0
        %5672 = vmatpush2.msra.mxu0 0.0
        %5673 = vmatprep.subr.mxu0 0.0
        %5674 = vmatpush2.msra.mxu0 0.0
        %5675 = vmatprep.subr.mxu0 0.0
        %5676 = vmatpush2.msra.mxu0 0.0
        %5677 = vmatprep.subr.mxu0 0.0
        %5678 = vmatpush2.msra.mxu0 0.0
        %5679 = vmatprep.subr.mxu0 0.0
        %5680 = vmatpush2.msra.mxu0 0.0
        %5681 = vmatprep.subr.mxu0 0.0
        %5682 = vmatpush2.msra.mxu0 0.0
        %5683 = vmatprep.subr.mxu0 0.0
        %5684 = vmatpush2.msra.mxu0 0.0
        %5685 = vmatprep.subr.mxu0 0.0
        %5686 = vmatpush2.msra.mxu0 0.0
        %5687 = vmatprep.subr.mxu0 0.0
        %5688 = vmatpush2.msra.mxu0 0.0
        %5689 = vmatprep.subr.mxu0 0.0
        %5690 = vmatpush2.msra.mxu0 0.0
        %5691 = vmatprep.subr.mxu0 0.0
        %5692 = vmatpush2.msra.mxu0 0.0
        %5693 = vmatprep.subr.mxu0 0.0
        %5694 = vmatpush2.msra.mxu0 0.0
        %5695 = vmatprep.subr.mxu0 0.0
        %5696 = vmatpush2.msra.mxu0 0.0
        %5697 = vmatprep.mubr.f32.mxu0 0.0
        %v5698 = vand.u32 %v5165, 4294901760
        %5699 = vmatmul.mubr.f32.gmra.mxu0 %v5698
        %v5700 = vpop.f32.mrf.mxu0
        %v5701 = vadd.f32 %v5622, %v5700
        %v5702 = vpop.f32.mrf.mxu0
        %5703 = vdwg.mxu0
        %v5705 = vsel %vm632, %v2925, 0
        %5707 = vmatprep.subr.mxu0 0.0
        %5708 = vmatpush1.msra.mxu0 0.0
        %5709 = vmatprep.subr.mxu0 0.0
        %5710 = vmatpush1.msra.mxu0 0.0
        %5711 = vmatprep.subr.mxu0 0.0
        %5712 = vmatpush1.msra.mxu0 0.0
        %5713 = vmatprep.subr.mxu0 0.0
        %5714 = vmatpush1.msra.mxu0 0.0
        %5715 = vmatprep.subr.mxu0 0.0
        %5716 = vmatpush1.msra.mxu0 0.0
        %5717 = vmatprep.subr.mxu0 0.0
        %5718 = vmatpush1.msra.mxu0 0.0
        %5719 = vmatprep.subr.mxu0 0.0
        %5720 = vmatpush1.msra.mxu0 0.0
        %5721 = vmatprep.subr.mxu0 0.0
        %5722 = vmatpush1.msra.mxu0 0.0
        %5723 = vmatprep.subr.mxu0 0.0
        %v5724 = vand.u32 %v2987, 4294901760
        %5725 = vmatpush1.msra.mxu0 %v5724
        %5726 = vmatprep.subr.mxu0 0.0
        %v5727 = vand.u32 %v2986, 4294901760
        %5728 = vmatpush1.msra.mxu0 %v5727
        %5729 = vmatprep.subr.mxu0 0.0
        %v5730 = vand.u32 %v2985, 4294901760
        %5731 = vmatpush1.msra.mxu0 %v5730
        %5732 = vmatprep.subr.mxu0 0.0
        %v5733 = vand.u32 %v2984, 4294901760
        %5734 = vmatpush1.msra.mxu0 %v5733
        %5735 = vmatprep.subr.mxu0 0.0
        %v5736 = vand.u32 %v2983, 4294901760
        %5737 = vmatpush1.msra.mxu0 %v5736
        %5738 = vmatprep.subr.mxu0 0.0
        %v5739 = vand.u32 %v2982, 4294901760
        %5740 = vmatpush1.msra.mxu0 %v5739
        %5741 = vmatprep.subr.mxu0 0.0
        %v5742 = vand.u32 %v2981, 4294901760
        %5743 = vmatpush1.msra.mxu0 %v5742
        %5744 = vmatprep.subr.mxu0 0.0
        %v5745 = vand.u32 %v2980, 4294901760
        %5746 = vmatpush1.msra.mxu0 %v5745
        %5747 = vmatprep.subr.mxu0 0.0
        %5748 = vmatpush2.msra.mxu0 0.0
        %5749 = vmatprep.subr.mxu0 0.0
        %5750 = vmatpush2.msra.mxu0 0.0
        %5751 = vmatprep.subr.mxu0 0.0
        %5752 = vmatpush2.msra.mxu0 0.0
        %5753 = vmatprep.subr.mxu0 0.0
        %5754 = vmatpush2.msra.mxu0 0.0
        %5755 = vmatprep.subr.mxu0 0.0
        %5756 = vmatpush2.msra.mxu0 0.0
        %5757 = vmatprep.subr.mxu0 0.0
        %5758 = vmatpush2.msra.mxu0 0.0
        %5759 = vmatprep.subr.mxu0 0.0
        %5760 = vmatpush2.msra.mxu0 0.0
        %5761 = vmatprep.subr.mxu0 0.0
        %5762 = vmatpush2.msra.mxu0 0.0
        %5763 = vmatprep.subr.mxu0 0.0
        %5764 = vmatpush2.msra.mxu0 0.0
        %5765 = vmatprep.subr.mxu0 0.0
        %5766 = vmatpush2.msra.mxu0 0.0
        %5767 = vmatprep.subr.mxu0 0.0
        %5768 = vmatpush2.msra.mxu0 0.0
        %5769 = vmatprep.subr.mxu0 0.0
        %5770 = vmatpush2.msra.mxu0 0.0
        %5771 = vmatprep.subr.mxu0 0.0
        %5772 = vmatpush2.msra.mxu0 0.0
        %5773 = vmatprep.subr.mxu0 0.0
        %5774 = vmatpush2.msra.mxu0 0.0
        %5775 = vmatprep.subr.mxu0 0.0
        %5776 = vmatpush2.msra.mxu0 0.0
        %5777 = vmatprep.subr.mxu0 0.0
        %5778 = vmatpush2.msra.mxu0 0.0
        %5779 = vmatprep.mubr.f32.mxu0 0.0
        %v5780 = vand.u32 %v5705, 4294901760
        %v5781 = vsub.f32 %v5705, %v5780
        %v5782 = vand.u32 %v5781, 4294901760
        %v5783 = vsub.f32 %v5781, %v5782
        %v5784 = vand.u32 %v5783, 4294901760
        %5785 = vmatmul.mubr.f32.gmra.mxu0 %v5784
        %v5786 = vpop.f32.mrf.mxu0
        %v5787 = vadd.f32 0.0, %v5786
        %v5788 = vpop.f32.mrf.mxu0
        %5789 = vdwg.mxu0
        %5790 = vmatprep.subr.mxu0 0.0
        %5791 = vmatpush1.msra.mxu0 0.0
        %5792 = vmatprep.subr.mxu0 0.0
        %5793 = vmatpush1.msra.mxu0 0.0
        %5794 = vmatprep.subr.mxu0 0.0
        %5795 = vmatpush1.msra.mxu0 0.0
        %5796 = vmatprep.subr.mxu0 0.0
        %5797 = vmatpush1.msra.mxu0 0.0
        %5798 = vmatprep.subr.mxu0 0.0
        %5799 = vmatpush1.msra.mxu0 0.0
        %5800 = vmatprep.subr.mxu0 0.0
        %5801 = vmatpush1.msra.mxu0 0.0
        %5802 = vmatprep.subr.mxu0 0.0
        %5803 = vmatpush1.msra.mxu0 0.0
        %5804 = vmatprep.subr.mxu0 0.0
        %5805 = vmatpush1.msra.mxu0 0.0
        %5806 = vmatprep.subr.mxu0 0.0
        %v5807 = vand.u32 %v2987, 4294901760
        %v5808 = vsub.f32 %v2987, %v5807
        %v5809 = vand.u32 %v5808, 4294901760
        %v5810 = vsub.f32 %v5808, %v5809
        %v5811 = vand.u32 %v5810, 4294901760
        %5812 = vmatpush1.msra.mxu0 %v5811
        %5813 = vmatprep.subr.mxu0 0.0
        %v5814 = vand.u32 %v2986, 4294901760
        %v5815 = vsub.f32 %v2986, %v5814
        %v5816 = vand.u32 %v5815, 4294901760
        %v5817 = vsub.f32 %v5815, %v5816
        %v5818 = vand.u32 %v5817, 4294901760
        %5819 = vmatpush1.msra.mxu0 %v5818
        %5820 = vmatprep.subr.mxu0 0.0
        %v5821 = vand.u32 %v2985, 4294901760
        %v5822 = vsub.f32 %v2985, %v5821
        %v5823 = vand.u32 %v5822, 4294901760
        %v5824 = vsub.f32 %v5822, %v5823
        %v5825 = vand.u32 %v5824, 4294901760
        %5826 = vmatpush1.msra.mxu0 %v5825
        %5827 = vmatprep.subr.mxu0 0.0
        %v5828 = vand.u32 %v2984, 4294901760
        %v5829 = vsub.f32 %v2984, %v5828
        %v5830 = vand.u32 %v5829, 4294901760
        %v5831 = vsub.f32 %v5829, %v5830
        %v5832 = vand.u32 %v5831, 4294901760
        %5833 = vmatpush1.msra.mxu0 %v5832
        %5834 = vmatprep.subr.mxu0 0.0
        %v5835 = vand.u32 %v2983, 4294901760
        %v5836 = vsub.f32 %v2983, %v5835
        %v5837 = vand.u32 %v5836, 4294901760
        %v5838 = vsub.f32 %v5836, %v5837
        %v5839 = vand.u32 %v5838, 4294901760
        %5840 = vmatpush1.msra.mxu0 %v5839
        %5841 = vmatprep.subr.mxu0 0.0
        %v5842 = vand.u32 %v2982, 4294901760
        %v5843 = vsub.f32 %v2982, %v5842
        %v5844 = vand.u32 %v5843, 4294901760
        %v5845 = vsub.f32 %v5843, %v5844
        %v5846 = vand.u32 %v5845, 4294901760
        %5847 = vmatpush1.msra.mxu0 %v5846
        %5848 = vmatprep.subr.mxu0 0.0
        %v5849 = vand.u32 %v2981, 4294901760
        %v5850 = vsub.f32 %v2981, %v5849
        %v5851 = vand.u32 %v5850, 4294901760
        %v5852 = vsub.f32 %v5850, %v5851
        %v5853 = vand.u32 %v5852, 4294901760
        %5854 = vmatpush1.msra.mxu0 %v5853
        %5855 = vmatprep.subr.mxu0 0.0
        %v5856 = vand.u32 %v2980, 4294901760
        %v5857 = vsub.f32 %v2980, %v5856
        %v5858 = vand.u32 %v5857, 4294901760
        %v5859 = vsub.f32 %v5857, %v5858
        %v5860 = vand.u32 %v5859, 4294901760
        %5861 = vmatpush1.msra.mxu0 %v5860
        %5862 = vmatprep.subr.mxu0 0.0
        %5863 = vmatpush2.msra.mxu0 0.0
        %5864 = vmatprep.subr.mxu0 0.0
        %5865 = vmatpush2.msra.mxu0 0.0
        %5866 = vmatprep.subr.mxu0 0.0
        %5867 = vmatpush2.msra.mxu0 0.0
        %5868 = vmatprep.subr.mxu0 0.0
        %5869 = vmatpush2.msra.mxu0 0.0
        %5870 = vmatprep.subr.mxu0 0.0
        %5871 = vmatpush2.msra.mxu0 0.0
        %5872 = vmatprep.subr.mxu0 0.0
        %5873 = vmatpush2.msra.mxu0 0.0
        %5874 = vmatprep.subr.mxu0 0.0
        %5875 = vmatpush2.msra.mxu0 0.0
        %5876 = vmatprep.subr.mxu0 0.0
        %5877 = vmatpush2.msra.mxu0 0.0
        %5878 = vmatprep.subr.mxu0 0.0
        %5879 = vmatpush2.msra.mxu0 0.0
        %5880 = vmatprep.subr.mxu0 0.0
        %5881 = vmatpush2.msra.mxu0 0.0
        %5882 = vmatprep.subr.mxu0 0.0
        %5883 = vmatpush2.msra.mxu0 0.0
        %5884 = vmatprep.subr.mxu0 0.0
        %5885 = vmatpush2.msra.mxu0 0.0
        %5886 = vmatprep.subr.mxu0 0.0
        %5887 = vmatpush2.msra.mxu0 0.0
        %5888 = vmatprep.subr.mxu0 0.0
        %5889 = vmatpush2.msra.mxu0 0.0
        %5890 = vmatprep.subr.mxu0 0.0
        %5891 = vmatpush2.msra.mxu0 0.0
        %5892 = vmatprep.subr.mxu0 0.0
        %5893 = vmatpush2.msra.mxu0 0.0
        %5894 = vmatprep.mubr.f32.mxu0 0.0
        %v5895 = vand.u32 %v5705, 4294901760
        %5896 = vmatmul.mubr.f32.gmra.mxu0 %v5895
        %v5897 = vpop.f32.mrf.mxu0
        %v5898 = vadd.f32 %v5787, %v5897
        %v5899 = vpop.f32.mrf.mxu0
        %5900 = vdwg.mxu0
        %5901 = vmatprep.subr.mxu0 0.0
        %5902 = vmatpush1.msra.mxu0 0.0
        %5903 = vmatprep.subr.mxu0 0.0
        %5904 = vmatpush1.msra.mxu0 0.0
        %5905 = vmatprep.subr.mxu0 0.0
        %5906 = vmatpush1.msra.mxu0 0.0
        %5907 = vmatprep.subr.mxu0 0.0
        %5908 = vmatpush1.msra.mxu0 0.0
        %5909 = vmatprep.subr.mxu0 0.0
        %5910 = vmatpush1.msra.mxu0 0.0
        %5911 = vmatprep.subr.mxu0 0.0
        %5912 = vmatpush1.msra.mxu0 0.0
        %5913 = vmatprep.subr.mxu0 0.0
        %5914 = vmatpush1.msra.mxu0 0.0
        %5915 = vmatprep.subr.mxu0 0.0
        %5916 = vmatpush1.msra.mxu0 0.0
        %5917 = vmatprep.subr.mxu0 0.0
        %v5918 = vand.u32 %v2987, 4294901760
        %v5919 = vsub.f32 %v2987, %v5918
        %5920 = vmatpush1.msra.mxu0 %v5919
        %5921 = vmatprep.subr.mxu0 0.0
        %v5922 = vand.u32 %v2986, 4294901760
        %v5923 = vsub.f32 %v2986, %v5922
        %5924 = vmatpush1.msra.mxu0 %v5923
        %5925 = vmatprep.subr.mxu0 0.0
        %v5926 = vand.u32 %v2985, 4294901760
        %v5927 = vsub.f32 %v2985, %v5926
        %5928 = vmatpush1.msra.mxu0 %v5927
        %5929 = vmatprep.subr.mxu0 0.0
        %v5930 = vand.u32 %v2984, 4294901760
        %v5931 = vsub.f32 %v2984, %v5930
        %5932 = vmatpush1.msra.mxu0 %v5931
        %5933 = vmatprep.subr.mxu0 0.0
        %v5934 = vand.u32 %v2983, 4294901760
        %v5935 = vsub.f32 %v2983, %v5934
        %5936 = vmatpush1.msra.mxu0 %v5935
        %5937 = vmatprep.subr.mxu0 0.0
        %v5938 = vand.u32 %v2982, 4294901760
        %v5939 = vsub.f32 %v2982, %v5938
        %5940 = vmatpush1.msra.mxu0 %v5939
        %5941 = vmatprep.subr.mxu0 0.0
        %v5942 = vand.u32 %v2981, 4294901760
        %v5943 = vsub.f32 %v2981, %v5942
        %5944 = vmatpush1.msra.mxu0 %v5943
        %5945 = vmatprep.subr.mxu0 0.0
        %v5946 = vand.u32 %v2980, 4294901760
        %v5947 = vsub.f32 %v2980, %v5946
        %5948 = vmatpush1.msra.mxu0 %v5947
        %5949 = vmatprep.subr.mxu0 0.0
        %5950 = vmatpush2.msra.mxu0 0.0
        %5951 = vmatprep.subr.mxu0 0.0
        %5952 = vmatpush2.msra.mxu0 0.0
        %5953 = vmatprep.subr.mxu0 0.0
        %5954 = vmatpush2.msra.mxu0 0.0
        %5955 = vmatprep.subr.mxu0 0.0
        %5956 = vmatpush2.msra.mxu0 0.0
        %5957 = vmatprep.subr.mxu0 0.0
        %5958 = vmatpush2.msra.mxu0 0.0
        %5959 = vmatprep.subr.mxu0 0.0
        %5960 = vmatpush2.msra.mxu0 0.0
        %5961 = vmatprep.subr.mxu0 0.0
        %5962 = vmatpush2.msra.mxu0 0.0
        %5963 = vmatprep.subr.mxu0 0.0
        %5964 = vmatpush2.msra.mxu0 0.0
        %5965 = vmatprep.subr.mxu0 0.0
        %5966 = vmatpush2.msra.mxu0 0.0
        %5967 = vmatprep.subr.mxu0 0.0
        %5968 = vmatpush2.msra.mxu0 0.0
        %5969 = vmatprep.subr.mxu0 0.0
        %5970 = vmatpush2.msra.mxu0 0.0
        %5971 = vmatprep.subr.mxu0 0.0
        %5972 = vmatpush2.msra.mxu0 0.0
        %5973 = vmatprep.subr.mxu0 0.0
        %5974 = vmatpush2.msra.mxu0 0.0
        %5975 = vmatprep.subr.mxu0 0.0
        %5976 = vmatpush2.msra.mxu0 0.0
        %5977 = vmatprep.subr.mxu0 0.0
        %5978 = vmatpush2.msra.mxu0 0.0
        %5979 = vmatprep.subr.mxu0 0.0
        %5980 = vmatpush2.msra.mxu0 0.0
        %5981 = vmatprep.mubr.f32.mxu0 0.0
        %v5982 = vand.u32 %v5705, 4294901760
        %v5983 = vsub.f32 %v5705, %v5982
        %5984 = vmatmul.mubr.f32.gmra.mxu0 %v5983
        %v5985 = vpop.f32.mrf.mxu0
        %v5986 = vadd.f32 %v5898, %v5985
        %v5987 = vpop.f32.mrf.mxu0
        %5988 = vdwg.mxu0
        %5989 = vmatprep.subr.mxu0 0.0
        %5990 = vmatpush1.msra.mxu0 0.0
        %5991 = vmatprep.subr.mxu0 0.0
        %5992 = vmatpush1.msra.mxu0 0.0
        %5993 = vmatprep.subr.mxu0 0.0
        %5994 = vmatpush1.msra.mxu0 0.0
        %5995 = vmatprep.subr.mxu0 0.0
        %5996 = vmatpush1.msra.mxu0 0.0
        %5997 = vmatprep.subr.mxu0 0.0
        %5998 = vmatpush1.msra.mxu0 0.0
        %5999 = vmatprep.subr.mxu0 0.0
        %6000 = vmatpush1.msra.mxu0 0.0
        %6001 = vmatprep.subr.mxu0 0.0
        %6002 = vmatpush1.msra.mxu0 0.0
        %6003 = vmatprep.subr.mxu0 0.0
        %6004 = vmatpush1.msra.mxu0 0.0
        %6005 = vmatprep.subr.mxu0 0.0
        %v6006 = vand.u32 %v2987, 4294901760
        %6007 = vmatpush1.msra.mxu0 %v6006
        %6008 = vmatprep.subr.mxu0 0.0
        %v6009 = vand.u32 %v2986, 4294901760
        %6010 = vmatpush1.msra.mxu0 %v6009
        %6011 = vmatprep.subr.mxu0 0.0
        %v6012 = vand.u32 %v2985, 4294901760
        %6013 = vmatpush1.msra.mxu0 %v6012
        %6014 = vmatprep.subr.mxu0 0.0
        %v6015 = vand.u32 %v2984, 4294901760
        %6016 = vmatpush1.msra.mxu0 %v6015
        %6017 = vmatprep.subr.mxu0 0.0
        %v6018 = vand.u32 %v2983, 4294901760
        %6019 = vmatpush1.msra.mxu0 %v6018
        %6020 = vmatprep.subr.mxu0 0.0
        %v6021 = vand.u32 %v2982, 4294901760
        %6022 = vmatpush1.msra.mxu0 %v6021
        %6023 = vmatprep.subr.mxu0 0.0
        %v6024 = vand.u32 %v2981, 4294901760
        %6025 = vmatpush1.msra.mxu0 %v6024
        %6026 = vmatprep.subr.mxu0 0.0
        %v6027 = vand.u32 %v2980, 4294901760
        %6028 = vmatpush1.msra.mxu0 %v6027
        %6029 = vmatprep.subr.mxu0 0.0
        %6030 = vmatpush2.msra.mxu0 0.0
        %6031 = vmatprep.subr.mxu0 0.0
        %6032 = vmatpush2.msra.mxu0 0.0
        %6033 = vmatprep.subr.mxu0 0.0
        %6034 = vmatpush2.msra.mxu0 0.0
        %6035 = vmatprep.subr.mxu0 0.0
        %6036 = vmatpush2.msra.mxu0 0.0
        %6037 = vmatprep.subr.mxu0 0.0
        %6038 = vmatpush2.msra.mxu0 0.0
        %6039 = vmatprep.subr.mxu0 0.0
        %6040 = vmatpush2.msra.mxu0 0.0
        %6041 = vmatprep.subr.mxu0 0.0
        %6042 = vmatpush2.msra.mxu0 0.0
        %6043 = vmatprep.subr.mxu0 0.0
        %6044 = vmatpush2.msra.mxu0 0.0
        %6045 = vmatprep.subr.mxu0 0.0
        %6046 = vmatpush2.msra.mxu0 0.0
        %6047 = vmatprep.subr.mxu0 0.0
        %6048 = vmatpush2.msra.mxu0 0.0
        %6049 = vmatprep.subr.mxu0 0.0
        %6050 = vmatpush2.msra.mxu0 0.0
        %6051 = vmatprep.subr.mxu0 0.0
        %6052 = vmatpush2.msra.mxu0 0.0
        %6053 = vmatprep.subr.mxu0 0.0
        %6054 = vmatpush2.msra.mxu0 0.0
        %6055 = vmatprep.subr.mxu0 0.0
        %6056 = vmatpush2.msra.mxu0 0.0
        %6057 = vmatprep.subr.mxu0 0.0
        %6058 = vmatpush2.msra.mxu0 0.0
        %6059 = vmatprep.subr.mxu0 0.0
        %6060 = vmatpush2.msra.mxu0 0.0
        %6061 = vmatprep.mubr.f32.mxu0 0.0
        %v6062 = vand.u32 %v5705, 4294901760
        %v6063 = vsub.f32 %v5705, %v6062
        %v6064 = vand.u32 %v6063, 4294901760
        %6065 = vmatmul.mubr.f32.gmra.mxu0 %v6064
        %v6066 = vpop.f32.mrf.mxu0
        %v6067 = vadd.f32 %v5986, %v6066
        %v6068 = vpop.f32.mrf.mxu0
        %6069 = vdwg.mxu0
        %6070 = vmatprep.subr.mxu0 0.0
        %6071 = vmatpush1.msra.mxu0 0.0
        %6072 = vmatprep.subr.mxu0 0.0
        %6073 = vmatpush1.msra.mxu0 0.0
        %6074 = vmatprep.subr.mxu0 0.0
        %6075 = vmatpush1.msra.mxu0 0.0
        %6076 = vmatprep.subr.mxu0 0.0
        %6077 = vmatpush1.msra.mxu0 0.0
        %6078 = vmatprep.subr.mxu0 0.0
        %6079 = vmatpush1.msra.mxu0 0.0
        %6080 = vmatprep.subr.mxu0 0.0
        %6081 = vmatpush1.msra.mxu0 0.0
        %6082 = vmatprep.subr.mxu0 0.0
        %6083 = vmatpush1.msra.mxu0 0.0
        %6084 = vmatprep.subr.mxu0 0.0
        %6085 = vmatpush1.msra.mxu0 0.0
        %6086 = vmatprep.subr.mxu0 0.0
        %v6087 = vand.u32 %v2987, 4294901760
        %v6088 = vsub.f32 %v2987, %v6087
        %v6089 = vand.u32 %v6088, 4294901760
        %6090 = vmatpush1.msra.mxu0 %v6089
        %6091 = vmatprep.subr.mxu0 0.0
        %v6092 = vand.u32 %v2986, 4294901760
        %v6093 = vsub.f32 %v2986, %v6092
        %v6094 = vand.u32 %v6093, 4294901760
        %6095 = vmatpush1.msra.mxu0 %v6094
        %6096 = vmatprep.subr.mxu0 0.0
        %v6097 = vand.u32 %v2985, 4294901760
        %v6098 = vsub.f32 %v2985, %v6097
        %v6099 = vand.u32 %v6098, 4294901760
        %6100 = vmatpush1.msra.mxu0 %v6099
        %6101 = vmatprep.subr.mxu0 0.0
        %v6102 = vand.u32 %v2984, 4294901760
        %v6103 = vsub.f32 %v2984, %v6102
        %v6104 = vand.u32 %v6103, 4294901760
        %6105 = vmatpush1.msra.mxu0 %v6104
        %6106 = vmatprep.subr.mxu0 0.0
        %v6107 = vand.u32 %v2983, 4294901760
        %v6108 = vsub.f32 %v2983, %v6107
        %v6109 = vand.u32 %v6108, 4294901760
        %6110 = vmatpush1.msra.mxu0 %v6109
        %6111 = vmatprep.subr.mxu0 0.0
        %v6112 = vand.u32 %v2982, 4294901760
        %v6113 = vsub.f32 %v2982, %v6112
        %v6114 = vand.u32 %v6113, 4294901760
        %6115 = vmatpush1.msra.mxu0 %v6114
        %6116 = vmatprep.subr.mxu0 0.0
        %v6117 = vand.u32 %v2981, 4294901760
        %v6118 = vsub.f32 %v2981, %v6117
        %v6119 = vand.u32 %v6118, 4294901760
        %6120 = vmatpush1.msra.mxu0 %v6119
        %6121 = vmatprep.subr.mxu0 0.0
        %v6122 = vand.u32 %v2980, 4294901760
        %v6123 = vsub.f32 %v2980, %v6122
        %v6124 = vand.u32 %v6123, 4294901760
        %6125 = vmatpush1.msra.mxu0 %v6124
        %6126 = vmatprep.subr.mxu0 0.0
        %6127 = vmatpush2.msra.mxu0 0.0
        %6128 = vmatprep.subr.mxu0 0.0
        %6129 = vmatpush2.msra.mxu0 0.0
        %6130 = vmatprep.subr.mxu0 0.0
        %6131 = vmatpush2.msra.mxu0 0.0
        %6132 = vmatprep.subr.mxu0 0.0
        %6133 = vmatpush2.msra.mxu0 0.0
        %6134 = vmatprep.subr.mxu0 0.0
        %6135 = vmatpush2.msra.mxu0 0.0
        %6136 = vmatprep.subr.mxu0 0.0
        %6137 = vmatpush2.msra.mxu0 0.0
        %6138 = vmatprep.subr.mxu0 0.0
        %6139 = vmatpush2.msra.mxu0 0.0
        %6140 = vmatprep.subr.mxu0 0.0
        %6141 = vmatpush2.msra.mxu0 0.0
        %6142 = vmatprep.subr.mxu0 0.0
        %6143 = vmatpush2.msra.mxu0 0.0
        %6144 = vmatprep.subr.mxu0 0.0
        %6145 = vmatpush2.msra.mxu0 0.0
        %6146 = vmatprep.subr.mxu0 0.0
        %6147 = vmatpush2.msra.mxu0 0.0
        %6148 = vmatprep.subr.mxu0 0.0
        %6149 = vmatpush2.msra.mxu0 0.0
        %6150 = vmatprep.subr.mxu0 0.0
        %6151 = vmatpush2.msra.mxu0 0.0
        %6152 = vmatprep.subr.mxu0 0.0
        %6153 = vmatpush2.msra.mxu0 0.0
        %6154 = vmatprep.subr.mxu0 0.0
        %6155 = vmatpush2.msra.mxu0 0.0
        %6156 = vmatprep.subr.mxu0 0.0
        %6157 = vmatpush2.msra.mxu0 0.0
        %6158 = vmatprep.mubr.f32.mxu0 0.0
        %v6159 = vand.u32 %v5705, 4294901760
        %6160 = vmatmul.mubr.f32.gmra.mxu0 %v6159
        %v6161 = vpop.f32.mrf.mxu0
        %v6162 = vadd.f32 %v6067, %v6161
        %v6163 = vpop.f32.mrf.mxu0
        %6164 = vdwg.mxu0
        %6165 = vmatprep.subr.mxu0 0.0
        %6166 = vmatpush1.msra.mxu0 0.0
        %6167 = vmatprep.subr.mxu0 0.0
        %6168 = vmatpush1.msra.mxu0 0.0
        %6169 = vmatprep.subr.mxu0 0.0
        %6170 = vmatpush1.msra.mxu0 0.0
        %6171 = vmatprep.subr.mxu0 0.0
        %6172 = vmatpush1.msra.mxu0 0.0
        %6173 = vmatprep.subr.mxu0 0.0
        %6174 = vmatpush1.msra.mxu0 0.0
        %6175 = vmatprep.subr.mxu0 0.0
        %6176 = vmatpush1.msra.mxu0 0.0
        %6177 = vmatprep.subr.mxu0 0.0
        %6178 = vmatpush1.msra.mxu0 0.0
        %6179 = vmatprep.subr.mxu0 0.0
        %6180 = vmatpush1.msra.mxu0 0.0
        %6181 = vmatprep.subr.mxu0 0.0
        %v6182 = vand.u32 %v2987, 4294901760
        %6183 = vmatpush1.msra.mxu0 %v6182
        %6184 = vmatprep.subr.mxu0 0.0
        %v6185 = vand.u32 %v2986, 4294901760
        %6186 = vmatpush1.msra.mxu0 %v6185
        %6187 = vmatprep.subr.mxu0 0.0
        %v6188 = vand.u32 %v2985, 4294901760
        %6189 = vmatpush1.msra.mxu0 %v6188
        %6190 = vmatprep.subr.mxu0 0.0
        %v6191 = vand.u32 %v2984, 4294901760
        %6192 = vmatpush1.msra.mxu0 %v6191
        %6193 = vmatprep.subr.mxu0 0.0
        %v6194 = vand.u32 %v2983, 4294901760
        %6195 = vmatpush1.msra.mxu0 %v6194
        %6196 = vmatprep.subr.mxu0 0.0
        %v6197 = vand.u32 %v2982, 4294901760
        %6198 = vmatpush1.msra.mxu0 %v6197
        %6199 = vmatprep.subr.mxu0 0.0
        %v6200 = vand.u32 %v2981, 4294901760
        %6201 = vmatpush1.msra.mxu0 %v6200
        %6202 = vmatprep.subr.mxu0 0.0
        %v6203 = vand.u32 %v2980, 4294901760
        %6204 = vmatpush1.msra.mxu0 %v6203
        %6205 = vmatprep.subr.mxu0 0.0
        %6206 = vmatpush2.msra.mxu0 0.0
        %6207 = vmatprep.subr.mxu0 0.0
        %6208 = vmatpush2.msra.mxu0 0.0
        %6209 = vmatprep.subr.mxu0 0.0
        %6210 = vmatpush2.msra.mxu0 0.0
        %6211 = vmatprep.subr.mxu0 0.0
        %6212 = vmatpush2.msra.mxu0 0.0
        %6213 = vmatprep.subr.mxu0 0.0
        %6214 = vmatpush2.msra.mxu0 0.0
        %6215 = vmatprep.subr.mxu0 0.0
        %6216 = vmatpush2.msra.mxu0 0.0
        %6217 = vmatprep.subr.mxu0 0.0
        %6218 = vmatpush2.msra.mxu0 0.0
        %6219 = vmatprep.subr.mxu0 0.0
        %6220 = vmatpush2.msra.mxu0 0.0
        %6221 = vmatprep.subr.mxu0 0.0
        %6222 = vmatpush2.msra.mxu0 0.0
        %6223 = vmatprep.subr.mxu0 0.0
        %6224 = vmatpush2.msra.mxu0 0.0
        %6225 = vmatprep.subr.mxu0 0.0
        %6226 = vmatpush2.msra.mxu0 0.0
        %6227 = vmatprep.subr.mxu0 0.0
        %6228 = vmatpush2.msra.mxu0 0.0
        %6229 = vmatprep.subr.mxu0 0.0
        %6230 = vmatpush2.msra.mxu0 0.0
        %6231 = vmatprep.subr.mxu0 0.0
        %6232 = vmatpush2.msra.mxu0 0.0
        %6233 = vmatprep.subr.mxu0 0.0
        %6234 = vmatpush2.msra.mxu0 0.0
        %6235 = vmatprep.subr.mxu0 0.0
        %6236 = vmatpush2.msra.mxu0 0.0
        %6237 = vmatprep.mubr.f32.mxu0 0.0
        %v6238 = vand.u32 %v5705, 4294901760
        %6239 = vmatmul.mubr.f32.gmra.mxu0 %v6238
        %v6240 = vpop.f32.mrf.mxu0
        %v6241 = vadd.f32 %v6162, %v6240
        %v6242 = vpop.f32.mrf.mxu0
        %6243 = vdwg.mxu0
        %v6245 = vsel %vm632, %v2931, 0
        %6247 = vmatprep.subr.mxu0 0.0
        %6248 = vmatpush1.msra.mxu0 0.0
        %6249 = vmatprep.subr.mxu0 0.0
        %6250 = vmatpush1.msra.mxu0 0.0
        %6251 = vmatprep.subr.mxu0 0.0
        %6252 = vmatpush1.msra.mxu0 0.0
        %6253 = vmatprep.subr.mxu0 0.0
        %6254 = vmatpush1.msra.mxu0 0.0
        %6255 = vmatprep.subr.mxu0 0.0
        %6256 = vmatpush1.msra.mxu0 0.0
        %6257 = vmatprep.subr.mxu0 0.0
        %6258 = vmatpush1.msra.mxu0 0.0
        %6259 = vmatprep.subr.mxu0 0.0
        %6260 = vmatpush1.msra.mxu0 0.0
        %6261 = vmatprep.subr.mxu0 0.0
        %6262 = vmatpush1.msra.mxu0 0.0
        %6263 = vmatprep.subr.mxu0 0.0
        %v6264 = vand.u32 %v2995, 4294901760
        %6265 = vmatpush1.msra.mxu0 %v6264
        %6266 = vmatprep.subr.mxu0 0.0
        %v6267 = vand.u32 %v2994, 4294901760
        %6268 = vmatpush1.msra.mxu0 %v6267
        %6269 = vmatprep.subr.mxu0 0.0
        %v6270 = vand.u32 %v2993, 4294901760
        %6271 = vmatpush1.msra.mxu0 %v6270
        %6272 = vmatprep.subr.mxu0 0.0
        %v6273 = vand.u32 %v2992, 4294901760
        %6274 = vmatpush1.msra.mxu0 %v6273
        %6275 = vmatprep.subr.mxu0 0.0
        %v6276 = vand.u32 %v2991, 4294901760
        %6277 = vmatpush1.msra.mxu0 %v6276
        %6278 = vmatprep.subr.mxu0 0.0
        %v6279 = vand.u32 %v2990, 4294901760
        %6280 = vmatpush1.msra.mxu0 %v6279
        %6281 = vmatprep.subr.mxu0 0.0
        %v6282 = vand.u32 %v2989, 4294901760
        %6283 = vmatpush1.msra.mxu0 %v6282
        %6284 = vmatprep.subr.mxu0 0.0
        %v6285 = vand.u32 %v2988, 4294901760
        %6286 = vmatpush1.msra.mxu0 %v6285
        %6287 = vmatprep.subr.mxu0 0.0
        %6288 = vmatpush2.msra.mxu0 0.0
        %6289 = vmatprep.subr.mxu0 0.0
        %6290 = vmatpush2.msra.mxu0 0.0
        %6291 = vmatprep.subr.mxu0 0.0
        %6292 = vmatpush2.msra.mxu0 0.0
        %6293 = vmatprep.subr.mxu0 0.0
        %6294 = vmatpush2.msra.mxu0 0.0
        %6295 = vmatprep.subr.mxu0 0.0
        %6296 = vmatpush2.msra.mxu0 0.0
        %6297 = vmatprep.subr.mxu0 0.0
        %6298 = vmatpush2.msra.mxu0 0.0
        %6299 = vmatprep.subr.mxu0 0.0
        %6300 = vmatpush2.msra.mxu0 0.0
        %6301 = vmatprep.subr.mxu0 0.0
        %6302 = vmatpush2.msra.mxu0 0.0
        %6303 = vmatprep.subr.mxu0 0.0
        %6304 = vmatpush2.msra.mxu0 0.0
        %6305 = vmatprep.subr.mxu0 0.0
        %6306 = vmatpush2.msra.mxu0 0.0
        %6307 = vmatprep.subr.mxu0 0.0
        %6308 = vmatpush2.msra.mxu0 0.0
        %6309 = vmatprep.subr.mxu0 0.0
        %6310 = vmatpush2.msra.mxu0 0.0
        %6311 = vmatprep.subr.mxu0 0.0
        %6312 = vmatpush2.msra.mxu0 0.0
        %6313 = vmatprep.subr.mxu0 0.0
        %6314 = vmatpush2.msra.mxu0 0.0
        %6315 = vmatprep.subr.mxu0 0.0
        %6316 = vmatpush2.msra.mxu0 0.0
        %6317 = vmatprep.subr.mxu0 0.0
        %6318 = vmatpush2.msra.mxu0 0.0
        %6319 = vmatprep.mubr.f32.mxu0 0.0
        %v6320 = vand.u32 %v6245, 4294901760
        %v6321 = vsub.f32 %v6245, %v6320
        %v6322 = vand.u32 %v6321, 4294901760
        %v6323 = vsub.f32 %v6321, %v6322
        %v6324 = vand.u32 %v6323, 4294901760
        %6325 = vmatmul.mubr.f32.gmra.mxu0 %v6324
        %v6326 = vpop.f32.mrf.mxu0
        %v6327 = vadd.f32 0.0, %v6326
        %v6328 = vpop.f32.mrf.mxu0
        %6329 = vdwg.mxu0
        %6330 = vmatprep.subr.mxu0 0.0
        %6331 = vmatpush1.msra.mxu0 0.0
        %6332 = vmatprep.subr.mxu0 0.0
        %6333 = vmatpush1.msra.mxu0 0.0
        %6334 = vmatprep.subr.mxu0 0.0
        %6335 = vmatpush1.msra.mxu0 0.0
        %6336 = vmatprep.subr.mxu0 0.0
        %6337 = vmatpush1.msra.mxu0 0.0
        %6338 = vmatprep.subr.mxu0 0.0
        %6339 = vmatpush1.msra.mxu0 0.0
        %6340 = vmatprep.subr.mxu0 0.0
        %6341 = vmatpush1.msra.mxu0 0.0
        %6342 = vmatprep.subr.mxu0 0.0
        %6343 = vmatpush1.msra.mxu0 0.0
        %6344 = vmatprep.subr.mxu0 0.0
        %6345 = vmatpush1.msra.mxu0 0.0
        %6346 = vmatprep.subr.mxu0 0.0
        %v6347 = vand.u32 %v2995, 4294901760
        %v6348 = vsub.f32 %v2995, %v6347
        %v6349 = vand.u32 %v6348, 4294901760
        %v6350 = vsub.f32 %v6348, %v6349
        %v6351 = vand.u32 %v6350, 4294901760
        %6352 = vmatpush1.msra.mxu0 %v6351
        %6353 = vmatprep.subr.mxu0 0.0
        %v6354 = vand.u32 %v2994, 4294901760
        %v6355 = vsub.f32 %v2994, %v6354
        %v6356 = vand.u32 %v6355, 4294901760
        %v6357 = vsub.f32 %v6355, %v6356
        %v6358 = vand.u32 %v6357, 4294901760
        %6359 = vmatpush1.msra.mxu0 %v6358
        %6360 = vmatprep.subr.mxu0 0.0
        %v6361 = vand.u32 %v2993, 4294901760
        %v6362 = vsub.f32 %v2993, %v6361
        %v6363 = vand.u32 %v6362, 4294901760
        %v6364 = vsub.f32 %v6362, %v6363
        %v6365 = vand.u32 %v6364, 4294901760
        %6366 = vmatpush1.msra.mxu0 %v6365
        %6367 = vmatprep.subr.mxu0 0.0
        %v6368 = vand.u32 %v2992, 4294901760
        %v6369 = vsub.f32 %v2992, %v6368
        %v6370 = vand.u32 %v6369, 4294901760
        %v6371 = vsub.f32 %v6369, %v6370
        %v6372 = vand.u32 %v6371, 4294901760
        %6373 = vmatpush1.msra.mxu0 %v6372
        %6374 = vmatprep.subr.mxu0 0.0
        %v6375 = vand.u32 %v2991, 4294901760
        %v6376 = vsub.f32 %v2991, %v6375
        %v6377 = vand.u32 %v6376, 4294901760
        %v6378 = vsub.f32 %v6376, %v6377
        %v6379 = vand.u32 %v6378, 4294901760
        %6380 = vmatpush1.msra.mxu0 %v6379
        %6381 = vmatprep.subr.mxu0 0.0
        %v6382 = vand.u32 %v2990, 4294901760
        %v6383 = vsub.f32 %v2990, %v6382
        %v6384 = vand.u32 %v6383, 4294901760
        %v6385 = vsub.f32 %v6383, %v6384
        %v6386 = vand.u32 %v6385, 4294901760
        %6387 = vmatpush1.msra.mxu0 %v6386
        %6388 = vmatprep.subr.mxu0 0.0
        %v6389 = vand.u32 %v2989, 4294901760
        %v6390 = vsub.f32 %v2989, %v6389
        %v6391 = vand.u32 %v6390, 4294901760
        %v6392 = vsub.f32 %v6390, %v6391
        %v6393 = vand.u32 %v6392, 4294901760
        %6394 = vmatpush1.msra.mxu0 %v6393
        %6395 = vmatprep.subr.mxu0 0.0
        %v6396 = vand.u32 %v2988, 4294901760
        %v6397 = vsub.f32 %v2988, %v6396
        %v6398 = vand.u32 %v6397, 4294901760
        %v6399 = vsub.f32 %v6397, %v6398
        %v6400 = vand.u32 %v6399, 4294901760
        %6401 = vmatpush1.msra.mxu0 %v6400
        %6402 = vmatprep.subr.mxu0 0.0
        %6403 = vmatpush2.msra.mxu0 0.0
        %6404 = vmatprep.subr.mxu0 0.0
        %6405 = vmatpush2.msra.mxu0 0.0
        %6406 = vmatprep.subr.mxu0 0.0
        %6407 = vmatpush2.msra.mxu0 0.0
        %6408 = vmatprep.subr.mxu0 0.0
        %6409 = vmatpush2.msra.mxu0 0.0
        %6410 = vmatprep.subr.mxu0 0.0
        %6411 = vmatpush2.msra.mxu0 0.0
        %6412 = vmatprep.subr.mxu0 0.0
        %6413 = vmatpush2.msra.mxu0 0.0
        %6414 = vmatprep.subr.mxu0 0.0
        %6415 = vmatpush2.msra.mxu0 0.0
        %6416 = vmatprep.subr.mxu0 0.0
        %6417 = vmatpush2.msra.mxu0 0.0
        %6418 = vmatprep.subr.mxu0 0.0
        %6419 = vmatpush2.msra.mxu0 0.0
        %6420 = vmatprep.subr.mxu0 0.0
        %6421 = vmatpush2.msra.mxu0 0.0
        %6422 = vmatprep.subr.mxu0 0.0
        %6423 = vmatpush2.msra.mxu0 0.0
        %6424 = vmatprep.subr.mxu0 0.0
        %6425 = vmatpush2.msra.mxu0 0.0
        %6426 = vmatprep.subr.mxu0 0.0
        %6427 = vmatpush2.msra.mxu0 0.0
        %6428 = vmatprep.subr.mxu0 0.0
        %6429 = vmatpush2.msra.mxu0 0.0
        %6430 = vmatprep.subr.mxu0 0.0
        %6431 = vmatpush2.msra.mxu0 0.0
        %6432 = vmatprep.subr.mxu0 0.0
        %6433 = vmatpush2.msra.mxu0 0.0
        %6434 = vmatprep.mubr.f32.mxu0 0.0
        %v6435 = vand.u32 %v6245, 4294901760
        %6436 = vmatmul.mubr.f32.gmra.mxu0 %v6435
        %v6437 = vpop.f32.mrf.mxu0
        %v6438 = vadd.f32 %v6327, %v6437
        %v6439 = vpop.f32.mrf.mxu0
        %6440 = vdwg.mxu0
        %6441 = vmatprep.subr.mxu0 0.0
        %6442 = vmatpush1.msra.mxu0 0.0
        %6443 = vmatprep.subr.mxu0 0.0
        %6444 = vmatpush1.msra.mxu0 0.0
        %6445 = vmatprep.subr.mxu0 0.0
        %6446 = vmatpush1.msra.mxu0 0.0
        %6447 = vmatprep.subr.mxu0 0.0
        %6448 = vmatpush1.msra.mxu0 0.0
        %6449 = vmatprep.subr.mxu0 0.0
        %6450 = vmatpush1.msra.mxu0 0.0
        %6451 = vmatprep.subr.mxu0 0.0
        %6452 = vmatpush1.msra.mxu0 0.0
        %6453 = vmatprep.subr.mxu0 0.0
        %6454 = vmatpush1.msra.mxu0 0.0
        %6455 = vmatprep.subr.mxu0 0.0
        %6456 = vmatpush1.msra.mxu0 0.0
        %6457 = vmatprep.subr.mxu0 0.0
        %v6458 = vand.u32 %v2995, 4294901760
        %v6459 = vsub.f32 %v2995, %v6458
        %6460 = vmatpush1.msra.mxu0 %v6459
        %6461 = vmatprep.subr.mxu0 0.0
        %v6462 = vand.u32 %v2994, 4294901760
        %v6463 = vsub.f32 %v2994, %v6462
        %6464 = vmatpush1.msra.mxu0 %v6463
        %6465 = vmatprep.subr.mxu0 0.0
        %v6466 = vand.u32 %v2993, 4294901760
        %v6467 = vsub.f32 %v2993, %v6466
        %6468 = vmatpush1.msra.mxu0 %v6467
        %6469 = vmatprep.subr.mxu0 0.0
        %v6470 = vand.u32 %v2992, 4294901760
        %v6471 = vsub.f32 %v2992, %v6470
        %6472 = vmatpush1.msra.mxu0 %v6471
        %6473 = vmatprep.subr.mxu0 0.0
        %v6474 = vand.u32 %v2991, 4294901760
        %v6475 = vsub.f32 %v2991, %v6474
        %6476 = vmatpush1.msra.mxu0 %v6475
        %6477 = vmatprep.subr.mxu0 0.0
        %v6478 = vand.u32 %v2990, 4294901760
        %v6479 = vsub.f32 %v2990, %v6478
        %6480 = vmatpush1.msra.mxu0 %v6479
        %6481 = vmatprep.subr.mxu0 0.0
        %v6482 = vand.u32 %v2989, 4294901760
        %v6483 = vsub.f32 %v2989, %v6482
        %6484 = vmatpush1.msra.mxu0 %v6483
        %6485 = vmatprep.subr.mxu0 0.0
        %v6486 = vand.u32 %v2988, 4294901760
        %v6487 = vsub.f32 %v2988, %v6486
        %6488 = vmatpush1.msra.mxu0 %v6487
        %6489 = vmatprep.subr.mxu0 0.0
        %6490 = vmatpush2.msra.mxu0 0.0
        %6491 = vmatprep.subr.mxu0 0.0
        %6492 = vmatpush2.msra.mxu0 0.0
        %6493 = vmatprep.subr.mxu0 0.0
        %6494 = vmatpush2.msra.mxu0 0.0
        %6495 = vmatprep.subr.mxu0 0.0
        %6496 = vmatpush2.msra.mxu0 0.0
        %6497 = vmatprep.subr.mxu0 0.0
        %6498 = vmatpush2.msra.mxu0 0.0
        %6499 = vmatprep.subr.mxu0 0.0
        %6500 = vmatpush2.msra.mxu0 0.0
        %6501 = vmatprep.subr.mxu0 0.0
        %6502 = vmatpush2.msra.mxu0 0.0
        %6503 = vmatprep.subr.mxu0 0.0
        %6504 = vmatpush2.msra.mxu0 0.0
        %6505 = vmatprep.subr.mxu0 0.0
        %6506 = vmatpush2.msra.mxu0 0.0
        %6507 = vmatprep.subr.mxu0 0.0
        %6508 = vmatpush2.msra.mxu0 0.0
        %6509 = vmatprep.subr.mxu0 0.0
        %6510 = vmatpush2.msra.mxu0 0.0
        %6511 = vmatprep.subr.mxu0 0.0
        %6512 = vmatpush2.msra.mxu0 0.0
        %6513 = vmatprep.subr.mxu0 0.0
        %6514 = vmatpush2.msra.mxu0 0.0
        %6515 = vmatprep.subr.mxu0 0.0
        %6516 = vmatpush2.msra.mxu0 0.0
        %6517 = vmatprep.subr.mxu0 0.0
        %6518 = vmatpush2.msra.mxu0 0.0
        %6519 = vmatprep.subr.mxu0 0.0
        %6520 = vmatpush2.msra.mxu0 0.0
        %6521 = vmatprep.mubr.f32.mxu0 0.0
        %v6522 = vand.u32 %v6245, 4294901760
        %v6523 = vsub.f32 %v6245, %v6522
        %6524 = vmatmul.mubr.f32.gmra.mxu0 %v6523
        %v6525 = vpop.f32.mrf.mxu0
        %v6526 = vadd.f32 %v6438, %v6525
        %v6527 = vpop.f32.mrf.mxu0
        %6528 = vdwg.mxu0
        %6529 = vmatprep.subr.mxu0 0.0
        %6530 = vmatpush1.msra.mxu0 0.0
        %6531 = vmatprep.subr.mxu0 0.0
        %6532 = vmatpush1.msra.mxu0 0.0
        %6533 = vmatprep.subr.mxu0 0.0
        %6534 = vmatpush1.msra.mxu0 0.0
        %6535 = vmatprep.subr.mxu0 0.0
        %6536 = vmatpush1.msra.mxu0 0.0
        %6537 = vmatprep.subr.mxu0 0.0
        %6538 = vmatpush1.msra.mxu0 0.0
        %6539 = vmatprep.subr.mxu0 0.0
        %6540 = vmatpush1.msra.mxu0 0.0
        %6541 = vmatprep.subr.mxu0 0.0
        %6542 = vmatpush1.msra.mxu0 0.0
        %6543 = vmatprep.subr.mxu0 0.0
        %6544 = vmatpush1.msra.mxu0 0.0
        %6545 = vmatprep.subr.mxu0 0.0
        %v6546 = vand.u32 %v2995, 4294901760
        %6547 = vmatpush1.msra.mxu0 %v6546
        %6548 = vmatprep.subr.mxu0 0.0
        %v6549 = vand.u32 %v2994, 4294901760
        %6550 = vmatpush1.msra.mxu0 %v6549
        %6551 = vmatprep.subr.mxu0 0.0
        %v6552 = vand.u32 %v2993, 4294901760
        %6553 = vmatpush1.msra.mxu0 %v6552
        %6554 = vmatprep.subr.mxu0 0.0
        %v6555 = vand.u32 %v2992, 4294901760
        %6556 = vmatpush1.msra.mxu0 %v6555
        %6557 = vmatprep.subr.mxu0 0.0
        %v6558 = vand.u32 %v2991, 4294901760
        %6559 = vmatpush1.msra.mxu0 %v6558
        %6560 = vmatprep.subr.mxu0 0.0
        %v6561 = vand.u32 %v2990, 4294901760
        %6562 = vmatpush1.msra.mxu0 %v6561
        %6563 = vmatprep.subr.mxu0 0.0
        %v6564 = vand.u32 %v2989, 4294901760
        %6565 = vmatpush1.msra.mxu0 %v6564
        %6566 = vmatprep.subr.mxu0 0.0
        %v6567 = vand.u32 %v2988, 4294901760
        %6568 = vmatpush1.msra.mxu0 %v6567
        %6569 = vmatprep.subr.mxu0 0.0
        %6570 = vmatpush2.msra.mxu0 0.0
        %6571 = vmatprep.subr.mxu0 0.0
        %6572 = vmatpush2.msra.mxu0 0.0
        %6573 = vmatprep.subr.mxu0 0.0
        %6574 = vmatpush2.msra.mxu0 0.0
        %6575 = vmatprep.subr.mxu0 0.0
        %6576 = vmatpush2.msra.mxu0 0.0
        %6577 = vmatprep.subr.mxu0 0.0
        %6578 = vmatpush2.msra.mxu0 0.0
        %6579 = vmatprep.subr.mxu0 0.0
        %6580 = vmatpush2.msra.mxu0 0.0
        %6581 = vmatprep.subr.mxu0 0.0
        %6582 = vmatpush2.msra.mxu0 0.0
        %6583 = vmatprep.subr.mxu0 0.0
        %6584 = vmatpush2.msra.mxu0 0.0
        %6585 = vmatprep.subr.mxu0 0.0
        %6586 = vmatpush2.msra.mxu0 0.0
        %6587 = vmatprep.subr.mxu0 0.0
        %6588 = vmatpush2.msra.mxu0 0.0
        %6589 = vmatprep.subr.mxu0 0.0
        %6590 = vmatpush2.msra.mxu0 0.0
        %6591 = vmatprep.subr.mxu0 0.0
        %6592 = vmatpush2.msra.mxu0 0.0
        %6593 = vmatprep.subr.mxu0 0.0
        %6594 = vmatpush2.msra.mxu0 0.0
        %6595 = vmatprep.subr.mxu0 0.0
        %6596 = vmatpush2.msra.mxu0 0.0
        %6597 = vmatprep.subr.mxu0 0.0
        %6598 = vmatpush2.msra.mxu0 0.0
        %6599 = vmatprep.subr.mxu0 0.0
        %6600 = vmatpush2.msra.mxu0 0.0
        %6601 = vmatprep.mubr.f32.mxu0 0.0
        %v6602 = vand.u32 %v6245, 4294901760
        %v6603 = vsub.f32 %v6245, %v6602
        %v6604 = vand.u32 %v6603, 4294901760
        %6605 = vmatmul.mubr.f32.gmra.mxu0 %v6604
        %v6606 = vpop.f32.mrf.mxu0
        %v6607 = vadd.f32 %v6526, %v6606
        %v6608 = vpop.f32.mrf.mxu0
        %6609 = vdwg.mxu0
        %6610 = vmatprep.subr.mxu0 0.0
        %6611 = vmatpush1.msra.mxu0 0.0
        %6612 = vmatprep.subr.mxu0 0.0
        %6613 = vmatpush1.msra.mxu0 0.0
        %6614 = vmatprep.subr.mxu0 0.0
        %6615 = vmatpush1.msra.mxu0 0.0
        %6616 = vmatprep.subr.mxu0 0.0
        %6617 = vmatpush1.msra.mxu0 0.0
        %6618 = vmatprep.subr.mxu0 0.0
        %6619 = vmatpush1.msra.mxu0 0.0
        %6620 = vmatprep.subr.mxu0 0.0
        %6621 = vmatpush1.msra.mxu0 0.0
        %6622 = vmatprep.subr.mxu0 0.0
        %6623 = vmatpush1.msra.mxu0 0.0
        %6624 = vmatprep.subr.mxu0 0.0
        %6625 = vmatpush1.msra.mxu0 0.0
        %6626 = vmatprep.subr.mxu0 0.0
        %v6627 = vand.u32 %v2995, 4294901760
        %v6628 = vsub.f32 %v2995, %v6627
        %v6629 = vand.u32 %v6628, 4294901760
        %6630 = vmatpush1.msra.mxu0 %v6629
        %6631 = vmatprep.subr.mxu0 0.0
        %v6632 = vand.u32 %v2994, 4294901760
        %v6633 = vsub.f32 %v2994, %v6632
        %v6634 = vand.u32 %v6633, 4294901760
        %6635 = vmatpush1.msra.mxu0 %v6634
        %6636 = vmatprep.subr.mxu0 0.0
        %v6637 = vand.u32 %v2993, 4294901760
        %v6638 = vsub.f32 %v2993, %v6637
        %v6639 = vand.u32 %v6638, 4294901760
        %6640 = vmatpush1.msra.mxu0 %v6639
        %6641 = vmatprep.subr.mxu0 0.0
        %v6642 = vand.u32 %v2992, 4294901760
        %v6643 = vsub.f32 %v2992, %v6642
        %v6644 = vand.u32 %v6643, 4294901760
        %6645 = vmatpush1.msra.mxu0 %v6644
        %6646 = vmatprep.subr.mxu0 0.0
        %v6647 = vand.u32 %v2991, 4294901760
        %v6648 = vsub.f32 %v2991, %v6647
        %v6649 = vand.u32 %v6648, 4294901760
        %6650 = vmatpush1.msra.mxu0 %v6649
        %6651 = vmatprep.subr.mxu0 0.0
        %v6652 = vand.u32 %v2990, 4294901760
        %v6653 = vsub.f32 %v2990, %v6652
        %v6654 = vand.u32 %v6653, 4294901760
        %6655 = vmatpush1.msra.mxu0 %v6654
        %6656 = vmatprep.subr.mxu0 0.0
        %v6657 = vand.u32 %v2989, 4294901760
        %v6658 = vsub.f32 %v2989, %v6657
        %v6659 = vand.u32 %v6658, 4294901760
        %6660 = vmatpush1.msra.mxu0 %v6659
        %6661 = vmatprep.subr.mxu0 0.0
        %v6662 = vand.u32 %v2988, 4294901760
        %v6663 = vsub.f32 %v2988, %v6662
        %v6664 = vand.u32 %v6663, 4294901760
        %6665 = vmatpush1.msra.mxu0 %v6664
        %6666 = vmatprep.subr.mxu0 0.0
        %6667 = vmatpush2.msra.mxu0 0.0
        %6668 = vmatprep.subr.mxu0 0.0
        %6669 = vmatpush2.msra.mxu0 0.0
        %6670 = vmatprep.subr.mxu0 0.0
        %6671 = vmatpush2.msra.mxu0 0.0
        %6672 = vmatprep.subr.mxu0 0.0
        %6673 = vmatpush2.msra.mxu0 0.0
        %6674 = vmatprep.subr.mxu0 0.0
        %6675 = vmatpush2.msra.mxu0 0.0
        %6676 = vmatprep.subr.mxu0 0.0
        %6677 = vmatpush2.msra.mxu0 0.0
        %6678 = vmatprep.subr.mxu0 0.0
        %6679 = vmatpush2.msra.mxu0 0.0
        %6680 = vmatprep.subr.mxu0 0.0
        %6681 = vmatpush2.msra.mxu0 0.0
        %6682 = vmatprep.subr.mxu0 0.0
        %6683 = vmatpush2.msra.mxu0 0.0
        %6684 = vmatprep.subr.mxu0 0.0
        %6685 = vmatpush2.msra.mxu0 0.0
        %6686 = vmatprep.subr.mxu0 0.0
        %6687 = vmatpush2.msra.mxu0 0.0
        %6688 = vmatprep.subr.mxu0 0.0
        %6689 = vmatpush2.msra.mxu0 0.0
        %6690 = vmatprep.subr.mxu0 0.0
        %6691 = vmatpush2.msra.mxu0 0.0
        %6692 = vmatprep.subr.mxu0 0.0
        %6693 = vmatpush2.msra.mxu0 0.0
        %6694 = vmatprep.subr.mxu0 0.0
        %6695 = vmatpush2.msra.mxu0 0.0
        %6696 = vmatprep.subr.mxu0 0.0
        %6697 = vmatpush2.msra.mxu0 0.0
        %6698 = vmatprep.mubr.f32.mxu0 0.0
        %v6699 = vand.u32 %v6245, 4294901760
        %6700 = vmatmul.mubr.f32.gmra.mxu0 %v6699
        %v6701 = vpop.f32.mrf.mxu0
        %v6702 = vadd.f32 %v6607, %v6701
        %v6703 = vpop.f32.mrf.mxu0
        %6704 = vdwg.mxu0
        %6705 = vmatprep.subr.mxu0 0.0
        %6706 = vmatpush1.msra.mxu0 0.0
        %6707 = vmatprep.subr.mxu0 0.0
        %6708 = vmatpush1.msra.mxu0 0.0
        %6709 = vmatprep.subr.mxu0 0.0
        %6710 = vmatpush1.msra.mxu0 0.0
        %6711 = vmatprep.subr.mxu0 0.0
        %6712 = vmatpush1.msra.mxu0 0.0
        %6713 = vmatprep.subr.mxu0 0.0
        %6714 = vmatpush1.msra.mxu0 0.0
        %6715 = vmatprep.subr.mxu0 0.0
        %6716 = vmatpush1.msra.mxu0 0.0
        %6717 = vmatprep.subr.mxu0 0.0
        %6718 = vmatpush1.msra.mxu0 0.0
        %6719 = vmatprep.subr.mxu0 0.0
        %6720 = vmatpush1.msra.mxu0 0.0
        %6721 = vmatprep.subr.mxu0 0.0
        %v6722 = vand.u32 %v2995, 4294901760
        %6723 = vmatpush1.msra.mxu0 %v6722
        %6724 = vmatprep.subr.mxu0 0.0
        %v6725 = vand.u32 %v2994, 4294901760
        %6726 = vmatpush1.msra.mxu0 %v6725
        %6727 = vmatprep.subr.mxu0 0.0
        %v6728 = vand.u32 %v2993, 4294901760
        %6729 = vmatpush1.msra.mxu0 %v6728
        %6730 = vmatprep.subr.mxu0 0.0
        %v6731 = vand.u32 %v2992, 4294901760
        %6732 = vmatpush1.msra.mxu0 %v6731
        %6733 = vmatprep.subr.mxu0 0.0
        %v6734 = vand.u32 %v2991, 4294901760
        %6735 = vmatpush1.msra.mxu0 %v6734
        %6736 = vmatprep.subr.mxu0 0.0
        %v6737 = vand.u32 %v2990, 4294901760
        %6738 = vmatpush1.msra.mxu0 %v6737
        %6739 = vmatprep.subr.mxu0 0.0
        %v6740 = vand.u32 %v2989, 4294901760
        %6741 = vmatpush1.msra.mxu0 %v6740
        %6742 = vmatprep.subr.mxu0 0.0
        %v6743 = vand.u32 %v2988, 4294901760
        %6744 = vmatpush1.msra.mxu0 %v6743
        %6745 = vmatprep.subr.mxu0 0.0
        %6746 = vmatpush2.msra.mxu0 0.0
        %6747 = vmatprep.subr.mxu0 0.0
        %6748 = vmatpush2.msra.mxu0 0.0
        %6749 = vmatprep.subr.mxu0 0.0
        %6750 = vmatpush2.msra.mxu0 0.0
        %6751 = vmatprep.subr.mxu0 0.0
        %6752 = vmatpush2.msra.mxu0 0.0
        %6753 = vmatprep.subr.mxu0 0.0
        %6754 = vmatpush2.msra.mxu0 0.0
        %6755 = vmatprep.subr.mxu0 0.0
        %6756 = vmatpush2.msra.mxu0 0.0
        %6757 = vmatprep.subr.mxu0 0.0
        %6758 = vmatpush2.msra.mxu0 0.0
        %6759 = vmatprep.subr.mxu0 0.0
        %6760 = vmatpush2.msra.mxu0 0.0
        %6761 = vmatprep.subr.mxu0 0.0
        %6762 = vmatpush2.msra.mxu0 0.0
        %6763 = vmatprep.subr.mxu0 0.0
        %6764 = vmatpush2.msra.mxu0 0.0
        %6765 = vmatprep.subr.mxu0 0.0
        %6766 = vmatpush2.msra.mxu0 0.0
        %6767 = vmatprep.subr.mxu0 0.0
        %6768 = vmatpush2.msra.mxu0 0.0
        %6769 = vmatprep.subr.mxu0 0.0
        %6770 = vmatpush2.msra.mxu0 0.0
        %6771 = vmatprep.subr.mxu0 0.0
        %6772 = vmatpush2.msra.mxu0 0.0
        %6773 = vmatprep.subr.mxu0 0.0
        %6774 = vmatpush2.msra.mxu0 0.0
        %6775 = vmatprep.subr.mxu0 0.0
        %6776 = vmatpush2.msra.mxu0 0.0
        %6777 = vmatprep.mubr.f32.mxu0 0.0
        %v6778 = vand.u32 %v6245, 4294901760
        %6779 = vmatmul.mubr.f32.gmra.mxu0 %v6778
        %v6780 = vpop.f32.mrf.mxu0
        %v6781 = vadd.f32 %v6702, %v6780
        %v6782 = vpop.f32.mrf.mxu0
        %6783 = vdwg.mxu0
        %v6785 = vsel %vm632, %v2937, 0
        %6787 = vmatprep.subr.mxu0 0.0
        %6788 = vmatpush1.msra.mxu0 0.0
        %6789 = vmatprep.subr.mxu0 0.0
        %6790 = vmatpush1.msra.mxu0 0.0
        %6791 = vmatprep.subr.mxu0 0.0
        %6792 = vmatpush1.msra.mxu0 0.0
        %6793 = vmatprep.subr.mxu0 0.0
        %6794 = vmatpush1.msra.mxu0 0.0
        %6795 = vmatprep.subr.mxu0 0.0
        %6796 = vmatpush1.msra.mxu0 0.0
        %6797 = vmatprep.subr.mxu0 0.0
        %6798 = vmatpush1.msra.mxu0 0.0
        %6799 = vmatprep.subr.mxu0 0.0
        %6800 = vmatpush1.msra.mxu0 0.0
        %6801 = vmatprep.subr.mxu0 0.0
        %6802 = vmatpush1.msra.mxu0 0.0
        %6803 = vmatprep.subr.mxu0 0.0
        %v6804 = vand.u32 %v3003, 4294901760
        %6805 = vmatpush1.msra.mxu0 %v6804
        %6806 = vmatprep.subr.mxu0 0.0
        %v6807 = vand.u32 %v3002, 4294901760
        %6808 = vmatpush1.msra.mxu0 %v6807
        %6809 = vmatprep.subr.mxu0 0.0
        %v6810 = vand.u32 %v3001, 4294901760
        %6811 = vmatpush1.msra.mxu0 %v6810
        %6812 = vmatprep.subr.mxu0 0.0
        %v6813 = vand.u32 %v3000, 4294901760
        %6814 = vmatpush1.msra.mxu0 %v6813
        %6815 = vmatprep.subr.mxu0 0.0
        %v6816 = vand.u32 %v2999, 4294901760
        %6817 = vmatpush1.msra.mxu0 %v6816
        %6818 = vmatprep.subr.mxu0 0.0
        %v6819 = vand.u32 %v2998, 4294901760
        %6820 = vmatpush1.msra.mxu0 %v6819
        %6821 = vmatprep.subr.mxu0 0.0
        %v6822 = vand.u32 %v2997, 4294901760
        %6823 = vmatpush1.msra.mxu0 %v6822
        %6824 = vmatprep.subr.mxu0 0.0
        %v6825 = vand.u32 %v2996, 4294901760
        %6826 = vmatpush1.msra.mxu0 %v6825
        %6827 = vmatprep.subr.mxu0 0.0
        %6828 = vmatpush2.msra.mxu0 0.0
        %6829 = vmatprep.subr.mxu0 0.0
        %6830 = vmatpush2.msra.mxu0 0.0
        %6831 = vmatprep.subr.mxu0 0.0
        %6832 = vmatpush2.msra.mxu0 0.0
        %6833 = vmatprep.subr.mxu0 0.0
        %6834 = vmatpush2.msra.mxu0 0.0
        %6835 = vmatprep.subr.mxu0 0.0
        %6836 = vmatpush2.msra.mxu0 0.0
        %6837 = vmatprep.subr.mxu0 0.0
        %6838 = vmatpush2.msra.mxu0 0.0
        %6839 = vmatprep.subr.mxu0 0.0
        %6840 = vmatpush2.msra.mxu0 0.0
        %6841 = vmatprep.subr.mxu0 0.0
        %6842 = vmatpush2.msra.mxu0 0.0
        %6843 = vmatprep.subr.mxu0 0.0
        %6844 = vmatpush2.msra.mxu0 0.0
        %6845 = vmatprep.subr.mxu0 0.0
        %6846 = vmatpush2.msra.mxu0 0.0
        %6847 = vmatprep.subr.mxu0 0.0
        %6848 = vmatpush2.msra.mxu0 0.0
        %6849 = vmatprep.subr.mxu0 0.0
        %6850 = vmatpush2.msra.mxu0 0.0
        %6851 = vmatprep.subr.mxu0 0.0
        %6852 = vmatpush2.msra.mxu0 0.0
        %6853 = vmatprep.subr.mxu0 0.0
        %6854 = vmatpush2.msra.mxu0 0.0
        %6855 = vmatprep.subr.mxu0 0.0
        %6856 = vmatpush2.msra.mxu0 0.0
        %6857 = vmatprep.subr.mxu0 0.0
        %6858 = vmatpush2.msra.mxu0 0.0
        %6859 = vmatprep.mubr.f32.mxu0 0.0
        %v6860 = vand.u32 %v6785, 4294901760
        %v6861 = vsub.f32 %v6785, %v6860
        %v6862 = vand.u32 %v6861, 4294901760
        %v6863 = vsub.f32 %v6861, %v6862
        %v6864 = vand.u32 %v6863, 4294901760
        %6865 = vmatmul.mubr.f32.gmra.mxu0 %v6864
        %v6866 = vpop.f32.mrf.mxu0
        %v6867 = vadd.f32 0.0, %v6866
        %v6868 = vpop.f32.mrf.mxu0
        %6869 = vdwg.mxu0
        %6870 = vmatprep.subr.mxu0 0.0
        %6871 = vmatpush1.msra.mxu0 0.0
        %6872 = vmatprep.subr.mxu0 0.0
        %6873 = vmatpush1.msra.mxu0 0.0
        %6874 = vmatprep.subr.mxu0 0.0
        %6875 = vmatpush1.msra.mxu0 0.0
        %6876 = vmatprep.subr.mxu0 0.0
        %6877 = vmatpush1.msra.mxu0 0.0
        %6878 = vmatprep.subr.mxu0 0.0
        %6879 = vmatpush1.msra.mxu0 0.0
        %6880 = vmatprep.subr.mxu0 0.0
        %6881 = vmatpush1.msra.mxu0 0.0
        %6882 = vmatprep.subr.mxu0 0.0
        %6883 = vmatpush1.msra.mxu0 0.0
        %6884 = vmatprep.subr.mxu0 0.0
        %6885 = vmatpush1.msra.mxu0 0.0
        %6886 = vmatprep.subr.mxu0 0.0
        %v6887 = vand.u32 %v3003, 4294901760
        %v6888 = vsub.f32 %v3003, %v6887
        %v6889 = vand.u32 %v6888, 4294901760
        %v6890 = vsub.f32 %v6888, %v6889
        %v6891 = vand.u32 %v6890, 4294901760
        %6892 = vmatpush1.msra.mxu0 %v6891
        %6893 = vmatprep.subr.mxu0 0.0
        %v6894 = vand.u32 %v3002, 4294901760
        %v6895 = vsub.f32 %v3002, %v6894
        %v6896 = vand.u32 %v6895, 4294901760
        %v6897 = vsub.f32 %v6895, %v6896
        %v6898 = vand.u32 %v6897, 4294901760
        %6899 = vmatpush1.msra.mxu0 %v6898
        %6900 = vmatprep.subr.mxu0 0.0
        %v6901 = vand.u32 %v3001, 4294901760
        %v6902 = vsub.f32 %v3001, %v6901
        %v6903 = vand.u32 %v6902, 4294901760
        %v6904 = vsub.f32 %v6902, %v6903
        %v6905 = vand.u32 %v6904, 4294901760
        %6906 = vmatpush1.msra.mxu0 %v6905
        %6907 = vmatprep.subr.mxu0 0.0
        %v6908 = vand.u32 %v3000, 4294901760
        %v6909 = vsub.f32 %v3000, %v6908
        %v6910 = vand.u32 %v6909, 4294901760
        %v6911 = vsub.f32 %v6909, %v6910
        %v6912 = vand.u32 %v6911, 4294901760
        %6913 = vmatpush1.msra.mxu0 %v6912
        %6914 = vmatprep.subr.mxu0 0.0
        %v6915 = vand.u32 %v2999, 4294901760
        %v6916 = vsub.f32 %v2999, %v6915
        %v6917 = vand.u32 %v6916, 4294901760
        %v6918 = vsub.f32 %v6916, %v6917
        %v6919 = vand.u32 %v6918, 4294901760
        %6920 = vmatpush1.msra.mxu0 %v6919
        %6921 = vmatprep.subr.mxu0 0.0
        %v6922 = vand.u32 %v2998, 4294901760
        %v6923 = vsub.f32 %v2998, %v6922
        %v6924 = vand.u32 %v6923, 4294901760
        %v6925 = vsub.f32 %v6923, %v6924
        %v6926 = vand.u32 %v6925, 4294901760
        %6927 = vmatpush1.msra.mxu0 %v6926
        %6928 = vmatprep.subr.mxu0 0.0
        %v6929 = vand.u32 %v2997, 4294901760
        %v6930 = vsub.f32 %v2997, %v6929
        %v6931 = vand.u32 %v6930, 4294901760
        %v6932 = vsub.f32 %v6930, %v6931
        %v6933 = vand.u32 %v6932, 4294901760
        %6934 = vmatpush1.msra.mxu0 %v6933
        %6935 = vmatprep.subr.mxu0 0.0
        %v6936 = vand.u32 %v2996, 4294901760
        %v6937 = vsub.f32 %v2996, %v6936
        %v6938 = vand.u32 %v6937, 4294901760
        %v6939 = vsub.f32 %v6937, %v6938
        %v6940 = vand.u32 %v6939, 4294901760
        %6941 = vmatpush1.msra.mxu0 %v6940
        %6942 = vmatprep.subr.mxu0 0.0
        %6943 = vmatpush2.msra.mxu0 0.0
        %6944 = vmatprep.subr.mxu0 0.0
        %6945 = vmatpush2.msra.mxu0 0.0
        %6946 = vmatprep.subr.mxu0 0.0
        %6947 = vmatpush2.msra.mxu0 0.0
        %6948 = vmatprep.subr.mxu0 0.0
        %6949 = vmatpush2.msra.mxu0 0.0
        %6950 = vmatprep.subr.mxu0 0.0
        %6951 = vmatpush2.msra.mxu0 0.0
        %6952 = vmatprep.subr.mxu0 0.0
        %6953 = vmatpush2.msra.mxu0 0.0
        %6954 = vmatprep.subr.mxu0 0.0
        %6955 = vmatpush2.msra.mxu0 0.0
        %6956 = vmatprep.subr.mxu0 0.0
        %6957 = vmatpush2.msra.mxu0 0.0
        %6958 = vmatprep.subr.mxu0 0.0
        %6959 = vmatpush2.msra.mxu0 0.0
        %6960 = vmatprep.subr.mxu0 0.0
        %6961 = vmatpush2.msra.mxu0 0.0
        %6962 = vmatprep.subr.mxu0 0.0
        %6963 = vmatpush2.msra.mxu0 0.0
        %6964 = vmatprep.subr.mxu0 0.0
        %6965 = vmatpush2.msra.mxu0 0.0
        %6966 = vmatprep.subr.mxu0 0.0
        %6967 = vmatpush2.msra.mxu0 0.0
        %6968 = vmatprep.subr.mxu0 0.0
        %6969 = vmatpush2.msra.mxu0 0.0
        %6970 = vmatprep.subr.mxu0 0.0
        %6971 = vmatpush2.msra.mxu0 0.0
        %6972 = vmatprep.subr.mxu0 0.0
        %6973 = vmatpush2.msra.mxu0 0.0
        %6974 = vmatprep.mubr.f32.mxu0 0.0
        %v6975 = vand.u32 %v6785, 4294901760
        %6976 = vmatmul.mubr.f32.gmra.mxu0 %v6975
        %v6977 = vpop.f32.mrf.mxu0
        %v6978 = vadd.f32 %v6867, %v6977
        %v6979 = vpop.f32.mrf.mxu0
        %6980 = vdwg.mxu0
        %6981 = vmatprep.subr.mxu0 0.0
        %6982 = vmatpush1.msra.mxu0 0.0
        %6983 = vmatprep.subr.mxu0 0.0
        %6984 = vmatpush1.msra.mxu0 0.0
        %6985 = vmatprep.subr.mxu0 0.0
        %6986 = vmatpush1.msra.mxu0 0.0
        %6987 = vmatprep.subr.mxu0 0.0
        %6988 = vmatpush1.msra.mxu0 0.0
        %6989 = vmatprep.subr.mxu0 0.0
        %6990 = vmatpush1.msra.mxu0 0.0
        %6991 = vmatprep.subr.mxu0 0.0
        %6992 = vmatpush1.msra.mxu0 0.0
        %6993 = vmatprep.subr.mxu0 0.0
        %6994 = vmatpush1.msra.mxu0 0.0
        %6995 = vmatprep.subr.mxu0 0.0
        %6996 = vmatpush1.msra.mxu0 0.0
        %6997 = vmatprep.subr.mxu0 0.0
        %v6998 = vand.u32 %v3003, 4294901760
        %v6999 = vsub.f32 %v3003, %v6998
        %7000 = vmatpush1.msra.mxu0 %v6999
        %7001 = vmatprep.subr.mxu0 0.0
        %v7002 = vand.u32 %v3002, 4294901760
        %v7003 = vsub.f32 %v3002, %v7002
        %7004 = vmatpush1.msra.mxu0 %v7003
        %7005 = vmatprep.subr.mxu0 0.0
        %v7006 = vand.u32 %v3001, 4294901760
        %v7007 = vsub.f32 %v3001, %v7006
        %7008 = vmatpush1.msra.mxu0 %v7007
        %7009 = vmatprep.subr.mxu0 0.0
        %v7010 = vand.u32 %v3000, 4294901760
        %v7011 = vsub.f32 %v3000, %v7010
        %7012 = vmatpush1.msra.mxu0 %v7011
        %7013 = vmatprep.subr.mxu0 0.0
        %v7014 = vand.u32 %v2999, 4294901760
        %v7015 = vsub.f32 %v2999, %v7014
        %7016 = vmatpush1.msra.mxu0 %v7015
        %7017 = vmatprep.subr.mxu0 0.0
        %v7018 = vand.u32 %v2998, 4294901760
        %v7019 = vsub.f32 %v2998, %v7018
        %7020 = vmatpush1.msra.mxu0 %v7019
        %7021 = vmatprep.subr.mxu0 0.0
        %v7022 = vand.u32 %v2997, 4294901760
        %v7023 = vsub.f32 %v2997, %v7022
        %7024 = vmatpush1.msra.mxu0 %v7023
        %7025 = vmatprep.subr.mxu0 0.0
        %v7026 = vand.u32 %v2996, 4294901760
        %v7027 = vsub.f32 %v2996, %v7026
        %7028 = vmatpush1.msra.mxu0 %v7027
        %7029 = vmatprep.subr.mxu0 0.0
        %7030 = vmatpush2.msra.mxu0 0.0
        %7031 = vmatprep.subr.mxu0 0.0
        %7032 = vmatpush2.msra.mxu0 0.0
        %7033 = vmatprep.subr.mxu0 0.0
        %7034 = vmatpush2.msra.mxu0 0.0
        %7035 = vmatprep.subr.mxu0 0.0
        %7036 = vmatpush2.msra.mxu0 0.0
        %7037 = vmatprep.subr.mxu0 0.0
        %7038 = vmatpush2.msra.mxu0 0.0
        %7039 = vmatprep.subr.mxu0 0.0
        %7040 = vmatpush2.msra.mxu0 0.0
        %7041 = vmatprep.subr.mxu0 0.0
        %7042 = vmatpush2.msra.mxu0 0.0
        %7043 = vmatprep.subr.mxu0 0.0
        %7044 = vmatpush2.msra.mxu0 0.0
        %7045 = vmatprep.subr.mxu0 0.0
        %7046 = vmatpush2.msra.mxu0 0.0
        %7047 = vmatprep.subr.mxu0 0.0
        %7048 = vmatpush2.msra.mxu0 0.0
        %7049 = vmatprep.subr.mxu0 0.0
        %7050 = vmatpush2.msra.mxu0 0.0
        %7051 = vmatprep.subr.mxu0 0.0
        %7052 = vmatpush2.msra.mxu0 0.0
        %7053 = vmatprep.subr.mxu0 0.0
        %7054 = vmatpush2.msra.mxu0 0.0
        %7055 = vmatprep.subr.mxu0 0.0
        %7056 = vmatpush2.msra.mxu0 0.0
        %7057 = vmatprep.subr.mxu0 0.0
        %7058 = vmatpush2.msra.mxu0 0.0
        %7059 = vmatprep.subr.mxu0 0.0
        %7060 = vmatpush2.msra.mxu0 0.0
        %7061 = vmatprep.mubr.f32.mxu0 0.0
        %v7062 = vand.u32 %v6785, 4294901760
        %v7063 = vsub.f32 %v6785, %v7062
        %7064 = vmatmul.mubr.f32.gmra.mxu0 %v7063
        %v7065 = vpop.f32.mrf.mxu0
        %v7066 = vadd.f32 %v6978, %v7065
        %v7067 = vpop.f32.mrf.mxu0
        %7068 = vdwg.mxu0
        %7069 = vmatprep.subr.mxu0 0.0
        %7070 = vmatpush1.msra.mxu0 0.0
        %7071 = vmatprep.subr.mxu0 0.0
        %7072 = vmatpush1.msra.mxu0 0.0
        %7073 = vmatprep.subr.mxu0 0.0
        %7074 = vmatpush1.msra.mxu0 0.0
        %7075 = vmatprep.subr.mxu0 0.0
        %7076 = vmatpush1.msra.mxu0 0.0
        %7077 = vmatprep.subr.mxu0 0.0
        %7078 = vmatpush1.msra.mxu0 0.0
        %7079 = vmatprep.subr.mxu0 0.0
        %7080 = vmatpush1.msra.mxu0 0.0
        %7081 = vmatprep.subr.mxu0 0.0
        %7082 = vmatpush1.msra.mxu0 0.0
        %7083 = vmatprep.subr.mxu0 0.0
        %7084 = vmatpush1.msra.mxu0 0.0
        %7085 = vmatprep.subr.mxu0 0.0
        %v7086 = vand.u32 %v3003, 4294901760
        %7087 = vmatpush1.msra.mxu0 %v7086
        %7088 = vmatprep.subr.mxu0 0.0
        %v7089 = vand.u32 %v3002, 4294901760
        %7090 = vmatpush1.msra.mxu0 %v7089
        %7091 = vmatprep.subr.mxu0 0.0
        %v7092 = vand.u32 %v3001, 4294901760
        %7093 = vmatpush1.msra.mxu0 %v7092
        %7094 = vmatprep.subr.mxu0 0.0
        %v7095 = vand.u32 %v3000, 4294901760
        %7096 = vmatpush1.msra.mxu0 %v7095
        %7097 = vmatprep.subr.mxu0 0.0
        %v7098 = vand.u32 %v2999, 4294901760
        %7099 = vmatpush1.msra.mxu0 %v7098
        %7100 = vmatprep.subr.mxu0 0.0
        %v7101 = vand.u32 %v2998, 4294901760
        %7102 = vmatpush1.msra.mxu0 %v7101
        %7103 = vmatprep.subr.mxu0 0.0
        %v7104 = vand.u32 %v2997, 4294901760
        %7105 = vmatpush1.msra.mxu0 %v7104
        %7106 = vmatprep.subr.mxu0 0.0
        %v7107 = vand.u32 %v2996, 4294901760
        %7108 = vmatpush1.msra.mxu0 %v7107
        %7109 = vmatprep.subr.mxu0 0.0
        %7110 = vmatpush2.msra.mxu0 0.0
        %7111 = vmatprep.subr.mxu0 0.0
        %7112 = vmatpush2.msra.mxu0 0.0
        %7113 = vmatprep.subr.mxu0 0.0
        %7114 = vmatpush2.msra.mxu0 0.0
        %7115 = vmatprep.subr.mxu0 0.0
        %7116 = vmatpush2.msra.mxu0 0.0
        %7117 = vmatprep.subr.mxu0 0.0
        %7118 = vmatpush2.msra.mxu0 0.0
        %7119 = vmatprep.subr.mxu0 0.0
        %7120 = vmatpush2.msra.mxu0 0.0
        %7121 = vmatprep.subr.mxu0 0.0
        %7122 = vmatpush2.msra.mxu0 0.0
        %7123 = vmatprep.subr.mxu0 0.0
        %7124 = vmatpush2.msra.mxu0 0.0
        %7125 = vmatprep.subr.mxu0 0.0
        %7126 = vmatpush2.msra.mxu0 0.0
        %7127 = vmatprep.subr.mxu0 0.0
        %7128 = vmatpush2.msra.mxu0 0.0
        %7129 = vmatprep.subr.mxu0 0.0
        %7130 = vmatpush2.msra.mxu0 0.0
        %7131 = vmatprep.subr.mxu0 0.0
        %7132 = vmatpush2.msra.mxu0 0.0
        %7133 = vmatprep.subr.mxu0 0.0
        %7134 = vmatpush2.msra.mxu0 0.0
        %7135 = vmatprep.subr.mxu0 0.0
        %7136 = vmatpush2.msra.mxu0 0.0
        %7137 = vmatprep.subr.mxu0 0.0
        %7138 = vmatpush2.msra.mxu0 0.0
        %7139 = vmatprep.subr.mxu0 0.0
        %7140 = vmatpush2.msra.mxu0 0.0
        %7141 = vmatprep.mubr.f32.mxu0 0.0
        %v7142 = vand.u32 %v6785, 4294901760
        %v7143 = vsub.f32 %v6785, %v7142
        %v7144 = vand.u32 %v7143, 4294901760
        %7145 = vmatmul.mubr.f32.gmra.mxu0 %v7144
        %v7146 = vpop.f32.mrf.mxu0
        %v7147 = vadd.f32 %v7066, %v7146
        %v7148 = vpop.f32.mrf.mxu0
        %7149 = vdwg.mxu0
        %7150 = vmatprep.subr.mxu0 0.0
        %7151 = vmatpush1.msra.mxu0 0.0
        %7152 = vmatprep.subr.mxu0 0.0
        %7153 = vmatpush1.msra.mxu0 0.0
        %7154 = vmatprep.subr.mxu0 0.0
        %7155 = vmatpush1.msra.mxu0 0.0
        %7156 = vmatprep.subr.mxu0 0.0
        %7157 = vmatpush1.msra.mxu0 0.0
        %7158 = vmatprep.subr.mxu0 0.0
        %7159 = vmatpush1.msra.mxu0 0.0
        %7160 = vmatprep.subr.mxu0 0.0
        %7161 = vmatpush1.msra.mxu0 0.0
        %7162 = vmatprep.subr.mxu0 0.0
        %7163 = vmatpush1.msra.mxu0 0.0
        %7164 = vmatprep.subr.mxu0 0.0
        %7165 = vmatpush1.msra.mxu0 0.0
        %7166 = vmatprep.subr.mxu0 0.0
        %v7167 = vand.u32 %v3003, 4294901760
        %v7168 = vsub.f32 %v3003, %v7167
        %v7169 = vand.u32 %v7168, 4294901760
        %7170 = vmatpush1.msra.mxu0 %v7169
        %7171 = vmatprep.subr.mxu0 0.0
        %v7172 = vand.u32 %v3002, 4294901760
        %v7173 = vsub.f32 %v3002, %v7172
        %v7174 = vand.u32 %v7173, 4294901760
        %7175 = vmatpush1.msra.mxu0 %v7174
        %7176 = vmatprep.subr.mxu0 0.0
        %v7177 = vand.u32 %v3001, 4294901760
        %v7178 = vsub.f32 %v3001, %v7177
        %v7179 = vand.u32 %v7178, 4294901760
        %7180 = vmatpush1.msra.mxu0 %v7179
        %7181 = vmatprep.subr.mxu0 0.0
        %v7182 = vand.u32 %v3000, 4294901760
        %v7183 = vsub.f32 %v3000, %v7182
        %v7184 = vand.u32 %v7183, 4294901760
        %7185 = vmatpush1.msra.mxu0 %v7184
        %7186 = vmatprep.subr.mxu0 0.0
        %v7187 = vand.u32 %v2999, 4294901760
        %v7188 = vsub.f32 %v2999, %v7187
        %v7189 = vand.u32 %v7188, 4294901760
        %7190 = vmatpush1.msra.mxu0 %v7189
        %7191 = vmatprep.subr.mxu0 0.0
        %v7192 = vand.u32 %v2998, 4294901760
        %v7193 = vsub.f32 %v2998, %v7192
        %v7194 = vand.u32 %v7193, 4294901760
        %7195 = vmatpush1.msra.mxu0 %v7194
        %7196 = vmatprep.subr.mxu0 0.0
        %v7197 = vand.u32 %v2997, 4294901760
        %v7198 = vsub.f32 %v2997, %v7197
        %v7199 = vand.u32 %v7198, 4294901760
        %7200 = vmatpush1.msra.mxu0 %v7199
        %7201 = vmatprep.subr.mxu0 0.0
        %v7202 = vand.u32 %v2996, 4294901760
        %v7203 = vsub.f32 %v2996, %v7202
        %v7204 = vand.u32 %v7203, 4294901760
        %7205 = vmatpush1.msra.mxu0 %v7204
        %7206 = vmatprep.subr.mxu0 0.0
        %7207 = vmatpush2.msra.mxu0 0.0
        %7208 = vmatprep.subr.mxu0 0.0
        %7209 = vmatpush2.msra.mxu0 0.0
        %7210 = vmatprep.subr.mxu0 0.0
        %7211 = vmatpush2.msra.mxu0 0.0
        %7212 = vmatprep.subr.mxu0 0.0
        %7213 = vmatpush2.msra.mxu0 0.0
        %7214 = vmatprep.subr.mxu0 0.0
        %7215 = vmatpush2.msra.mxu0 0.0
        %7216 = vmatprep.subr.mxu0 0.0
        %7217 = vmatpush2.msra.mxu0 0.0
        %7218 = vmatprep.subr.mxu0 0.0
        %7219 = vmatpush2.msra.mxu0 0.0
        %7220 = vmatprep.subr.mxu0 0.0
        %7221 = vmatpush2.msra.mxu0 0.0
        %7222 = vmatprep.subr.mxu0 0.0
        %7223 = vmatpush2.msra.mxu0 0.0
        %7224 = vmatprep.subr.mxu0 0.0
        %7225 = vmatpush2.msra.mxu0 0.0
        %7226 = vmatprep.subr.mxu0 0.0
        %7227 = vmatpush2.msra.mxu0 0.0
        %7228 = vmatprep.subr.mxu0 0.0
        %7229 = vmatpush2.msra.mxu0 0.0
        %7230 = vmatprep.subr.mxu0 0.0
        %7231 = vmatpush2.msra.mxu0 0.0
        %7232 = vmatprep.subr.mxu0 0.0
        %7233 = vmatpush2.msra.mxu0 0.0
        %7234 = vmatprep.subr.mxu0 0.0
        %7235 = vmatpush2.msra.mxu0 0.0
        %7236 = vmatprep.subr.mxu0 0.0
        %7237 = vmatpush2.msra.mxu0 0.0
        %7238 = vmatprep.mubr.f32.mxu0 0.0
        %v7239 = vand.u32 %v6785, 4294901760
        %7240 = vmatmul.mubr.f32.gmra.mxu0 %v7239
        %v7241 = vpop.f32.mrf.mxu0
        %v7242 = vadd.f32 %v7147, %v7241
        %v7243 = vpop.f32.mrf.mxu0
        %7244 = vdwg.mxu0
        %7245 = vmatprep.subr.mxu0 0.0
        %7246 = vmatpush1.msra.mxu0 0.0
        %7247 = vmatprep.subr.mxu0 0.0
        %7248 = vmatpush1.msra.mxu0 0.0
        %7249 = vmatprep.subr.mxu0 0.0
        %7250 = vmatpush1.msra.mxu0 0.0
        %7251 = vmatprep.subr.mxu0 0.0
        %7252 = vmatpush1.msra.mxu0 0.0
        %7253 = vmatprep.subr.mxu0 0.0
        %7254 = vmatpush1.msra.mxu0 0.0
        %7255 = vmatprep.subr.mxu0 0.0
        %7256 = vmatpush1.msra.mxu0 0.0
        %7257 = vmatprep.subr.mxu0 0.0
        %7258 = vmatpush1.msra.mxu0 0.0
        %7259 = vmatprep.subr.mxu0 0.0
        %7260 = vmatpush1.msra.mxu0 0.0
        %7261 = vmatprep.subr.mxu0 0.0
        %v7262 = vand.u32 %v3003, 4294901760
        %7263 = vmatpush1.msra.mxu0 %v7262
        %7264 = vmatprep.subr.mxu0 0.0
        %v7265 = vand.u32 %v3002, 4294901760
        %7266 = vmatpush1.msra.mxu0 %v7265
        %7267 = vmatprep.subr.mxu0 0.0
        %v7268 = vand.u32 %v3001, 4294901760
        %7269 = vmatpush1.msra.mxu0 %v7268
        %7270 = vmatprep.subr.mxu0 0.0
        %v7271 = vand.u32 %v3000, 4294901760
        %7272 = vmatpush1.msra.mxu0 %v7271
        %7273 = vmatprep.subr.mxu0 0.0
        %v7274 = vand.u32 %v2999, 4294901760
        %7275 = vmatpush1.msra.mxu0 %v7274
        %7276 = vmatprep.subr.mxu0 0.0
        %v7277 = vand.u32 %v2998, 4294901760
        %7278 = vmatpush1.msra.mxu0 %v7277
        %7279 = vmatprep.subr.mxu0 0.0
        %v7280 = vand.u32 %v2997, 4294901760
        %7281 = vmatpush1.msra.mxu0 %v7280
        %7282 = vmatprep.subr.mxu0 0.0
        %v7283 = vand.u32 %v2996, 4294901760
        %7284 = vmatpush1.msra.mxu0 %v7283
        %7285 = vmatprep.subr.mxu0 0.0
        %7286 = vmatpush2.msra.mxu0 0.0
        %7287 = vmatprep.subr.mxu0 0.0
        %7288 = vmatpush2.msra.mxu0 0.0
        %7289 = vmatprep.subr.mxu0 0.0
        %7290 = vmatpush2.msra.mxu0 0.0
        %7291 = vmatprep.subr.mxu0 0.0
        %7292 = vmatpush2.msra.mxu0 0.0
        %7293 = vmatprep.subr.mxu0 0.0
        %7294 = vmatpush2.msra.mxu0 0.0
        %7295 = vmatprep.subr.mxu0 0.0
        %7296 = vmatpush2.msra.mxu0 0.0
        %7297 = vmatprep.subr.mxu0 0.0
        %7298 = vmatpush2.msra.mxu0 0.0
        %7299 = vmatprep.subr.mxu0 0.0
        %7300 = vmatpush2.msra.mxu0 0.0
        %7301 = vmatprep.subr.mxu0 0.0
        %7302 = vmatpush2.msra.mxu0 0.0
        %7303 = vmatprep.subr.mxu0 0.0
        %7304 = vmatpush2.msra.mxu0 0.0
        %7305 = vmatprep.subr.mxu0 0.0
        %7306 = vmatpush2.msra.mxu0 0.0
        %7307 = vmatprep.subr.mxu0 0.0
        %7308 = vmatpush2.msra.mxu0 0.0
        %7309 = vmatprep.subr.mxu0 0.0
        %7310 = vmatpush2.msra.mxu0 0.0
        %7311 = vmatprep.subr.mxu0 0.0
        %7312 = vmatpush2.msra.mxu0 0.0
        %7313 = vmatprep.subr.mxu0 0.0
        %7314 = vmatpush2.msra.mxu0 0.0
        %7315 = vmatprep.subr.mxu0 0.0
        %7316 = vmatpush2.msra.mxu0 0.0
        %7317 = vmatprep.mubr.f32.mxu0 0.0
        %v7318 = vand.u32 %v6785, 4294901760
        %7319 = vmatmul.mubr.f32.gmra.mxu0 %v7318
        %v7320 = vpop.f32.mrf.mxu0
        %v7321 = vadd.f32 %v7242, %v7320
        %v7322 = vpop.f32.mrf.mxu0
        %7323 = vdwg.mxu0
        %v7324 = vsel %vm632, %v3541, 0.0
        %v7325 = vsel %vm632, %v4081, 0.0
        %v7326 = vadd.f32 %v7324, %v7325
        %v7327 = vsel %vm632, %v4621, 0.0
        %v7328 = vadd.f32 %v7326, %v7327
        %v7329 = vsel %vm632, %v5161, 0.0
        %v7330 = vadd.f32 %v7328, %v7329
        %v7331 = vsel %vm632, %v5701, 0.0
        %v7332 = vadd.f32 %v7330, %v7331
        %v7333 = vsel %vm632, %v6241, 0.0
        %v7334 = vadd.f32 %v7332, %v7333
        %v7335 = vsel %vm632, %v6781, 0.0
        %v7336 = vadd.f32 %v7334, %v7335
        %v7337 = vsel %vm632, %v7321, 0.0
        %v7338 = vadd.f32 %v7336, %v7337
        %v7339 = vld [vmem:[%s7] sm:$0x1]
        %v7341 = vlaneseq
        %v7342 = vshrl.u32 %v7341, 7
        %v7343 = vsub.s32 0, %v7342
        %v7344 = vrot.slane %v7339, %v7343
        %v7346 = vadd.f32 %v7338, %v7344
        %v7347 = vld [vmem:[%s3] sm:$0xff]
        %v7348 = vadd.f32 %v7347, %v7346
        %v7349 = vld [vmem:[%s8] sm:$0x1]
        %v7350 = vld [vmem:[%s9] sm:$0x1]
        %v7351 = vsel %vm632, %v7348, 0.0
        %7352 = vadd.xlane.f32.xlu0 %v7351
        %v7353 = vpop.xlane.xlu0 %7352
        %v7354 = vrcp.pop 64.0
        %v7355 = vmul.f32 %v7353, %v7354
        %v7356 = vsub.f32 %v7348, %v7355
        %v7357 = vmul.f32 %v7356, %v7356
        %v7358 = vsel %vm632, %v7357, 0.0
        %7359 = vadd.xlane.f32.xlu0 %v7358
        %v7360 = vpop.xlane.xlu0 %7359
        %v7361 = vmul.f32 %v7360, %v7354
        %v7362 = vadd.f32 %v7361, 1e-05
        %v7363 = vrsqrt.pop %v7362
        %v7364 = vmul.f32 %v7356, %v7363
        %v7366 = vlaneseq
        %v7367 = vshrl.u32 %v7366, 7
        %v7368 = vsub.s32 0, %v7367
        %v7369 = vrot.slane %v7349, %v7368
        %v7371 = vmul.f32 %v7364, %v7369
        %v7373 = vlaneseq
        %v7374 = vshrl.u32 %v7373, 7
        %v7375 = vsub.s32 0, %v7374
        %v7376 = vrot.slane %v7350, %v7375
        %v7378 = vadd.f32 %v7371, %v7376
        %v7379 = vld [vmem:[%s12] sm:$0xff]
        %v7380 = vld [vmem:[%s12 + $0x8] sm:$0xff]
        %v7381 = vld [vmem:[%s12 + $0x10] sm:$0xff]
        %v7382 = vld [vmem:[%s12 + $0x18] sm:$0xff]
        %v7383 = vld [vmem:[%s12 + $0x20] sm:$0xff]
        %v7384 = vld [vmem:[%s12 + $0x28] sm:$0xff]
        %v7385 = vld [vmem:[%s12 + $0x30] sm:$0xff]
        %v7386 = vld [vmem:[%s12 + $0x38] sm:$0xff]
        %v7387 = vld [vmem:[%s12 + $0x40] sm:$0xff]
        %v7388 = vld [vmem:[%s12 + $0x48] sm:$0xff]
        %v7389 = vld [vmem:[%s12 + $0x50] sm:$0xff]
        %v7390 = vld [vmem:[%s12 + $0x58] sm:$0xff]
        %v7391 = vld [vmem:[%s12 + $0x60] sm:$0xff]
        %v7392 = vld [vmem:[%s12 + $0x68] sm:$0xff]
        %v7393 = vld [vmem:[%s12 + $0x70] sm:$0xff]
        %v7394 = vld [vmem:[%s12 + $0x78] sm:$0xff]
        %v7395 = vld [vmem:[%s13] sm:$0x3]
        %v7397 = vlaneseq
        %v7398 = vshrl.u32 %v7397, 7
        %v7399 = vsub.s32 0, %v7398
        %v7400 = vrot.slane %v7395, %v7399
        %v7401 = vlaneseq
        %v7402 = vshrl.u32 %v7401, 7
        %v7403 = vsub.s32 1, %v7402
        %v7404 = vrot.slane %v7395, %v7403
        %v7408 = vsel %vm632, %v7378, 0
        %7410 = vmatprep.subr.mxu0 0.0
        %7411 = vmatpush1.msra.mxu0 0.0
        %7412 = vmatprep.subr.mxu0 0.0
        %7413 = vmatpush1.msra.mxu0 0.0
        %7414 = vmatprep.subr.mxu0 0.0
        %7415 = vmatpush1.msra.mxu0 0.0
        %7416 = vmatprep.subr.mxu0 0.0
        %7417 = vmatpush1.msra.mxu0 0.0
        %7418 = vmatprep.subr.mxu0 0.0
        %7419 = vmatpush1.msra.mxu0 0.0
        %7420 = vmatprep.subr.mxu0 0.0
        %7421 = vmatpush1.msra.mxu0 0.0
        %7422 = vmatprep.subr.mxu0 0.0
        %7423 = vmatpush1.msra.mxu0 0.0
        %7424 = vmatprep.subr.mxu0 0.0
        %7425 = vmatpush1.msra.mxu0 0.0
        %v7426 = vand.u32 %v7394, 4294901760
        %7427 = vmatprep.subr.mxu0 %v7426
        %v7428 = vand.u32 %v7393, 4294901760
        %7429 = vmatpush1.msra.mxu0 %v7428
        %v7430 = vand.u32 %v7392, 4294901760
        %7431 = vmatprep.subr.mxu0 %v7430
        %v7432 = vand.u32 %v7391, 4294901760
        %7433 = vmatpush1.msra.mxu0 %v7432
        %v7434 = vand.u32 %v7390, 4294901760
        %7435 = vmatprep.subr.mxu0 %v7434
        %v7436 = vand.u32 %v7389, 4294901760
        %7437 = vmatpush1.msra.mxu0 %v7436
        %v7438 = vand.u32 %v7388, 4294901760
        %7439 = vmatprep.subr.mxu0 %v7438
        %v7440 = vand.u32 %v7387, 4294901760
        %7441 = vmatpush1.msra.mxu0 %v7440
        %v7442 = vand.u32 %v7386, 4294901760
        %7443 = vmatprep.subr.mxu0 %v7442
        %v7444 = vand.u32 %v7385, 4294901760
        %7445 = vmatpush1.msra.mxu0 %v7444
        %v7446 = vand.u32 %v7384, 4294901760
        %7447 = vmatprep.subr.mxu0 %v7446
        %v7448 = vand.u32 %v7383, 4294901760
        %7449 = vmatpush1.msra.mxu0 %v7448
        %v7450 = vand.u32 %v7382, 4294901760
        %7451 = vmatprep.subr.mxu0 %v7450
        %v7452 = vand.u32 %v7381, 4294901760
        %7453 = vmatpush1.msra.mxu0 %v7452
        %v7454 = vand.u32 %v7380, 4294901760
        %7455 = vmatprep.subr.mxu0 %v7454
        %v7456 = vand.u32 %v7379, 4294901760
        %7457 = vmatpush1.msra.mxu0 %v7456
        %7458 = vmatprep.subr.mxu0 0.0
        %7459 = vmatpush2.msra.mxu0 0.0
        %7460 = vmatprep.subr.mxu0 0.0
        %7461 = vmatpush2.msra.mxu0 0.0
        %7462 = vmatprep.subr.mxu0 0.0
        %7463 = vmatpush2.msra.mxu0 0.0
        %7464 = vmatprep.subr.mxu0 0.0
        %7465 = vmatpush2.msra.mxu0 0.0
        %7466 = vmatprep.subr.mxu0 0.0
        %7467 = vmatpush2.msra.mxu0 0.0
        %7468 = vmatprep.subr.mxu0 0.0
        %7469 = vmatpush2.msra.mxu0 0.0
        %7470 = vmatprep.subr.mxu0 0.0
        %7471 = vmatpush2.msra.mxu0 0.0
        %7472 = vmatprep.subr.mxu0 0.0
        %7473 = vmatpush2.msra.mxu0 0.0
        %7474 = vmatprep.subr.mxu0 0.0
        %7475 = vmatpush2.msra.mxu0 0.0
        %7476 = vmatprep.subr.mxu0 0.0
        %7477 = vmatpush2.msra.mxu0 0.0
        %7478 = vmatprep.subr.mxu0 0.0
        %7479 = vmatpush2.msra.mxu0 0.0
        %7480 = vmatprep.subr.mxu0 0.0
        %7481 = vmatpush2.msra.mxu0 0.0
        %7482 = vmatprep.subr.mxu0 0.0
        %7483 = vmatpush2.msra.mxu0 0.0
        %7484 = vmatprep.subr.mxu0 0.0
        %7485 = vmatpush2.msra.mxu0 0.0
        %7486 = vmatprep.subr.mxu0 0.0
        %7487 = vmatpush2.msra.mxu0 0.0
        %7488 = vmatprep.subr.mxu0 0.0
        %7489 = vmatpush2.msra.mxu0 0.0
        %7490 = vmatprep.mubr.f32.mxu0 0.0
        %v7491 = vand.u32 %v7408, 4294901760
        %v7492 = vsub.f32 %v7408, %v7491
        %v7493 = vand.u32 %v7492, 4294901760
        %v7494 = vsub.f32 %v7492, %v7493
        %v7495 = vand.u32 %v7494, 4294901760
        %7496 = vmatmul.mubr.f32.gmra.mxu0 %v7495
        %v7497 = vpop.f32.mrf.mxu0
        %v7498 = vadd.f32 %v7400, %v7497
        %v7499 = vpop.f32.mrf.mxu0
        %v7500 = vadd.f32 %v7404, %v7499
        %7501 = vdwg.mxu0
        %7502 = vmatprep.subr.mxu0 0.0
        %7503 = vmatpush1.msra.mxu0 0.0
        %7504 = vmatprep.subr.mxu0 0.0
        %7505 = vmatpush1.msra.mxu0 0.0
        %7506 = vmatprep.subr.mxu0 0.0
        %7507 = vmatpush1.msra.mxu0 0.0
        %7508 = vmatprep.subr.mxu0 0.0
        %7509 = vmatpush1.msra.mxu0 0.0
        %7510 = vmatprep.subr.mxu0 0.0
        %7511 = vmatpush1.msra.mxu0 0.0
        %7512 = vmatprep.subr.mxu0 0.0
        %7513 = vmatpush1.msra.mxu0 0.0
        %7514 = vmatprep.subr.mxu0 0.0
        %7515 = vmatpush1.msra.mxu0 0.0
        %7516 = vmatprep.subr.mxu0 0.0
        %7517 = vmatpush1.msra.mxu0 0.0
        %v7518 = vand.u32 %v7394, 4294901760
        %v7519 = vsub.f32 %v7394, %v7518
        %v7520 = vand.u32 %v7519, 4294901760
        %v7521 = vsub.f32 %v7519, %v7520
        %v7522 = vand.u32 %v7521, 4294901760
        %7523 = vmatprep.subr.mxu0 %v7522
        %v7524 = vand.u32 %v7393, 4294901760
        %v7525 = vsub.f32 %v7393, %v7524
        %v7526 = vand.u32 %v7525, 4294901760
        %v7527 = vsub.f32 %v7525, %v7526
        %v7528 = vand.u32 %v7527, 4294901760
        %7529 = vmatpush1.msra.mxu0 %v7528
        %v7530 = vand.u32 %v7392, 4294901760
        %v7531 = vsub.f32 %v7392, %v7530
        %v7532 = vand.u32 %v7531, 4294901760
        %v7533 = vsub.f32 %v7531, %v7532
        %v7534 = vand.u32 %v7533, 4294901760
        %7535 = vmatprep.subr.mxu0 %v7534
        %v7536 = vand.u32 %v7391, 4294901760
        %v7537 = vsub.f32 %v7391, %v7536
        %v7538 = vand.u32 %v7537, 4294901760
        %v7539 = vsub.f32 %v7537, %v7538
        %v7540 = vand.u32 %v7539, 4294901760
        %7541 = vmatpush1.msra.mxu0 %v7540
        %v7542 = vand.u32 %v7390, 4294901760
        %v7543 = vsub.f32 %v7390, %v7542
        %v7544 = vand.u32 %v7543, 4294901760
        %v7545 = vsub.f32 %v7543, %v7544
        %v7546 = vand.u32 %v7545, 4294901760
        %7547 = vmatprep.subr.mxu0 %v7546
        %v7548 = vand.u32 %v7389, 4294901760
        %v7549 = vsub.f32 %v7389, %v7548
        %v7550 = vand.u32 %v7549, 4294901760
        %v7551 = vsub.f32 %v7549, %v7550
        %v7552 = vand.u32 %v7551, 4294901760
        %7553 = vmatpush1.msra.mxu0 %v7552
        %v7554 = vand.u32 %v7388, 4294901760
        %v7555 = vsub.f32 %v7388, %v7554
        %v7556 = vand.u32 %v7555, 4294901760
        %v7557 = vsub.f32 %v7555, %v7556
        %v7558 = vand.u32 %v7557, 4294901760
        %7559 = vmatprep.subr.mxu0 %v7558
        %v7560 = vand.u32 %v7387, 4294901760
        %v7561 = vsub.f32 %v7387, %v7560
        %v7562 = vand.u32 %v7561, 4294901760
        %v7563 = vsub.f32 %v7561, %v7562
        %v7564 = vand.u32 %v7563, 4294901760
        %7565 = vmatpush1.msra.mxu0 %v7564
        %v7566 = vand.u32 %v7386, 4294901760
        %v7567 = vsub.f32 %v7386, %v7566
        %v7568 = vand.u32 %v7567, 4294901760
        %v7569 = vsub.f32 %v7567, %v7568
        %v7570 = vand.u32 %v7569, 4294901760
        %7571 = vmatprep.subr.mxu0 %v7570
        %v7572 = vand.u32 %v7385, 4294901760
        %v7573 = vsub.f32 %v7385, %v7572
        %v7574 = vand.u32 %v7573, 4294901760
        %v7575 = vsub.f32 %v7573, %v7574
        %v7576 = vand.u32 %v7575, 4294901760
        %7577 = vmatpush1.msra.mxu0 %v7576
        %v7578 = vand.u32 %v7384, 4294901760
        %v7579 = vsub.f32 %v7384, %v7578
        %v7580 = vand.u32 %v7579, 4294901760
        %v7581 = vsub.f32 %v7579, %v7580
        %v7582 = vand.u32 %v7581, 4294901760
        %7583 = vmatprep.subr.mxu0 %v7582
        %v7584 = vand.u32 %v7383, 4294901760
        %v7585 = vsub.f32 %v7383, %v7584
        %v7586 = vand.u32 %v7585, 4294901760
        %v7587 = vsub.f32 %v7585, %v7586
        %v7588 = vand.u32 %v7587, 4294901760
        %7589 = vmatpush1.msra.mxu0 %v7588
        %v7590 = vand.u32 %v7382, 4294901760
        %v7591 = vsub.f32 %v7382, %v7590
        %v7592 = vand.u32 %v7591, 4294901760
        %v7593 = vsub.f32 %v7591, %v7592
        %v7594 = vand.u32 %v7593, 4294901760
        %7595 = vmatprep.subr.mxu0 %v7594
        %v7596 = vand.u32 %v7381, 4294901760
        %v7597 = vsub.f32 %v7381, %v7596
        %v7598 = vand.u32 %v7597, 4294901760
        %v7599 = vsub.f32 %v7597, %v7598
        %v7600 = vand.u32 %v7599, 4294901760
        %7601 = vmatpush1.msra.mxu0 %v7600
        %v7602 = vand.u32 %v7380, 4294901760
        %v7603 = vsub.f32 %v7380, %v7602
        %v7604 = vand.u32 %v7603, 4294901760
        %v7605 = vsub.f32 %v7603, %v7604
        %v7606 = vand.u32 %v7605, 4294901760
        %7607 = vmatprep.subr.mxu0 %v7606
        %v7608 = vand.u32 %v7379, 4294901760
        %v7609 = vsub.f32 %v7379, %v7608
        %v7610 = vand.u32 %v7609, 4294901760
        %v7611 = vsub.f32 %v7609, %v7610
        %v7612 = vand.u32 %v7611, 4294901760
        %7613 = vmatpush1.msra.mxu0 %v7612
        %7614 = vmatprep.subr.mxu0 0.0
        %7615 = vmatpush2.msra.mxu0 0.0
        %7616 = vmatprep.subr.mxu0 0.0
        %7617 = vmatpush2.msra.mxu0 0.0
        %7618 = vmatprep.subr.mxu0 0.0
        %7619 = vmatpush2.msra.mxu0 0.0
        %7620 = vmatprep.subr.mxu0 0.0
        %7621 = vmatpush2.msra.mxu0 0.0
        %7622 = vmatprep.subr.mxu0 0.0
        %7623 = vmatpush2.msra.mxu0 0.0
        %7624 = vmatprep.subr.mxu0 0.0
        %7625 = vmatpush2.msra.mxu0 0.0
        %7626 = vmatprep.subr.mxu0 0.0
        %7627 = vmatpush2.msra.mxu0 0.0
        %7628 = vmatprep.subr.mxu0 0.0
        %7629 = vmatpush2.msra.mxu0 0.0
        %7630 = vmatprep.subr.mxu0 0.0
        %7631 = vmatpush2.msra.mxu0 0.0
        %7632 = vmatprep.subr.mxu0 0.0
        %7633 = vmatpush2.msra.mxu0 0.0
        %7634 = vmatprep.subr.mxu0 0.0
        %7635 = vmatpush2.msra.mxu0 0.0
        %7636 = vmatprep.subr.mxu0 0.0
        %7637 = vmatpush2.msra.mxu0 0.0
        %7638 = vmatprep.subr.mxu0 0.0
        %7639 = vmatpush2.msra.mxu0 0.0
        %7640 = vmatprep.subr.mxu0 0.0
        %7641 = vmatpush2.msra.mxu0 0.0
        %7642 = vmatprep.subr.mxu0 0.0
        %7643 = vmatpush2.msra.mxu0 0.0
        %7644 = vmatprep.subr.mxu0 0.0
        %7645 = vmatpush2.msra.mxu0 0.0
        %7646 = vmatprep.mubr.f32.mxu0 0.0
        %v7647 = vand.u32 %v7408, 4294901760
        %7648 = vmatmul.mubr.f32.gmra.mxu0 %v7647
        %v7649 = vpop.f32.mrf.mxu0
        %v7650 = vadd.f32 %v7498, %v7649
        %v7651 = vpop.f32.mrf.mxu0
        %v7652 = vadd.f32 %v7500, %v7651
        %7653 = vdwg.mxu0
        %7654 = vmatprep.subr.mxu0 0.0
        %7655 = vmatpush1.msra.mxu0 0.0
        %7656 = vmatprep.subr.mxu0 0.0
        %7657 = vmatpush1.msra.mxu0 0.0
        %7658 = vmatprep.subr.mxu0 0.0
        %7659 = vmatpush1.msra.mxu0 0.0
        %7660 = vmatprep.subr.mxu0 0.0
        %7661 = vmatpush1.msra.mxu0 0.0
        %7662 = vmatprep.subr.mxu0 0.0
        %7663 = vmatpush1.msra.mxu0 0.0
        %7664 = vmatprep.subr.mxu0 0.0
        %7665 = vmatpush1.msra.mxu0 0.0
        %7666 = vmatprep.subr.mxu0 0.0
        %7667 = vmatpush1.msra.mxu0 0.0
        %7668 = vmatprep.subr.mxu0 0.0
        %7669 = vmatpush1.msra.mxu0 0.0
        %v7670 = vand.u32 %v7394, 4294901760
        %v7671 = vsub.f32 %v7394, %v7670
        %7672 = vmatprep.subr.mxu0 %v7671
        %v7673 = vand.u32 %v7393, 4294901760
        %v7674 = vsub.f32 %v7393, %v7673
        %7675 = vmatpush1.msra.mxu0 %v7674
        %v7676 = vand.u32 %v7392, 4294901760
        %v7677 = vsub.f32 %v7392, %v7676
        %7678 = vmatprep.subr.mxu0 %v7677
        %v7679 = vand.u32 %v7391, 4294901760
        %v7680 = vsub.f32 %v7391, %v7679
        %7681 = vmatpush1.msra.mxu0 %v7680
        %v7682 = vand.u32 %v7390, 4294901760
        %v7683 = vsub.f32 %v7390, %v7682
        %7684 = vmatprep.subr.mxu0 %v7683
        %v7685 = vand.u32 %v7389, 4294901760
        %v7686 = vsub.f32 %v7389, %v7685
        %7687 = vmatpush1.msra.mxu0 %v7686
        %v7688 = vand.u32 %v7388, 4294901760
        %v7689 = vsub.f32 %v7388, %v7688
        %7690 = vmatprep.subr.mxu0 %v7689
        %v7691 = vand.u32 %v7387, 4294901760
        %v7692 = vsub.f32 %v7387, %v7691
        %7693 = vmatpush1.msra.mxu0 %v7692
        %v7694 = vand.u32 %v7386, 4294901760
        %v7695 = vsub.f32 %v7386, %v7694
        %7696 = vmatprep.subr.mxu0 %v7695
        %v7697 = vand.u32 %v7385, 4294901760
        %v7698 = vsub.f32 %v7385, %v7697
        %7699 = vmatpush1.msra.mxu0 %v7698
        %v7700 = vand.u32 %v7384, 4294901760
        %v7701 = vsub.f32 %v7384, %v7700
        %7702 = vmatprep.subr.mxu0 %v7701
        %v7703 = vand.u32 %v7383, 4294901760
        %v7704 = vsub.f32 %v7383, %v7703
        %7705 = vmatpush1.msra.mxu0 %v7704
        %v7706 = vand.u32 %v7382, 4294901760
        %v7707 = vsub.f32 %v7382, %v7706
        %7708 = vmatprep.subr.mxu0 %v7707
        %v7709 = vand.u32 %v7381, 4294901760
        %v7710 = vsub.f32 %v7381, %v7709
        %7711 = vmatpush1.msra.mxu0 %v7710
        %v7712 = vand.u32 %v7380, 4294901760
        %v7713 = vsub.f32 %v7380, %v7712
        %7714 = vmatprep.subr.mxu0 %v7713
        %v7715 = vand.u32 %v7379, 4294901760
        %v7716 = vsub.f32 %v7379, %v7715
        %7717 = vmatpush1.msra.mxu0 %v7716
        %7718 = vmatprep.subr.mxu0 0.0
        %7719 = vmatpush2.msra.mxu0 0.0
        %7720 = vmatprep.subr.mxu0 0.0
        %7721 = vmatpush2.msra.mxu0 0.0
        %7722 = vmatprep.subr.mxu0 0.0
        %7723 = vmatpush2.msra.mxu0 0.0
        %7724 = vmatprep.subr.mxu0 0.0
        %7725 = vmatpush2.msra.mxu0 0.0
        %7726 = vmatprep.subr.mxu0 0.0
        %7727 = vmatpush2.msra.mxu0 0.0
        %7728 = vmatprep.subr.mxu0 0.0
        %7729 = vmatpush2.msra.mxu0 0.0
        %7730 = vmatprep.subr.mxu0 0.0
        %7731 = vmatpush2.msra.mxu0 0.0
        %7732 = vmatprep.subr.mxu0 0.0
        %7733 = vmatpush2.msra.mxu0 0.0
        %7734 = vmatprep.subr.mxu0 0.0
        %7735 = vmatpush2.msra.mxu0 0.0
        %7736 = vmatprep.subr.mxu0 0.0
        %7737 = vmatpush2.msra.mxu0 0.0
        %7738 = vmatprep.subr.mxu0 0.0
        %7739 = vmatpush2.msra.mxu0 0.0
        %7740 = vmatprep.subr.mxu0 0.0
        %7741 = vmatpush2.msra.mxu0 0.0
        %7742 = vmatprep.subr.mxu0 0.0
        %7743 = vmatpush2.msra.mxu0 0.0
        %7744 = vmatprep.subr.mxu0 0.0
        %7745 = vmatpush2.msra.mxu0 0.0
        %7746 = vmatprep.subr.mxu0 0.0
        %7747 = vmatpush2.msra.mxu0 0.0
        %7748 = vmatprep.subr.mxu0 0.0
        %7749 = vmatpush2.msra.mxu0 0.0
        %7750 = vmatprep.mubr.f32.mxu0 0.0
        %v7751 = vand.u32 %v7408, 4294901760
        %v7752 = vsub.f32 %v7408, %v7751
        %7753 = vmatmul.mubr.f32.gmra.mxu0 %v7752
        %v7754 = vpop.f32.mrf.mxu0
        %v7755 = vadd.f32 %v7650, %v7754
        %v7756 = vpop.f32.mrf.mxu0
        %v7757 = vadd.f32 %v7652, %v7756
        %7758 = vdwg.mxu0
        %7759 = vmatprep.subr.mxu0 0.0
        %7760 = vmatpush1.msra.mxu0 0.0
        %7761 = vmatprep.subr.mxu0 0.0
        %7762 = vmatpush1.msra.mxu0 0.0
        %7763 = vmatprep.subr.mxu0 0.0
        %7764 = vmatpush1.msra.mxu0 0.0
        %7765 = vmatprep.subr.mxu0 0.0
        %7766 = vmatpush1.msra.mxu0 0.0
        %7767 = vmatprep.subr.mxu0 0.0
        %7768 = vmatpush1.msra.mxu0 0.0
        %7769 = vmatprep.subr.mxu0 0.0
        %7770 = vmatpush1.msra.mxu0 0.0
        %7771 = vmatprep.subr.mxu0 0.0
        %7772 = vmatpush1.msra.mxu0 0.0
        %7773 = vmatprep.subr.mxu0 0.0
        %7774 = vmatpush1.msra.mxu0 0.0
        %v7775 = vand.u32 %v7394, 4294901760
        %7776 = vmatprep.subr.mxu0 %v7775
        %v7777 = vand.u32 %v7393, 4294901760
        %7778 = vmatpush1.msra.mxu0 %v7777
        %v7779 = vand.u32 %v7392, 4294901760
        %7780 = vmatprep.subr.mxu0 %v7779
        %v7781 = vand.u32 %v7391, 4294901760
        %7782 = vmatpush1.msra.mxu0 %v7781
        %v7783 = vand.u32 %v7390, 4294901760
        %7784 = vmatprep.subr.mxu0 %v7783
        %v7785 = vand.u32 %v7389, 4294901760
        %7786 = vmatpush1.msra.mxu0 %v7785
        %v7787 = vand.u32 %v7388, 4294901760
        %7788 = vmatprep.subr.mxu0 %v7787
        %v7789 = vand.u32 %v7387, 4294901760
        %7790 = vmatpush1.msra.mxu0 %v7789
        %v7791 = vand.u32 %v7386, 4294901760
        %7792 = vmatprep.subr.mxu0 %v7791
        %v7793 = vand.u32 %v7385, 4294901760
        %7794 = vmatpush1.msra.mxu0 %v7793
        %v7795 = vand.u32 %v7384, 4294901760
        %7796 = vmatprep.subr.mxu0 %v7795
        %v7797 = vand.u32 %v7383, 4294901760
        %7798 = vmatpush1.msra.mxu0 %v7797
        %v7799 = vand.u32 %v7382, 4294901760
        %7800 = vmatprep.subr.mxu0 %v7799
        %v7801 = vand.u32 %v7381, 4294901760
        %7802 = vmatpush1.msra.mxu0 %v7801
        %v7803 = vand.u32 %v7380, 4294901760
        %7804 = vmatprep.subr.mxu0 %v7803
        %v7805 = vand.u32 %v7379, 4294901760
        %7806 = vmatpush1.msra.mxu0 %v7805
        %7807 = vmatprep.subr.mxu0 0.0
        %7808 = vmatpush2.msra.mxu0 0.0
        %7809 = vmatprep.subr.mxu0 0.0
        %7810 = vmatpush2.msra.mxu0 0.0
        %7811 = vmatprep.subr.mxu0 0.0
        %7812 = vmatpush2.msra.mxu0 0.0
        %7813 = vmatprep.subr.mxu0 0.0
        %7814 = vmatpush2.msra.mxu0 0.0
        %7815 = vmatprep.subr.mxu0 0.0
        %7816 = vmatpush2.msra.mxu0 0.0
        %7817 = vmatprep.subr.mxu0 0.0
        %7818 = vmatpush2.msra.mxu0 0.0
        %7819 = vmatprep.subr.mxu0 0.0
        %7820 = vmatpush2.msra.mxu0 0.0
        %7821 = vmatprep.subr.mxu0 0.0
        %7822 = vmatpush2.msra.mxu0 0.0
        %7823 = vmatprep.subr.mxu0 0.0
        %7824 = vmatpush2.msra.mxu0 0.0
        %7825 = vmatprep.subr.mxu0 0.0
        %7826 = vmatpush2.msra.mxu0 0.0
        %7827 = vmatprep.subr.mxu0 0.0
        %7828 = vmatpush2.msra.mxu0 0.0
        %7829 = vmatprep.subr.mxu0 0.0
        %7830 = vmatpush2.msra.mxu0 0.0
        %7831 = vmatprep.subr.mxu0 0.0
        %7832 = vmatpush2.msra.mxu0 0.0
        %7833 = vmatprep.subr.mxu0 0.0
        %7834 = vmatpush2.msra.mxu0 0.0
        %7835 = vmatprep.subr.mxu0 0.0
        %7836 = vmatpush2.msra.mxu0 0.0
        %7837 = vmatprep.subr.mxu0 0.0
        %7838 = vmatpush2.msra.mxu0 0.0
        %7839 = vmatprep.mubr.f32.mxu0 0.0
        %v7840 = vand.u32 %v7408, 4294901760
        %v7841 = vsub.f32 %v7408, %v7840
        %v7842 = vand.u32 %v7841, 4294901760
        %7843 = vmatmul.mubr.f32.gmra.mxu0 %v7842
        %v7844 = vpop.f32.mrf.mxu0
        %v7845 = vadd.f32 %v7755, %v7844
        %v7846 = vpop.f32.mrf.mxu0
        %v7847 = vadd.f32 %v7757, %v7846
        %7848 = vdwg.mxu0
        %7849 = vmatprep.subr.mxu0 0.0
        %7850 = vmatpush1.msra.mxu0 0.0
        %7851 = vmatprep.subr.mxu0 0.0
        %7852 = vmatpush1.msra.mxu0 0.0
        %7853 = vmatprep.subr.mxu0 0.0
        %7854 = vmatpush1.msra.mxu0 0.0
        %7855 = vmatprep.subr.mxu0 0.0
        %7856 = vmatpush1.msra.mxu0 0.0
        %7857 = vmatprep.subr.mxu0 0.0
        %7858 = vmatpush1.msra.mxu0 0.0
        %7859 = vmatprep.subr.mxu0 0.0
        %7860 = vmatpush1.msra.mxu0 0.0
        %7861 = vmatprep.subr.mxu0 0.0
        %7862 = vmatpush1.msra.mxu0 0.0
        %7863 = vmatprep.subr.mxu0 0.0
        %7864 = vmatpush1.msra.mxu0 0.0
        %v7865 = vand.u32 %v7394, 4294901760
        %v7866 = vsub.f32 %v7394, %v7865
        %v7867 = vand.u32 %v7866, 4294901760
        %7868 = vmatprep.subr.mxu0 %v7867
        %v7869 = vand.u32 %v7393, 4294901760
        %v7870 = vsub.f32 %v7393, %v7869
        %v7871 = vand.u32 %v7870, 4294901760
        %7872 = vmatpush1.msra.mxu0 %v7871
        %v7873 = vand.u32 %v7392, 4294901760
        %v7874 = vsub.f32 %v7392, %v7873
        %v7875 = vand.u32 %v7874, 4294901760
        %7876 = vmatprep.subr.mxu0 %v7875
        %v7877 = vand.u32 %v7391, 4294901760
        %v7878 = vsub.f32 %v7391, %v7877
        %v7879 = vand.u32 %v7878, 4294901760
        %7880 = vmatpush1.msra.mxu0 %v7879
        %v7881 = vand.u32 %v7390, 4294901760
        %v7882 = vsub.f32 %v7390, %v7881
        %v7883 = vand.u32 %v7882, 4294901760
        %7884 = vmatprep.subr.mxu0 %v7883
        %v7885 = vand.u32 %v7389, 4294901760
        %v7886 = vsub.f32 %v7389, %v7885
        %v7887 = vand.u32 %v7886, 4294901760
        %7888 = vmatpush1.msra.mxu0 %v7887
        %v7889 = vand.u32 %v7388, 4294901760
        %v7890 = vsub.f32 %v7388, %v7889
        %v7891 = vand.u32 %v7890, 4294901760
        %7892 = vmatprep.subr.mxu0 %v7891
        %v7893 = vand.u32 %v7387, 4294901760
        %v7894 = vsub.f32 %v7387, %v7893
        %v7895 = vand.u32 %v7894, 4294901760
        %7896 = vmatpush1.msra.mxu0 %v7895
        %v7897 = vand.u32 %v7386, 4294901760
        %v7898 = vsub.f32 %v7386, %v7897
        %v7899 = vand.u32 %v7898, 4294901760
        %7900 = vmatprep.subr.mxu0 %v7899
        %v7901 = vand.u32 %v7385, 4294901760
        %v7902 = vsub.f32 %v7385, %v7901
        %v7903 = vand.u32 %v7902, 4294901760
        %7904 = vmatpush1.msra.mxu0 %v7903
        %v7905 = vand.u32 %v7384, 4294901760
        %v7906 = vsub.f32 %v7384, %v7905
        %v7907 = vand.u32 %v7906, 4294901760
        %7908 = vmatprep.subr.mxu0 %v7907
        %v7909 = vand.u32 %v7383, 4294901760
        %v7910 = vsub.f32 %v7383, %v7909
        %v7911 = vand.u32 %v7910, 4294901760
        %7912 = vmatpush1.msra.mxu0 %v7911
        %v7913 = vand.u32 %v7382, 4294901760
        %v7914 = vsub.f32 %v7382, %v7913
        %v7915 = vand.u32 %v7914, 4294901760
        %7916 = vmatprep.subr.mxu0 %v7915
        %v7917 = vand.u32 %v7381, 4294901760
        %v7918 = vsub.f32 %v7381, %v7917
        %v7919 = vand.u32 %v7918, 4294901760
        %7920 = vmatpush1.msra.mxu0 %v7919
        %v7921 = vand.u32 %v7380, 4294901760
        %v7922 = vsub.f32 %v7380, %v7921
        %v7923 = vand.u32 %v7922, 4294901760
        %7924 = vmatprep.subr.mxu0 %v7923
        %v7925 = vand.u32 %v7379, 4294901760
        %v7926 = vsub.f32 %v7379, %v7925
        %v7927 = vand.u32 %v7926, 4294901760
        %7928 = vmatpush1.msra.mxu0 %v7927
        %7929 = vmatprep.subr.mxu0 0.0
        %7930 = vmatpush2.msra.mxu0 0.0
        %7931 = vmatprep.subr.mxu0 0.0
        %7932 = vmatpush2.msra.mxu0 0.0
        %7933 = vmatprep.subr.mxu0 0.0
        %7934 = vmatpush2.msra.mxu0 0.0
        %7935 = vmatprep.subr.mxu0 0.0
        %7936 = vmatpush2.msra.mxu0 0.0
        %7937 = vmatprep.subr.mxu0 0.0
        %7938 = vmatpush2.msra.mxu0 0.0
        %7939 = vmatprep.subr.mxu0 0.0
        %7940 = vmatpush2.msra.mxu0 0.0
        %7941 = vmatprep.subr.mxu0 0.0
        %7942 = vmatpush2.msra.mxu0 0.0
        %7943 = vmatprep.subr.mxu0 0.0
        %7944 = vmatpush2.msra.mxu0 0.0
        %7945 = vmatprep.subr.mxu0 0.0
        %7946 = vmatpush2.msra.mxu0 0.0
        %7947 = vmatprep.subr.mxu0 0.0
        %7948 = vmatpush2.msra.mxu0 0.0
        %7949 = vmatprep.subr.mxu0 0.0
        %7950 = vmatpush2.msra.mxu0 0.0
        %7951 = vmatprep.subr.mxu0 0.0
        %7952 = vmatpush2.msra.mxu0 0.0
        %7953 = vmatprep.subr.mxu0 0.0
        %7954 = vmatpush2.msra.mxu0 0.0
        %7955 = vmatprep.subr.mxu0 0.0
        %7956 = vmatpush2.msra.mxu0 0.0
        %7957 = vmatprep.subr.mxu0 0.0
        %7958 = vmatpush2.msra.mxu0 0.0
        %7959 = vmatprep.subr.mxu0 0.0
        %7960 = vmatpush2.msra.mxu0 0.0
        %7961 = vmatprep.mubr.f32.mxu0 0.0
        %v7962 = vand.u32 %v7408, 4294901760
        %7963 = vmatmul.mubr.f32.gmra.mxu0 %v7962
        %v7964 = vpop.f32.mrf.mxu0
        %v7965 = vadd.f32 %v7845, %v7964
        %v7966 = vpop.f32.mrf.mxu0
        %v7967 = vadd.f32 %v7847, %v7966
        %7968 = vdwg.mxu0
        %7969 = vmatprep.subr.mxu0 0.0
        %7970 = vmatpush1.msra.mxu0 0.0
        %7971 = vmatprep.subr.mxu0 0.0
        %7972 = vmatpush1.msra.mxu0 0.0
        %7973 = vmatprep.subr.mxu0 0.0
        %7974 = vmatpush1.msra.mxu0 0.0
        %7975 = vmatprep.subr.mxu0 0.0
        %7976 = vmatpush1.msra.mxu0 0.0
        %7977 = vmatprep.subr.mxu0 0.0
        %7978 = vmatpush1.msra.mxu0 0.0
        %7979 = vmatprep.subr.mxu0 0.0
        %7980 = vmatpush1.msra.mxu0 0.0
        %7981 = vmatprep.subr.mxu0 0.0
        %7982 = vmatpush1.msra.mxu0 0.0
        %7983 = vmatprep.subr.mxu0 0.0
        %7984 = vmatpush1.msra.mxu0 0.0
        %v7985 = vand.u32 %v7394, 4294901760
        %7986 = vmatprep.subr.mxu0 %v7985
        %v7987 = vand.u32 %v7393, 4294901760
        %7988 = vmatpush1.msra.mxu0 %v7987
        %v7989 = vand.u32 %v7392, 4294901760
        %7990 = vmatprep.subr.mxu0 %v7989
        %v7991 = vand.u32 %v7391, 4294901760
        %7992 = vmatpush1.msra.mxu0 %v7991
        %v7993 = vand.u32 %v7390, 4294901760
        %7994 = vmatprep.subr.mxu0 %v7993
        %v7995 = vand.u32 %v7389, 4294901760
        %7996 = vmatpush1.msra.mxu0 %v7995
        %v7997 = vand.u32 %v7388, 4294901760
        %7998 = vmatprep.subr.mxu0 %v7997
        %v7999 = vand.u32 %v7387, 4294901760
        %8000 = vmatpush1.msra.mxu0 %v7999
        %v8001 = vand.u32 %v7386, 4294901760
        %8002 = vmatprep.subr.mxu0 %v8001
        %v8003 = vand.u32 %v7385, 4294901760
        %8004 = vmatpush1.msra.mxu0 %v8003
        %v8005 = vand.u32 %v7384, 4294901760
        %8006 = vmatprep.subr.mxu0 %v8005
        %v8007 = vand.u32 %v7383, 4294901760
        %8008 = vmatpush1.msra.mxu0 %v8007
        %v8009 = vand.u32 %v7382, 4294901760
        %8010 = vmatprep.subr.mxu0 %v8009
        %v8011 = vand.u32 %v7381, 4294901760
        %8012 = vmatpush1.msra.mxu0 %v8011
        %v8013 = vand.u32 %v7380, 4294901760
        %8014 = vmatprep.subr.mxu0 %v8013
        %v8015 = vand.u32 %v7379, 4294901760
        %8016 = vmatpush1.msra.mxu0 %v8015
        %8017 = vmatprep.subr.mxu0 0.0
        %8018 = vmatpush2.msra.mxu0 0.0
        %8019 = vmatprep.subr.mxu0 0.0
        %8020 = vmatpush2.msra.mxu0 0.0
        %8021 = vmatprep.subr.mxu0 0.0
        %8022 = vmatpush2.msra.mxu0 0.0
        %8023 = vmatprep.subr.mxu0 0.0
        %8024 = vmatpush2.msra.mxu0 0.0
        %8025 = vmatprep.subr.mxu0 0.0
        %8026 = vmatpush2.msra.mxu0 0.0
        %8027 = vmatprep.subr.mxu0 0.0
        %8028 = vmatpush2.msra.mxu0 0.0
        %8029 = vmatprep.subr.mxu0 0.0
        %8030 = vmatpush2.msra.mxu0 0.0
        %8031 = vmatprep.subr.mxu0 0.0
        %8032 = vmatpush2.msra.mxu0 0.0
        %8033 = vmatprep.subr.mxu0 0.0
        %8034 = vmatpush2.msra.mxu0 0.0
        %8035 = vmatprep.subr.mxu0 0.0
        %8036 = vmatpush2.msra.mxu0 0.0
        %8037 = vmatprep.subr.mxu0 0.0
        %8038 = vmatpush2.msra.mxu0 0.0
        %8039 = vmatprep.subr.mxu0 0.0
        %8040 = vmatpush2.msra.mxu0 0.0
        %8041 = vmatprep.subr.mxu0 0.0
        %8042 = vmatpush2.msra.mxu0 0.0
        %8043 = vmatprep.subr.mxu0 0.0
        %8044 = vmatpush2.msra.mxu0 0.0
        %8045 = vmatprep.subr.mxu0 0.0
        %8046 = vmatpush2.msra.mxu0 0.0
        %8047 = vmatprep.subr.mxu0 0.0
        %8048 = vmatpush2.msra.mxu0 0.0
        %8049 = vmatprep.mubr.f32.mxu0 0.0
        %v8050 = vand.u32 %v7408, 4294901760
        %8051 = vmatmul.mubr.f32.gmra.mxu0 %v8050
        %v8052 = vpop.f32.mrf.mxu0
        %v8053 = vadd.f32 %v7965, %v8052
        %v8054 = vpop.f32.mrf.mxu0
        %v8055 = vadd.f32 %v7967, %v8054
        %8056 = vdwg.mxu0
        %v8057 = vmax.f32 %v8053, 0.0
        %v8058 = vmax.f32 %v8055, 0.0
        %v8059 = vld [vmem:[%s14] sm:$0xff]
        %v8060 = vld [vmem:[%s14 + $0x8] sm:$0xff]
        %v8061 = vld [vmem:[%s14 + $0x10] sm:$0xff]
        %v8062 = vld [vmem:[%s14 + $0x18] sm:$0xff]
        %v8063 = vld [vmem:[%s14 + $0x20] sm:$0xff]
        %v8064 = vld [vmem:[%s14 + $0x28] sm:$0xff]
        %v8065 = vld [vmem:[%s14 + $0x30] sm:$0xff]
        %v8066 = vld [vmem:[%s14 + $0x38] sm:$0xff]
        %v8067 = vld [vmem:[%s14 + $0x40] sm:$0xff]
        %v8068 = vld [vmem:[%s14 + $0x48] sm:$0xff]
        %v8069 = vld [vmem:[%s14 + $0x50] sm:$0xff]
        %v8070 = vld [vmem:[%s14 + $0x58] sm:$0xff]
        %v8071 = vld [vmem:[%s14 + $0x60] sm:$0xff]
        %v8072 = vld [vmem:[%s14 + $0x68] sm:$0xff]
        %v8073 = vld [vmem:[%s14 + $0x70] sm:$0xff]
        %v8074 = vld [vmem:[%s14 + $0x78] sm:$0xff]
        %v8075 = vld [vmem:[%s14 + $0x80] sm:$0xff]
        %v8076 = vld [vmem:[%s14 + $0x88] sm:$0xff]
        %v8077 = vld [vmem:[%s14 + $0x90] sm:$0xff]
        %v8078 = vld [vmem:[%s14 + $0x98] sm:$0xff]
        %v8079 = vld [vmem:[%s14 + $0xa0] sm:$0xff]
        %v8080 = vld [vmem:[%s14 + $0xa8] sm:$0xff]
        %v8081 = vld [vmem:[%s14 + $0xb0] sm:$0xff]
        %v8082 = vld [vmem:[%s14 + $0xb8] sm:$0xff]
        %v8083 = vld [vmem:[%s14 + $0xc0] sm:$0xff]
        %v8084 = vld [vmem:[%s14 + $0xc8] sm:$0xff]
        %v8085 = vld [vmem:[%s14 + $0xd0] sm:$0xff]
        %v8086 = vld [vmem:[%s14 + $0xd8] sm:$0xff]
        %v8087 = vld [vmem:[%s14 + $0xe0] sm:$0xff]
        %v8088 = vld [vmem:[%s14 + $0xe8] sm:$0xff]
        %v8089 = vld [vmem:[%s14 + $0xf0] sm:$0xff]
        %v8090 = vld [vmem:[%s14 + $0xf8] sm:$0xff]
        %v8091 = vld [vmem:[%s15] sm:$0x1]
        %v8093 = vlaneseq
        %v8094 = vshrl.u32 %v8093, 7
        %v8095 = vsub.s32 0, %v8094
        %v8096 = vrot.slane %v8091, %v8095
        %8098 = vmatprep.subr.mxu0 0.0
        %v8099 = vand.u32 %v8074, 4294901760
        %8100 = vmatpush1.msra.mxu0 %v8099
        %8101 = vmatprep.subr.mxu0 0.0
        %v8102 = vand.u32 %v8073, 4294901760
        %8103 = vmatpush1.msra.mxu0 %v8102
        %8104 = vmatprep.subr.mxu0 0.0
        %v8105 = vand.u32 %v8072, 4294901760
        %8106 = vmatpush1.msra.mxu0 %v8105
        %8107 = vmatprep.subr.mxu0 0.0
        %v8108 = vand.u32 %v8071, 4294901760
        %8109 = vmatpush1.msra.mxu0 %v8108
        %8110 = vmatprep.subr.mxu0 0.0
        %v8111 = vand.u32 %v8070, 4294901760
        %8112 = vmatpush1.msra.mxu0 %v8111
        %8113 = vmatprep.subr.mxu0 0.0
        %v8114 = vand.u32 %v8069, 4294901760
        %8115 = vmatpush1.msra.mxu0 %v8114
        %8116 = vmatprep.subr.mxu0 0.0
        %v8117 = vand.u32 %v8068, 4294901760
        %8118 = vmatpush1.msra.mxu0 %v8117
        %8119 = vmatprep.subr.mxu0 0.0
        %v8120 = vand.u32 %v8067, 4294901760
        %8121 = vmatpush1.msra.mxu0 %v8120
        %8122 = vmatprep.subr.mxu0 0.0
        %v8123 = vand.u32 %v8066, 4294901760
        %8124 = vmatpush1.msra.mxu0 %v8123
        %8125 = vmatprep.subr.mxu0 0.0
        %v8126 = vand.u32 %v8065, 4294901760
        %8127 = vmatpush1.msra.mxu0 %v8126
        %8128 = vmatprep.subr.mxu0 0.0
        %v8129 = vand.u32 %v8064, 4294901760
        %8130 = vmatpush1.msra.mxu0 %v8129
        %8131 = vmatprep.subr.mxu0 0.0
        %v8132 = vand.u32 %v8063, 4294901760
        %8133 = vmatpush1.msra.mxu0 %v8132
        %8134 = vmatprep.subr.mxu0 0.0
        %v8135 = vand.u32 %v8062, 4294901760
        %8136 = vmatpush1.msra.mxu0 %v8135
        %8137 = vmatprep.subr.mxu0 0.0
        %v8138 = vand.u32 %v8061, 4294901760
        %8139 = vmatpush1.msra.mxu0 %v8138
        %8140 = vmatprep.subr.mxu0 0.0
        %v8141 = vand.u32 %v8060, 4294901760
        %8142 = vmatpush1.msra.mxu0 %v8141
        %8143 = vmatprep.subr.mxu0 0.0
        %v8144 = vand.u32 %v8059, 4294901760
        %8145 = vmatpush1.msra.mxu0 %v8144
        %8146 = vmatprep.subr.mxu0 0.0
        %v8147 = vand.u32 %v8090, 4294901760
        %8148 = vmatpush2.msra.mxu0 %v8147
        %8149 = vmatprep.subr.mxu0 0.0
        %v8150 = vand.u32 %v8089, 4294901760
        %8151 = vmatpush2.msra.mxu0 %v8150
        %8152 = vmatprep.subr.mxu0 0.0
        %v8153 = vand.u32 %v8088, 4294901760
        %8154 = vmatpush2.msra.mxu0 %v8153
        %8155 = vmatprep.subr.mxu0 0.0
        %v8156 = vand.u32 %v8087, 4294901760
        %8157 = vmatpush2.msra.mxu0 %v8156
        %8158 = vmatprep.subr.mxu0 0.0
        %v8159 = vand.u32 %v8086, 4294901760
        %8160 = vmatpush2.msra.mxu0 %v8159
        %8161 = vmatprep.subr.mxu0 0.0
        %v8162 = vand.u32 %v8085, 4294901760
        %8163 = vmatpush2.msra.mxu0 %v8162
        %8164 = vmatprep.subr.mxu0 0.0
        %v8165 = vand.u32 %v8084, 4294901760
        %8166 = vmatpush2.msra.mxu0 %v8165
        %8167 = vmatprep.subr.mxu0 0.0
        %v8168 = vand.u32 %v8083, 4294901760
        %8169 = vmatpush2.msra.mxu0 %v8168
        %8170 = vmatprep.subr.mxu0 0.0
        %v8171 = vand.u32 %v8082, 4294901760
        %8172 = vmatpush2.msra.mxu0 %v8171
        %8173 = vmatprep.subr.mxu0 0.0
        %v8174 = vand.u32 %v8081, 4294901760
        %8175 = vmatpush2.msra.mxu0 %v8174
        %8176 = vmatprep.subr.mxu0 0.0
        %v8177 = vand.u32 %v8080, 4294901760
        %8178 = vmatpush2.msra.mxu0 %v8177
        %8179 = vmatprep.subr.mxu0 0.0
        %v8180 = vand.u32 %v8079, 4294901760
        %8181 = vmatpush2.msra.mxu0 %v8180
        %8182 = vmatprep.subr.mxu0 0.0
        %v8183 = vand.u32 %v8078, 4294901760
        %8184 = vmatpush2.msra.mxu0 %v8183
        %8185 = vmatprep.subr.mxu0 0.0
        %v8186 = vand.u32 %v8077, 4294901760
        %8187 = vmatpush2.msra.mxu0 %v8186
        %8188 = vmatprep.subr.mxu0 0.0
        %v8189 = vand.u32 %v8076, 4294901760
        %8190 = vmatpush2.msra.mxu0 %v8189
        %8191 = vmatprep.subr.mxu0 0.0
        %v8192 = vand.u32 %v8075, 4294901760
        %8193 = vmatpush2.msra.mxu0 %v8192
        %v8194 = vand.u32 %v8058, 4294901760
        %v8195 = vsub.f32 %v8058, %v8194
        %v8196 = vand.u32 %v8195, 4294901760
        %v8197 = vsub.f32 %v8195, %v8196
        %v8198 = vand.u32 %v8197, 4294901760
        %8199 = vmatprep.mubr.f32.mxu0 %v8198
        %v8200 = vand.u32 %v8057, 4294901760
        %v8201 = vsub.f32 %v8057, %v8200
        %v8202 = vand.u32 %v8201, 4294901760
        %v8203 = vsub.f32 %v8201, %v8202
        %v8204 = vand.u32 %v8203, 4294901760
        %8205 = vmatmul.mubr.f32.gmra.mxu0 %v8204
        %v8206 = vpop.f32.mrf.mxu0
        %v8207 = vadd.f32 %v8096, %v8206
        %v8208 = vpop.f32.mrf.mxu0
        %8209 = vdwg.mxu0
        %8210 = vmatprep.subr.mxu0 0.0
        %v8211 = vand.u32 %v8074, 4294901760
        %v8212 = vsub.f32 %v8074, %v8211
        %v8213 = vand.u32 %v8212, 4294901760
        %v8214 = vsub.f32 %v8212, %v8213
        %v8215 = vand.u32 %v8214, 4294901760
        %8216 = vmatpush1.msra.mxu0 %v8215
        %8217 = vmatprep.subr.mxu0 0.0
        %v8218 = vand.u32 %v8073, 4294901760
        %v8219 = vsub.f32 %v8073, %v8218
        %v8220 = vand.u32 %v8219, 4294901760
        %v8221 = vsub.f32 %v8219, %v8220
        %v8222 = vand.u32 %v8221, 4294901760
        %8223 = vmatpush1.msra.mxu0 %v8222
        %8224 = vmatprep.subr.mxu0 0.0
        %v8225 = vand.u32 %v8072, 4294901760
        %v8226 = vsub.f32 %v8072, %v8225
        %v8227 = vand.u32 %v8226, 4294901760
        %v8228 = vsub.f32 %v8226, %v8227
        %v8229 = vand.u32 %v8228, 4294901760
        %8230 = vmatpush1.msra.mxu0 %v8229
        %8231 = vmatprep.subr.mxu0 0.0
        %v8232 = vand.u32 %v8071, 4294901760
        %v8233 = vsub.f32 %v8071, %v8232
        %v8234 = vand.u32 %v8233, 4294901760
        %v8235 = vsub.f32 %v8233, %v8234
        %v8236 = vand.u32 %v8235, 4294901760
        %8237 = vmatpush1.msra.mxu0 %v8236
        %8238 = vmatprep.subr.mxu0 0.0
        %v8239 = vand.u32 %v8070, 4294901760
        %v8240 = vsub.f32 %v8070, %v8239
        %v8241 = vand.u32 %v8240, 4294901760
        %v8242 = vsub.f32 %v8240, %v8241
        %v8243 = vand.u32 %v8242, 4294901760
        %8244 = vmatpush1.msra.mxu0 %v8243
        %8245 = vmatprep.subr.mxu0 0.0
        %v8246 = vand.u32 %v8069, 4294901760
        %v8247 = vsub.f32 %v8069, %v8246
        %v8248 = vand.u32 %v8247, 4294901760
        %v8249 = vsub.f32 %v8247, %v8248
        %v8250 = vand.u32 %v8249, 4294901760
        %8251 = vmatpush1.msra.mxu0 %v8250
        %8252 = vmatprep.subr.mxu0 0.0
        %v8253 = vand.u32 %v8068, 4294901760
        %v8254 = vsub.f32 %v8068, %v8253
        %v8255 = vand.u32 %v8254, 4294901760
        %v8256 = vsub.f32 %v8254, %v8255
        %v8257 = vand.u32 %v8256, 4294901760
        %8258 = vmatpush1.msra.mxu0 %v8257
        %8259 = vmatprep.subr.mxu0 0.0
        %v8260 = vand.u32 %v8067, 4294901760
        %v8261 = vsub.f32 %v8067, %v8260
        %v8262 = vand.u32 %v8261, 4294901760
        %v8263 = vsub.f32 %v8261, %v8262
        %v8264 = vand.u32 %v8263, 4294901760
        %8265 = vmatpush1.msra.mxu0 %v8264
        %8266 = vmatprep.subr.mxu0 0.0
        %v8267 = vand.u32 %v8066, 4294901760
        %v8268 = vsub.f32 %v8066, %v8267
        %v8269 = vand.u32 %v8268, 4294901760
        %v8270 = vsub.f32 %v8268, %v8269
        %v8271 = vand.u32 %v8270, 4294901760
        %8272 = vmatpush1.msra.mxu0 %v8271
        %8273 = vmatprep.subr.mxu0 0.0
        %v8274 = vand.u32 %v8065, 4294901760
        %v8275 = vsub.f32 %v8065, %v8274
        %v8276 = vand.u32 %v8275, 4294901760
        %v8277 = vsub.f32 %v8275, %v8276
        %v8278 = vand.u32 %v8277, 4294901760
        %8279 = vmatpush1.msra.mxu0 %v8278
        %8280 = vmatprep.subr.mxu0 0.0
        %v8281 = vand.u32 %v8064, 4294901760
        %v8282 = vsub.f32 %v8064, %v8281
        %v8283 = vand.u32 %v8282, 4294901760
        %v8284 = vsub.f32 %v8282, %v8283
        %v8285 = vand.u32 %v8284, 4294901760
        %8286 = vmatpush1.msra.mxu0 %v8285
        %8287 = vmatprep.subr.mxu0 0.0
        %v8288 = vand.u32 %v8063, 4294901760
        %v8289 = vsub.f32 %v8063, %v8288
        %v8290 = vand.u32 %v8289, 4294901760
        %v8291 = vsub.f32 %v8289, %v8290
        %v8292 = vand.u32 %v8291, 4294901760
        %8293 = vmatpush1.msra.mxu0 %v8292
        %8294 = vmatprep.subr.mxu0 0.0
        %v8295 = vand.u32 %v8062, 4294901760
        %v8296 = vsub.f32 %v8062, %v8295
        %v8297 = vand.u32 %v8296, 4294901760
        %v8298 = vsub.f32 %v8296, %v8297
        %v8299 = vand.u32 %v8298, 4294901760
        %8300 = vmatpush1.msra.mxu0 %v8299
        %8301 = vmatprep.subr.mxu0 0.0
        %v8302 = vand.u32 %v8061, 4294901760
        %v8303 = vsub.f32 %v8061, %v8302
        %v8304 = vand.u32 %v8303, 4294901760
        %v8305 = vsub.f32 %v8303, %v8304
        %v8306 = vand.u32 %v8305, 4294901760
        %8307 = vmatpush1.msra.mxu0 %v8306
        %8308 = vmatprep.subr.mxu0 0.0
        %v8309 = vand.u32 %v8060, 4294901760
        %v8310 = vsub.f32 %v8060, %v8309
        %v8311 = vand.u32 %v8310, 4294901760
        %v8312 = vsub.f32 %v8310, %v8311
        %v8313 = vand.u32 %v8312, 4294901760
        %8314 = vmatpush1.msra.mxu0 %v8313
        %8315 = vmatprep.subr.mxu0 0.0
        %v8316 = vand.u32 %v8059, 4294901760
        %v8317 = vsub.f32 %v8059, %v8316
        %v8318 = vand.u32 %v8317, 4294901760
        %v8319 = vsub.f32 %v8317, %v8318
        %v8320 = vand.u32 %v8319, 4294901760
        %8321 = vmatpush1.msra.mxu0 %v8320
        %8322 = vmatprep.subr.mxu0 0.0
        %v8323 = vand.u32 %v8090, 4294901760
        %v8324 = vsub.f32 %v8090, %v8323
        %v8325 = vand.u32 %v8324, 4294901760
        %v8326 = vsub.f32 %v8324, %v8325
        %v8327 = vand.u32 %v8326, 4294901760
        %8328 = vmatpush2.msra.mxu0 %v8327
        %8329 = vmatprep.subr.mxu0 0.0
        %v8330 = vand.u32 %v8089, 4294901760
        %v8331 = vsub.f32 %v8089, %v8330
        %v8332 = vand.u32 %v8331, 4294901760
        %v8333 = vsub.f32 %v8331, %v8332
        %v8334 = vand.u32 %v8333, 4294901760
        %8335 = vmatpush2.msra.mxu0 %v8334
        %8336 = vmatprep.subr.mxu0 0.0
        %v8337 = vand.u32 %v8088, 4294901760
        %v8338 = vsub.f32 %v8088, %v8337
        %v8339 = vand.u32 %v8338, 4294901760
        %v8340 = vsub.f32 %v8338, %v8339
        %v8341 = vand.u32 %v8340, 4294901760
        %8342 = vmatpush2.msra.mxu0 %v8341
        %8343 = vmatprep.subr.mxu0 0.0
        %v8344 = vand.u32 %v8087, 4294901760
        %v8345 = vsub.f32 %v8087, %v8344
        %v8346 = vand.u32 %v8345, 4294901760
        %v8347 = vsub.f32 %v8345, %v8346
        %v8348 = vand.u32 %v8347, 4294901760
        %8349 = vmatpush2.msra.mxu0 %v8348
        %8350 = vmatprep.subr.mxu0 0.0
        %v8351 = vand.u32 %v8086, 4294901760
        %v8352 = vsub.f32 %v8086, %v8351
        %v8353 = vand.u32 %v8352, 4294901760
        %v8354 = vsub.f32 %v8352, %v8353
        %v8355 = vand.u32 %v8354, 4294901760
        %8356 = vmatpush2.msra.mxu0 %v8355
        %8357 = vmatprep.subr.mxu0 0.0
        %v8358 = vand.u32 %v8085, 4294901760
        %v8359 = vsub.f32 %v8085, %v8358
        %v8360 = vand.u32 %v8359, 4294901760
        %v8361 = vsub.f32 %v8359, %v8360
        %v8362 = vand.u32 %v8361, 4294901760
        %8363 = vmatpush2.msra.mxu0 %v8362
        %8364 = vmatprep.subr.mxu0 0.0
        %v8365 = vand.u32 %v8084, 4294901760
        %v8366 = vsub.f32 %v8084, %v8365
        %v8367 = vand.u32 %v8366, 4294901760
        %v8368 = vsub.f32 %v8366, %v8367
        %v8369 = vand.u32 %v8368, 4294901760
        %8370 = vmatpush2.msra.mxu0 %v8369
        %8371 = vmatprep.subr.mxu0 0.0
        %v8372 = vand.u32 %v8083, 4294901760
        %v8373 = vsub.f32 %v8083, %v8372
        %v8374 = vand.u32 %v8373, 4294901760
        %v8375 = vsub.f32 %v8373, %v8374
        %v8376 = vand.u32 %v8375, 4294901760
        %8377 = vmatpush2.msra.mxu0 %v8376
        %8378 = vmatprep.subr.mxu0 0.0
        %v8379 = vand.u32 %v8082, 4294901760
        %v8380 = vsub.f32 %v8082, %v8379
        %v8381 = vand.u32 %v8380, 4294901760
        %v8382 = vsub.f32 %v8380, %v8381
        %v8383 = vand.u32 %v8382, 4294901760
        %8384 = vmatpush2.msra.mxu0 %v8383
        %8385 = vmatprep.subr.mxu0 0.0
        %v8386 = vand.u32 %v8081, 4294901760
        %v8387 = vsub.f32 %v8081, %v8386
        %v8388 = vand.u32 %v8387, 4294901760
        %v8389 = vsub.f32 %v8387, %v8388
        %v8390 = vand.u32 %v8389, 4294901760
        %8391 = vmatpush2.msra.mxu0 %v8390
        %8392 = vmatprep.subr.mxu0 0.0
        %v8393 = vand.u32 %v8080, 4294901760
        %v8394 = vsub.f32 %v8080, %v8393
        %v8395 = vand.u32 %v8394, 4294901760
        %v8396 = vsub.f32 %v8394, %v8395
        %v8397 = vand.u32 %v8396, 4294901760
        %8398 = vmatpush2.msra.mxu0 %v8397
        %8399 = vmatprep.subr.mxu0 0.0
        %v8400 = vand.u32 %v8079, 4294901760
        %v8401 = vsub.f32 %v8079, %v8400
        %v8402 = vand.u32 %v8401, 4294901760
        %v8403 = vsub.f32 %v8401, %v8402
        %v8404 = vand.u32 %v8403, 4294901760
        %8405 = vmatpush2.msra.mxu0 %v8404
        %8406 = vmatprep.subr.mxu0 0.0
        %v8407 = vand.u32 %v8078, 4294901760
        %v8408 = vsub.f32 %v8078, %v8407
        %v8409 = vand.u32 %v8408, 4294901760
        %v8410 = vsub.f32 %v8408, %v8409
        %v8411 = vand.u32 %v8410, 4294901760
        %8412 = vmatpush2.msra.mxu0 %v8411
        %8413 = vmatprep.subr.mxu0 0.0
        %v8414 = vand.u32 %v8077, 4294901760
        %v8415 = vsub.f32 %v8077, %v8414
        %v8416 = vand.u32 %v8415, 4294901760
        %v8417 = vsub.f32 %v8415, %v8416
        %v8418 = vand.u32 %v8417, 4294901760
        %8419 = vmatpush2.msra.mxu0 %v8418
        %8420 = vmatprep.subr.mxu0 0.0
        %v8421 = vand.u32 %v8076, 4294901760
        %v8422 = vsub.f32 %v8076, %v8421
        %v8423 = vand.u32 %v8422, 4294901760
        %v8424 = vsub.f32 %v8422, %v8423
        %v8425 = vand.u32 %v8424, 4294901760
        %8426 = vmatpush2.msra.mxu0 %v8425
        %8427 = vmatprep.subr.mxu0 0.0
        %v8428 = vand.u32 %v8075, 4294901760
        %v8429 = vsub.f32 %v8075, %v8428
        %v8430 = vand.u32 %v8429, 4294901760
        %v8431 = vsub.f32 %v8429, %v8430
        %v8432 = vand.u32 %v8431, 4294901760
        %8433 = vmatpush2.msra.mxu0 %v8432
        %v8434 = vand.u32 %v8058, 4294901760
        %8435 = vmatprep.mubr.f32.mxu0 %v8434
        %v8436 = vand.u32 %v8057, 4294901760
        %8437 = vmatmul.mubr.f32.gmra.mxu0 %v8436
        %v8438 = vpop.f32.mrf.mxu0
        %v8439 = vadd.f32 %v8207, %v8438
        %v8440 = vpop.f32.mrf.mxu0
        %8441 = vdwg.mxu0
        %8442 = vmatprep.subr.mxu0 0.0
        %v8443 = vand.u32 %v8074, 4294901760
        %v8444 = vsub.f32 %v8074, %v8443
        %8445 = vmatpush1.msra.mxu0 %v8444
        %8446 = vmatprep.subr.mxu0 0.0
        %v8447 = vand.u32 %v8073, 4294901760
        %v8448 = vsub.f32 %v8073, %v8447
        %8449 = vmatpush1.msra.mxu0 %v8448
        %8450 = vmatprep.subr.mxu0 0.0
        %v8451 = vand.u32 %v8072, 4294901760
        %v8452 = vsub.f32 %v8072, %v8451
        %8453 = vmatpush1.msra.mxu0 %v8452
        %8454 = vmatprep.subr.mxu0 0.0
        %v8455 = vand.u32 %v8071, 4294901760
        %v8456 = vsub.f32 %v8071, %v8455
        %8457 = vmatpush1.msra.mxu0 %v8456
        %8458 = vmatprep.subr.mxu0 0.0
        %v8459 = vand.u32 %v8070, 4294901760
        %v8460 = vsub.f32 %v8070, %v8459
        %8461 = vmatpush1.msra.mxu0 %v8460
        %8462 = vmatprep.subr.mxu0 0.0
        %v8463 = vand.u32 %v8069, 4294901760
        %v8464 = vsub.f32 %v8069, %v8463
        %8465 = vmatpush1.msra.mxu0 %v8464
        %8466 = vmatprep.subr.mxu0 0.0
        %v8467 = vand.u32 %v8068, 4294901760
        %v8468 = vsub.f32 %v8068, %v8467
        %8469 = vmatpush1.msra.mxu0 %v8468
        %8470 = vmatprep.subr.mxu0 0.0
        %v8471 = vand.u32 %v8067, 4294901760
        %v8472 = vsub.f32 %v8067, %v8471
        %8473 = vmatpush1.msra.mxu0 %v8472
        %8474 = vmatprep.subr.mxu0 0.0
        %v8475 = vand.u32 %v8066, 4294901760
        %v8476 = vsub.f32 %v8066, %v8475
        %8477 = vmatpush1.msra.mxu0 %v8476
        %8478 = vmatprep.subr.mxu0 0.0
        %v8479 = vand.u32 %v8065, 4294901760
        %v8480 = vsub.f32 %v8065, %v8479
        %8481 = vmatpush1.msra.mxu0 %v8480
        %8482 = vmatprep.subr.mxu0 0.0
        %v8483 = vand.u32 %v8064, 4294901760
        %v8484 = vsub.f32 %v8064, %v8483
        %8485 = vmatpush1.msra.mxu0 %v8484
        %8486 = vmatprep.subr.mxu0 0.0
        %v8487 = vand.u32 %v8063, 4294901760
        %v8488 = vsub.f32 %v8063, %v8487
        %8489 = vmatpush1.msra.mxu0 %v8488
        %8490 = vmatprep.subr.mxu0 0.0
        %v8491 = vand.u32 %v8062, 4294901760
        %v8492 = vsub.f32 %v8062, %v8491
        %8493 = vmatpush1.msra.mxu0 %v8492
        %8494 = vmatprep.subr.mxu0 0.0
        %v8495 = vand.u32 %v8061, 4294901760
        %v8496 = vsub.f32 %v8061, %v8495
        %8497 = vmatpush1.msra.mxu0 %v8496
        %8498 = vmatprep.subr.mxu0 0.0
        %v8499 = vand.u32 %v8060, 4294901760
        %v8500 = vsub.f32 %v8060, %v8499
        %8501 = vmatpush1.msra.mxu0 %v8500
        %8502 = vmatprep.subr.mxu0 0.0
        %v8503 = vand.u32 %v8059, 4294901760
        %v8504 = vsub.f32 %v8059, %v8503
        %8505 = vmatpush1.msra.mxu0 %v8504
        %8506 = vmatprep.subr.mxu0 0.0
        %v8507 = vand.u32 %v8090, 4294901760
        %v8508 = vsub.f32 %v8090, %v8507
        %8509 = vmatpush2.msra.mxu0 %v8508
        %8510 = vmatprep.subr.mxu0 0.0
        %v8511 = vand.u32 %v8089, 4294901760
        %v8512 = vsub.f32 %v8089, %v8511
        %8513 = vmatpush2.msra.mxu0 %v8512
        %8514 = vmatprep.subr.mxu0 0.0
        %v8515 = vand.u32 %v8088, 4294901760
        %v8516 = vsub.f32 %v8088, %v8515
        %8517 = vmatpush2.msra.mxu0 %v8516
        %8518 = vmatprep.subr.mxu0 0.0
        %v8519 = vand.u32 %v8087, 4294901760
        %v8520 = vsub.f32 %v8087, %v8519
        %8521 = vmatpush2.msra.mxu0 %v8520
        %8522 = vmatprep.subr.mxu0 0.0
        %v8523 = vand.u32 %v8086, 4294901760
        %v8524 = vsub.f32 %v8086, %v8523
        %8525 = vmatpush2.msra.mxu0 %v8524
        %8526 = vmatprep.subr.mxu0 0.0
        %v8527 = vand.u32 %v8085, 4294901760
        %v8528 = vsub.f32 %v8085, %v8527
        %8529 = vmatpush2.msra.mxu0 %v8528
        %8530 = vmatprep.subr.mxu0 0.0
        %v8531 = vand.u32 %v8084, 4294901760
        %v8532 = vsub.f32 %v8084, %v8531
        %8533 = vmatpush2.msra.mxu0 %v8532
        %8534 = vmatprep.subr.mxu0 0.0
        %v8535 = vand.u32 %v8083, 4294901760
        %v8536 = vsub.f32 %v8083, %v8535
        %8537 = vmatpush2.msra.mxu0 %v8536
        %8538 = vmatprep.subr.mxu0 0.0
        %v8539 = vand.u32 %v8082, 4294901760
        %v8540 = vsub.f32 %v8082, %v8539
        %8541 = vmatpush2.msra.mxu0 %v8540
        %8542 = vmatprep.subr.mxu0 0.0
        %v8543 = vand.u32 %v8081, 4294901760
        %v8544 = vsub.f32 %v8081, %v8543
        %8545 = vmatpush2.msra.mxu0 %v8544
        %8546 = vmatprep.subr.mxu0 0.0
        %v8547 = vand.u32 %v8080, 4294901760
        %v8548 = vsub.f32 %v8080, %v8547
        %8549 = vmatpush2.msra.mxu0 %v8548
        %8550 = vmatprep.subr.mxu0 0.0
        %v8551 = vand.u32 %v8079, 4294901760
        %v8552 = vsub.f32 %v8079, %v8551
        %8553 = vmatpush2.msra.mxu0 %v8552
        %8554 = vmatprep.subr.mxu0 0.0
        %v8555 = vand.u32 %v8078, 4294901760
        %v8556 = vsub.f32 %v8078, %v8555
        %8557 = vmatpush2.msra.mxu0 %v8556
        %8558 = vmatprep.subr.mxu0 0.0
        %v8559 = vand.u32 %v8077, 4294901760
        %v8560 = vsub.f32 %v8077, %v8559
        %8561 = vmatpush2.msra.mxu0 %v8560
        %8562 = vmatprep.subr.mxu0 0.0
        %v8563 = vand.u32 %v8076, 4294901760
        %v8564 = vsub.f32 %v8076, %v8563
        %8565 = vmatpush2.msra.mxu0 %v8564
        %8566 = vmatprep.subr.mxu0 0.0
        %v8567 = vand.u32 %v8075, 4294901760
        %v8568 = vsub.f32 %v8075, %v8567
        %8569 = vmatpush2.msra.mxu0 %v8568
        %v8570 = vand.u32 %v8058, 4294901760
        %v8571 = vsub.f32 %v8058, %v8570
        %8572 = vmatprep.mubr.f32.mxu0 %v8571
        %v8573 = vand.u32 %v8057, 4294901760
        %v8574 = vsub.f32 %v8057, %v8573
        %8575 = vmatmul.mubr.f32.gmra.mxu0 %v8574
        %v8576 = vpop.f32.mrf.mxu0
        %v8577 = vadd.f32 %v8439, %v8576
        %v8578 = vpop.f32.mrf.mxu0
        %8579 = vdwg.mxu0
        %8580 = vmatprep.subr.mxu0 0.0
        %v8581 = vand.u32 %v8074, 4294901760
        %8582 = vmatpush1.msra.mxu0 %v8581
        %8583 = vmatprep.subr.mxu0 0.0
        %v8584 = vand.u32 %v8073, 4294901760
        %8585 = vmatpush1.msra.mxu0 %v8584
        %8586 = vmatprep.subr.mxu0 0.0
        %v8587 = vand.u32 %v8072, 4294901760
        %8588 = vmatpush1.msra.mxu0 %v8587
        %8589 = vmatprep.subr.mxu0 0.0
        %v8590 = vand.u32 %v8071, 4294901760
        %8591 = vmatpush1.msra.mxu0 %v8590
        %8592 = vmatprep.subr.mxu0 0.0
        %v8593 = vand.u32 %v8070, 4294901760
        %8594 = vmatpush1.msra.mxu0 %v8593
        %8595 = vmatprep.subr.mxu0 0.0
        %v8596 = vand.u32 %v8069, 4294901760
        %8597 = vmatpush1.msra.mxu0 %v8596
        %8598 = vmatprep.subr.mxu0 0.0
        %v8599 = vand.u32 %v8068, 4294901760
        %8600 = vmatpush1.msra.mxu0 %v8599
        %8601 = vmatprep.subr.mxu0 0.0
        %v8602 = vand.u32 %v8067, 4294901760
        %8603 = vmatpush1.msra.mxu0 %v8602
        %8604 = vmatprep.subr.mxu0 0.0
        %v8605 = vand.u32 %v8066, 4294901760
        %8606 = vmatpush1.msra.mxu0 %v8605
        %8607 = vmatprep.subr.mxu0 0.0
        %v8608 = vand.u32 %v8065, 4294901760
        %8609 = vmatpush1.msra.mxu0 %v8608
        %8610 = vmatprep.subr.mxu0 0.0
        %v8611 = vand.u32 %v8064, 4294901760
        %8612 = vmatpush1.msra.mxu0 %v8611
        %8613 = vmatprep.subr.mxu0 0.0
        %v8614 = vand.u32 %v8063, 4294901760
        %8615 = vmatpush1.msra.mxu0 %v8614
        %8616 = vmatprep.subr.mxu0 0.0
        %v8617 = vand.u32 %v8062, 4294901760
        %8618 = vmatpush1.msra.mxu0 %v8617
        %8619 = vmatprep.subr.mxu0 0.0
        %v8620 = vand.u32 %v8061, 4294901760
        %8621 = vmatpush1.msra.mxu0 %v8620
        %8622 = vmatprep.subr.mxu0 0.0
        %v8623 = vand.u32 %v8060, 4294901760
        %8624 = vmatpush1.msra.mxu0 %v8623
        %8625 = vmatprep.subr.mxu0 0.0
        %v8626 = vand.u32 %v8059, 4294901760
        %8627 = vmatpush1.msra.mxu0 %v8626
        %8628 = vmatprep.subr.mxu0 0.0
        %v8629 = vand.u32 %v8090, 4294901760
        %8630 = vmatpush2.msra.mxu0 %v8629
        %8631 = vmatprep.subr.mxu0 0.0
        %v8632 = vand.u32 %v8089, 4294901760
        %8633 = vmatpush2.msra.mxu0 %v8632
        %8634 = vmatprep.subr.mxu0 0.0
        %v8635 = vand.u32 %v8088, 4294901760
        %8636 = vmatpush2.msra.mxu0 %v8635
        %8637 = vmatprep.subr.mxu0 0.0
        %v8638 = vand.u32 %v8087, 4294901760
        %8639 = vmatpush2.msra.mxu0 %v8638
        %8640 = vmatprep.subr.mxu0 0.0
        %v8641 = vand.u32 %v8086, 4294901760
        %8642 = vmatpush2.msra.mxu0 %v8641
        %8643 = vmatprep.subr.mxu0 0.0
        %v8644 = vand.u32 %v8085, 4294901760
        %8645 = vmatpush2.msra.mxu0 %v8644
        %8646 = vmatprep.subr.mxu0 0.0
        %v8647 = vand.u32 %v8084, 4294901760
        %8648 = vmatpush2.msra.mxu0 %v8647
        %8649 = vmatprep.subr.mxu0 0.0
        %v8650 = vand.u32 %v8083, 4294901760
        %8651 = vmatpush2.msra.mxu0 %v8650
        %8652 = vmatprep.subr.mxu0 0.0
        %v8653 = vand.u32 %v8082, 4294901760
        %8654 = vmatpush2.msra.mxu0 %v8653
        %8655 = vmatprep.subr.mxu0 0.0
        %v8656 = vand.u32 %v8081, 4294901760
        %8657 = vmatpush2.msra.mxu0 %v8656
        %8658 = vmatprep.subr.mxu0 0.0
        %v8659 = vand.u32 %v8080, 4294901760
        %8660 = vmatpush2.msra.mxu0 %v8659
        %8661 = vmatprep.subr.mxu0 0.0
        %v8662 = vand.u32 %v8079, 4294901760
        %8663 = vmatpush2.msra.mxu0 %v8662
        %8664 = vmatprep.subr.mxu0 0.0
        %v8665 = vand.u32 %v8078, 4294901760
        %8666 = vmatpush2.msra.mxu0 %v8665
        %8667 = vmatprep.subr.mxu0 0.0
        %v8668 = vand.u32 %v8077, 4294901760
        %8669 = vmatpush2.msra.mxu0 %v8668
        %8670 = vmatprep.subr.mxu0 0.0
        %v8671 = vand.u32 %v8076, 4294901760
        %8672 = vmatpush2.msra.mxu0 %v8671
        %8673 = vmatprep.subr.mxu0 0.0
        %v8674 = vand.u32 %v8075, 4294901760
        %8675 = vmatpush2.msra.mxu0 %v8674
        %v8676 = vand.u32 %v8058, 4294901760
        %v8677 = vsub.f32 %v8058, %v8676
        %v8678 = vand.u32 %v8677, 4294901760
        %8679 = vmatprep.mubr.f32.mxu0 %v8678
        %v8680 = vand.u32 %v8057, 4294901760
        %v8681 = vsub.f32 %v8057, %v8680
        %v8682 = vand.u32 %v8681, 4294901760
        %8683 = vmatmul.mubr.f32.gmra.mxu0 %v8682
        %v8684 = vpop.f32.mrf.mxu0
        %v8685 = vadd.f32 %v8577, %v8684
        %v8686 = vpop.f32.mrf.mxu0
        %8687 = vdwg.mxu0
        %8688 = vmatprep.subr.mxu0 0.0
        %v8689 = vand.u32 %v8074, 4294901760
        %v8690 = vsub.f32 %v8074, %v8689
        %v8691 = vand.u32 %v8690, 4294901760
        %8692 = vmatpush1.msra.mxu0 %v8691
        %8693 = vmatprep.subr.mxu0 0.0
        %v8694 = vand.u32 %v8073, 4294901760
        %v8695 = vsub.f32 %v8073, %v8694
        %v8696 = vand.u32 %v8695, 4294901760
        %8697 = vmatpush1.msra.mxu0 %v8696
        %8698 = vmatprep.subr.mxu0 0.0
        %v8699 = vand.u32 %v8072, 4294901760
        %v8700 = vsub.f32 %v8072, %v8699
        %v8701 = vand.u32 %v8700, 4294901760
        %8702 = vmatpush1.msra.mxu0 %v8701
        %8703 = vmatprep.subr.mxu0 0.0
        %v8704 = vand.u32 %v8071, 4294901760
        %v8705 = vsub.f32 %v8071, %v8704
        %v8706 = vand.u32 %v8705, 4294901760
        %8707 = vmatpush1.msra.mxu0 %v8706
        %8708 = vmatprep.subr.mxu0 0.0
        %v8709 = vand.u32 %v8070, 4294901760
        %v8710 = vsub.f32 %v8070, %v8709
        %v8711 = vand.u32 %v8710, 4294901760
        %8712 = vmatpush1.msra.mxu0 %v8711
        %8713 = vmatprep.subr.mxu0 0.0
        %v8714 = vand.u32 %v8069, 4294901760
        %v8715 = vsub.f32 %v8069, %v8714
        %v8716 = vand.u32 %v8715, 4294901760
        %8717 = vmatpush1.msra.mxu0 %v8716
        %8718 = vmatprep.subr.mxu0 0.0
        %v8719 = vand.u32 %v8068, 4294901760
        %v8720 = vsub.f32 %v8068, %v8719
        %v8721 = vand.u32 %v8720, 4294901760
        %8722 = vmatpush1.msra.mxu0 %v8721
        %8723 = vmatprep.subr.mxu0 0.0
        %v8724 = vand.u32 %v8067, 4294901760
        %v8725 = vsub.f32 %v8067, %v8724
        %v8726 = vand.u32 %v8725, 4294901760
        %8727 = vmatpush1.msra.mxu0 %v8726
        %8728 = vmatprep.subr.mxu0 0.0
        %v8729 = vand.u32 %v8066, 4294901760
        %v8730 = vsub.f32 %v8066, %v8729
        %v8731 = vand.u32 %v8730, 4294901760
        %8732 = vmatpush1.msra.mxu0 %v8731
        %8733 = vmatprep.subr.mxu0 0.0
        %v8734 = vand.u32 %v8065, 4294901760
        %v8735 = vsub.f32 %v8065, %v8734
        %v8736 = vand.u32 %v8735, 4294901760
        %8737 = vmatpush1.msra.mxu0 %v8736
        %8738 = vmatprep.subr.mxu0 0.0
        %v8739 = vand.u32 %v8064, 4294901760
        %v8740 = vsub.f32 %v8064, %v8739
        %v8741 = vand.u32 %v8740, 4294901760
        %8742 = vmatpush1.msra.mxu0 %v8741
        %8743 = vmatprep.subr.mxu0 0.0
        %v8744 = vand.u32 %v8063, 4294901760
        %v8745 = vsub.f32 %v8063, %v8744
        %v8746 = vand.u32 %v8745, 4294901760
        %8747 = vmatpush1.msra.mxu0 %v8746
        %8748 = vmatprep.subr.mxu0 0.0
        %v8749 = vand.u32 %v8062, 4294901760
        %v8750 = vsub.f32 %v8062, %v8749
        %v8751 = vand.u32 %v8750, 4294901760
        %8752 = vmatpush1.msra.mxu0 %v8751
        %8753 = vmatprep.subr.mxu0 0.0
        %v8754 = vand.u32 %v8061, 4294901760
        %v8755 = vsub.f32 %v8061, %v8754
        %v8756 = vand.u32 %v8755, 4294901760
        %8757 = vmatpush1.msra.mxu0 %v8756
        %8758 = vmatprep.subr.mxu0 0.0
        %v8759 = vand.u32 %v8060, 4294901760
        %v8760 = vsub.f32 %v8060, %v8759
        %v8761 = vand.u32 %v8760, 4294901760
        %8762 = vmatpush1.msra.mxu0 %v8761
        %8763 = vmatprep.subr.mxu0 0.0
        %v8764 = vand.u32 %v8059, 4294901760
        %v8765 = vsub.f32 %v8059, %v8764
        %v8766 = vand.u32 %v8765, 4294901760
        %8767 = vmatpush1.msra.mxu0 %v8766
        %8768 = vmatprep.subr.mxu0 0.0
        %v8769 = vand.u32 %v8090, 4294901760
        %v8770 = vsub.f32 %v8090, %v8769
        %v8771 = vand.u32 %v8770, 4294901760
        %8772 = vmatpush2.msra.mxu0 %v8771
        %8773 = vmatprep.subr.mxu0 0.0
        %v8774 = vand.u32 %v8089, 4294901760
        %v8775 = vsub.f32 %v8089, %v8774
        %v8776 = vand.u32 %v8775, 4294901760
        %8777 = vmatpush2.msra.mxu0 %v8776
        %8778 = vmatprep.subr.mxu0 0.0
        %v8779 = vand.u32 %v8088, 4294901760
        %v8780 = vsub.f32 %v8088, %v8779
        %v8781 = vand.u32 %v8780, 4294901760
        %8782 = vmatpush2.msra.mxu0 %v8781
        %8783 = vmatprep.subr.mxu0 0.0
        %v8784 = vand.u32 %v8087, 4294901760
        %v8785 = vsub.f32 %v8087, %v8784
        %v8786 = vand.u32 %v8785, 4294901760
        %8787 = vmatpush2.msra.mxu0 %v8786
        %8788 = vmatprep.subr.mxu0 0.0
        %v8789 = vand.u32 %v8086, 4294901760
        %v8790 = vsub.f32 %v8086, %v8789
        %v8791 = vand.u32 %v8790, 4294901760
        %8792 = vmatpush2.msra.mxu0 %v8791
        %8793 = vmatprep.subr.mxu0 0.0
        %v8794 = vand.u32 %v8085, 4294901760
        %v8795 = vsub.f32 %v8085, %v8794
        %v8796 = vand.u32 %v8795, 4294901760
        %8797 = vmatpush2.msra.mxu0 %v8796
        %8798 = vmatprep.subr.mxu0 0.0
        %v8799 = vand.u32 %v8084, 4294901760
        %v8800 = vsub.f32 %v8084, %v8799
        %v8801 = vand.u32 %v8800, 4294901760
        %8802 = vmatpush2.msra.mxu0 %v8801
        %8803 = vmatprep.subr.mxu0 0.0
        %v8804 = vand.u32 %v8083, 4294901760
        %v8805 = vsub.f32 %v8083, %v8804
        %v8806 = vand.u32 %v8805, 4294901760
        %8807 = vmatpush2.msra.mxu0 %v8806
        %8808 = vmatprep.subr.mxu0 0.0
        %v8809 = vand.u32 %v8082, 4294901760
        %v8810 = vsub.f32 %v8082, %v8809
        %v8811 = vand.u32 %v8810, 4294901760
        %8812 = vmatpush2.msra.mxu0 %v8811
        %8813 = vmatprep.subr.mxu0 0.0
        %v8814 = vand.u32 %v8081, 4294901760
        %v8815 = vsub.f32 %v8081, %v8814
        %v8816 = vand.u32 %v8815, 4294901760
        %8817 = vmatpush2.msra.mxu0 %v8816
        %8818 = vmatprep.subr.mxu0 0.0
        %v8819 = vand.u32 %v8080, 4294901760
        %v8820 = vsub.f32 %v8080, %v8819
        %v8821 = vand.u32 %v8820, 4294901760
        %8822 = vmatpush2.msra.mxu0 %v8821
        %8823 = vmatprep.subr.mxu0 0.0
        %v8824 = vand.u32 %v8079, 4294901760
        %v8825 = vsub.f32 %v8079, %v8824
        %v8826 = vand.u32 %v8825, 4294901760
        %8827 = vmatpush2.msra.mxu0 %v8826
        %8828 = vmatprep.subr.mxu0 0.0
        %v8829 = vand.u32 %v8078, 4294901760
        %v8830 = vsub.f32 %v8078, %v8829
        %v8831 = vand.u32 %v8830, 4294901760
        %8832 = vmatpush2.msra.mxu0 %v8831
        %8833 = vmatprep.subr.mxu0 0.0
        %v8834 = vand.u32 %v8077, 4294901760
        %v8835 = vsub.f32 %v8077, %v8834
        %v8836 = vand.u32 %v8835, 4294901760
        %8837 = vmatpush2.msra.mxu0 %v8836
        %8838 = vmatprep.subr.mxu0 0.0
        %v8839 = vand.u32 %v8076, 4294901760
        %v8840 = vsub.f32 %v8076, %v8839
        %v8841 = vand.u32 %v8840, 4294901760
        %8842 = vmatpush2.msra.mxu0 %v8841
        %8843 = vmatprep.subr.mxu0 0.0
        %v8844 = vand.u32 %v8075, 4294901760
        %v8845 = vsub.f32 %v8075, %v8844
        %v8846 = vand.u32 %v8845, 4294901760
        %8847 = vmatpush2.msra.mxu0 %v8846
        %v8848 = vand.u32 %v8058, 4294901760
        %8849 = vmatprep.mubr.f32.mxu0 %v8848
        %v8850 = vand.u32 %v8057, 4294901760
        %8851 = vmatmul.mubr.f32.gmra.mxu0 %v8850
        %v8852 = vpop.f32.mrf.mxu0
        %v8853 = vadd.f32 %v8685, %v8852
        %v8854 = vpop.f32.mrf.mxu0
        %8855 = vdwg.mxu0
        %8856 = vmatprep.subr.mxu0 0.0
        %v8857 = vand.u32 %v8074, 4294901760
        %8858 = vmatpush1.msra.mxu0 %v8857
        %8859 = vmatprep.subr.mxu0 0.0
        %v8860 = vand.u32 %v8073, 4294901760
        %8861 = vmatpush1.msra.mxu0 %v8860
        %8862 = vmatprep.subr.mxu0 0.0
        %v8863 = vand.u32 %v8072, 4294901760
        %8864 = vmatpush1.msra.mxu0 %v8863
        %8865 = vmatprep.subr.mxu0 0.0
        %v8866 = vand.u32 %v8071, 4294901760
        %8867 = vmatpush1.msra.mxu0 %v8866
        %8868 = vmatprep.subr.mxu0 0.0
        %v8869 = vand.u32 %v8070, 4294901760
        %8870 = vmatpush1.msra.mxu0 %v8869
        %8871 = vmatprep.subr.mxu0 0.0
        %v8872 = vand.u32 %v8069, 4294901760
        %8873 = vmatpush1.msra.mxu0 %v8872
        %8874 = vmatprep.subr.mxu0 0.0
        %v8875 = vand.u32 %v8068, 4294901760
        %8876 = vmatpush1.msra.mxu0 %v8875
        %8877 = vmatprep.subr.mxu0 0.0
        %v8878 = vand.u32 %v8067, 4294901760
        %8879 = vmatpush1.msra.mxu0 %v8878
        %8880 = vmatprep.subr.mxu0 0.0
        %v8881 = vand.u32 %v8066, 4294901760
        %8882 = vmatpush1.msra.mxu0 %v8881
        %8883 = vmatprep.subr.mxu0 0.0
        %v8884 = vand.u32 %v8065, 4294901760
        %8885 = vmatpush1.msra.mxu0 %v8884
        %8886 = vmatprep.subr.mxu0 0.0
        %v8887 = vand.u32 %v8064, 4294901760
        %8888 = vmatpush1.msra.mxu0 %v8887
        %8889 = vmatprep.subr.mxu0 0.0
        %v8890 = vand.u32 %v8063, 4294901760
        %8891 = vmatpush1.msra.mxu0 %v8890
        %8892 = vmatprep.subr.mxu0 0.0
        %v8893 = vand.u32 %v8062, 4294901760
        %8894 = vmatpush1.msra.mxu0 %v8893
        %8895 = vmatprep.subr.mxu0 0.0
        %v8896 = vand.u32 %v8061, 4294901760
        %8897 = vmatpush1.msra.mxu0 %v8896
        %8898 = vmatprep.subr.mxu0 0.0
        %v8899 = vand.u32 %v8060, 4294901760
        %8900 = vmatpush1.msra.mxu0 %v8899
        %8901 = vmatprep.subr.mxu0 0.0
        %v8902 = vand.u32 %v8059, 4294901760
        %8903 = vmatpush1.msra.mxu0 %v8902
        %8904 = vmatprep.subr.mxu0 0.0
        %v8905 = vand.u32 %v8090, 4294901760
        %8906 = vmatpush2.msra.mxu0 %v8905
        %8907 = vmatprep.subr.mxu0 0.0
        %v8908 = vand.u32 %v8089, 4294901760
        %8909 = vmatpush2.msra.mxu0 %v8908
        %8910 = vmatprep.subr.mxu0 0.0
        %v8911 = vand.u32 %v8088, 4294901760
        %8912 = vmatpush2.msra.mxu0 %v8911
        %8913 = vmatprep.subr.mxu0 0.0
        %v8914 = vand.u32 %v8087, 4294901760
        %8915 = vmatpush2.msra.mxu0 %v8914
        %8916 = vmatprep.subr.mxu0 0.0
        %v8917 = vand.u32 %v8086, 4294901760
        %8918 = vmatpush2.msra.mxu0 %v8917
        %8919 = vmatprep.subr.mxu0 0.0
        %v8920 = vand.u32 %v8085, 4294901760
        %8921 = vmatpush2.msra.mxu0 %v8920
        %8922 = vmatprep.subr.mxu0 0.0
        %v8923 = vand.u32 %v8084, 4294901760
        %8924 = vmatpush2.msra.mxu0 %v8923
        %8925 = vmatprep.subr.mxu0 0.0
        %v8926 = vand.u32 %v8083, 4294901760
        %8927 = vmatpush2.msra.mxu0 %v8926
        %8928 = vmatprep.subr.mxu0 0.0
        %v8929 = vand.u32 %v8082, 4294901760
        %8930 = vmatpush2.msra.mxu0 %v8929
        %8931 = vmatprep.subr.mxu0 0.0
        %v8932 = vand.u32 %v8081, 4294901760
        %8933 = vmatpush2.msra.mxu0 %v8932
        %8934 = vmatprep.subr.mxu0 0.0
        %v8935 = vand.u32 %v8080, 4294901760
        %8936 = vmatpush2.msra.mxu0 %v8935
        %8937 = vmatprep.subr.mxu0 0.0
        %v8938 = vand.u32 %v8079, 4294901760
        %8939 = vmatpush2.msra.mxu0 %v8938
        %8940 = vmatprep.subr.mxu0 0.0
        %v8941 = vand.u32 %v8078, 4294901760
        %8942 = vmatpush2.msra.mxu0 %v8941
        %8943 = vmatprep.subr.mxu0 0.0
        %v8944 = vand.u32 %v8077, 4294901760
        %8945 = vmatpush2.msra.mxu0 %v8944
        %8946 = vmatprep.subr.mxu0 0.0
        %v8947 = vand.u32 %v8076, 4294901760
        %8948 = vmatpush2.msra.mxu0 %v8947
        %8949 = vmatprep.subr.mxu0 0.0
        %v8950 = vand.u32 %v8075, 4294901760
        %8951 = vmatpush2.msra.mxu0 %v8950
        %v8952 = vand.u32 %v8058, 4294901760
        %8953 = vmatprep.mubr.f32.mxu0 %v8952
        %v8954 = vand.u32 %v8057, 4294901760
        %8955 = vmatmul.mubr.f32.gmra.mxu0 %v8954
        %v8956 = vpop.f32.mrf.mxu0
        %v8957 = vadd.f32 %v8853, %v8956
        %v8958 = vpop.f32.mrf.mxu0
        %8959 = vdwg.mxu0
        %v8960 = vadd.f32 %v7378, %v8957
        %v8961 = vld [vmem:[%s10] sm:$0x1]
        %v8962 = vld [vmem:[%s11] sm:$0x1]
        %v8963 = vsel %vm632, %v8960, 0.0
        %8964 = vadd.xlane.f32.xlu0 %v8963
        %v8965 = vpop.xlane.xlu0 %8964
        %v8966 = vmul.f32 %v8965, %v7354
        %v8967 = vsub.f32 %v8960, %v8966
        %v8968 = vmul.f32 %v8967, %v8967
        %v8969 = vsel %vm632, %v8968, 0.0
        %8970 = vadd.xlane.f32.xlu0 %v8969
        %v8971 = vpop.xlane.xlu0 %8970
        %v8972 = vmul.f32 %v8971, %v7354
        %v8973 = vadd.f32 %v8972, 1e-05
        %v8974 = vrsqrt.pop %v8973
        %v8975 = vmul.f32 %v8967, %v8974
        %v8977 = vlaneseq
        %v8978 = vshrl.u32 %v8977, 7
        %v8979 = vsub.s32 0, %v8978
        %v8980 = vrot.slane %v8961, %v8979
        %v8982 = vmul.f32 %v8975, %v8980
        %v8984 = vlaneseq
        %v8985 = vshrl.u32 %v8984, 7
        %v8986 = vsub.s32 0, %v8985
        %v8987 = vrot.slane %v8962, %v8986
        %v8989 = vadd.f32 %v8982, %v8987
        %v8990 = vld [vmem:[%s16] sm:$0xff]
        %v8991 = vld [vmem:[%s16 + $0x8] sm:$0xff]
        %v8992 = vld [vmem:[%s16 + $0x10] sm:$0xff]
        %v8993 = vld [vmem:[%s16 + $0x18] sm:$0xff]
        %v8994 = vld [vmem:[%s16 + $0x20] sm:$0xff]
        %v8995 = vld [vmem:[%s16 + $0x28] sm:$0xff]
        %v8996 = vld [vmem:[%s16 + $0x30] sm:$0xff]
        %v8997 = vld [vmem:[%s16 + $0x38] sm:$0xff]
        %v8999 = vsel %vm632, %v8989, 0
        %9001 = vmatprep.subr.mxu0 0.0
        %9002 = vmatpush1.msra.mxu0 0.0
        %9003 = vmatprep.subr.mxu0 0.0
        %9004 = vmatpush1.msra.mxu0 0.0
        %9005 = vmatprep.subr.mxu0 0.0
        %9006 = vmatpush1.msra.mxu0 0.0
        %9007 = vmatprep.subr.mxu0 0.0
        %9008 = vmatpush1.msra.mxu0 0.0
        %9009 = vmatprep.subr.mxu0 0.0
        %9010 = vmatpush1.msra.mxu0 0.0
        %9011 = vmatprep.subr.mxu0 0.0
        %9012 = vmatpush1.msra.mxu0 0.0
        %9013 = vmatprep.subr.mxu0 0.0
        %9014 = vmatpush1.msra.mxu0 0.0
        %9015 = vmatprep.subr.mxu0 0.0
        %9016 = vmatpush1.msra.mxu0 0.0
        %9017 = vmatprep.subr.mxu0 0.0
        %v9018 = vand.u32 %v8997, 4294901760
        %9019 = vmatpush1.msra.mxu0 %v9018
        %9020 = vmatprep.subr.mxu0 0.0
        %v9021 = vand.u32 %v8996, 4294901760
        %9022 = vmatpush1.msra.mxu0 %v9021
        %9023 = vmatprep.subr.mxu0 0.0
        %v9024 = vand.u32 %v8995, 4294901760
        %9025 = vmatpush1.msra.mxu0 %v9024
        %9026 = vmatprep.subr.mxu0 0.0
        %v9027 = vand.u32 %v8994, 4294901760
        %9028 = vmatpush1.msra.mxu0 %v9027
        %9029 = vmatprep.subr.mxu0 0.0
        %v9030 = vand.u32 %v8993, 4294901760
        %9031 = vmatpush1.msra.mxu0 %v9030
        %9032 = vmatprep.subr.mxu0 0.0
        %v9033 = vand.u32 %v8992, 4294901760
        %9034 = vmatpush1.msra.mxu0 %v9033
        %9035 = vmatprep.subr.mxu0 0.0
        %v9036 = vand.u32 %v8991, 4294901760
        %9037 = vmatpush1.msra.mxu0 %v9036
        %9038 = vmatprep.subr.mxu0 0.0
        %v9039 = vand.u32 %v8990, 4294901760
        %9040 = vmatpush1.msra.mxu0 %v9039
        %9041 = vmatprep.subr.mxu0 0.0
        %9042 = vmatpush2.msra.mxu0 0.0
        %9043 = vmatprep.subr.mxu0 0.0
        %9044 = vmatpush2.msra.mxu0 0.0
        %9045 = vmatprep.subr.mxu0 0.0
        %9046 = vmatpush2.msra.mxu0 0.0
        %9047 = vmatprep.subr.mxu0 0.0
        %9048 = vmatpush2.msra.mxu0 0.0
        %9049 = vmatprep.subr.mxu0 0.0
        %9050 = vmatpush2.msra.mxu0 0.0
        %9051 = vmatprep.subr.mxu0 0.0
        %9052 = vmatpush2.msra.mxu0 0.0
        %9053 = vmatprep.subr.mxu0 0.0
        %9054 = vmatpush2.msra.mxu0 0.0
        %9055 = vmatprep.subr.mxu0 0.0
        %9056 = vmatpush2.msra.mxu0 0.0
        %9057 = vmatprep.subr.mxu0 0.0
        %9058 = vmatpush2.msra.mxu0 0.0
        %9059 = vmatprep.subr.mxu0 0.0
        %9060 = vmatpush2.msra.mxu0 0.0
        %9061 = vmatprep.subr.mxu0 0.0
        %9062 = vmatpush2.msra.mxu0 0.0
        %9063 = vmatprep.subr.mxu0 0.0
        %9064 = vmatpush2.msra.mxu0 0.0
        %9065 = vmatprep.subr.mxu0 0.0
        %9066 = vmatpush2.msra.mxu0 0.0
        %9067 = vmatprep.subr.mxu0 0.0
        %9068 = vmatpush2.msra.mxu0 0.0
        %9069 = vmatprep.subr.mxu0 0.0
        %9070 = vmatpush2.msra.mxu0 0.0
        %9071 = vmatprep.subr.mxu0 0.0
        %9072 = vmatpush2.msra.mxu0 0.0
        %9073 = vmatprep.mubr.f32.mxu0 0.0
        %v9074 = vand.u32 %v8999, 4294901760
        %v9075 = vsub.f32 %v8999, %v9074
        %v9076 = vand.u32 %v9075, 4294901760
        %v9077 = vsub.f32 %v9075, %v9076
        %v9078 = vand.u32 %v9077, 4294901760
        %9079 = vmatmul.mubr.f32.gmra.mxu0 %v9078
        %v9080 = vpop.f32.mrf.mxu0
        %v9081 = vadd.f32 0.0, %v9080
        %v9082 = vpop.f32.mrf.mxu0
        %9083 = vdwg.mxu0
        %9084 = vmatprep.subr.mxu0 0.0
        %9085 = vmatpush1.msra.mxu0 0.0
        %9086 = vmatprep.subr.mxu0 0.0
        %9087 = vmatpush1.msra.mxu0 0.0
        %9088 = vmatprep.subr.mxu0 0.0
        %9089 = vmatpush1.msra.mxu0 0.0
        %9090 = vmatprep.subr.mxu0 0.0
        %9091 = vmatpush1.msra.mxu0 0.0
        %9092 = vmatprep.subr.mxu0 0.0
        %9093 = vmatpush1.msra.mxu0 0.0
        %9094 = vmatprep.subr.mxu0 0.0
        %9095 = vmatpush1.msra.mxu0 0.0
        %9096 = vmatprep.subr.mxu0 0.0
        %9097 = vmatpush1.msra.mxu0 0.0
        %9098 = vmatprep.subr.mxu0 0.0
        %9099 = vmatpush1.msra.mxu0 0.0
        %9100 = vmatprep.subr.mxu0 0.0
        %v9101 = vand.u32 %v8997, 4294901760
        %v9102 = vsub.f32 %v8997, %v9101
        %v9103 = vand.u32 %v9102, 4294901760
        %v9104 = vsub.f32 %v9102, %v9103
        %v9105 = vand.u32 %v9104, 4294901760
        %9106 = vmatpush1.msra.mxu0 %v9105
        %9107 = vmatprep.subr.mxu0 0.0
        %v9108 = vand.u32 %v8996, 4294901760
        %v9109 = vsub.f32 %v8996, %v9108
        %v9110 = vand.u32 %v9109, 4294901760
        %v9111 = vsub.f32 %v9109, %v9110
        %v9112 = vand.u32 %v9111, 4294901760
        %9113 = vmatpush1.msra.mxu0 %v9112
        %9114 = vmatprep.subr.mxu0 0.0
        %v9115 = vand.u32 %v8995, 4294901760
        %v9116 = vsub.f32 %v8995, %v9115
        %v9117 = vand.u32 %v9116, 4294901760
        %v9118 = vsub.f32 %v9116, %v9117
        %v9119 = vand.u32 %v9118, 4294901760
        %9120 = vmatpush1.msra.mxu0 %v9119
        %9121 = vmatprep.subr.mxu0 0.0
        %v9122 = vand.u32 %v8994, 4294901760
        %v9123 = vsub.f32 %v8994, %v9122
        %v9124 = vand.u32 %v9123, 4294901760
        %v9125 = vsub.f32 %v9123, %v9124
        %v9126 = vand.u32 %v9125, 4294901760
        %9127 = vmatpush1.msra.mxu0 %v9126
        %9128 = vmatprep.subr.mxu0 0.0
        %v9129 = vand.u32 %v8993, 4294901760
        %v9130 = vsub.f32 %v8993, %v9129
        %v9131 = vand.u32 %v9130, 4294901760
        %v9132 = vsub.f32 %v9130, %v9131
        %v9133 = vand.u32 %v9132, 4294901760
        %9134 = vmatpush1.msra.mxu0 %v9133
        %9135 = vmatprep.subr.mxu0 0.0
        %v9136 = vand.u32 %v8992, 4294901760
        %v9137 = vsub.f32 %v8992, %v9136
        %v9138 = vand.u32 %v9137, 4294901760
        %v9139 = vsub.f32 %v9137, %v9138
        %v9140 = vand.u32 %v9139, 4294901760
        %9141 = vmatpush1.msra.mxu0 %v9140
        %9142 = vmatprep.subr.mxu0 0.0
        %v9143 = vand.u32 %v8991, 4294901760
        %v9144 = vsub.f32 %v8991, %v9143
        %v9145 = vand.u32 %v9144, 4294901760
        %v9146 = vsub.f32 %v9144, %v9145
        %v9147 = vand.u32 %v9146, 4294901760
        %9148 = vmatpush1.msra.mxu0 %v9147
        %9149 = vmatprep.subr.mxu0 0.0
        %v9150 = vand.u32 %v8990, 4294901760
        %v9151 = vsub.f32 %v8990, %v9150
        %v9152 = vand.u32 %v9151, 4294901760
        %v9153 = vsub.f32 %v9151, %v9152
        %v9154 = vand.u32 %v9153, 4294901760
        %9155 = vmatpush1.msra.mxu0 %v9154
        %9156 = vmatprep.subr.mxu0 0.0
        %9157 = vmatpush2.msra.mxu0 0.0
        %9158 = vmatprep.subr.mxu0 0.0
        %9159 = vmatpush2.msra.mxu0 0.0
        %9160 = vmatprep.subr.mxu0 0.0
        %9161 = vmatpush2.msra.mxu0 0.0
        %9162 = vmatprep.subr.mxu0 0.0
        %9163 = vmatpush2.msra.mxu0 0.0
        %9164 = vmatprep.subr.mxu0 0.0
        %9165 = vmatpush2.msra.mxu0 0.0
        %9166 = vmatprep.subr.mxu0 0.0
        %9167 = vmatpush2.msra.mxu0 0.0
        %9168 = vmatprep.subr.mxu0 0.0
        %9169 = vmatpush2.msra.mxu0 0.0
        %9170 = vmatprep.subr.mxu0 0.0
        %9171 = vmatpush2.msra.mxu0 0.0
        %9172 = vmatprep.subr.mxu0 0.0
        %9173 = vmatpush2.msra.mxu0 0.0
        %9174 = vmatprep.subr.mxu0 0.0
        %9175 = vmatpush2.msra.mxu0 0.0
        %9176 = vmatprep.subr.mxu0 0.0
        %9177 = vmatpush2.msra.mxu0 0.0
        %9178 = vmatprep.subr.mxu0 0.0
        %9179 = vmatpush2.msra.mxu0 0.0
        %9180 = vmatprep.subr.mxu0 0.0
        %9181 = vmatpush2.msra.mxu0 0.0
        %9182 = vmatprep.subr.mxu0 0.0
        %9183 = vmatpush2.msra.mxu0 0.0
        %9184 = vmatprep.subr.mxu0 0.0
        %9185 = vmatpush2.msra.mxu0 0.0
        %9186 = vmatprep.subr.mxu0 0.0
        %9187 = vmatpush2.msra.mxu0 0.0
        %9188 = vmatprep.mubr.f32.mxu0 0.0
        %v9189 = vand.u32 %v8999, 4294901760
        %9190 = vmatmul.mubr.f32.gmra.mxu0 %v9189
        %v9191 = vpop.f32.mrf.mxu0
        %v9192 = vadd.f32 %v9081, %v9191
        %v9193 = vpop.f32.mrf.mxu0
        %9194 = vdwg.mxu0
        %9195 = vmatprep.subr.mxu0 0.0
        %9196 = vmatpush1.msra.mxu0 0.0
        %9197 = vmatprep.subr.mxu0 0.0
        %9198 = vmatpush1.msra.mxu0 0.0
        %9199 = vmatprep.subr.mxu0 0.0
        %9200 = vmatpush1.msra.mxu0 0.0
        %9201 = vmatprep.subr.mxu0 0.0
        %9202 = vmatpush1.msra.mxu0 0.0
        %9203 = vmatprep.subr.mxu0 0.0
        %9204 = vmatpush1.msra.mxu0 0.0
        %9205 = vmatprep.subr.mxu0 0.0
        %9206 = vmatpush1.msra.mxu0 0.0
        %9207 = vmatprep.subr.mxu0 0.0
        %9208 = vmatpush1.msra.mxu0 0.0
        %9209 = vmatprep.subr.mxu0 0.0
        %9210 = vmatpush1.msra.mxu0 0.0
        %9211 = vmatprep.subr.mxu0 0.0
        %v9212 = vand.u32 %v8997, 4294901760
        %v9213 = vsub.f32 %v8997, %v9212
        %9214 = vmatpush1.msra.mxu0 %v9213
        %9215 = vmatprep.subr.mxu0 0.0
        %v9216 = vand.u32 %v8996, 4294901760
        %v9217 = vsub.f32 %v8996, %v9216
        %9218 = vmatpush1.msra.mxu0 %v9217
        %9219 = vmatprep.subr.mxu0 0.0
        %v9220 = vand.u32 %v8995, 4294901760
        %v9221 = vsub.f32 %v8995, %v9220
        %9222 = vmatpush1.msra.mxu0 %v9221
        %9223 = vmatprep.subr.mxu0 0.0
        %v9224 = vand.u32 %v8994, 4294901760
        %v9225 = vsub.f32 %v8994, %v9224
        %9226 = vmatpush1.msra.mxu0 %v9225
        %9227 = vmatprep.subr.mxu0 0.0
        %v9228 = vand.u32 %v8993, 4294901760
        %v9229 = vsub.f32 %v8993, %v9228
        %9230 = vmatpush1.msra.mxu0 %v9229
        %9231 = vmatprep.subr.mxu0 0.0
        %v9232 = vand.u32 %v8992, 4294901760
        %v9233 = vsub.f32 %v8992, %v9232
        %9234 = vmatpush1.msra.mxu0 %v9233
        %9235 = vmatprep.subr.mxu0 0.0
        %v9236 = vand.u32 %v8991, 4294901760
        %v9237 = vsub.f32 %v8991, %v9236
        %9238 = vmatpush1.msra.mxu0 %v9237
        %9239 = vmatprep.subr.mxu0 0.0
        %v9240 = vand.u32 %v8990, 4294901760
        %v9241 = vsub.f32 %v8990, %v9240
        %9242 = vmatpush1.msra.mxu0 %v9241
        %9243 = vmatprep.subr.mxu0 0.0
        %9244 = vmatpush2.msra.mxu0 0.0
        %9245 = vmatprep.subr.mxu0 0.0
        %9246 = vmatpush2.msra.mxu0 0.0
        %9247 = vmatprep.subr.mxu0 0.0
        %9248 = vmatpush2.msra.mxu0 0.0
        %9249 = vmatprep.subr.mxu0 0.0
        %9250 = vmatpush2.msra.mxu0 0.0
        %9251 = vmatprep.subr.mxu0 0.0
        %9252 = vmatpush2.msra.mxu0 0.0
        %9253 = vmatprep.subr.mxu0 0.0
        %9254 = vmatpush2.msra.mxu0 0.0
        %9255 = vmatprep.subr.mxu0 0.0
        %9256 = vmatpush2.msra.mxu0 0.0
        %9257 = vmatprep.subr.mxu0 0.0
        %9258 = vmatpush2.msra.mxu0 0.0
        %9259 = vmatprep.subr.mxu0 0.0
        %9260 = vmatpush2.msra.mxu0 0.0
        %9261 = vmatprep.subr.mxu0 0.0
        %9262 = vmatpush2.msra.mxu0 0.0
        %9263 = vmatprep.subr.mxu0 0.0
        %9264 = vmatpush2.msra.mxu0 0.0
        %9265 = vmatprep.subr.mxu0 0.0
        %9266 = vmatpush2.msra.mxu0 0.0
        %9267 = vmatprep.subr.mxu0 0.0
        %9268 = vmatpush2.msra.mxu0 0.0
        %9269 = vmatprep.subr.mxu0 0.0
        %9270 = vmatpush2.msra.mxu0 0.0
        %9271 = vmatprep.subr.mxu0 0.0
        %9272 = vmatpush2.msra.mxu0 0.0
        %9273 = vmatprep.subr.mxu0 0.0
        %9274 = vmatpush2.msra.mxu0 0.0
        %9275 = vmatprep.mubr.f32.mxu0 0.0
        %v9276 = vand.u32 %v8999, 4294901760
        %v9277 = vsub.f32 %v8999, %v9276
        %9278 = vmatmul.mubr.f32.gmra.mxu0 %v9277
        %v9279 = vpop.f32.mrf.mxu0
        %v9280 = vadd.f32 %v9192, %v9279
        %v9281 = vpop.f32.mrf.mxu0
        %9282 = vdwg.mxu0
        %9283 = vmatprep.subr.mxu0 0.0
        %9284 = vmatpush1.msra.mxu0 0.0
        %9285 = vmatprep.subr.mxu0 0.0
        %9286 = vmatpush1.msra.mxu0 0.0
        %9287 = vmatprep.subr.mxu0 0.0
        %9288 = vmatpush1.msra.mxu0 0.0
        %9289 = vmatprep.subr.mxu0 0.0
        %9290 = vmatpush1.msra.mxu0 0.0
        %9291 = vmatprep.subr.mxu0 0.0
        %9292 = vmatpush1.msra.mxu0 0.0
        %9293 = vmatprep.subr.mxu0 0.0
        %9294 = vmatpush1.msra.mxu0 0.0
        %9295 = vmatprep.subr.mxu0 0.0
        %9296 = vmatpush1.msra.mxu0 0.0
        %9297 = vmatprep.subr.mxu0 0.0
        %9298 = vmatpush1.msra.mxu0 0.0
        %9299 = vmatprep.subr.mxu0 0.0
        %v9300 = vand.u32 %v8997, 4294901760
        %9301 = vmatpush1.msra.mxu0 %v9300
        %9302 = vmatprep.subr.mxu0 0.0
        %v9303 = vand.u32 %v8996, 4294901760
        %9304 = vmatpush1.msra.mxu0 %v9303
        %9305 = vmatprep.subr.mxu0 0.0
        %v9306 = vand.u32 %v8995, 4294901760
        %9307 = vmatpush1.msra.mxu0 %v9306
        %9308 = vmatprep.subr.mxu0 0.0
        %v9309 = vand.u32 %v8994, 4294901760
        %9310 = vmatpush1.msra.mxu0 %v9309
        %9311 = vmatprep.subr.mxu0 0.0
        %v9312 = vand.u32 %v8993, 4294901760
        %9313 = vmatpush1.msra.mxu0 %v9312
        %9314 = vmatprep.subr.mxu0 0.0
        %v9315 = vand.u32 %v8992, 4294901760
        %9316 = vmatpush1.msra.mxu0 %v9315
        %9317 = vmatprep.subr.mxu0 0.0
        %v9318 = vand.u32 %v8991, 4294901760
        %9319 = vmatpush1.msra.mxu0 %v9318
        %9320 = vmatprep.subr.mxu0 0.0
        %v9321 = vand.u32 %v8990, 4294901760
        %9322 = vmatpush1.msra.mxu0 %v9321
        %9323 = vmatprep.subr.mxu0 0.0
        %9324 = vmatpush2.msra.mxu0 0.0
        %9325 = vmatprep.subr.mxu0 0.0
        %9326 = vmatpush2.msra.mxu0 0.0
        %9327 = vmatprep.subr.mxu0 0.0
        %9328 = vmatpush2.msra.mxu0 0.0
        %9329 = vmatprep.subr.mxu0 0.0
        %9330 = vmatpush2.msra.mxu0 0.0
        %9331 = vmatprep.subr.mxu0 0.0
        %9332 = vmatpush2.msra.mxu0 0.0
        %9333 = vmatprep.subr.mxu0 0.0
        %9334 = vmatpush2.msra.mxu0 0.0
        %9335 = vmatprep.subr.mxu0 0.0
        %9336 = vmatpush2.msra.mxu0 0.0
        %9337 = vmatprep.subr.mxu0 0.0
        %9338 = vmatpush2.msra.mxu0 0.0
        %9339 = vmatprep.subr.mxu0 0.0
        %9340 = vmatpush2.msra.mxu0 0.0
        %9341 = vmatprep.subr.mxu0 0.0
        %9342 = vmatpush2.msra.mxu0 0.0
        %9343 = vmatprep.subr.mxu0 0.0
        %9344 = vmatpush2.msra.mxu0 0.0
        %9345 = vmatprep.subr.mxu0 0.0
        %9346 = vmatpush2.msra.mxu0 0.0
        %9347 = vmatprep.subr.mxu0 0.0
        %9348 = vmatpush2.msra.mxu0 0.0
        %9349 = vmatprep.subr.mxu0 0.0
        %9350 = vmatpush2.msra.mxu0 0.0
        %9351 = vmatprep.subr.mxu0 0.0
        %9352 = vmatpush2.msra.mxu0 0.0
        %9353 = vmatprep.subr.mxu0 0.0
        %9354 = vmatpush2.msra.mxu0 0.0
        %9355 = vmatprep.mubr.f32.mxu0 0.0
        %v9356 = vand.u32 %v8999, 4294901760
        %v9357 = vsub.f32 %v8999, %v9356
        %v9358 = vand.u32 %v9357, 4294901760
        %9359 = vmatmul.mubr.f32.gmra.mxu0 %v9358
        %v9360 = vpop.f32.mrf.mxu0
        %v9361 = vadd.f32 %v9280, %v9360
        %v9362 = vpop.f32.mrf.mxu0
        %9363 = vdwg.mxu0
        %9364 = vmatprep.subr.mxu0 0.0
        %9365 = vmatpush1.msra.mxu0 0.0
        %9366 = vmatprep.subr.mxu0 0.0
        %9367 = vmatpush1.msra.mxu0 0.0
        %9368 = vmatprep.subr.mxu0 0.0
        %9369 = vmatpush1.msra.mxu0 0.0
        %9370 = vmatprep.subr.mxu0 0.0
        %9371 = vmatpush1.msra.mxu0 0.0
        %9372 = vmatprep.subr.mxu0 0.0
        %9373 = vmatpush1.msra.mxu0 0.0
        %9374 = vmatprep.subr.mxu0 0.0
        %9375 = vmatpush1.msra.mxu0 0.0
        %9376 = vmatprep.subr.mxu0 0.0
        %9377 = vmatpush1.msra.mxu0 0.0
        %9378 = vmatprep.subr.mxu0 0.0
        %9379 = vmatpush1.msra.mxu0 0.0
        %9380 = vmatprep.subr.mxu0 0.0
        %v9381 = vand.u32 %v8997, 4294901760
        %v9382 = vsub.f32 %v8997, %v9381
        %v9383 = vand.u32 %v9382, 4294901760
        %9384 = vmatpush1.msra.mxu0 %v9383
        %9385 = vmatprep.subr.mxu0 0.0
        %v9386 = vand.u32 %v8996, 4294901760
        %v9387 = vsub.f32 %v8996, %v9386
        %v9388 = vand.u32 %v9387, 4294901760
        %9389 = vmatpush1.msra.mxu0 %v9388
        %9390 = vmatprep.subr.mxu0 0.0
        %v9391 = vand.u32 %v8995, 4294901760
        %v9392 = vsub.f32 %v8995, %v9391
        %v9393 = vand.u32 %v9392, 4294901760
        %9394 = vmatpush1.msra.mxu0 %v9393
        %9395 = vmatprep.subr.mxu0 0.0
        %v9396 = vand.u32 %v8994, 4294901760
        %v9397 = vsub.f32 %v8994, %v9396
        %v9398 = vand.u32 %v9397, 4294901760
        %9399 = vmatpush1.msra.mxu0 %v9398
        %9400 = vmatprep.subr.mxu0 0.0
        %v9401 = vand.u32 %v8993, 4294901760
        %v9402 = vsub.f32 %v8993, %v9401
        %v9403 = vand.u32 %v9402, 4294901760
        %9404 = vmatpush1.msra.mxu0 %v9403
        %9405 = vmatprep.subr.mxu0 0.0
        %v9406 = vand.u32 %v8992, 4294901760
        %v9407 = vsub.f32 %v8992, %v9406
        %v9408 = vand.u32 %v9407, 4294901760
        %9409 = vmatpush1.msra.mxu0 %v9408
        %9410 = vmatprep.subr.mxu0 0.0
        %v9411 = vand.u32 %v8991, 4294901760
        %v9412 = vsub.f32 %v8991, %v9411
        %v9413 = vand.u32 %v9412, 4294901760
        %9414 = vmatpush1.msra.mxu0 %v9413
        %9415 = vmatprep.subr.mxu0 0.0
        %v9416 = vand.u32 %v8990, 4294901760
        %v9417 = vsub.f32 %v8990, %v9416
        %v9418 = vand.u32 %v9417, 4294901760
        %9419 = vmatpush1.msra.mxu0 %v9418
        %9420 = vmatprep.subr.mxu0 0.0
        %9421 = vmatpush2.msra.mxu0 0.0
        %9422 = vmatprep.subr.mxu0 0.0
        %9423 = vmatpush2.msra.mxu0 0.0
        %9424 = vmatprep.subr.mxu0 0.0
        %9425 = vmatpush2.msra.mxu0 0.0
        %9426 = vmatprep.subr.mxu0 0.0
        %9427 = vmatpush2.msra.mxu0 0.0
        %9428 = vmatprep.subr.mxu0 0.0
        %9429 = vmatpush2.msra.mxu0 0.0
        %9430 = vmatprep.subr.mxu0 0.0
        %9431 = vmatpush2.msra.mxu0 0.0
        %9432 = vmatprep.subr.mxu0 0.0
        %9433 = vmatpush2.msra.mxu0 0.0
        %9434 = vmatprep.subr.mxu0 0.0
        %9435 = vmatpush2.msra.mxu0 0.0
        %9436 = vmatprep.subr.mxu0 0.0
        %9437 = vmatpush2.msra.mxu0 0.0
        %9438 = vmatprep.subr.mxu0 0.0
        %9439 = vmatpush2.msra.mxu0 0.0
        %9440 = vmatprep.subr.mxu0 0.0
        %9441 = vmatpush2.msra.mxu0 0.0
        %9442 = vmatprep.subr.mxu0 0.0
        %9443 = vmatpush2.msra.mxu0 0.0
        %9444 = vmatprep.subr.mxu0 0.0
        %9445 = vmatpush2.msra.mxu0 0.0
        %9446 = vmatprep.subr.mxu0 0.0
        %9447 = vmatpush2.msra.mxu0 0.0
        %9448 = vmatprep.subr.mxu0 0.0
        %9449 = vmatpush2.msra.mxu0 0.0
        %9450 = vmatprep.subr.mxu0 0.0
        %9451 = vmatpush2.msra.mxu0 0.0
        %9452 = vmatprep.mubr.f32.mxu0 0.0
        %v9453 = vand.u32 %v8999, 4294901760
        %9454 = vmatmul.mubr.f32.gmra.mxu0 %v9453
        %v9455 = vpop.f32.mrf.mxu0
        %v9456 = vadd.f32 %v9361, %v9455
        %v9457 = vpop.f32.mrf.mxu0
        %9458 = vdwg.mxu0
        %9459 = vmatprep.subr.mxu0 0.0
        %9460 = vmatpush1.msra.mxu0 0.0
        %9461 = vmatprep.subr.mxu0 0.0
        %9462 = vmatpush1.msra.mxu0 0.0
        %9463 = vmatprep.subr.mxu0 0.0
        %9464 = vmatpush1.msra.mxu0 0.0
        %9465 = vmatprep.subr.mxu0 0.0
        %9466 = vmatpush1.msra.mxu0 0.0
        %9467 = vmatprep.subr.mxu0 0.0
        %9468 = vmatpush1.msra.mxu0 0.0
        %9469 = vmatprep.subr.mxu0 0.0
        %9470 = vmatpush1.msra.mxu0 0.0
        %9471 = vmatprep.subr.mxu0 0.0
        %9472 = vmatpush1.msra.mxu0 0.0
        %9473 = vmatprep.subr.mxu0 0.0
        %9474 = vmatpush1.msra.mxu0 0.0
        %9475 = vmatprep.subr.mxu0 0.0
        %v9476 = vand.u32 %v8997, 4294901760
        %9477 = vmatpush1.msra.mxu0 %v9476
        %9478 = vmatprep.subr.mxu0 0.0
        %v9479 = vand.u32 %v8996, 4294901760
        %9480 = vmatpush1.msra.mxu0 %v9479
        %9481 = vmatprep.subr.mxu0 0.0
        %v9482 = vand.u32 %v8995, 4294901760
        %9483 = vmatpush1.msra.mxu0 %v9482
        %9484 = vmatprep.subr.mxu0 0.0
        %v9485 = vand.u32 %v8994, 4294901760
        %9486 = vmatpush1.msra.mxu0 %v9485
        %9487 = vmatprep.subr.mxu0 0.0
        %v9488 = vand.u32 %v8993, 4294901760
        %9489 = vmatpush1.msra.mxu0 %v9488
        %9490 = vmatprep.subr.mxu0 0.0
        %v9491 = vand.u32 %v8992, 4294901760
        %9492 = vmatpush1.msra.mxu0 %v9491
        %9493 = vmatprep.subr.mxu0 0.0
        %v9494 = vand.u32 %v8991, 4294901760
        %9495 = vmatpush1.msra.mxu0 %v9494
        %9496 = vmatprep.subr.mxu0 0.0
        %v9497 = vand.u32 %v8990, 4294901760
        %9498 = vmatpush1.msra.mxu0 %v9497
        %9499 = vmatprep.subr.mxu0 0.0
        %9500 = vmatpush2.msra.mxu0 0.0
        %9501 = vmatprep.subr.mxu0 0.0
        %9502 = vmatpush2.msra.mxu0 0.0
        %9503 = vmatprep.subr.mxu0 0.0
        %9504 = vmatpush2.msra.mxu0 0.0
        %9505 = vmatprep.subr.mxu0 0.0
        %9506 = vmatpush2.msra.mxu0 0.0
        %9507 = vmatprep.subr.mxu0 0.0
        %9508 = vmatpush2.msra.mxu0 0.0
        %9509 = vmatprep.subr.mxu0 0.0
        %9510 = vmatpush2.msra.mxu0 0.0
        %9511 = vmatprep.subr.mxu0 0.0
        %9512 = vmatpush2.msra.mxu0 0.0
        %9513 = vmatprep.subr.mxu0 0.0
        %9514 = vmatpush2.msra.mxu0 0.0
        %9515 = vmatprep.subr.mxu0 0.0
        %9516 = vmatpush2.msra.mxu0 0.0
        %9517 = vmatprep.subr.mxu0 0.0
        %9518 = vmatpush2.msra.mxu0 0.0
        %9519 = vmatprep.subr.mxu0 0.0
        %9520 = vmatpush2.msra.mxu0 0.0
        %9521 = vmatprep.subr.mxu0 0.0
        %9522 = vmatpush2.msra.mxu0 0.0
        %9523 = vmatprep.subr.mxu0 0.0
        %9524 = vmatpush2.msra.mxu0 0.0
        %9525 = vmatprep.subr.mxu0 0.0
        %9526 = vmatpush2.msra.mxu0 0.0
        %9527 = vmatprep.subr.mxu0 0.0
        %9528 = vmatpush2.msra.mxu0 0.0
        %9529 = vmatprep.subr.mxu0 0.0
        %9530 = vmatpush2.msra.mxu0 0.0
        %9531 = vmatprep.mubr.f32.mxu0 0.0
        %v9532 = vand.u32 %v8999, 4294901760
        %9533 = vmatmul.mubr.f32.gmra.mxu0 %v9532
        %v9534 = vpop.f32.mrf.mxu0
        %v9535 = vadd.f32 %v9456, %v9534
        %v9536 = vpop.f32.mrf.mxu0
        %9537 = vdwg.mxu0
        %v9538 = vld [vmem:[%s17] sm:$0xff]
        %v9539 = vmul.f32 %v9535, %v9538
        %v9540 = vrot.slane %v9539, 4
        %v9541 = vadd.f32 %v9539, %v9540
        %v9542 = vrot.slane %v9541, 2
        %v9543 = vadd.f32 %v9541, %v9542
        %v9544 = vrot.slane %v9543, 1
        %v9545 = vadd.f32 %v9543, %v9544
        %v9546 = vld [vmem:[%s18] sm:$0x1]
        %v9547 = vadd.f32 %v9545, %v9546
        %9548 = vst [vmem:[%s609] sm:$0x1] %v9547
        %s9549 = sand.u32 %s446, 1
        %s9550 = scalar_lea.sflag [#allocation4], %s9549
        %s9551 = sand.u32 %s446, 1
        %s9552 = scalar_lea.vmem [#allocation5], %s9551
        // Predicated region
        $region101: #{ml_decoder_forward.1} parent=95 // pred_check
          %p9553 = pneg %p456
        $region102: #{ml_decoder_forward.1} parent=95 // pred_check_branch
          %9555 = sbr.rel (%p9553) target = $region104
        $region103: #{ml_decoder_forward.1} parent=95 // pred_region
          %s9557 = ssub.s32 16, 16
          %9558 = vsyncadd %s9550, %s9557
          %s9559 = smul.addr %s34, 16
          %s9560 = scalar_lea.hbm %s19, %s9559
          %s9562 = sshll.u32 %s9552, 4
          %s9563 = int_to_ptr.vmem [resolvable:$true] %s9562
          %9565 = dma.vmem_to_hbm [thread:$0]  %s9563, 16, %s9560, %s9550
        $region104: #{ml_decoder_forward.1} parent=95 // pred_fallthru
          _
      $region96: #{ml_decoder_forward.1} parent=5 // pred_fallthru
        _
      %p9566 = scmp.le.s32.totalorder 2, %s29
      // Predicated region
      $region105: #{ml_decoder_forward.1} parent=5 // pred_check
        %p9567 = pneg %p9566
      $region106: #{ml_decoder_forward.1} parent=5 // pred_check_branch
        %9569 = sbr.rel (%p9567) target = $region108
      $region107: #{ml_decoder_forward.1} parent=5 // pred_region
        %s9570 = ssub.s32 %s29, 2
        // Predicated region
        $region109: #{ml_decoder_forward.1} parent=107 // pred_check
          %p9571 = pneg %p462
        $region110: #{ml_decoder_forward.1} parent=107 // pred_check_branch
          %9573 = sbr.rel (%p9571) target = $region112
        $region111: #{ml_decoder_forward.1} parent=107 // pred_region
          %s9574 = sand.u32 %s447, 1
          %s9575 = scalar_lea.sflag [#allocation4], %s9574
          %s9576 = sand.u32 %s447, 1
          %s9577 = scalar_lea.vmem [#allocation5], %s9576
          %9578 = dma.done %s9575, 16
        $region112: #{ml_decoder_forward.1} parent=107 // pred_fallthru
          _
      $region108: #{ml_decoder_forward.1} parent=5 // pred_fallthru
        _
    $region6: #{ml_decoder_forward.1} parent=1 // loop_footer
      %s33 = sadd.s32 1, %s29
    $region7: #{ml_decoder_forward.1} parent=1 // loop_footer_branch
      %28 = sbr.rel target = $region3
    $region8: #{ml_decoder_forward.1} parent=1 // loop_exit
      _
    %9579 = vsyncpa [#allocation3], 1
    %s9580 = scalar_lea.sflag [#allocation3], 1
    %9581 = vsyncpa %s9580, 1
    %9582 = vsyncpa [#allocation4], 1
    %s9583 = scalar_lea.sflag [#allocation4], 1
    %9584 = vsyncpa %s9583, 1

</llo_original>
